<compile_context>
chip_gen: v7x
topology: tpu7x:2x2x1
jax: 0.10.0
libtpu: 0.0.40
codegen_flags: <defaults>
</compile_context>

<pallas_src>
import functools

import numpy as np

import jax
import jax.numpy as jnp
from jax.experimental import pallas as pl
from jax.experimental.pallas import tpu as pltpu

EPS = 1e-5

_VMEM = functools.partial(pl.BlockSpec, memory_space=pltpu.MemorySpace.VMEM)


# ---------------------------------------------------------------------------
# Constant matrices (built once, at trace time, from static shapes) that let
# pooling / the conv2 row-gather / run as plain MXU matmuls inside the kernel.
# ---------------------------------------------------------------------------
def _make_pool_matrix(n, h, w, position_major=False):
    """(M_out, M_in) matrix performing AvgPool2d(2,2) on row-flattened
    (n, h, w) spatial positions (channels stay on the lane axis).
    position_major=True orders output rows (spatial_pos, sample)."""
    ho, wo = h // 2, w // 2
    P = np.zeros((n * ho * wo, n * h * w), np.float32)
    for b in range(n):
        for i in range(ho):
            for j in range(wo):
                if position_major:
                    r = (i * wo + j) * n + b
                else:
                    r = b * ho * wo + i * wo + j
                for di in range(2):
                    for dj in range(2):
                        P[r, b * h * w + (2 * i + di) * w + (2 * j + dj)] = 0.25
    return jnp.asarray(P)


def _make_conv_gather_matrix(n, h_in, w_in, k=5):
    """0/1 row-selection matrix performing the im2col row gather for a valid
    kxk conv on an (n*h_in*w_in, C) row-flattened activation.  Output rows are
    k*k blocks (one per kernel offset) of n*h_out*w_out rows each."""
    h_out, w_out = h_in - k + 1, w_in - k + 1
    m_out = n * h_out * w_out
    S = np.zeros((k * k * m_out, n * h_in * w_in), np.float32)
    for dy in range(k):
        for dx in range(k):
            kk = dy * k + dx
            for b in range(n):
                for y in range(h_out):
                    for x in range(w_out):
                        r = kk * m_out + b * h_out * w_out + y * w_out + x
                        c = b * h_in * w_in + (y + dy) * w_in + (x + dx)
                        S[r, c] = 1.0
    return jnp.asarray(S)


# ---------------------------------------------------------------------------
# The single fused kernel: whole BNLeNet forward, all intermediates in VMEM.
# ---------------------------------------------------------------------------
def _bn_lenet_kernel(x_ref, w1_ref, g1_ref, be1_ref, p1_ref,
                     s2_ref, w2_ref, g2_ref, be2_ref, p2_ref,
                     w3_ref, g3_ref, be3_ref,
                     w4_ref, g4_ref, be4_ref,
                     w5_ref, b5_ref, o_ref):
    f32 = jnp.float32
    n, hp, wp, cin = x_ref.shape
    h1, w1 = hp - 4, wp - 4            # conv1 output spatial (k=5, pad=2)
    m1 = n * h1 * w1                   # conv1 output rows
    m2 = p2_ref.shape[1]               # conv2 output rows = n*h2*w2
    npos = w3_ref.shape[0]             # pooled-2 spatial positions per sample

    def bn_relu(y, g_ref, b_ref):
        # Training-mode BatchNorm: batch stats, biased variance (one pass:
        # var = E[x^2] - mean^2), eps=1e-5, affine, then ReLU.
        mean = jnp.mean(y, axis=0, keepdims=True)
        var = jnp.maximum(jnp.mean(y * y, axis=0, keepdims=True) - mean * mean, 0.0)
        y = (y - mean) * jax.lax.rsqrt(var + EPS)
        return jnp.maximum(y * g_ref[...] + b_ref[...], 0.0)

    # ---- stage 1: Conv2d(6, k=5, pad=2) + BN2d + ReLU + AvgPool2d(2,2) ------
    # im2col inside the kernel: 25 static window slices of the VMEM-resident
    # padded input, lane-concatenated into one (M1, 25*Cin) patch matrix so the
    # conv is one lane-dense MXU matmul.  Conv bias is omitted: it is cancelled
    # exactly by the BN mean subtraction.
    cols1 = [x_ref[:, dy:dy + h1, dx:dx + w1, :].reshape(m1, cin)
             for dy in range(5) for dx in range(5)]
    patches1 = jnp.concatenate(cols1, axis=-1)                        # (M1, 25*Cin)
    y1 = bn_relu(jnp.dot(patches1, w1_ref[...], preferred_element_type=f32),
                 g1_ref, be1_ref)                                     # (M1, C1)
    pooled1 = jnp.dot(p1_ref[...], y1, preferred_element_type=f32)    # (M1p, C1)

    # ---- stage 2: Conv2d(16, k=5) + BN2d + ReLU + AvgPool2d(2,2) ------------
    # conv2's im2col is a row-gather of the tiny pooled map, expressed as one
    # 0/1 selection matmul; the 25 per-offset row blocks are lane-concatenated
    # into a (M2, 25*C1) patch matrix -> again a single MXU matmul.
    gathered = jnp.dot(s2_ref[...], pooled1, preferred_element_type=f32)   # (25*M2, C1)
    cols2 = [gathered[kk * m2:(kk + 1) * m2, :] for kk in range(25)]
    patches2 = jnp.concatenate(cols2, axis=-1)                        # (M2, 25*C1)
    y2 = bn_relu(jnp.dot(patches2, w2_ref[...], preferred_element_type=f32),
                 g2_ref, be2_ref)                                     # (M2, C2)
    pooled2 = jnp.dot(p2_ref[...], y2, preferred_element_type=f32)    # (npos*n, C2)

    # ---- classifier: Flatten + FC(120)+BN+ReLU + FC(84)+BN+ReLU + FC(cls) ---
    # nn.Flatten's NCHW ordering is folded into per-spatial-position fc1 weight
    # blocks (pooled2 rows are position-major), so no activation transpose.
    acc = jnp.zeros((n, w3_ref.shape[2]), f32)
    for m in range(npos):
        acc = acc + jnp.dot(pooled2[m * n:(m + 1) * n, :], w3_ref[m],
                            preferred_element_type=f32)
    y3 = bn_relu(acc, g3_ref, be3_ref)
    y4 = bn_relu(jnp.dot(y3, w4_ref[...], preferred_element_type=f32),
                 g4_ref, be4_ref)
    o_ref[...] = (jnp.dot(y4, w5_ref[...], preferred_element_type=f32)
                  + b5_ref[...])


# ---------------------------------------------------------------------------
# Wrapper: one-time layout prep on the input/parameters, then one pallas_call.
# ---------------------------------------------------------------------------
def bn_lenet_forward(x_nchw, params):
    n, c_in, h, w = x_nchw.shape
    c1 = params["g1"].shape[0]          # 6
    c2 = params["g2"].shape[0]          # 16
    num_classes = params["w5"].shape[1]

    # Only the input and the parameters are touched outside the kernel.
    x = jnp.transpose(x_nchw, (0, 2, 3, 1)).astype(jnp.float32)     # NCHW -> NHWC
    x = jnp.pad(x, ((0, 0), (2, 2), (2, 2), (0, 0)))                # conv1 padding=2

    h1, w1 = h, w                       # conv1 out (k5, pad2)
    h1p, w1p = h1 // 2, w1 // 2         # after pool1
    h2, w2 = h1p - 4, w1p - 4           # conv2 out (k5, valid)
    h2p, w2p = h2 // 2, w2 // 2         # after pool2
    npos = h2p * w2p

    # Constant pooling / im2col-gather matrices (trace-time constants).
    p1 = _make_pool_matrix(n, h1, w1)                          # (n*h1p*w1p, n*h1*w1)
    s2 = _make_conv_gather_matrix(n, h1p, w1p)                 # (25*n*h2*w2, n*h1p*w1p)
    p2 = _make_pool_matrix(n, h2, w2, position_major=True)     # (npos*n, n*h2*w2)

    # Parameter reshuffles (pure layout, done once under jit).
    w1r = params["w1"].reshape(25 * c_in, c1)                  # (5,5,Cin,C1) -> (25*Cin, C1)
    w2r = params["w2"].reshape(25 * c1, c2)                    # (5,5,C1,C2)  -> (25*C1, C2)
    # fc1 weight is stored NCHW-flat (C2*npos, 120); regroup per spatial pos.
    w3r = params["w3"].reshape(c2, npos, -1).transpose(1, 0, 2)   # (npos, C2, 120)

    row = lambda v: v.reshape(1, -1)
    inputs = (
        x, w1r, row(params["g1"]), row(params["be1"]), p1,
        s2, w2r, row(params["g2"]), row(params["be2"]), p2,
        w3r, row(params["g3"]), row(params["be3"]),
        params["w4"], row(params["g4"]), row(params["be4"]),
        params["w5"], row(params["b5"]),
    )
    return pl.pallas_call(
        _bn_lenet_kernel,
        out_shape=jax.ShapeDtypeStruct((n, num_classes), jnp.float32),
        in_specs=[_VMEM() for _ in inputs],
        out_specs=_VMEM(),
    )(*inputs)


# ---------------------------------------------------------------------------
# Parameters (deterministic synthetic init, xavier-uniform scale).
# conv1/conv2/fc1/fc2 biases are not created: followed by training-mode BN
# they are mathematically cancelled (and nn.init.zeros_ zeroes them anyway).
# ---------------------------------------------------------------------------
def xavier(key, shape, fan_in, fan_out):
    bound = (6.0 / (fan_in + fan_out)) ** 0.5
    return jax.random.uniform(key, shape, jnp.float32, minval=-bound, maxval=bound)


def init_params(key, c_in, num_classes=10, flat_dim=64):
    k = jax.random.split(key, 5)
    p = {}
    p["w1"] = xavier(k[0], (5, 5, c_in, 6), c_in * 25, 6 * 25)     # conv1 (HWIO)
    p["g1"], p["be1"] = jnp.ones((6,), jnp.float32), jnp.zeros((6,), jnp.float32)
    p["w2"] = xavier(k[1], (5, 5, 6, 16), 6 * 25, 16 * 25)         # conv2 (HWIO)
    p["g2"], p["be2"] = jnp.ones((16,), jnp.float32), jnp.zeros((16,), jnp.float32)
    p["w3"] = xavier(k[2], (flat_dim, 120), flat_dim, 120)         # fc1 (NCHW-flat rows)
    p["g3"], p["be3"] = jnp.ones((120,), jnp.float32), jnp.zeros((120,), jnp.float32)
    p["w4"] = xavier(k[3], (120, 84), 120, 84)                     # fc2
    p["g4"], p["be4"] = jnp.ones((84,), jnp.float32), jnp.zeros((84,), jnp.float32)
    p["w5"] = xavier(k[4], (84, num_classes), 84, num_classes)     # fc3
    p["b5"] = jnp.zeros((num_classes,), jnp.float32)
    return p


if __name__ == "__main__":
    key = jax.random.PRNGKey(0)
    k_x, k_p = jax.random.split(key)

    # input: (N, C, H, W) = (2, 3, 16, 16)
    #   conv1 pad2 k5 -> 16x16 -> pool -> 8x8 -> conv2 k5 -> 4x4 -> pool -> 2x2
    #   flatten -> 16 * 2 * 2 = 64
    N, C, H, W = 2, 3, 16, 16
    x = jax.random.normal(k_x, (N, C, H, W), jnp.float32)

    flat_dim = 16 * (((H // 2) - 4) // 2) * (((W // 2) - 4) // 2)  # 64
    params = init_params(k_p, C, num_classes=10, flat_dim=flat_dim)

    out = jax.jit(bn_lenet_forward)(x, params)
    out = jax.block_until_ready(out)
    assert out.shape == (N, 10), out.shape
    assert bool(jnp.all(jnp.isfinite(out)))
    print("KERNEL_OK")
</pallas_src>

<mosaic_0001>
module attributes {stable_mosaic.version = 11 : i64} {
  func.func @_bn_lenet_kernel(%arg0: memref<2x20x20x3xf32, #tpu.memory_space<vmem>>, %arg1: memref<75x6xf32, #tpu.memory_space<vmem>>, %arg2: memref<1x6xf32, #tpu.memory_space<vmem>>, %arg3: memref<1x6xf32, #tpu.memory_space<vmem>>, %arg4: memref<128x512xf32, #tpu.memory_space<vmem>>, %arg5: memref<800x128xf32, #tpu.memory_space<vmem>>, %arg6: memref<150x16xf32, #tpu.memory_space<vmem>>, %arg7: memref<1x16xf32, #tpu.memory_space<vmem>>, %arg8: memref<1x16xf32, #tpu.memory_space<vmem>>, %arg9: memref<8x32xf32, #tpu.memory_space<vmem>>, %arg10: memref<4x16x120xf32, #tpu.memory_space<vmem>>, %arg11: memref<1x120xf32, #tpu.memory_space<vmem>>, %arg12: memref<1x120xf32, #tpu.memory_space<vmem>>, %arg13: memref<120x84xf32, #tpu.memory_space<vmem>>, %arg14: memref<1x84xf32, #tpu.memory_space<vmem>>, %arg15: memref<1x84xf32, #tpu.memory_space<vmem>>, %arg16: memref<84x10xf32, #tpu.memory_space<vmem>>, %arg17: memref<1x10xf32, #tpu.memory_space<vmem>>, %arg18: memref<2x10xf32, #tpu.memory_space<vmem>>) attributes {dimension_semantics = [], scalar_prefetch = 0 : i64, scratch_operands = 0 : i64, tpu.core_type = #tpu.core_type<tc>} {
    %c0 = arith.constant 0 : index
    %c0_0 = arith.constant 0 : index
    %c0_1 = arith.constant 0 : index
    %c0_2 = arith.constant 0 : index
    %0 = vector.load %arg0[%c0, %c0_0, %c0_1, %c0_2] : memref<2x20x20x3xf32, #tpu.memory_space<vmem>>, vector<2x16x16x3xf32>
    %1 = vector.shape_cast %0 : vector<2x16x16x3xf32> to vector<512x3xf32>
    %c0_3 = arith.constant 0 : index
    %c0_4 = arith.constant 0 : index
    %c1 = arith.constant 1 : index
    %c0_5 = arith.constant 0 : index
    %2 = vector.load %arg0[%c0_3, %c0_4, %c1, %c0_5] : memref<2x20x20x3xf32, #tpu.memory_space<vmem>>, vector<2x16x16x3xf32>
    %3 = vector.shape_cast %2 : vector<2x16x16x3xf32> to vector<512x3xf32>
    %c0_6 = arith.constant 0 : index
    %c0_7 = arith.constant 0 : index
    %c2 = arith.constant 2 : index
    %c0_8 = arith.constant 0 : index
    %4 = vector.load %arg0[%c0_6, %c0_7, %c2, %c0_8] : memref<2x20x20x3xf32, #tpu.memory_space<vmem>>, vector<2x16x16x3xf32>
    %5 = vector.shape_cast %4 : vector<2x16x16x3xf32> to vector<512x3xf32>
    %c0_9 = arith.constant 0 : index
    %c0_10 = arith.constant 0 : index
    %c3 = arith.constant 3 : index
    %c0_11 = arith.constant 0 : index
    %6 = vector.load %arg0[%c0_9, %c0_10, %c3, %c0_11] : memref<2x20x20x3xf32, #tpu.memory_space<vmem>>, vector<2x16x16x3xf32>
    %7 = vector.shape_cast %6 : vector<2x16x16x3xf32> to vector<512x3xf32>
    %c0_12 = arith.constant 0 : index
    %c0_13 = arith.constant 0 : index
    %c4 = arith.constant 4 : index
    %c0_14 = arith.constant 0 : index
    %8 = vector.load %arg0[%c0_12, %c0_13, %c4, %c0_14] : memref<2x20x20x3xf32, #tpu.memory_space<vmem>>, vector<2x16x16x3xf32>
    %9 = vector.shape_cast %8 : vector<2x16x16x3xf32> to vector<512x3xf32>
    %c0_15 = arith.constant 0 : index
    %c1_16 = arith.constant 1 : index
    %c0_17 = arith.constant 0 : index
    %c0_18 = arith.constant 0 : index
    %10 = vector.load %arg0[%c0_15, %c1_16, %c0_17, %c0_18] : memref<2x20x20x3xf32, #tpu.memory_space<vmem>>, vector<2x16x16x3xf32>
    %11 = vector.shape_cast %10 : vector<2x16x16x3xf32> to vector<512x3xf32>
    %c0_19 = arith.constant 0 : index
    %c1_20 = arith.constant 1 : index
    %c1_21 = arith.constant 1 : index
    %c0_22 = arith.constant 0 : index
    %12 = vector.load %arg0[%c0_19, %c1_20, %c1_21, %c0_22] : memref<2x20x20x3xf32, #tpu.memory_space<vmem>>, vector<2x16x16x3xf32>
    %13 = vector.shape_cast %12 : vector<2x16x16x3xf32> to vector<512x3xf32>
    %c0_23 = arith.constant 0 : index
    %c1_24 = arith.constant 1 : index
    %c2_25 = arith.constant 2 : index
    %c0_26 = arith.constant 0 : index
    %14 = vector.load %arg0[%c0_23, %c1_24, %c2_25, %c0_26] : memref<2x20x20x3xf32, #tpu.memory_space<vmem>>, vector<2x16x16x3xf32>
    %15 = vector.shape_cast %14 : vector<2x16x16x3xf32> to vector<512x3xf32>
    %c0_27 = arith.constant 0 : index
    %c1_28 = arith.constant 1 : index
    %c3_29 = arith.constant 3 : index
    %c0_30 = arith.constant 0 : index
    %16 = vector.load %arg0[%c0_27, %c1_28, %c3_29, %c0_30] : memref<2x20x20x3xf32, #tpu.memory_space<vmem>>, vector<2x16x16x3xf32>
    %17 = vector.shape_cast %16 : vector<2x16x16x3xf32> to vector<512x3xf32>
    %c0_31 = arith.constant 0 : index
    %c1_32 = arith.constant 1 : index
    %c4_33 = arith.constant 4 : index
    %c0_34 = arith.constant 0 : index
    %18 = vector.load %arg0[%c0_31, %c1_32, %c4_33, %c0_34] : memref<2x20x20x3xf32, #tpu.memory_space<vmem>>, vector<2x16x16x3xf32>
    %19 = vector.shape_cast %18 : vector<2x16x16x3xf32> to vector<512x3xf32>
    %c0_35 = arith.constant 0 : index
    %c2_36 = arith.constant 2 : index
    %c0_37 = arith.constant 0 : index
    %c0_38 = arith.constant 0 : index
    %20 = vector.load %arg0[%c0_35, %c2_36, %c0_37, %c0_38] : memref<2x20x20x3xf32, #tpu.memory_space<vmem>>, vector<2x16x16x3xf32>
    %21 = vector.shape_cast %20 : vector<2x16x16x3xf32> to vector<512x3xf32>
    %c0_39 = arith.constant 0 : index
    %c2_40 = arith.constant 2 : index
    %c1_41 = arith.constant 1 : index
    %c0_42 = arith.constant 0 : index
    %22 = vector.load %arg0[%c0_39, %c2_40, %c1_41, %c0_42] : memref<2x20x20x3xf32, #tpu.memory_space<vmem>>, vector<2x16x16x3xf32>
    %23 = vector.shape_cast %22 : vector<2x16x16x3xf32> to vector<512x3xf32>
    %c0_43 = arith.constant 0 : index
    %c2_44 = arith.constant 2 : index
    %c2_45 = arith.constant 2 : index
    %c0_46 = arith.constant 0 : index
    %24 = vector.load %arg0[%c0_43, %c2_44, %c2_45, %c0_46] : memref<2x20x20x3xf32, #tpu.memory_space<vmem>>, vector<2x16x16x3xf32>
    %25 = vector.shape_cast %24 : vector<2x16x16x3xf32> to vector<512x3xf32>
    %c0_47 = arith.constant 0 : index
    %c2_48 = arith.constant 2 : index
    %c3_49 = arith.constant 3 : index
    %c0_50 = arith.constant 0 : index
    %26 = vector.load %arg0[%c0_47, %c2_48, %c3_49, %c0_50] : memref<2x20x20x3xf32, #tpu.memory_space<vmem>>, vector<2x16x16x3xf32>
    %27 = vector.shape_cast %26 : vector<2x16x16x3xf32> to vector<512x3xf32>
    %c0_51 = arith.constant 0 : index
    %c2_52 = arith.constant 2 : index
    %c4_53 = arith.constant 4 : index
    %c0_54 = arith.constant 0 : index
    %28 = vector.load %arg0[%c0_51, %c2_52, %c4_53, %c0_54] : memref<2x20x20x3xf32, #tpu.memory_space<vmem>>, vector<2x16x16x3xf32>
    %29 = vector.shape_cast %28 : vector<2x16x16x3xf32> to vector<512x3xf32>
    %c0_55 = arith.constant 0 : index
    %c3_56 = arith.constant 3 : index
    %c0_57 = arith.constant 0 : index
    %c0_58 = arith.constant 0 : index
    %30 = vector.load %arg0[%c0_55, %c3_56, %c0_57, %c0_58] : memref<2x20x20x3xf32, #tpu.memory_space<vmem>>, vector<2x16x16x3xf32>
    %31 = vector.shape_cast %30 : vector<2x16x16x3xf32> to vector<512x3xf32>
    %c0_59 = arith.constant 0 : index
    %c3_60 = arith.constant 3 : index
    %c1_61 = arith.constant 1 : index
    %c0_62 = arith.constant 0 : index
    %32 = vector.load %arg0[%c0_59, %c3_60, %c1_61, %c0_62] : memref<2x20x20x3xf32, #tpu.memory_space<vmem>>, vector<2x16x16x3xf32>
    %33 = vector.shape_cast %32 : vector<2x16x16x3xf32> to vector<512x3xf32>
    %c0_63 = arith.constant 0 : index
    %c3_64 = arith.constant 3 : index
    %c2_65 = arith.constant 2 : index
    %c0_66 = arith.constant 0 : index
    %34 = vector.load %arg0[%c0_63, %c3_64, %c2_65, %c0_66] : memref<2x20x20x3xf32, #tpu.memory_space<vmem>>, vector<2x16x16x3xf32>
    %35 = vector.shape_cast %34 : vector<2x16x16x3xf32> to vector<512x3xf32>
    %c0_67 = arith.constant 0 : index
    %c3_68 = arith.constant 3 : index
    %c3_69 = arith.constant 3 : index
    %c0_70 = arith.constant 0 : index
    %36 = vector.load %arg0[%c0_67, %c3_68, %c3_69, %c0_70] : memref<2x20x20x3xf32, #tpu.memory_space<vmem>>, vector<2x16x16x3xf32>
    %37 = vector.shape_cast %36 : vector<2x16x16x3xf32> to vector<512x3xf32>
    %c0_71 = arith.constant 0 : index
    %c3_72 = arith.constant 3 : index
    %c4_73 = arith.constant 4 : index
    %c0_74 = arith.constant 0 : index
    %38 = vector.load %arg0[%c0_71, %c3_72, %c4_73, %c0_74] : memref<2x20x20x3xf32, #tpu.memory_space<vmem>>, vector<2x16x16x3xf32>
    %39 = vector.shape_cast %38 : vector<2x16x16x3xf32> to vector<512x3xf32>
    %c0_75 = arith.constant 0 : index
    %c4_76 = arith.constant 4 : index
    %c0_77 = arith.constant 0 : index
    %c0_78 = arith.constant 0 : index
    %40 = vector.load %arg0[%c0_75, %c4_76, %c0_77, %c0_78] : memref<2x20x20x3xf32, #tpu.memory_space<vmem>>, vector<2x16x16x3xf32>
    %41 = vector.shape_cast %40 : vector<2x16x16x3xf32> to vector<512x3xf32>
    %c0_79 = arith.constant 0 : index
    %c4_80 = arith.constant 4 : index
    %c1_81 = arith.constant 1 : index
    %c0_82 = arith.constant 0 : index
    %42 = vector.load %arg0[%c0_79, %c4_80, %c1_81, %c0_82] : memref<2x20x20x3xf32, #tpu.memory_space<vmem>>, vector<2x16x16x3xf32>
    %43 = vector.shape_cast %42 : vector<2x16x16x3xf32> to vector<512x3xf32>
    %c0_83 = arith.constant 0 : index
    %c4_84 = arith.constant 4 : index
    %c2_85 = arith.constant 2 : index
    %c0_86 = arith.constant 0 : index
    %44 = vector.load %arg0[%c0_83, %c4_84, %c2_85, %c0_86] : memref<2x20x20x3xf32, #tpu.memory_space<vmem>>, vector<2x16x16x3xf32>
    %45 = vector.shape_cast %44 : vector<2x16x16x3xf32> to vector<512x3xf32>
    %c0_87 = arith.constant 0 : index
    %c4_88 = arith.constant 4 : index
    %c3_89 = arith.constant 3 : index
    %c0_90 = arith.constant 0 : index
    %46 = vector.load %arg0[%c0_87, %c4_88, %c3_89, %c0_90] : memref<2x20x20x3xf32, #tpu.memory_space<vmem>>, vector<2x16x16x3xf32>
    %47 = vector.shape_cast %46 : vector<2x16x16x3xf32> to vector<512x3xf32>
    %c0_91 = arith.constant 0 : index
    %c4_92 = arith.constant 4 : index
    %c4_93 = arith.constant 4 : index
    %c0_94 = arith.constant 0 : index
    %48 = vector.load %arg0[%c0_91, %c4_92, %c4_93, %c0_94] : memref<2x20x20x3xf32, #tpu.memory_space<vmem>>, vector<2x16x16x3xf32>
    %49 = vector.shape_cast %48 : vector<2x16x16x3xf32> to vector<512x3xf32>
    %50 = tpu.concatenate %1, %3, %5, %7, %9, %11, %13, %15, %17, %19, %21, %23, %25, %27, %29, %31 in 1 : vector<512x3xf32>, vector<512x3xf32>, vector<512x3xf32>, vector<512x3xf32>, vector<512x3xf32>, vector<512x3xf32>, vector<512x3xf32>, vector<512x3xf32>, vector<512x3xf32>, vector<512x3xf32>, vector<512x3xf32>, vector<512x3xf32>, vector<512x3xf32>, vector<512x3xf32>, vector<512x3xf32>, vector<512x3xf32> -> vector<512x48xf32>
    %51 = tpu.concatenate %33, %35, %37, %39, %41, %43, %45, %47, %49 in 1 : vector<512x3xf32>, vector<512x3xf32>, vector<512x3xf32>, vector<512x3xf32>, vector<512x3xf32>, vector<512x3xf32>, vector<512x3xf32>, vector<512x3xf32>, vector<512x3xf32> -> vector<512x27xf32>
    %52 = tpu.concatenate %50, %51 in 1 : vector<512x48xf32>, vector<512x27xf32> -> vector<512x75xf32>
    %c0_95 = arith.constant 0 : index
    %c0_96 = arith.constant 0 : index
    %53 = vector.load %arg1[%c0_95, %c0_96] : memref<75x6xf32, #tpu.memory_space<vmem>>, vector<75x6xf32>
    %cst = arith.constant dense<0.000000e+00> : vector<512x6xf32>
    %54 = tpu.matmul %52, %53, %cst {dimension_numbers = #tpu.dot_dimension_numbers<[1], [0], [0], [1], [0, 0, 1, 1], [], []>} : vector<512x75xf32>, vector<75x6xf32>, vector<512x6xf32> -> vector<512x6xf32>
    %cst_97 = arith.constant dense<0.000000e+00> : vector<6xf32>
    %55 = vector.multi_reduction <add>, %54, %cst_97 [0] : vector<512x6xf32> to vector<6xf32>
    %56 = vector.shape_cast %55 : vector<6xf32> to vector<1x6xf32>
    %cst_98 = arith.constant 5.120000e+02 : f32
    %57 = vector.broadcast %cst_98 : f32 to vector<1x6xf32>
    %58 = arith.divf %56, %57 : vector<1x6xf32>
    %59 = arith.mulf %54, %54 : vector<512x6xf32>
    %cst_99 = arith.constant dense<0.000000e+00> : vector<6xf32>
    %60 = vector.multi_reduction <add>, %59, %cst_99 [0] : vector<512x6xf32> to vector<6xf32>
    %61 = vector.shape_cast %60 : vector<6xf32> to vector<1x6xf32>
    %cst_100 = arith.constant 5.120000e+02 : f32
    %62 = vector.broadcast %cst_100 : f32 to vector<1x6xf32>
    %63 = arith.divf %61, %62 : vector<1x6xf32>
    %64 = arith.mulf %58, %58 : vector<1x6xf32>
    %65 = arith.subf %63, %64 : vector<1x6xf32>
    %cst_101 = arith.constant 0.000000e+00 : f32
    %66 = vector.broadcast %cst_101 : f32 to vector<1x6xf32>
    %67 = arith.maximumf %65, %66 : vector<1x6xf32>
    %68 = vector.broadcast %58 : vector<1x6xf32> to vector<512x6xf32>
    %69 = arith.subf %54, %68 : vector<512x6xf32>
    %cst_102 = arith.constant 9.99999974E-6 : f32
    %70 = vector.broadcast %cst_102 : f32 to vector<1x6xf32>
    %71 = arith.addf %67, %70 : vector<1x6xf32>
    %72 = math.rsqrt %71 : vector<1x6xf32>
    %73 = vector.broadcast %72 : vector<1x6xf32> to vector<512x6xf32>
    %74 = arith.mulf %69, %73 : vector<512x6xf32>
    %c0_103 = arith.constant 0 : index
    %c0_104 = arith.constant 0 : index
    %75 = vector.load %arg2[%c0_103, %c0_104] : memref<1x6xf32, #tpu.memory_space<vmem>>, vector<1x6xf32>
    %76 = vector.broadcast %75 : vector<1x6xf32> to vector<512x6xf32>
    %77 = arith.mulf %74, %76 : vector<512x6xf32>
    %c0_105 = arith.constant 0 : index
    %c0_106 = arith.constant 0 : index
    %78 = vector.load %arg3[%c0_105, %c0_106] : memref<1x6xf32, #tpu.memory_space<vmem>>, vector<1x6xf32>
    %79 = vector.broadcast %78 : vector<1x6xf32> to vector<512x6xf32>
    %80 = arith.addf %77, %79 : vector<512x6xf32>
    %cst_107 = arith.constant 0.000000e+00 : f32
    %81 = vector.broadcast %cst_107 : f32 to vector<512x6xf32>
    %82 = arith.maximumf %80, %81 : vector<512x6xf32>
    %c0_108 = arith.constant 0 : index
    %c0_109 = arith.constant 0 : index
    %83 = vector.load %arg4[%c0_108, %c0_109] : memref<128x512xf32, #tpu.memory_space<vmem>>, vector<128x512xf32>
    %cst_110 = arith.constant dense<0.000000e+00> : vector<128x6xf32>
    %84 = tpu.matmul %83, %82, %cst_110 {dimension_numbers = #tpu.dot_dimension_numbers<[1], [0], [0], [1], [0, 0, 1, 1], [], []>} : vector<128x512xf32>, vector<512x6xf32>, vector<128x6xf32> -> vector<128x6xf32>
    %c0_111 = arith.constant 0 : index
    %c0_112 = arith.constant 0 : index
    %85 = vector.load %arg5[%c0_111, %c0_112] : memref<800x128xf32, #tpu.memory_space<vmem>>, vector<800x128xf32>
    %cst_113 = arith.constant dense<0.000000e+00> : vector<800x6xf32>
    %86 = tpu.matmul %85, %84, %cst_113 {dimension_numbers = #tpu.dot_dimension_numbers<[1], [0], [0], [1], [0, 0, 1, 1], [], []>} : vector<800x128xf32>, vector<128x6xf32>, vector<800x6xf32> -> vector<800x6xf32>
    %87 = vector.extract_strided_slice %86 {offsets = [0, 0], sizes = [32, 6], strides = [1, 1]} : vector<800x6xf32> to vector<32x6xf32>
    %88 = vector.extract_strided_slice %86 {offsets = [32, 0], sizes = [32, 6], strides = [1, 1]} : vector<800x6xf32> to vector<32x6xf32>
    %89 = vector.extract_strided_slice %86 {offsets = [64, 0], sizes = [32, 6], strides = [1, 1]} : vector<800x6xf32> to vector<32x6xf32>
    %90 = vector.extract_strided_slice %86 {offsets = [96, 0], sizes = [32, 6], strides = [1, 1]} : vector<800x6xf32> to vector<32x6xf32>
    %91 = vector.extract_strided_slice %86 {offsets = [128, 0], sizes = [32, 6], strides = [1, 1]} : vector<800x6xf32> to vector<32x6xf32>
    %92 = vector.extract_strided_slice %86 {offsets = [160, 0], sizes = [32, 6], strides = [1, 1]} : vector<800x6xf32> to vector<32x6xf32>
    %93 = vector.extract_strided_slice %86 {offsets = [192, 0], sizes = [32, 6], strides = [1, 1]} : vector<800x6xf32> to vector<32x6xf32>
    %94 = vector.extract_strided_slice %86 {offsets = [224, 0], sizes = [32, 6], strides = [1, 1]} : vector<800x6xf32> to vector<32x6xf32>
    %95 = vector.extract_strided_slice %86 {offsets = [256, 0], sizes = [32, 6], strides = [1, 1]} : vector<800x6xf32> to vector<32x6xf32>
    %96 = vector.extract_strided_slice %86 {offsets = [288, 0], sizes = [32, 6], strides = [1, 1]} : vector<800x6xf32> to vector<32x6xf32>
    %97 = vector.extract_strided_slice %86 {offsets = [320, 0], sizes = [32, 6], strides = [1, 1]} : vector<800x6xf32> to vector<32x6xf32>
    %98 = vector.extract_strided_slice %86 {offsets = [352, 0], sizes = [32, 6], strides = [1, 1]} : vector<800x6xf32> to vector<32x6xf32>
    %99 = vector.extract_strided_slice %86 {offsets = [384, 0], sizes = [32, 6], strides = [1, 1]} : vector<800x6xf32> to vector<32x6xf32>
    %100 = vector.extract_strided_slice %86 {offsets = [416, 0], sizes = [32, 6], strides = [1, 1]} : vector<800x6xf32> to vector<32x6xf32>
    %101 = vector.extract_strided_slice %86 {offsets = [448, 0], sizes = [32, 6], strides = [1, 1]} : vector<800x6xf32> to vector<32x6xf32>
    %102 = vector.extract_strided_slice %86 {offsets = [480, 0], sizes = [32, 6], strides = [1, 1]} : vector<800x6xf32> to vector<32x6xf32>
    %103 = vector.extract_strided_slice %86 {offsets = [512, 0], sizes = [32, 6], strides = [1, 1]} : vector<800x6xf32> to vector<32x6xf32>
    %104 = vector.extract_strided_slice %86 {offsets = [544, 0], sizes = [32, 6], strides = [1, 1]} : vector<800x6xf32> to vector<32x6xf32>
    %105 = vector.extract_strided_slice %86 {offsets = [576, 0], sizes = [32, 6], strides = [1, 1]} : vector<800x6xf32> to vector<32x6xf32>
    %106 = vector.extract_strided_slice %86 {offsets = [608, 0], sizes = [32, 6], strides = [1, 1]} : vector<800x6xf32> to vector<32x6xf32>
    %107 = vector.extract_strided_slice %86 {offsets = [640, 0], sizes = [32, 6], strides = [1, 1]} : vector<800x6xf32> to vector<32x6xf32>
    %108 = vector.extract_strided_slice %86 {offsets = [672, 0], sizes = [32, 6], strides = [1, 1]} : vector<800x6xf32> to vector<32x6xf32>
    %109 = vector.extract_strided_slice %86 {offsets = [704, 0], sizes = [32, 6], strides = [1, 1]} : vector<800x6xf32> to vector<32x6xf32>
    %110 = vector.extract_strided_slice %86 {offsets = [736, 0], sizes = [32, 6], strides = [1, 1]} : vector<800x6xf32> to vector<32x6xf32>
    %111 = vector.extract_strided_slice %86 {offsets = [768, 0], sizes = [32, 6], strides = [1, 1]} : vector<800x6xf32> to vector<32x6xf32>
    %112 = tpu.concatenate %87, %88, %89, %90, %91, %92, %93, %94, %95, %96, %97, %98, %99, %100, %101, %102 in 1 : vector<32x6xf32>, vector<32x6xf32>, vector<32x6xf32>, vector<32x6xf32>, vector<32x6xf32>, vector<32x6xf32>, vector<32x6xf32>, vector<32x6xf32>, vector<32x6xf32>, vector<32x6xf32>, vector<32x6xf32>, vector<32x6xf32>, vector<32x6xf32>, vector<32x6xf32>, vector<32x6xf32>, vector<32x6xf32> -> vector<32x96xf32>
    %113 = tpu.concatenate %103, %104, %105, %106, %107, %108, %109, %110, %111 in 1 : vector<32x6xf32>, vector<32x6xf32>, vector<32x6xf32>, vector<32x6xf32>, vector<32x6xf32>, vector<32x6xf32>, vector<32x6xf32>, vector<32x6xf32>, vector<32x6xf32> -> vector<32x54xf32>
    %114 = tpu.concatenate %112, %113 in 1 : vector<32x96xf32>, vector<32x54xf32> -> vector<32x150xf32>
    %c0_114 = arith.constant 0 : index
    %c0_115 = arith.constant 0 : index
    %115 = vector.load %arg6[%c0_114, %c0_115] : memref<150x16xf32, #tpu.memory_space<vmem>>, vector<150x16xf32>
    %cst_116 = arith.constant dense<0.000000e+00> : vector<32x16xf32>
    %116 = tpu.matmul %114, %115, %cst_116 {dimension_numbers = #tpu.dot_dimension_numbers<[1], [0], [0], [1], [0, 0, 1, 1], [], []>} : vector<32x150xf32>, vector<150x16xf32>, vector<32x16xf32> -> vector<32x16xf32>
    %cst_117 = arith.constant dense<0.000000e+00> : vector<16xf32>
    %117 = vector.multi_reduction <add>, %116, %cst_117 [0] : vector<32x16xf32> to vector<16xf32>
    %118 = vector.shape_cast %117 : vector<16xf32> to vector<1x16xf32>
    %cst_118 = arith.constant 3.200000e+01 : f32
    %119 = vector.broadcast %cst_118 : f32 to vector<1x16xf32>
    %120 = arith.divf %118, %119 : vector<1x16xf32>
    %121 = arith.mulf %116, %116 : vector<32x16xf32>
    %cst_119 = arith.constant dense<0.000000e+00> : vector<16xf32>
    %122 = vector.multi_reduction <add>, %121, %cst_119 [0] : vector<32x16xf32> to vector<16xf32>
    %123 = vector.shape_cast %122 : vector<16xf32> to vector<1x16xf32>
    %cst_120 = arith.constant 3.200000e+01 : f32
    %124 = vector.broadcast %cst_120 : f32 to vector<1x16xf32>
    %125 = arith.divf %123, %124 : vector<1x16xf32>
    %126 = arith.mulf %120, %120 : vector<1x16xf32>
    %127 = arith.subf %125, %126 : vector<1x16xf32>
    %cst_121 = arith.constant 0.000000e+00 : f32
    %128 = vector.broadcast %cst_121 : f32 to vector<1x16xf32>
    %129 = arith.maximumf %127, %128 : vector<1x16xf32>
    %130 = vector.broadcast %120 : vector<1x16xf32> to vector<32x16xf32>
    %131 = arith.subf %116, %130 : vector<32x16xf32>
    %cst_122 = arith.constant 9.99999974E-6 : f32
    %132 = vector.broadcast %cst_122 : f32 to vector<1x16xf32>
    %133 = arith.addf %129, %132 : vector<1x16xf32>
    %134 = math.rsqrt %133 : vector<1x16xf32>
    %135 = vector.broadcast %134 : vector<1x16xf32> to vector<32x16xf32>
    %136 = arith.mulf %131, %135 : vector<32x16xf32>
    %c0_123 = arith.constant 0 : index
    %c0_124 = arith.constant 0 : index
    %137 = vector.load %arg7[%c0_123, %c0_124] : memref<1x16xf32, #tpu.memory_space<vmem>>, vector<1x16xf32>
    %138 = vector.broadcast %137 : vector<1x16xf32> to vector<32x16xf32>
    %139 = arith.mulf %136, %138 : vector<32x16xf32>
    %c0_125 = arith.constant 0 : index
    %c0_126 = arith.constant 0 : index
    %140 = vector.load %arg8[%c0_125, %c0_126] : memref<1x16xf32, #tpu.memory_space<vmem>>, vector<1x16xf32>
    %141 = vector.broadcast %140 : vector<1x16xf32> to vector<32x16xf32>
    %142 = arith.addf %139, %141 : vector<32x16xf32>
    %cst_127 = arith.constant 0.000000e+00 : f32
    %143 = vector.broadcast %cst_127 : f32 to vector<32x16xf32>
    %144 = arith.maximumf %142, %143 : vector<32x16xf32>
    %c0_128 = arith.constant 0 : index
    %c0_129 = arith.constant 0 : index
    %145 = vector.load %arg9[%c0_128, %c0_129] : memref<8x32xf32, #tpu.memory_space<vmem>>, vector<8x32xf32>
    %cst_130 = arith.constant dense<0.000000e+00> : vector<8x16xf32>
    %146 = tpu.matmul %145, %144, %cst_130 {dimension_numbers = #tpu.dot_dimension_numbers<[1], [0], [0], [1], [0, 0, 1, 1], [], []>} : vector<8x32xf32>, vector<32x16xf32>, vector<8x16xf32> -> vector<8x16xf32>
    %cst_131 = arith.constant 0.000000e+00 : f32
    %147 = vector.broadcast %cst_131 : f32 to vector<2x120xf32>
    %148 = vector.extract_strided_slice %146 {offsets = [0, 0], sizes = [2, 16], strides = [1, 1]} : vector<8x16xf32> to vector<2x16xf32>
    %c0_132 = arith.constant 0 : index
    %c0_133 = arith.constant 0 : index
    %c0_134 = arith.constant 0 : index
    %149 = vector.load %arg10[%c0_132, %c0_133, %c0_134] : memref<4x16x120xf32, #tpu.memory_space<vmem>>, vector<1x16x120xf32>
    %150 = vector.shape_cast %149 : vector<1x16x120xf32> to vector<16x120xf32>
    %cst_135 = arith.constant dense<0.000000e+00> : vector<2x120xf32>
    %151 = tpu.matmul %148, %150, %cst_135 {dimension_numbers = #tpu.dot_dimension_numbers<[1], [0], [0], [1], [0, 0, 1, 1], [], []>} : vector<2x16xf32>, vector<16x120xf32>, vector<2x120xf32> -> vector<2x120xf32>
    %152 = arith.addf %147, %151 : vector<2x120xf32>
    %153 = vector.extract_strided_slice %146 {offsets = [2, 0], sizes = [2, 16], strides = [1, 1]} : vector<8x16xf32> to vector<2x16xf32>
    %c1_136 = arith.constant 1 : index
    %c0_137 = arith.constant 0 : index
    %c0_138 = arith.constant 0 : index
    %154 = vector.load %arg10[%c1_136, %c0_137, %c0_138] : memref<4x16x120xf32, #tpu.memory_space<vmem>>, vector<1x16x120xf32>
    %155 = vector.shape_cast %154 : vector<1x16x120xf32> to vector<16x120xf32>
    %cst_139 = arith.constant dense<0.000000e+00> : vector<2x120xf32>
    %156 = tpu.matmul %153, %155, %cst_139 {dimension_numbers = #tpu.dot_dimension_numbers<[1], [0], [0], [1], [0, 0, 1, 1], [], []>} : vector<2x16xf32>, vector<16x120xf32>, vector<2x120xf32> -> vector<2x120xf32>
    %157 = arith.addf %152, %156 : vector<2x120xf32>
    %158 = vector.extract_strided_slice %146 {offsets = [4, 0], sizes = [2, 16], strides = [1, 1]} : vector<8x16xf32> to vector<2x16xf32>
    %c2_140 = arith.constant 2 : index
    %c0_141 = arith.constant 0 : index
    %c0_142 = arith.constant 0 : index
    %159 = vector.load %arg10[%c2_140, %c0_141, %c0_142] : memref<4x16x120xf32, #tpu.memory_space<vmem>>, vector<1x16x120xf32>
    %160 = vector.shape_cast %159 : vector<1x16x120xf32> to vector<16x120xf32>
    %cst_143 = arith.constant dense<0.000000e+00> : vector<2x120xf32>
    %161 = tpu.matmul %158, %160, %cst_143 {dimension_numbers = #tpu.dot_dimension_numbers<[1], [0], [0], [1], [0, 0, 1, 1], [], []>} : vector<2x16xf32>, vector<16x120xf32>, vector<2x120xf32> -> vector<2x120xf32>
    %162 = arith.addf %157, %161 : vector<2x120xf32>
    %163 = vector.extract_strided_slice %146 {offsets = [6, 0], sizes = [2, 16], strides = [1, 1]} : vector<8x16xf32> to vector<2x16xf32>
    %c3_144 = arith.constant 3 : index
    %c0_145 = arith.constant 0 : index
    %c0_146 = arith.constant 0 : index
    %164 = vector.load %arg10[%c3_144, %c0_145, %c0_146] : memref<4x16x120xf32, #tpu.memory_space<vmem>>, vector<1x16x120xf32>
    %165 = vector.shape_cast %164 : vector<1x16x120xf32> to vector<16x120xf32>
    %cst_147 = arith.constant dense<0.000000e+00> : vector<2x120xf32>
    %166 = tpu.matmul %163, %165, %cst_147 {dimension_numbers = #tpu.dot_dimension_numbers<[1], [0], [0], [1], [0, 0, 1, 1], [], []>} : vector<2x16xf32>, vector<16x120xf32>, vector<2x120xf32> -> vector<2x120xf32>
    %167 = arith.addf %162, %166 : vector<2x120xf32>
    %cst_148 = arith.constant dense<0.000000e+00> : vector<120xf32>
    %168 = vector.multi_reduction <add>, %167, %cst_148 [0] : vector<2x120xf32> to vector<120xf32>
    %169 = vector.shape_cast %168 : vector<120xf32> to vector<1x120xf32>
    %cst_149 = arith.constant 2.000000e+00 : f32
    %170 = vector.broadcast %cst_149 : f32 to vector<1x120xf32>
    %171 = arith.divf %169, %170 : vector<1x120xf32>
    %172 = arith.mulf %167, %167 : vector<2x120xf32>
    %cst_150 = arith.constant dense<0.000000e+00> : vector<120xf32>
    %173 = vector.multi_reduction <add>, %172, %cst_150 [0] : vector<2x120xf32> to vector<120xf32>
    %174 = vector.shape_cast %173 : vector<120xf32> to vector<1x120xf32>
    %cst_151 = arith.constant 2.000000e+00 : f32
    %175 = vector.broadcast %cst_151 : f32 to vector<1x120xf32>
    %176 = arith.divf %174, %175 : vector<1x120xf32>
    %177 = arith.mulf %171, %171 : vector<1x120xf32>
    %178 = arith.subf %176, %177 : vector<1x120xf32>
    %cst_152 = arith.constant 0.000000e+00 : f32
    %179 = vector.broadcast %cst_152 : f32 to vector<1x120xf32>
    %180 = arith.maximumf %178, %179 : vector<1x120xf32>
    %181 = vector.broadcast %171 : vector<1x120xf32> to vector<2x120xf32>
    %182 = arith.subf %167, %181 : vector<2x120xf32>
    %cst_153 = arith.constant 9.99999974E-6 : f32
    %183 = vector.broadcast %cst_153 : f32 to vector<1x120xf32>
    %184 = arith.addf %180, %183 : vector<1x120xf32>
    %185 = math.rsqrt %184 : vector<1x120xf32>
    %186 = vector.broadcast %185 : vector<1x120xf32> to vector<2x120xf32>
    %187 = arith.mulf %182, %186 : vector<2x120xf32>
    %c0_154 = arith.constant 0 : index
    %c0_155 = arith.constant 0 : index
    %188 = vector.load %arg11[%c0_154, %c0_155] : memref<1x120xf32, #tpu.memory_space<vmem>>, vector<1x120xf32>
    %189 = vector.broadcast %188 : vector<1x120xf32> to vector<2x120xf32>
    %190 = arith.mulf %187, %189 : vector<2x120xf32>
    %c0_156 = arith.constant 0 : index
    %c0_157 = arith.constant 0 : index
    %191 = vector.load %arg12[%c0_156, %c0_157] : memref<1x120xf32, #tpu.memory_space<vmem>>, vector<1x120xf32>
    %192 = vector.broadcast %191 : vector<1x120xf32> to vector<2x120xf32>
    %193 = arith.addf %190, %192 : vector<2x120xf32>
    %cst_158 = arith.constant 0.000000e+00 : f32
    %194 = vector.broadcast %cst_158 : f32 to vector<2x120xf32>
    %195 = arith.maximumf %193, %194 : vector<2x120xf32>
    %c0_159 = arith.constant 0 : index
    %c0_160 = arith.constant 0 : index
    %196 = vector.load %arg13[%c0_159, %c0_160] : memref<120x84xf32, #tpu.memory_space<vmem>>, vector<120x84xf32>
    %cst_161 = arith.constant dense<0.000000e+00> : vector<2x84xf32>
    %197 = tpu.matmul %195, %196, %cst_161 {dimension_numbers = #tpu.dot_dimension_numbers<[1], [0], [0], [1], [0, 0, 1, 1], [], []>} : vector<2x120xf32>, vector<120x84xf32>, vector<2x84xf32> -> vector<2x84xf32>
    %cst_162 = arith.constant dense<0.000000e+00> : vector<84xf32>
    %198 = vector.multi_reduction <add>, %197, %cst_162 [0] : vector<2x84xf32> to vector<84xf32>
    %199 = vector.shape_cast %198 : vector<84xf32> to vector<1x84xf32>
    %cst_163 = arith.constant 2.000000e+00 : f32
    %200 = vector.broadcast %cst_163 : f32 to vector<1x84xf32>
    %201 = arith.divf %199, %200 : vector<1x84xf32>
    %202 = arith.mulf %197, %197 : vector<2x84xf32>
    %cst_164 = arith.constant dense<0.000000e+00> : vector<84xf32>
    %203 = vector.multi_reduction <add>, %202, %cst_164 [0] : vector<2x84xf32> to vector<84xf32>
    %204 = vector.shape_cast %203 : vector<84xf32> to vector<1x84xf32>
    %cst_165 = arith.constant 2.000000e+00 : f32
    %205 = vector.broadcast %cst_165 : f32 to vector<1x84xf32>
    %206 = arith.divf %204, %205 : vector<1x84xf32>
    %207 = arith.mulf %201, %201 : vector<1x84xf32>
    %208 = arith.subf %206, %207 : vector<1x84xf32>
    %cst_166 = arith.constant 0.000000e+00 : f32
    %209 = vector.broadcast %cst_166 : f32 to vector<1x84xf32>
    %210 = arith.maximumf %208, %209 : vector<1x84xf32>
    %211 = vector.broadcast %201 : vector<1x84xf32> to vector<2x84xf32>
    %212 = arith.subf %197, %211 : vector<2x84xf32>
    %cst_167 = arith.constant 9.99999974E-6 : f32
    %213 = vector.broadcast %cst_167 : f32 to vector<1x84xf32>
    %214 = arith.addf %210, %213 : vector<1x84xf32>
    %215 = math.rsqrt %214 : vector<1x84xf32>
    %216 = vector.broadcast %215 : vector<1x84xf32> to vector<2x84xf32>
    %217 = arith.mulf %212, %216 : vector<2x84xf32>
    %c0_168 = arith.constant 0 : index
    %c0_169 = arith.constant 0 : index
    %218 = vector.load %arg14[%c0_168, %c0_169] : memref<1x84xf32, #tpu.memory_space<vmem>>, vector<1x84xf32>
    %219 = vector.broadcast %218 : vector<1x84xf32> to vector<2x84xf32>
    %220 = arith.mulf %217, %219 : vector<2x84xf32>
    %c0_170 = arith.constant 0 : index
    %c0_171 = arith.constant 0 : index
    %221 = vector.load %arg15[%c0_170, %c0_171] : memref<1x84xf32, #tpu.memory_space<vmem>>, vector<1x84xf32>
    %222 = vector.broadcast %221 : vector<1x84xf32> to vector<2x84xf32>
    %223 = arith.addf %220, %222 : vector<2x84xf32>
    %cst_172 = arith.constant 0.000000e+00 : f32
    %224 = vector.broadcast %cst_172 : f32 to vector<2x84xf32>
    %225 = arith.maximumf %223, %224 : vector<2x84xf32>
    %c0_173 = arith.constant 0 : index
    %c0_174 = arith.constant 0 : index
    %226 = vector.load %arg16[%c0_173, %c0_174] : memref<84x10xf32, #tpu.memory_space<vmem>>, vector<84x10xf32>
    %cst_175 = arith.constant dense<0.000000e+00> : vector<2x10xf32>
    %227 = tpu.matmul %225, %226, %cst_175 {dimension_numbers = #tpu.dot_dimension_numbers<[1], [0], [0], [1], [0, 0, 1, 1], [], []>} : vector<2x84xf32>, vector<84x10xf32>, vector<2x10xf32> -> vector<2x10xf32>
    %c0_176 = arith.constant 0 : index
    %c0_177 = arith.constant 0 : index
    %228 = vector.load %arg17[%c0_176, %c0_177] : memref<1x10xf32, #tpu.memory_space<vmem>>, vector<1x10xf32>
    %229 = vector.broadcast %228 : vector<1x10xf32> to vector<2x10xf32>
    %230 = arith.addf %227, %229 : vector<2x10xf32>
    %c0_178 = arith.constant 0 : index
    %c0_179 = arith.constant 0 : index
    %231 = vector.load %arg18[%c0_178, %c0_179] : memref<2x10xf32, #tpu.memory_space<vmem>>, vector<2x10xf32>
    tpu.vector_store %arg18[%c0_178, %c0_179], %230 {strides = array<i32>} : memref<2x10xf32, #tpu.memory_space<vmem>>, vector<2x10xf32>,
    return
  }
}

</mosaic_0001>

<llo_original>
// kernel: bn_lenet_forward.1
$region0: #{bn_lenet_forward.1}
  #allocation0 [shape = 'u32[]', space=smem, size = 0x4, offset = 0x4, fixed_abs, tag = 'smem constant byte address 0x4 - core index']
  #allocation1 [shape = 'u32[144,128]{1,0:T(1,128)}', space=vmem, size = 0x12000, scoped, tag = 'internal scratch']
  %s0 = inlined_call_operand.vmem [shape: f32[2,20,20,3], index: 0, kind: input, shape index: {}]
  %s1 = inlined_call_operand.vmem [shape: f32[75,6], index: 1, kind: input, shape index: {}]
  %s2 = inlined_call_operand.vmem [shape: f32[1,6], index: 2, kind: input, shape index: {}]
  %s3 = inlined_call_operand.vmem [shape: f32[1,6], index: 3, kind: input, shape index: {}]
  %s4 = inlined_call_operand.vmem [shape: f32[128,512], index: 4, kind: input, shape index: {}]
  %s5 = inlined_call_operand.vmem [shape: f32[800,128], index: 5, kind: input, shape index: {}]
  %s6 = inlined_call_operand.vmem [shape: f32[150,16], index: 6, kind: input, shape index: {}]
  %s7 = inlined_call_operand.vmem [shape: f32[1,16], index: 7, kind: input, shape index: {}]
  %s8 = inlined_call_operand.vmem [shape: f32[1,16], index: 8, kind: input, shape index: {}]
  %s9 = inlined_call_operand.vmem [shape: f32[8,32], index: 9, kind: input, shape index: {}]
  %s10 = inlined_call_operand.vmem [shape: f32[4,16,120], index: 10, kind: input, shape index: {}]
  %s11 = inlined_call_operand.vmem [shape: f32[1,120], index: 11, kind: input, shape index: {}]
  %s12 = inlined_call_operand.vmem [shape: f32[1,120], index: 12, kind: input, shape index: {}]
  %s13 = inlined_call_operand.vmem [shape: f32[120,84], index: 13, kind: input, shape index: {}]
  %s14 = inlined_call_operand.vmem [shape: f32[1,84], index: 14, kind: input, shape index: {}]
  %s15 = inlined_call_operand.vmem [shape: f32[1,84], index: 15, kind: input, shape index: {}]
  %s16 = inlined_call_operand.vmem [shape: f32[84,10], index: 16, kind: input, shape index: {}]
  %s17 = inlined_call_operand.vmem [shape: f32[1,10], index: 17, kind: input, shape index: {}]
  %s18 = inlined_call_operand.hbm [shape: f32[2,10], index: 18, kind: output, shape index: {}]
  %s19 = sld [smem:[#allocation0]]
  $region82: #{bn_lenet_forward.1} parent=0
    _
  %s21 = ssub.s32 1, %s19
  %s22 = scalar_select 0, %s21, %s19
  $region1: #{bn_lenet_forward.1} parent=0
    #allocation2 [shape = 'u8[1024]{0}', space=vmem, size = 0x400, scoped, tag = 'output window, operand 0, single buffered']
    #allocation3 [shape = 's32[1]{0}', space=sflag, size = 0x4, scoped, tag = 'scoped memory for bn_lenet_forward.1']
    %23 = vsyncpa [#allocation3], 0
    // Predicated region
    $region2: #{bn_lenet_forward.1} parent=1 // pred_check
      _
    $region3: #{bn_lenet_forward.1} parent=1 // pred_check_branch
      %25 = sbr.rel (0) target = $region5
    $region4: #{bn_lenet_forward.1} parent=1 // pred_region
      _
    $region5: #{bn_lenet_forward.1} parent=1 // pred_fallthru
      _
    // Predicated region
    $region6: #{bn_lenet_forward.1} parent=1 // pred_check
      _
    $region7: #{bn_lenet_forward.1} parent=1 // pred_check_branch
      %27 = sbr.rel (0) target = $region9
    $region8: #{bn_lenet_forward.1} parent=1 // pred_region
      _
    $region9: #{bn_lenet_forward.1} parent=1 // pred_fallthru
      _
    // Predicated region
    $region10: #{bn_lenet_forward.1} parent=1 // pred_check
      _
    $region11: #{bn_lenet_forward.1} parent=1 // pred_check_branch
      %29 = sbr.rel (0) target = $region13
    $region12: #{bn_lenet_forward.1} parent=1 // pred_region
      _
    $region13: #{bn_lenet_forward.1} parent=1 // pred_fallthru
      _
    // Predicated region
    $region14: #{bn_lenet_forward.1} parent=1 // pred_check
      _
    $region15: #{bn_lenet_forward.1} parent=1 // pred_check_branch
      %31 = sbr.rel (0) target = $region17
    $region16: #{bn_lenet_forward.1} parent=1 // pred_region
      _
    $region17: #{bn_lenet_forward.1} parent=1 // pred_fallthru
      _
    // Predicated region
    $region18: #{bn_lenet_forward.1} parent=1 // pred_check
      _
    $region19: #{bn_lenet_forward.1} parent=1 // pred_check_branch
      %33 = sbr.rel (0) target = $region21
    $region20: #{bn_lenet_forward.1} parent=1 // pred_region
      _
    $region21: #{bn_lenet_forward.1} parent=1 // pred_fallthru
      _
    // Predicated region
    $region22: #{bn_lenet_forward.1} parent=1 // pred_check
      _
    $region23: #{bn_lenet_forward.1} parent=1 // pred_check_branch
      %35 = sbr.rel (0) target = $region25
    $region24: #{bn_lenet_forward.1} parent=1 // pred_region
      _
    $region25: #{bn_lenet_forward.1} parent=1 // pred_fallthru
      _
    // Predicated region
    $region26: #{bn_lenet_forward.1} parent=1 // pred_check
      _
    $region27: #{bn_lenet_forward.1} parent=1 // pred_check_branch
      %37 = sbr.rel (0) target = $region29
    $region28: #{bn_lenet_forward.1} parent=1 // pred_region
      _
    $region29: #{bn_lenet_forward.1} parent=1 // pred_fallthru
      _
    // Predicated region
    $region30: #{bn_lenet_forward.1} parent=1 // pred_check
      _
    $region31: #{bn_lenet_forward.1} parent=1 // pred_check_branch
      %39 = sbr.rel (0) target = $region33
    $region32: #{bn_lenet_forward.1} parent=1 // pred_region
      _
    $region33: #{bn_lenet_forward.1} parent=1 // pred_fallthru
      _
    // Predicated region
    $region34: #{bn_lenet_forward.1} parent=1 // pred_check
      _
    $region35: #{bn_lenet_forward.1} parent=1 // pred_check_branch
      %41 = sbr.rel (0) target = $region37
    $region36: #{bn_lenet_forward.1} parent=1 // pred_region
      _
    $region37: #{bn_lenet_forward.1} parent=1 // pred_fallthru
      _
    // Predicated region
    $region38: #{bn_lenet_forward.1} parent=1 // pred_check
      _
    $region39: #{bn_lenet_forward.1} parent=1 // pred_check_branch
      %43 = sbr.rel (0) target = $region41
    $region40: #{bn_lenet_forward.1} parent=1 // pred_region
      _
    $region41: #{bn_lenet_forward.1} parent=1 // pred_fallthru
      _
    // Predicated region
    $region42: #{bn_lenet_forward.1} parent=1 // pred_check
      _
    $region43: #{bn_lenet_forward.1} parent=1 // pred_check_branch
      %45 = sbr.rel (0) target = $region45
    $region44: #{bn_lenet_forward.1} parent=1 // pred_region
      _
    $region45: #{bn_lenet_forward.1} parent=1 // pred_fallthru
      _
    // Predicated region
    $region46: #{bn_lenet_forward.1} parent=1 // pred_check
      _
    $region47: #{bn_lenet_forward.1} parent=1 // pred_check_branch
      %47 = sbr.rel (0) target = $region49
    $region48: #{bn_lenet_forward.1} parent=1 // pred_region
      _
    $region49: #{bn_lenet_forward.1} parent=1 // pred_fallthru
      _
    // Predicated region
    $region50: #{bn_lenet_forward.1} parent=1 // pred_check
      _
    $region51: #{bn_lenet_forward.1} parent=1 // pred_check_branch
      %49 = sbr.rel (0) target = $region53
    $region52: #{bn_lenet_forward.1} parent=1 // pred_region
      _
    $region53: #{bn_lenet_forward.1} parent=1 // pred_fallthru
      _
    // Predicated region
    $region54: #{bn_lenet_forward.1} parent=1 // pred_check
      _
    $region55: #{bn_lenet_forward.1} parent=1 // pred_check_branch
      %51 = sbr.rel (0) target = $region57
    $region56: #{bn_lenet_forward.1} parent=1 // pred_region
      _
    $region57: #{bn_lenet_forward.1} parent=1 // pred_fallthru
      _
    // Predicated region
    $region58: #{bn_lenet_forward.1} parent=1 // pred_check
      _
    $region59: #{bn_lenet_forward.1} parent=1 // pred_check_branch
      %53 = sbr.rel (0) target = $region61
    $region60: #{bn_lenet_forward.1} parent=1 // pred_region
      _
    $region61: #{bn_lenet_forward.1} parent=1 // pred_fallthru
      _
    // Predicated region
    $region62: #{bn_lenet_forward.1} parent=1 // pred_check
      _
    $region63: #{bn_lenet_forward.1} parent=1 // pred_check_branch
      %55 = sbr.rel (0) target = $region65
    $region64: #{bn_lenet_forward.1} parent=1 // pred_region
      _
    $region65: #{bn_lenet_forward.1} parent=1 // pred_fallthru
      _
    // Predicated region
    $region66: #{bn_lenet_forward.1} parent=1 // pred_check
      _
    $region67: #{bn_lenet_forward.1} parent=1 // pred_check_branch
      %57 = sbr.rel (0) target = $region69
    $region68: #{bn_lenet_forward.1} parent=1 // pred_region
      _
    $region69: #{bn_lenet_forward.1} parent=1 // pred_fallthru
      _
    // Predicated region
    $region70: #{bn_lenet_forward.1} parent=1 // pred_check
      _
    $region71: #{bn_lenet_forward.1} parent=1 // pred_check_branch
      %59 = sbr.rel (0) target = $region73
    $region72: #{bn_lenet_forward.1} parent=1 // pred_region
      _
    $region73: #{bn_lenet_forward.1} parent=1 // pred_fallthru
      _
    %v60 = vld [vmem:[%s0] sm:$0xff]
    %v61 = vld [vmem:[%s0 + $0x8] sm:$0xff]
    %v62 = vld [vmem:[%s0 + $0x18] sm:$0xff]
    %v63 = vld [vmem:[%s0 + $0x20] sm:$0xff]
    %v64 = vld [vmem:[%s0 + $0x30] sm:$0xff]
    %v65 = vld [vmem:[%s0 + $0x38] sm:$0xff]
    %v66 = vld [vmem:[%s0 + $0x48] sm:$0xff]
    %v67 = vld [vmem:[%s0 + $0x50] sm:$0xff]
    %v68 = vld [vmem:[%s0 + $0x60] sm:$0xff]
    %v69 = vld [vmem:[%s0 + $0x68] sm:$0xff]
    %v70 = vld [vmem:[%s0 + $0x78] sm:$0xff]
    %v71 = vld [vmem:[%s0 + $0x80] sm:$0xff]
    %v72 = vld [vmem:[%s0 + $0x90] sm:$0xff]
    %v73 = vld [vmem:[%s0 + $0x98] sm:$0xff]
    %v74 = vld [vmem:[%s0 + $0xa8] sm:$0xff]
    %v75 = vld [vmem:[%s0 + $0xb0] sm:$0xff]
    %v76 = vld [vmem:[%s0 + $0xc0] sm:$0xff]
    %v77 = vld [vmem:[%s0 + $0xc8] sm:$0xff]
    %v78 = vld [vmem:[%s0 + $0xd8] sm:$0xff]
    %v79 = vld [vmem:[%s0 + $0xe0] sm:$0xff]
    %v80 = vld [vmem:[%s0 + $0xf0] sm:$0xff]
    %v81 = vld [vmem:[%s0 + $0xf8] sm:$0xff]
    %v82 = vld [vmem:[%s0 + $0x108] sm:$0xff]
    %v83 = vld [vmem:[%s0 + $0x110] sm:$0xff]
    %v84 = vld [vmem:[%s0 + $0x120] sm:$0xff]
    %v85 = vld [vmem:[%s0 + $0x128] sm:$0xff]
    %v86 = vld [vmem:[%s0 + $0x138] sm:$0xff]
    %v87 = vld [vmem:[%s0 + $0x140] sm:$0xff]
    %v88 = vld [vmem:[%s0 + $0x150] sm:$0xff]
    %v89 = vld [vmem:[%s0 + $0x158] sm:$0xff]
    %v90 = vld [vmem:[%s0 + $0x168] sm:$0xff]
    %v91 = vld [vmem:[%s0 + $0x170] sm:$0xff]
    %v92 = vld [vmem:[%s0 + $0x1e0] sm:$0xff]
    %v93 = vld [vmem:[%s0 + $0x1e8] sm:$0xff]
    %v94 = vld [vmem:[%s0 + $0x1f8] sm:$0xff]
    %v95 = vld [vmem:[%s0 + $0x200] sm:$0xff]
    %v96 = vld [vmem:[%s0 + $0x210] sm:$0xff]
    %v97 = vld [vmem:[%s0 + $0x218] sm:$0xff]
    %v98 = vld [vmem:[%s0 + $0x228] sm:$0xff]
    %v99 = vld [vmem:[%s0 + $0x230] sm:$0xff]
    %v100 = vld [vmem:[%s0 + $0x240] sm:$0xff]
    %v101 = vld [vmem:[%s0 + $0x248] sm:$0xff]
    %v102 = vld [vmem:[%s0 + $0x258] sm:$0xff]
    %v103 = vld [vmem:[%s0 + $0x260] sm:$0xff]
    %v104 = vld [vmem:[%s0 + $0x270] sm:$0xff]
    %v105 = vld [vmem:[%s0 + $0x278] sm:$0xff]
    %v106 = vld [vmem:[%s0 + $0x288] sm:$0xff]
    %v107 = vld [vmem:[%s0 + $0x290] sm:$0xff]
    %v108 = vld [vmem:[%s0 + $0x2a0] sm:$0xff]
    %v109 = vld [vmem:[%s0 + $0x2a8] sm:$0xff]
    %v110 = vld [vmem:[%s0 + $0x2b8] sm:$0xff]
    %v111 = vld [vmem:[%s0 + $0x2c0] sm:$0xff]
    %v112 = vld [vmem:[%s0 + $0x2d0] sm:$0xff]
    %v113 = vld [vmem:[%s0 + $0x2d8] sm:$0xff]
    %v114 = vld [vmem:[%s0 + $0x2e8] sm:$0xff]
    %v115 = vld [vmem:[%s0 + $0x2f0] sm:$0xff]
    %v116 = vld [vmem:[%s0 + $0x300] sm:$0xff]
    %v117 = vld [vmem:[%s0 + $0x308] sm:$0xff]
    %v118 = vld [vmem:[%s0 + $0x318] sm:$0xff]
    %v119 = vld [vmem:[%s0 + $0x320] sm:$0xff]
    %v120 = vld [vmem:[%s0 + $0x330] sm:$0xff]
    %v121 = vld [vmem:[%s0 + $0x338] sm:$0xff]
    %v122 = vld [vmem:[%s0 + $0x348] sm:$0xff]
    %v123 = vld [vmem:[%s0 + $0x350] sm:$0xff]
    %v124 = vld [vmem:[%s0 + $0x1] sm:$0xff]
    %v125 = vld [vmem:[%s0 + $0x9] sm:$0xff]
    %v126 = vld [vmem:[%s0 + $0x19] sm:$0xff]
    %v127 = vld [vmem:[%s0 + $0x21] sm:$0xff]
    %v128 = vld [vmem:[%s0 + $0x31] sm:$0xff]
    %v129 = vld [vmem:[%s0 + $0x39] sm:$0xff]
    %v130 = vld [vmem:[%s0 + $0x49] sm:$0xff]
    %v131 = vld [vmem:[%s0 + $0x51] sm:$0xff]
    %v132 = vld [vmem:[%s0 + $0x61] sm:$0xff]
    %v133 = vld [vmem:[%s0 + $0x69] sm:$0xff]
    %v134 = vld [vmem:[%s0 + $0x79] sm:$0xff]
    %v135 = vld [vmem:[%s0 + $0x81] sm:$0xff]
    %v136 = vld [vmem:[%s0 + $0x91] sm:$0xff]
    %v137 = vld [vmem:[%s0 + $0x99] sm:$0xff]
    %v138 = vld [vmem:[%s0 + $0xa9] sm:$0xff]
    %v139 = vld [vmem:[%s0 + $0xb1] sm:$0xff]
    %v140 = vld [vmem:[%s0 + $0xc1] sm:$0xff]
    %v141 = vld [vmem:[%s0 + $0xc9] sm:$0xff]
    %v142 = vld [vmem:[%s0 + $0xd9] sm:$0xff]
    %v143 = vld [vmem:[%s0 + $0xe1] sm:$0xff]
    %v144 = vld [vmem:[%s0 + $0xf1] sm:$0xff]
    %v145 = vld [vmem:[%s0 + $0xf9] sm:$0xff]
    %v146 = vld [vmem:[%s0 + $0x109] sm:$0xff]
    %v147 = vld [vmem:[%s0 + $0x111] sm:$0xff]
    %v148 = vld [vmem:[%s0 + $0x121] sm:$0xff]
    %v149 = vld [vmem:[%s0 + $0x129] sm:$0xff]
    %v150 = vld [vmem:[%s0 + $0x139] sm:$0xff]
    %v151 = vld [vmem:[%s0 + $0x141] sm:$0xff]
    %v152 = vld [vmem:[%s0 + $0x151] sm:$0xff]
    %v153 = vld [vmem:[%s0 + $0x159] sm:$0xff]
    %v154 = vld [vmem:[%s0 + $0x169] sm:$0xff]
    %v155 = vld [vmem:[%s0 + $0x171] sm:$0xff]
    %v156 = vld [vmem:[%s0 + $0x1e1] sm:$0xff]
    %v157 = vld [vmem:[%s0 + $0x1e9] sm:$0xff]
    %v158 = vld [vmem:[%s0 + $0x1f9] sm:$0xff]
    %v159 = vld [vmem:[%s0 + $0x201] sm:$0xff]
    %v160 = vld [vmem:[%s0 + $0x211] sm:$0xff]
    %v161 = vld [vmem:[%s0 + $0x219] sm:$0xff]
    %v162 = vld [vmem:[%s0 + $0x229] sm:$0xff]
    %v163 = vld [vmem:[%s0 + $0x231] sm:$0xff]
    %v164 = vld [vmem:[%s0 + $0x241] sm:$0xff]
    %v165 = vld [vmem:[%s0 + $0x249] sm:$0xff]
    %v166 = vld [vmem:[%s0 + $0x259] sm:$0xff]
    %v167 = vld [vmem:[%s0 + $0x261] sm:$0xff]
    %v168 = vld [vmem:[%s0 + $0x271] sm:$0xff]
    %v169 = vld [vmem:[%s0 + $0x279] sm:$0xff]
    %v170 = vld [vmem:[%s0 + $0x289] sm:$0xff]
    %v171 = vld [vmem:[%s0 + $0x291] sm:$0xff]
    %v172 = vld [vmem:[%s0 + $0x2a1] sm:$0xff]
    %v173 = vld [vmem:[%s0 + $0x2a9] sm:$0xff]
    %v174 = vld [vmem:[%s0 + $0x2b9] sm:$0xff]
    %v175 = vld [vmem:[%s0 + $0x2c1] sm:$0xff]
    %v176 = vld [vmem:[%s0 + $0x2d1] sm:$0xff]
    %v177 = vld [vmem:[%s0 + $0x2d9] sm:$0xff]
    %v178 = vld [vmem:[%s0 + $0x2e9] sm:$0xff]
    %v179 = vld [vmem:[%s0 + $0x2f1] sm:$0xff]
    %v180 = vld [vmem:[%s0 + $0x301] sm:$0xff]
    %v181 = vld [vmem:[%s0 + $0x309] sm:$0xff]
    %v182 = vld [vmem:[%s0 + $0x319] sm:$0xff]
    %v183 = vld [vmem:[%s0 + $0x321] sm:$0xff]
    %v184 = vld [vmem:[%s0 + $0x331] sm:$0xff]
    %v185 = vld [vmem:[%s0 + $0x339] sm:$0xff]
    %v186 = vld [vmem:[%s0 + $0x349] sm:$0xff]
    %v187 = vld [vmem:[%s0 + $0x351] sm:$0xff]
    %v188 = vld [vmem:[%s0 + $0x2] sm:$0xff]
    %v189 = vld [vmem:[%s0 + $0xa] sm:$0xff]
    %v190 = vld [vmem:[%s0 + $0x1a] sm:$0xff]
    %v191 = vld [vmem:[%s0 + $0x22] sm:$0xff]
    %v192 = vld [vmem:[%s0 + $0x32] sm:$0xff]
    %v193 = vld [vmem:[%s0 + $0x3a] sm:$0xff]
    %v194 = vld [vmem:[%s0 + $0x4a] sm:$0xff]
    %v195 = vld [vmem:[%s0 + $0x52] sm:$0xff]
    %v196 = vld [vmem:[%s0 + $0x62] sm:$0xff]
    %v197 = vld [vmem:[%s0 + $0x6a] sm:$0xff]
    %v198 = vld [vmem:[%s0 + $0x7a] sm:$0xff]
    %v199 = vld [vmem:[%s0 + $0x82] sm:$0xff]
    %v200 = vld [vmem:[%s0 + $0x92] sm:$0xff]
    %v201 = vld [vmem:[%s0 + $0x9a] sm:$0xff]
    %v202 = vld [vmem:[%s0 + $0xaa] sm:$0xff]
    %v203 = vld [vmem:[%s0 + $0xb2] sm:$0xff]
    %v204 = vld [vmem:[%s0 + $0xc2] sm:$0xff]
    %v205 = vld [vmem:[%s0 + $0xca] sm:$0xff]
    %v206 = vld [vmem:[%s0 + $0xda] sm:$0xff]
    %v207 = vld [vmem:[%s0 + $0xe2] sm:$0xff]
    %v208 = vld [vmem:[%s0 + $0xf2] sm:$0xff]
    %v209 = vld [vmem:[%s0 + $0xfa] sm:$0xff]
    %v210 = vld [vmem:[%s0 + $0x10a] sm:$0xff]
    %v211 = vld [vmem:[%s0 + $0x112] sm:$0xff]
    %v212 = vld [vmem:[%s0 + $0x122] sm:$0xff]
    %v213 = vld [vmem:[%s0 + $0x12a] sm:$0xff]
    %v214 = vld [vmem:[%s0 + $0x13a] sm:$0xff]
    %v215 = vld [vmem:[%s0 + $0x142] sm:$0xff]
    %v216 = vld [vmem:[%s0 + $0x152] sm:$0xff]
    %v217 = vld [vmem:[%s0 + $0x15a] sm:$0xff]
    %v218 = vld [vmem:[%s0 + $0x16a] sm:$0xff]
    %v219 = vld [vmem:[%s0 + $0x172] sm:$0xff]
    %v220 = vld [vmem:[%s0 + $0x1e2] sm:$0xff]
    %v221 = vld [vmem:[%s0 + $0x1ea] sm:$0xff]
    %v222 = vld [vmem:[%s0 + $0x1fa] sm:$0xff]
    %v223 = vld [vmem:[%s0 + $0x202] sm:$0xff]
    %v224 = vld [vmem:[%s0 + $0x212] sm:$0xff]
    %v225 = vld [vmem:[%s0 + $0x21a] sm:$0xff]
    %v226 = vld [vmem:[%s0 + $0x22a] sm:$0xff]
    %v227 = vld [vmem:[%s0 + $0x232] sm:$0xff]
    %v228 = vld [vmem:[%s0 + $0x242] sm:$0xff]
    %v229 = vld [vmem:[%s0 + $0x24a] sm:$0xff]
    %v230 = vld [vmem:[%s0 + $0x25a] sm:$0xff]
    %v231 = vld [vmem:[%s0 + $0x262] sm:$0xff]
    %v232 = vld [vmem:[%s0 + $0x272] sm:$0xff]
    %v233 = vld [vmem:[%s0 + $0x27a] sm:$0xff]
    %v234 = vld [vmem:[%s0 + $0x28a] sm:$0xff]
    %v235 = vld [vmem:[%s0 + $0x292] sm:$0xff]
    %v236 = vld [vmem:[%s0 + $0x2a2] sm:$0xff]
    %v237 = vld [vmem:[%s0 + $0x2aa] sm:$0xff]
    %v238 = vld [vmem:[%s0 + $0x2ba] sm:$0xff]
    %v239 = vld [vmem:[%s0 + $0x2c2] sm:$0xff]
    %v240 = vld [vmem:[%s0 + $0x2d2] sm:$0xff]
    %v241 = vld [vmem:[%s0 + $0x2da] sm:$0xff]
    %v242 = vld [vmem:[%s0 + $0x2ea] sm:$0xff]
    %v243 = vld [vmem:[%s0 + $0x2f2] sm:$0xff]
    %v244 = vld [vmem:[%s0 + $0x302] sm:$0xff]
    %v245 = vld [vmem:[%s0 + $0x30a] sm:$0xff]
    %v246 = vld [vmem:[%s0 + $0x31a] sm:$0xff]
    %v247 = vld [vmem:[%s0 + $0x322] sm:$0xff]
    %v248 = vld [vmem:[%s0 + $0x332] sm:$0xff]
    %v249 = vld [vmem:[%s0 + $0x33a] sm:$0xff]
    %v250 = vld [vmem:[%s0 + $0x34a] sm:$0xff]
    %v251 = vld [vmem:[%s0 + $0x352] sm:$0xff]
    %v252 = vld [vmem:[%s0 + $0x3] sm:$0xff]
    %v253 = vld [vmem:[%s0 + $0xb] sm:$0xff]
    %v254 = vld [vmem:[%s0 + $0x1b] sm:$0xff]
    %v255 = vld [vmem:[%s0 + $0x23] sm:$0xff]
    %v256 = vld [vmem:[%s0 + $0x33] sm:$0xff]
    %v257 = vld [vmem:[%s0 + $0x3b] sm:$0xff]
    %v258 = vld [vmem:[%s0 + $0x4b] sm:$0xff]
    %v259 = vld [vmem:[%s0 + $0x53] sm:$0xff]
    %v260 = vld [vmem:[%s0 + $0x63] sm:$0xff]
    %v261 = vld [vmem:[%s0 + $0x6b] sm:$0xff]
    %v262 = vld [vmem:[%s0 + $0x7b] sm:$0xff]
    %v263 = vld [vmem:[%s0 + $0x83] sm:$0xff]
    %v264 = vld [vmem:[%s0 + $0x93] sm:$0xff]
    %v265 = vld [vmem:[%s0 + $0x9b] sm:$0xff]
    %v266 = vld [vmem:[%s0 + $0xab] sm:$0xff]
    %v267 = vld [vmem:[%s0 + $0xb3] sm:$0xff]
    %v268 = vld [vmem:[%s0 + $0xc3] sm:$0xff]
    %v269 = vld [vmem:[%s0 + $0xcb] sm:$0xff]
    %v270 = vld [vmem:[%s0 + $0xdb] sm:$0xff]
    %v271 = vld [vmem:[%s0 + $0xe3] sm:$0xff]
    %v272 = vld [vmem:[%s0 + $0xf3] sm:$0xff]
    %v273 = vld [vmem:[%s0 + $0xfb] sm:$0xff]
    %v274 = vld [vmem:[%s0 + $0x10b] sm:$0xff]
    %v275 = vld [vmem:[%s0 + $0x113] sm:$0xff]
    %v276 = vld [vmem:[%s0 + $0x123] sm:$0xff]
    %v277 = vld [vmem:[%s0 + $0x12b] sm:$0xff]
    %v278 = vld [vmem:[%s0 + $0x13b] sm:$0xff]
    %v279 = vld [vmem:[%s0 + $0x143] sm:$0xff]
    %v280 = vld [vmem:[%s0 + $0x153] sm:$0xff]
    %v281 = vld [vmem:[%s0 + $0x15b] sm:$0xff]
    %v282 = vld [vmem:[%s0 + $0x16b] sm:$0xff]
    %v283 = vld [vmem:[%s0 + $0x173] sm:$0xff]
    %v284 = vld [vmem:[%s0 + $0x1e3] sm:$0xff]
    %v285 = vld [vmem:[%s0 + $0x1eb] sm:$0xff]
    %v286 = vld [vmem:[%s0 + $0x1fb] sm:$0xff]
    %v287 = vld [vmem:[%s0 + $0x203] sm:$0xff]
    %v288 = vld [vmem:[%s0 + $0x213] sm:$0xff]
    %v289 = vld [vmem:[%s0 + $0x21b] sm:$0xff]
    %v290 = vld [vmem:[%s0 + $0x22b] sm:$0xff]
    %v291 = vld [vmem:[%s0 + $0x233] sm:$0xff]
    %v292 = vld [vmem:[%s0 + $0x243] sm:$0xff]
    %v293 = vld [vmem:[%s0 + $0x24b] sm:$0xff]
    %v294 = vld [vmem:[%s0 + $0x25b] sm:$0xff]
    %v295 = vld [vmem:[%s0 + $0x263] sm:$0xff]
    %v296 = vld [vmem:[%s0 + $0x273] sm:$0xff]
    %v297 = vld [vmem:[%s0 + $0x27b] sm:$0xff]
    %v298 = vld [vmem:[%s0 + $0x28b] sm:$0xff]
    %v299 = vld [vmem:[%s0 + $0x293] sm:$0xff]
    %v300 = vld [vmem:[%s0 + $0x2a3] sm:$0xff]
    %v301 = vld [vmem:[%s0 + $0x2ab] sm:$0xff]
    %v302 = vld [vmem:[%s0 + $0x2bb] sm:$0xff]
    %v303 = vld [vmem:[%s0 + $0x2c3] sm:$0xff]
    %v304 = vld [vmem:[%s0 + $0x2d3] sm:$0xff]
    %v305 = vld [vmem:[%s0 + $0x2db] sm:$0xff]
    %v306 = vld [vmem:[%s0 + $0x2eb] sm:$0xff]
    %v307 = vld [vmem:[%s0 + $0x2f3] sm:$0xff]
    %v308 = vld [vmem:[%s0 + $0x303] sm:$0xff]
    %v309 = vld [vmem:[%s0 + $0x30b] sm:$0xff]
    %v310 = vld [vmem:[%s0 + $0x31b] sm:$0xff]
    %v311 = vld [vmem:[%s0 + $0x323] sm:$0xff]
    %v312 = vld [vmem:[%s0 + $0x333] sm:$0xff]
    %v313 = vld [vmem:[%s0 + $0x33b] sm:$0xff]
    %v314 = vld [vmem:[%s0 + $0x34b] sm:$0xff]
    %v315 = vld [vmem:[%s0 + $0x353] sm:$0xff]
    %v316 = vld [vmem:[%s0 + $0x4] sm:$0xff]
    %v317 = vld [vmem:[%s0 + $0xc] sm:$0xff]
    %v318 = vld [vmem:[%s0 + $0x1c] sm:$0xff]
    %v319 = vld [vmem:[%s0 + $0x24] sm:$0xff]
    %v320 = vld [vmem:[%s0 + $0x34] sm:$0xff]
    %v321 = vld [vmem:[%s0 + $0x3c] sm:$0xff]
    %v322 = vld [vmem:[%s0 + $0x4c] sm:$0xff]
    %v323 = vld [vmem:[%s0 + $0x54] sm:$0xff]
    %v324 = vld [vmem:[%s0 + $0x64] sm:$0xff]
    %v325 = vld [vmem:[%s0 + $0x6c] sm:$0xff]
    %v326 = vld [vmem:[%s0 + $0x7c] sm:$0xff]
    %v327 = vld [vmem:[%s0 + $0x84] sm:$0xff]
    %v328 = vld [vmem:[%s0 + $0x94] sm:$0xff]
    %v329 = vld [vmem:[%s0 + $0x9c] sm:$0xff]
    %v330 = vld [vmem:[%s0 + $0xac] sm:$0xff]
    %v331 = vld [vmem:[%s0 + $0xb4] sm:$0xff]
    %v332 = vld [vmem:[%s0 + $0xc4] sm:$0xff]
    %v333 = vld [vmem:[%s0 + $0xcc] sm:$0xff]
    %v334 = vld [vmem:[%s0 + $0xdc] sm:$0xff]
    %v335 = vld [vmem:[%s0 + $0xe4] sm:$0xff]
    %v336 = vld [vmem:[%s0 + $0xf4] sm:$0xff]
    %v337 = vld [vmem:[%s0 + $0xfc] sm:$0xff]
    %v338 = vld [vmem:[%s0 + $0x10c] sm:$0xff]
    %v339 = vld [vmem:[%s0 + $0x114] sm:$0xff]
    %v340 = vld [vmem:[%s0 + $0x124] sm:$0xff]
    %v341 = vld [vmem:[%s0 + $0x12c] sm:$0xff]
    %v342 = vld [vmem:[%s0 + $0x13c] sm:$0xff]
    %v343 = vld [vmem:[%s0 + $0x144] sm:$0xff]
    %v344 = vld [vmem:[%s0 + $0x154] sm:$0xff]
    %v345 = vld [vmem:[%s0 + $0x15c] sm:$0xff]
    %v346 = vld [vmem:[%s0 + $0x16c] sm:$0xff]
    %v347 = vld [vmem:[%s0 + $0x174] sm:$0xff]
    %v348 = vld [vmem:[%s0 + $0x1e4] sm:$0xff]
    %v349 = vld [vmem:[%s0 + $0x1ec] sm:$0xff]
    %v350 = vld [vmem:[%s0 + $0x1fc] sm:$0xff]
    %v351 = vld [vmem:[%s0 + $0x204] sm:$0xff]
    %v352 = vld [vmem:[%s0 + $0x214] sm:$0xff]
    %v353 = vld [vmem:[%s0 + $0x21c] sm:$0xff]
    %v354 = vld [vmem:[%s0 + $0x22c] sm:$0xff]
    %v355 = vld [vmem:[%s0 + $0x234] sm:$0xff]
    %v356 = vld [vmem:[%s0 + $0x244] sm:$0xff]
    %v357 = vld [vmem:[%s0 + $0x24c] sm:$0xff]
    %v358 = vld [vmem:[%s0 + $0x25c] sm:$0xff]
    %v359 = vld [vmem:[%s0 + $0x264] sm:$0xff]
    %v360 = vld [vmem:[%s0 + $0x274] sm:$0xff]
    %v361 = vld [vmem:[%s0 + $0x27c] sm:$0xff]
    %v362 = vld [vmem:[%s0 + $0x28c] sm:$0xff]
    %v363 = vld [vmem:[%s0 + $0x294] sm:$0xff]
    %v364 = vld [vmem:[%s0 + $0x2a4] sm:$0xff]
    %v365 = vld [vmem:[%s0 + $0x2ac] sm:$0xff]
    %v366 = vld [vmem:[%s0 + $0x2bc] sm:$0xff]
    %v367 = vld [vmem:[%s0 + $0x2c4] sm:$0xff]
    %v368 = vld [vmem:[%s0 + $0x2d4] sm:$0xff]
    %v369 = vld [vmem:[%s0 + $0x2dc] sm:$0xff]
    %v370 = vld [vmem:[%s0 + $0x2ec] sm:$0xff]
    %v371 = vld [vmem:[%s0 + $0x2f4] sm:$0xff]
    %v372 = vld [vmem:[%s0 + $0x304] sm:$0xff]
    %v373 = vld [vmem:[%s0 + $0x30c] sm:$0xff]
    %v374 = vld [vmem:[%s0 + $0x31c] sm:$0xff]
    %v375 = vld [vmem:[%s0 + $0x324] sm:$0xff]
    %v376 = vld [vmem:[%s0 + $0x334] sm:$0xff]
    %v377 = vld [vmem:[%s0 + $0x33c] sm:$0xff]
    %v378 = vld [vmem:[%s0 + $0x34c] sm:$0xff]
    %v379 = vld [vmem:[%s0 + $0x354] sm:$0xff]
    %s380 = scalar_lea.vmem %s0, 24
    %v381 = vld [vmem:[%s380] sm:$0xff]
    %v382 = vld [vmem:[%s380 + $0x8] sm:$0xff]
    %v383 = vld [vmem:[%s380 + $0x18] sm:$0xff]
    %v384 = vld [vmem:[%s380 + $0x20] sm:$0xff]
    %v385 = vld [vmem:[%s380 + $0x30] sm:$0xff]
    %v386 = vld [vmem:[%s380 + $0x38] sm:$0xff]
    %v387 = vld [vmem:[%s380 + $0x48] sm:$0xff]
    %v388 = vld [vmem:[%s380 + $0x50] sm:$0xff]
    %v389 = vld [vmem:[%s380 + $0x60] sm:$0xff]
    %v390 = vld [vmem:[%s380 + $0x68] sm:$0xff]
    %v391 = vld [vmem:[%s380 + $0x78] sm:$0xff]
    %v392 = vld [vmem:[%s380 + $0x80] sm:$0xff]
    %v393 = vld [vmem:[%s380 + $0x90] sm:$0xff]
    %v394 = vld [vmem:[%s380 + $0x98] sm:$0xff]
    %v395 = vld [vmem:[%s380 + $0xa8] sm:$0xff]
    %v396 = vld [vmem:[%s380 + $0xb0] sm:$0xff]
    %v397 = vld [vmem:[%s380 + $0xc0] sm:$0xff]
    %v398 = vld [vmem:[%s380 + $0xc8] sm:$0xff]
    %v399 = vld [vmem:[%s380 + $0xd8] sm:$0xff]
    %v400 = vld [vmem:[%s380 + $0xe0] sm:$0xff]
    %v401 = vld [vmem:[%s380 + $0xf0] sm:$0xff]
    %v402 = vld [vmem:[%s380 + $0xf8] sm:$0xff]
    %v403 = vld [vmem:[%s380 + $0x108] sm:$0xff]
    %v404 = vld [vmem:[%s380 + $0x110] sm:$0xff]
    %v405 = vld [vmem:[%s380 + $0x120] sm:$0xff]
    %v406 = vld [vmem:[%s380 + $0x128] sm:$0xff]
    %v407 = vld [vmem:[%s380 + $0x138] sm:$0xff]
    %v408 = vld [vmem:[%s380 + $0x140] sm:$0xff]
    %v409 = vld [vmem:[%s380 + $0x150] sm:$0xff]
    %v410 = vld [vmem:[%s380 + $0x158] sm:$0xff]
    %v411 = vld [vmem:[%s380 + $0x168] sm:$0xff]
    %v412 = vld [vmem:[%s380 + $0x170] sm:$0xff]
    %v413 = vld [vmem:[%s380 + $0x1e0] sm:$0xff]
    %v414 = vld [vmem:[%s380 + $0x1e8] sm:$0xff]
    %v415 = vld [vmem:[%s380 + $0x1f8] sm:$0xff]
    %v416 = vld [vmem:[%s380 + $0x200] sm:$0xff]
    %v417 = vld [vmem:[%s380 + $0x210] sm:$0xff]
    %v418 = vld [vmem:[%s380 + $0x218] sm:$0xff]
    %v419 = vld [vmem:[%s380 + $0x228] sm:$0xff]
    %v420 = vld [vmem:[%s380 + $0x230] sm:$0xff]
    %v421 = vld [vmem:[%s380 + $0x240] sm:$0xff]
    %v422 = vld [vmem:[%s380 + $0x248] sm:$0xff]
    %v423 = vld [vmem:[%s380 + $0x258] sm:$0xff]
    %v424 = vld [vmem:[%s380 + $0x260] sm:$0xff]
    %v425 = vld [vmem:[%s380 + $0x270] sm:$0xff]
    %v426 = vld [vmem:[%s380 + $0x278] sm:$0xff]
    %v427 = vld [vmem:[%s380 + $0x288] sm:$0xff]
    %v428 = vld [vmem:[%s380 + $0x290] sm:$0xff]
    %v429 = vld [vmem:[%s380 + $0x2a0] sm:$0xff]
    %v430 = vld [vmem:[%s380 + $0x2a8] sm:$0xff]
    %v431 = vld [vmem:[%s380 + $0x2b8] sm:$0xff]
    %v432 = vld [vmem:[%s380 + $0x2c0] sm:$0xff]
    %v433 = vld [vmem:[%s380 + $0x2d0] sm:$0xff]
    %v434 = vld [vmem:[%s380 + $0x2d8] sm:$0xff]
    %v435 = vld [vmem:[%s380 + $0x2e8] sm:$0xff]
    %v436 = vld [vmem:[%s380 + $0x2f0] sm:$0xff]
    %v437 = vld [vmem:[%s380 + $0x300] sm:$0xff]
    %v438 = vld [vmem:[%s380 + $0x308] sm:$0xff]
    %v439 = vld [vmem:[%s380 + $0x318] sm:$0xff]
    %v440 = vld [vmem:[%s380 + $0x320] sm:$0xff]
    %v441 = vld [vmem:[%s380 + $0x330] sm:$0xff]
    %v442 = vld [vmem:[%s380 + $0x338] sm:$0xff]
    %v443 = vld [vmem:[%s380 + $0x348] sm:$0xff]
    %v444 = vld [vmem:[%s380 + $0x350] sm:$0xff]
    %v445 = vld [vmem:[%s380 + $0x1] sm:$0xff]
    %v446 = vld [vmem:[%s380 + $0x9] sm:$0xff]
    %v447 = vld [vmem:[%s380 + $0x19] sm:$0xff]
    %v448 = vld [vmem:[%s380 + $0x21] sm:$0xff]
    %v449 = vld [vmem:[%s380 + $0x31] sm:$0xff]
    %v450 = vld [vmem:[%s380 + $0x39] sm:$0xff]
    %v451 = vld [vmem:[%s380 + $0x49] sm:$0xff]
    %v452 = vld [vmem:[%s380 + $0x51] sm:$0xff]
    %v453 = vld [vmem:[%s380 + $0x61] sm:$0xff]
    %v454 = vld [vmem:[%s380 + $0x69] sm:$0xff]
    %v455 = vld [vmem:[%s380 + $0x79] sm:$0xff]
    %v456 = vld [vmem:[%s380 + $0x81] sm:$0xff]
    %v457 = vld [vmem:[%s380 + $0x91] sm:$0xff]
    %v458 = vld [vmem:[%s380 + $0x99] sm:$0xff]
    %v459 = vld [vmem:[%s380 + $0xa9] sm:$0xff]
    %v460 = vld [vmem:[%s380 + $0xb1] sm:$0xff]
    %v461 = vld [vmem:[%s380 + $0xc1] sm:$0xff]
    %v462 = vld [vmem:[%s380 + $0xc9] sm:$0xff]
    %v463 = vld [vmem:[%s380 + $0xd9] sm:$0xff]
    %v464 = vld [vmem:[%s380 + $0xe1] sm:$0xff]
    %v465 = vld [vmem:[%s380 + $0xf1] sm:$0xff]
    %v466 = vld [vmem:[%s380 + $0xf9] sm:$0xff]
    %v467 = vld [vmem:[%s380 + $0x109] sm:$0xff]
    %v468 = vld [vmem:[%s380 + $0x111] sm:$0xff]
    %v469 = vld [vmem:[%s380 + $0x121] sm:$0xff]
    %v470 = vld [vmem:[%s380 + $0x129] sm:$0xff]
    %v471 = vld [vmem:[%s380 + $0x139] sm:$0xff]
    %v472 = vld [vmem:[%s380 + $0x141] sm:$0xff]
    %v473 = vld [vmem:[%s380 + $0x151] sm:$0xff]
    %v474 = vld [vmem:[%s380 + $0x159] sm:$0xff]
    %v475 = vld [vmem:[%s380 + $0x169] sm:$0xff]
    %v476 = vld [vmem:[%s380 + $0x171] sm:$0xff]
    %v477 = vld [vmem:[%s380 + $0x1e1] sm:$0xff]
    %v478 = vld [vmem:[%s380 + $0x1e9] sm:$0xff]
    %v479 = vld [vmem:[%s380 + $0x1f9] sm:$0xff]
    %v480 = vld [vmem:[%s380 + $0x201] sm:$0xff]
    %v481 = vld [vmem:[%s380 + $0x211] sm:$0xff]
    %v482 = vld [vmem:[%s380 + $0x219] sm:$0xff]
    %v483 = vld [vmem:[%s380 + $0x229] sm:$0xff]
    %v484 = vld [vmem:[%s380 + $0x231] sm:$0xff]
    %v485 = vld [vmem:[%s380 + $0x241] sm:$0xff]
    %v486 = vld [vmem:[%s380 + $0x249] sm:$0xff]
    %v487 = vld [vmem:[%s380 + $0x259] sm:$0xff]
    %v488 = vld [vmem:[%s380 + $0x261] sm:$0xff]
    %v489 = vld [vmem:[%s380 + $0x271] sm:$0xff]
    %v490 = vld [vmem:[%s380 + $0x279] sm:$0xff]
    %v491 = vld [vmem:[%s380 + $0x289] sm:$0xff]
    %v492 = vld [vmem:[%s380 + $0x291] sm:$0xff]
    %v493 = vld [vmem:[%s380 + $0x2a1] sm:$0xff]
    %v494 = vld [vmem:[%s380 + $0x2a9] sm:$0xff]
    %v495 = vld [vmem:[%s380 + $0x2b9] sm:$0xff]
    %v496 = vld [vmem:[%s380 + $0x2c1] sm:$0xff]
    %v497 = vld [vmem:[%s380 + $0x2d1] sm:$0xff]
    %v498 = vld [vmem:[%s380 + $0x2d9] sm:$0xff]
    %v499 = vld [vmem:[%s380 + $0x2e9] sm:$0xff]
    %v500 = vld [vmem:[%s380 + $0x2f1] sm:$0xff]
    %v501 = vld [vmem:[%s380 + $0x301] sm:$0xff]
    %v502 = vld [vmem:[%s380 + $0x309] sm:$0xff]
    %v503 = vld [vmem:[%s380 + $0x319] sm:$0xff]
    %v504 = vld [vmem:[%s380 + $0x321] sm:$0xff]
    %v505 = vld [vmem:[%s380 + $0x331] sm:$0xff]
    %v506 = vld [vmem:[%s380 + $0x339] sm:$0xff]
    %v507 = vld [vmem:[%s380 + $0x349] sm:$0xff]
    %v508 = vld [vmem:[%s380 + $0x351] sm:$0xff]
    %v509 = vld [vmem:[%s380 + $0x2] sm:$0xff]
    %v510 = vld [vmem:[%s380 + $0xa] sm:$0xff]
    %v511 = vld [vmem:[%s380 + $0x1a] sm:$0xff]
    %v512 = vld [vmem:[%s380 + $0x22] sm:$0xff]
    %v513 = vld [vmem:[%s380 + $0x32] sm:$0xff]
    %v514 = vld [vmem:[%s380 + $0x3a] sm:$0xff]
    %v515 = vld [vmem:[%s380 + $0x4a] sm:$0xff]
    %v516 = vld [vmem:[%s380 + $0x52] sm:$0xff]
    %v517 = vld [vmem:[%s380 + $0x62] sm:$0xff]
    %v518 = vld [vmem:[%s380 + $0x6a] sm:$0xff]
    %v519 = vld [vmem:[%s380 + $0x7a] sm:$0xff]
    %v520 = vld [vmem:[%s380 + $0x82] sm:$0xff]
    %v521 = vld [vmem:[%s380 + $0x92] sm:$0xff]
    %v522 = vld [vmem:[%s380 + $0x9a] sm:$0xff]
    %v523 = vld [vmem:[%s380 + $0xaa] sm:$0xff]
    %v524 = vld [vmem:[%s380 + $0xb2] sm:$0xff]
    %v525 = vld [vmem:[%s380 + $0xc2] sm:$0xff]
    %v526 = vld [vmem:[%s380 + $0xca] sm:$0xff]
    %v527 = vld [vmem:[%s380 + $0xda] sm:$0xff]
    %v528 = vld [vmem:[%s380 + $0xe2] sm:$0xff]
    %v529 = vld [vmem:[%s380 + $0xf2] sm:$0xff]
    %v530 = vld [vmem:[%s380 + $0xfa] sm:$0xff]
    %v531 = vld [vmem:[%s380 + $0x10a] sm:$0xff]
    %v532 = vld [vmem:[%s380 + $0x112] sm:$0xff]
    %v533 = vld [vmem:[%s380 + $0x122] sm:$0xff]
    %v534 = vld [vmem:[%s380 + $0x12a] sm:$0xff]
    %v535 = vld [vmem:[%s380 + $0x13a] sm:$0xff]
    %v536 = vld [vmem:[%s380 + $0x142] sm:$0xff]
    %v537 = vld [vmem:[%s380 + $0x152] sm:$0xff]
    %v538 = vld [vmem:[%s380 + $0x15a] sm:$0xff]
    %v539 = vld [vmem:[%s380 + $0x16a] sm:$0xff]
    %v540 = vld [vmem:[%s380 + $0x172] sm:$0xff]
    %v541 = vld [vmem:[%s380 + $0x1e2] sm:$0xff]
    %v542 = vld [vmem:[%s380 + $0x1ea] sm:$0xff]
    %v543 = vld [vmem:[%s380 + $0x1fa] sm:$0xff]
    %v544 = vld [vmem:[%s380 + $0x202] sm:$0xff]
    %v545 = vld [vmem:[%s380 + $0x212] sm:$0xff]
    %v546 = vld [vmem:[%s380 + $0x21a] sm:$0xff]
    %v547 = vld [vmem:[%s380 + $0x22a] sm:$0xff]
    %v548 = vld [vmem:[%s380 + $0x232] sm:$0xff]
    %v549 = vld [vmem:[%s380 + $0x242] sm:$0xff]
    %v550 = vld [vmem:[%s380 + $0x24a] sm:$0xff]
    %v551 = vld [vmem:[%s380 + $0x25a] sm:$0xff]
    %v552 = vld [vmem:[%s380 + $0x262] sm:$0xff]
    %v553 = vld [vmem:[%s380 + $0x272] sm:$0xff]
    %v554 = vld [vmem:[%s380 + $0x27a] sm:$0xff]
    %v555 = vld [vmem:[%s380 + $0x28a] sm:$0xff]
    %v556 = vld [vmem:[%s380 + $0x292] sm:$0xff]
    %v557 = vld [vmem:[%s380 + $0x2a2] sm:$0xff]
    %v558 = vld [vmem:[%s380 + $0x2aa] sm:$0xff]
    %v559 = vld [vmem:[%s380 + $0x2ba] sm:$0xff]
    %v560 = vld [vmem:[%s380 + $0x2c2] sm:$0xff]
    %v561 = vld [vmem:[%s380 + $0x2d2] sm:$0xff]
    %v562 = vld [vmem:[%s380 + $0x2da] sm:$0xff]
    %v563 = vld [vmem:[%s380 + $0x2ea] sm:$0xff]
    %v564 = vld [vmem:[%s380 + $0x2f2] sm:$0xff]
    %v565 = vld [vmem:[%s380 + $0x302] sm:$0xff]
    %v566 = vld [vmem:[%s380 + $0x30a] sm:$0xff]
    %v567 = vld [vmem:[%s380 + $0x31a] sm:$0xff]
    %v568 = vld [vmem:[%s380 + $0x322] sm:$0xff]
    %v569 = vld [vmem:[%s380 + $0x332] sm:$0xff]
    %v570 = vld [vmem:[%s380 + $0x33a] sm:$0xff]
    %v571 = vld [vmem:[%s380 + $0x34a] sm:$0xff]
    %v572 = vld [vmem:[%s380 + $0x352] sm:$0xff]
    %v573 = vld [vmem:[%s380 + $0x3] sm:$0xff]
    %v574 = vld [vmem:[%s380 + $0xb] sm:$0xff]
    %v575 = vld [vmem:[%s380 + $0x1b] sm:$0xff]
    %v576 = vld [vmem:[%s380 + $0x23] sm:$0xff]
    %v577 = vld [vmem:[%s380 + $0x33] sm:$0xff]
    %v578 = vld [vmem:[%s380 + $0x3b] sm:$0xff]
    %v579 = vld [vmem:[%s380 + $0x4b] sm:$0xff]
    %v580 = vld [vmem:[%s380 + $0x53] sm:$0xff]
    %v581 = vld [vmem:[%s380 + $0x63] sm:$0xff]
    %v582 = vld [vmem:[%s380 + $0x6b] sm:$0xff]
    %v583 = vld [vmem:[%s380 + $0x7b] sm:$0xff]
    %v584 = vld [vmem:[%s380 + $0x83] sm:$0xff]
    %v585 = vld [vmem:[%s380 + $0x93] sm:$0xff]
    %v586 = vld [vmem:[%s380 + $0x9b] sm:$0xff]
    %v587 = vld [vmem:[%s380 + $0xab] sm:$0xff]
    %v588 = vld [vmem:[%s380 + $0xb3] sm:$0xff]
    %v589 = vld [vmem:[%s380 + $0xc3] sm:$0xff]
    %v590 = vld [vmem:[%s380 + $0xcb] sm:$0xff]
    %v591 = vld [vmem:[%s380 + $0xdb] sm:$0xff]
    %v592 = vld [vmem:[%s380 + $0xe3] sm:$0xff]
    %v593 = vld [vmem:[%s380 + $0xf3] sm:$0xff]
    %v594 = vld [vmem:[%s380 + $0xfb] sm:$0xff]
    %v595 = vld [vmem:[%s380 + $0x10b] sm:$0xff]
    %v596 = vld [vmem:[%s380 + $0x113] sm:$0xff]
    %v597 = vld [vmem:[%s380 + $0x123] sm:$0xff]
    %v598 = vld [vmem:[%s380 + $0x12b] sm:$0xff]
    %v599 = vld [vmem:[%s380 + $0x13b] sm:$0xff]
    %v600 = vld [vmem:[%s380 + $0x143] sm:$0xff]
    %v601 = vld [vmem:[%s380 + $0x153] sm:$0xff]
    %v602 = vld [vmem:[%s380 + $0x15b] sm:$0xff]
    %v603 = vld [vmem:[%s380 + $0x16b] sm:$0xff]
    %v604 = vld [vmem:[%s380 + $0x173] sm:$0xff]
    %v605 = vld [vmem:[%s380 + $0x1e3] sm:$0xff]
    %v606 = vld [vmem:[%s380 + $0x1eb] sm:$0xff]
    %v607 = vld [vmem:[%s380 + $0x1fb] sm:$0xff]
    %v608 = vld [vmem:[%s380 + $0x203] sm:$0xff]
    %v609 = vld [vmem:[%s380 + $0x213] sm:$0xff]
    %v610 = vld [vmem:[%s380 + $0x21b] sm:$0xff]
    %v611 = vld [vmem:[%s380 + $0x22b] sm:$0xff]
    %v612 = vld [vmem:[%s380 + $0x233] sm:$0xff]
    %v613 = vld [vmem:[%s380 + $0x243] sm:$0xff]
    %v614 = vld [vmem:[%s380 + $0x24b] sm:$0xff]
    %v615 = vld [vmem:[%s380 + $0x25b] sm:$0xff]
    %v616 = vld [vmem:[%s380 + $0x263] sm:$0xff]
    %v617 = vld [vmem:[%s380 + $0x273] sm:$0xff]
    %v618 = vld [vmem:[%s380 + $0x27b] sm:$0xff]
    %v619 = vld [vmem:[%s380 + $0x28b] sm:$0xff]
    %v620 = vld [vmem:[%s380 + $0x293] sm:$0xff]
    %v621 = vld [vmem:[%s380 + $0x2a3] sm:$0xff]
    %v622 = vld [vmem:[%s380 + $0x2ab] sm:$0xff]
    %v623 = vld [vmem:[%s380 + $0x2bb] sm:$0xff]
    %v624 = vld [vmem:[%s380 + $0x2c3] sm:$0xff]
    %v625 = vld [vmem:[%s380 + $0x2d3] sm:$0xff]
    %v626 = vld [vmem:[%s380 + $0x2db] sm:$0xff]
    %v627 = vld [vmem:[%s380 + $0x2eb] sm:$0xff]
    %v628 = vld [vmem:[%s380 + $0x2f3] sm:$0xff]
    %v629 = vld [vmem:[%s380 + $0x303] sm:$0xff]
    %v630 = vld [vmem:[%s380 + $0x30b] sm:$0xff]
    %v631 = vld [vmem:[%s380 + $0x31b] sm:$0xff]
    %v632 = vld [vmem:[%s380 + $0x323] sm:$0xff]
    %v633 = vld [vmem:[%s380 + $0x333] sm:$0xff]
    %v634 = vld [vmem:[%s380 + $0x33b] sm:$0xff]
    %v635 = vld [vmem:[%s380 + $0x34b] sm:$0xff]
    %v636 = vld [vmem:[%s380 + $0x353] sm:$0xff]
    %v637 = vld [vmem:[%s380 + $0x4] sm:$0xff]
    %v638 = vld [vmem:[%s380 + $0xc] sm:$0xff]
    %v639 = vld [vmem:[%s380 + $0x1c] sm:$0xff]
    %v640 = vld [vmem:[%s380 + $0x24] sm:$0xff]
    %v641 = vld [vmem:[%s380 + $0x34] sm:$0xff]
    %v642 = vld [vmem:[%s380 + $0x3c] sm:$0xff]
    %v643 = vld [vmem:[%s380 + $0x4c] sm:$0xff]
    %v644 = vld [vmem:[%s380 + $0x54] sm:$0xff]
    %v645 = vld [vmem:[%s380 + $0x64] sm:$0xff]
    %v646 = vld [vmem:[%s380 + $0x6c] sm:$0xff]
    %v647 = vld [vmem:[%s380 + $0x7c] sm:$0xff]
    %v648 = vld [vmem:[%s380 + $0x84] sm:$0xff]
    %v649 = vld [vmem:[%s380 + $0x94] sm:$0xff]
    %v650 = vld [vmem:[%s380 + $0x9c] sm:$0xff]
    %v651 = vld [vmem:[%s380 + $0xac] sm:$0xff]
    %v652 = vld [vmem:[%s380 + $0xb4] sm:$0xff]
    %v653 = vld [vmem:[%s380 + $0xc4] sm:$0xff]
    %v654 = vld [vmem:[%s380 + $0xcc] sm:$0xff]
    %v655 = vld [vmem:[%s380 + $0xdc] sm:$0xff]
    %v656 = vld [vmem:[%s380 + $0xe4] sm:$0xff]
    %v657 = vld [vmem:[%s380 + $0xf4] sm:$0xff]
    %v658 = vld [vmem:[%s380 + $0xfc] sm:$0xff]
    %v659 = vld [vmem:[%s380 + $0x10c] sm:$0xff]
    %v660 = vld [vmem:[%s380 + $0x114] sm:$0xff]
    %v661 = vld [vmem:[%s380 + $0x124] sm:$0xff]
    %v662 = vld [vmem:[%s380 + $0x12c] sm:$0xff]
    %v663 = vld [vmem:[%s380 + $0x13c] sm:$0xff]
    %v664 = vld [vmem:[%s380 + $0x144] sm:$0xff]
    %v665 = vld [vmem:[%s380 + $0x154] sm:$0xff]
    %v666 = vld [vmem:[%s380 + $0x15c] sm:$0xff]
    %v667 = vld [vmem:[%s380 + $0x16c] sm:$0xff]
    %v668 = vld [vmem:[%s380 + $0x174] sm:$0xff]
    %v669 = vld [vmem:[%s380 + $0x1e4] sm:$0xff]
    %v670 = vld [vmem:[%s380 + $0x1ec] sm:$0xff]
    %v671 = vld [vmem:[%s380 + $0x1fc] sm:$0xff]
    %v672 = vld [vmem:[%s380 + $0x204] sm:$0xff]
    %v673 = vld [vmem:[%s380 + $0x214] sm:$0xff]
    %v674 = vld [vmem:[%s380 + $0x21c] sm:$0xff]
    %v675 = vld [vmem:[%s380 + $0x22c] sm:$0xff]
    %v676 = vld [vmem:[%s380 + $0x234] sm:$0xff]
    %v677 = vld [vmem:[%s380 + $0x244] sm:$0xff]
    %v678 = vld [vmem:[%s380 + $0x24c] sm:$0xff]
    %v679 = vld [vmem:[%s380 + $0x25c] sm:$0xff]
    %v680 = vld [vmem:[%s380 + $0x264] sm:$0xff]
    %v681 = vld [vmem:[%s380 + $0x274] sm:$0xff]
    %v682 = vld [vmem:[%s380 + $0x27c] sm:$0xff]
    %v683 = vld [vmem:[%s380 + $0x28c] sm:$0xff]
    %v684 = vld [vmem:[%s380 + $0x294] sm:$0xff]
    %v685 = vld [vmem:[%s380 + $0x2a4] sm:$0xff]
    %v686 = vld [vmem:[%s380 + $0x2ac] sm:$0xff]
    %v687 = vld [vmem:[%s380 + $0x2bc] sm:$0xff]
    %v688 = vld [vmem:[%s380 + $0x2c4] sm:$0xff]
    %v689 = vld [vmem:[%s380 + $0x2d4] sm:$0xff]
    %v690 = vld [vmem:[%s380 + $0x2dc] sm:$0xff]
    %v691 = vld [vmem:[%s380 + $0x2ec] sm:$0xff]
    %v692 = vld [vmem:[%s380 + $0x2f4] sm:$0xff]
    %v693 = vld [vmem:[%s380 + $0x304] sm:$0xff]
    %v694 = vld [vmem:[%s380 + $0x30c] sm:$0xff]
    %v695 = vld [vmem:[%s380 + $0x31c] sm:$0xff]
    %v696 = vld [vmem:[%s380 + $0x324] sm:$0xff]
    %v697 = vld [vmem:[%s380 + $0x334] sm:$0xff]
    %v698 = vld [vmem:[%s380 + $0x33c] sm:$0xff]
    %v699 = vld [vmem:[%s380 + $0x34c] sm:$0xff]
    %v700 = vld [vmem:[%s380 + $0x354] sm:$0xff]
    %s701 = scalar_lea.vmem %s0, 48
    %v702 = vld [vmem:[%s701] sm:$0xff]
    %v703 = vld [vmem:[%s701 + $0x8] sm:$0xff]
    %v704 = vld [vmem:[%s701 + $0x18] sm:$0xff]
    %v705 = vld [vmem:[%s701 + $0x20] sm:$0xff]
    %v706 = vld [vmem:[%s701 + $0x30] sm:$0xff]
    %v707 = vld [vmem:[%s701 + $0x38] sm:$0xff]
    %v708 = vld [vmem:[%s701 + $0x48] sm:$0xff]
    %v709 = vld [vmem:[%s701 + $0x50] sm:$0xff]
    %v710 = vld [vmem:[%s701 + $0x60] sm:$0xff]
    %v711 = vld [vmem:[%s701 + $0x68] sm:$0xff]
    %v712 = vld [vmem:[%s701 + $0x78] sm:$0xff]
    %v713 = vld [vmem:[%s701 + $0x80] sm:$0xff]
    %v714 = vld [vmem:[%s701 + $0x90] sm:$0xff]
    %v715 = vld [vmem:[%s701 + $0x98] sm:$0xff]
    %v716 = vld [vmem:[%s701 + $0xa8] sm:$0xff]
    %v717 = vld [vmem:[%s701 + $0xb0] sm:$0xff]
    %v718 = vld [vmem:[%s701 + $0xc0] sm:$0xff]
    %v719 = vld [vmem:[%s701 + $0xc8] sm:$0xff]
    %v720 = vld [vmem:[%s701 + $0xd8] sm:$0xff]
    %v721 = vld [vmem:[%s701 + $0xe0] sm:$0xff]
    %v722 = vld [vmem:[%s701 + $0xf0] sm:$0xff]
    %v723 = vld [vmem:[%s701 + $0xf8] sm:$0xff]
    %v724 = vld [vmem:[%s701 + $0x108] sm:$0xff]
    %v725 = vld [vmem:[%s701 + $0x110] sm:$0xff]
    %v726 = vld [vmem:[%s701 + $0x120] sm:$0xff]
    %v727 = vld [vmem:[%s701 + $0x128] sm:$0xff]
    %v728 = vld [vmem:[%s701 + $0x138] sm:$0xff]
    %v729 = vld [vmem:[%s701 + $0x140] sm:$0xff]
    %v730 = vld [vmem:[%s701 + $0x150] sm:$0xff]
    %v731 = vld [vmem:[%s701 + $0x158] sm:$0xff]
    %v732 = vld [vmem:[%s701 + $0x168] sm:$0xff]
    %v733 = vld [vmem:[%s701 + $0x170] sm:$0xff]
    %v734 = vld [vmem:[%s701 + $0x1e0] sm:$0xff]
    %v735 = vld [vmem:[%s701 + $0x1e8] sm:$0xff]
    %v736 = vld [vmem:[%s701 + $0x1f8] sm:$0xff]
    %v737 = vld [vmem:[%s701 + $0x200] sm:$0xff]
    %v738 = vld [vmem:[%s701 + $0x210] sm:$0xff]
    %v739 = vld [vmem:[%s701 + $0x218] sm:$0xff]
    %v740 = vld [vmem:[%s701 + $0x228] sm:$0xff]
    %v741 = vld [vmem:[%s701 + $0x230] sm:$0xff]
    %v742 = vld [vmem:[%s701 + $0x240] sm:$0xff]
    %v743 = vld [vmem:[%s701 + $0x248] sm:$0xff]
    %v744 = vld [vmem:[%s701 + $0x258] sm:$0xff]
    %v745 = vld [vmem:[%s701 + $0x260] sm:$0xff]
    %v746 = vld [vmem:[%s701 + $0x270] sm:$0xff]
    %v747 = vld [vmem:[%s701 + $0x278] sm:$0xff]
    %v748 = vld [vmem:[%s701 + $0x288] sm:$0xff]
    %v749 = vld [vmem:[%s701 + $0x290] sm:$0xff]
    %v750 = vld [vmem:[%s701 + $0x2a0] sm:$0xff]
    %v751 = vld [vmem:[%s701 + $0x2a8] sm:$0xff]
    %v752 = vld [vmem:[%s701 + $0x2b8] sm:$0xff]
    %v753 = vld [vmem:[%s701 + $0x2c0] sm:$0xff]
    %v754 = vld [vmem:[%s701 + $0x2d0] sm:$0xff]
    %v755 = vld [vmem:[%s701 + $0x2d8] sm:$0xff]
    %v756 = vld [vmem:[%s701 + $0x2e8] sm:$0xff]
    %v757 = vld [vmem:[%s701 + $0x2f0] sm:$0xff]
    %v758 = vld [vmem:[%s701 + $0x300] sm:$0xff]
    %v759 = vld [vmem:[%s701 + $0x308] sm:$0xff]
    %v760 = vld [vmem:[%s701 + $0x318] sm:$0xff]
    %v761 = vld [vmem:[%s701 + $0x320] sm:$0xff]
    %v762 = vld [vmem:[%s701 + $0x330] sm:$0xff]
    %v763 = vld [vmem:[%s701 + $0x338] sm:$0xff]
    %v764 = vld [vmem:[%s701 + $0x348] sm:$0xff]
    %v765 = vld [vmem:[%s701 + $0x350] sm:$0xff]
    %v766 = vld [vmem:[%s701 + $0x1] sm:$0xff]
    %v767 = vld [vmem:[%s701 + $0x9] sm:$0xff]
    %v768 = vld [vmem:[%s701 + $0x19] sm:$0xff]
    %v769 = vld [vmem:[%s701 + $0x21] sm:$0xff]
    %v770 = vld [vmem:[%s701 + $0x31] sm:$0xff]
    %v771 = vld [vmem:[%s701 + $0x39] sm:$0xff]
    %v772 = vld [vmem:[%s701 + $0x49] sm:$0xff]
    %v773 = vld [vmem:[%s701 + $0x51] sm:$0xff]
    %v774 = vld [vmem:[%s701 + $0x61] sm:$0xff]
    %v775 = vld [vmem:[%s701 + $0x69] sm:$0xff]
    %v776 = vld [vmem:[%s701 + $0x79] sm:$0xff]
    %v777 = vld [vmem:[%s701 + $0x81] sm:$0xff]
    %v778 = vld [vmem:[%s701 + $0x91] sm:$0xff]
    %v779 = vld [vmem:[%s701 + $0x99] sm:$0xff]
    %v780 = vld [vmem:[%s701 + $0xa9] sm:$0xff]
    %v781 = vld [vmem:[%s701 + $0xb1] sm:$0xff]
    %v782 = vld [vmem:[%s701 + $0xc1] sm:$0xff]
    %v783 = vld [vmem:[%s701 + $0xc9] sm:$0xff]
    %v784 = vld [vmem:[%s701 + $0xd9] sm:$0xff]
    %v785 = vld [vmem:[%s701 + $0xe1] sm:$0xff]
    %v786 = vld [vmem:[%s701 + $0xf1] sm:$0xff]
    %v787 = vld [vmem:[%s701 + $0xf9] sm:$0xff]
    %v788 = vld [vmem:[%s701 + $0x109] sm:$0xff]
    %v789 = vld [vmem:[%s701 + $0x111] sm:$0xff]
    %v790 = vld [vmem:[%s701 + $0x121] sm:$0xff]
    %v791 = vld [vmem:[%s701 + $0x129] sm:$0xff]
    %v792 = vld [vmem:[%s701 + $0x139] sm:$0xff]
    %v793 = vld [vmem:[%s701 + $0x141] sm:$0xff]
    %v794 = vld [vmem:[%s701 + $0x151] sm:$0xff]
    %v795 = vld [vmem:[%s701 + $0x159] sm:$0xff]
    %v796 = vld [vmem:[%s701 + $0x169] sm:$0xff]
    %v797 = vld [vmem:[%s701 + $0x171] sm:$0xff]
    %v798 = vld [vmem:[%s701 + $0x1e1] sm:$0xff]
    %v799 = vld [vmem:[%s701 + $0x1e9] sm:$0xff]
    %v800 = vld [vmem:[%s701 + $0x1f9] sm:$0xff]
    %v801 = vld [vmem:[%s701 + $0x201] sm:$0xff]
    %v802 = vld [vmem:[%s701 + $0x211] sm:$0xff]
    %v803 = vld [vmem:[%s701 + $0x219] sm:$0xff]
    %v804 = vld [vmem:[%s701 + $0x229] sm:$0xff]
    %v805 = vld [vmem:[%s701 + $0x231] sm:$0xff]
    %v806 = vld [vmem:[%s701 + $0x241] sm:$0xff]
    %v807 = vld [vmem:[%s701 + $0x249] sm:$0xff]
    %v808 = vld [vmem:[%s701 + $0x259] sm:$0xff]
    %v809 = vld [vmem:[%s701 + $0x261] sm:$0xff]
    %v810 = vld [vmem:[%s701 + $0x271] sm:$0xff]
    %v811 = vld [vmem:[%s701 + $0x279] sm:$0xff]
    %v812 = vld [vmem:[%s701 + $0x289] sm:$0xff]
    %v813 = vld [vmem:[%s701 + $0x291] sm:$0xff]
    %v814 = vld [vmem:[%s701 + $0x2a1] sm:$0xff]
    %v815 = vld [vmem:[%s701 + $0x2a9] sm:$0xff]
    %v816 = vld [vmem:[%s701 + $0x2b9] sm:$0xff]
    %v817 = vld [vmem:[%s701 + $0x2c1] sm:$0xff]
    %v818 = vld [vmem:[%s701 + $0x2d1] sm:$0xff]
    %v819 = vld [vmem:[%s701 + $0x2d9] sm:$0xff]
    %v820 = vld [vmem:[%s701 + $0x2e9] sm:$0xff]
    %v821 = vld [vmem:[%s701 + $0x2f1] sm:$0xff]
    %v822 = vld [vmem:[%s701 + $0x301] sm:$0xff]
    %v823 = vld [vmem:[%s701 + $0x309] sm:$0xff]
    %v824 = vld [vmem:[%s701 + $0x319] sm:$0xff]
    %v825 = vld [vmem:[%s701 + $0x321] sm:$0xff]
    %v826 = vld [vmem:[%s701 + $0x331] sm:$0xff]
    %v827 = vld [vmem:[%s701 + $0x339] sm:$0xff]
    %v828 = vld [vmem:[%s701 + $0x349] sm:$0xff]
    %v829 = vld [vmem:[%s701 + $0x351] sm:$0xff]
    %v830 = vld [vmem:[%s701 + $0x2] sm:$0xff]
    %v831 = vld [vmem:[%s701 + $0xa] sm:$0xff]
    %v832 = vld [vmem:[%s701 + $0x1a] sm:$0xff]
    %v833 = vld [vmem:[%s701 + $0x22] sm:$0xff]
    %v834 = vld [vmem:[%s701 + $0x32] sm:$0xff]
    %v835 = vld [vmem:[%s701 + $0x3a] sm:$0xff]
    %v836 = vld [vmem:[%s701 + $0x4a] sm:$0xff]
    %v837 = vld [vmem:[%s701 + $0x52] sm:$0xff]
    %v838 = vld [vmem:[%s701 + $0x62] sm:$0xff]
    %v839 = vld [vmem:[%s701 + $0x6a] sm:$0xff]
    %v840 = vld [vmem:[%s701 + $0x7a] sm:$0xff]
    %v841 = vld [vmem:[%s701 + $0x82] sm:$0xff]
    %v842 = vld [vmem:[%s701 + $0x92] sm:$0xff]
    %v843 = vld [vmem:[%s701 + $0x9a] sm:$0xff]
    %v844 = vld [vmem:[%s701 + $0xaa] sm:$0xff]
    %v845 = vld [vmem:[%s701 + $0xb2] sm:$0xff]
    %v846 = vld [vmem:[%s701 + $0xc2] sm:$0xff]
    %v847 = vld [vmem:[%s701 + $0xca] sm:$0xff]
    %v848 = vld [vmem:[%s701 + $0xda] sm:$0xff]
    %v849 = vld [vmem:[%s701 + $0xe2] sm:$0xff]
    %v850 = vld [vmem:[%s701 + $0xf2] sm:$0xff]
    %v851 = vld [vmem:[%s701 + $0xfa] sm:$0xff]
    %v852 = vld [vmem:[%s701 + $0x10a] sm:$0xff]
    %v853 = vld [vmem:[%s701 + $0x112] sm:$0xff]
    %v854 = vld [vmem:[%s701 + $0x122] sm:$0xff]
    %v855 = vld [vmem:[%s701 + $0x12a] sm:$0xff]
    %v856 = vld [vmem:[%s701 + $0x13a] sm:$0xff]
    %v857 = vld [vmem:[%s701 + $0x142] sm:$0xff]
    %v858 = vld [vmem:[%s701 + $0x152] sm:$0xff]
    %v859 = vld [vmem:[%s701 + $0x15a] sm:$0xff]
    %v860 = vld [vmem:[%s701 + $0x16a] sm:$0xff]
    %v861 = vld [vmem:[%s701 + $0x172] sm:$0xff]
    %v862 = vld [vmem:[%s701 + $0x1e2] sm:$0xff]
    %v863 = vld [vmem:[%s701 + $0x1ea] sm:$0xff]
    %v864 = vld [vmem:[%s701 + $0x1fa] sm:$0xff]
    %v865 = vld [vmem:[%s701 + $0x202] sm:$0xff]
    %v866 = vld [vmem:[%s701 + $0x212] sm:$0xff]
    %v867 = vld [vmem:[%s701 + $0x21a] sm:$0xff]
    %v868 = vld [vmem:[%s701 + $0x22a] sm:$0xff]
    %v869 = vld [vmem:[%s701 + $0x232] sm:$0xff]
    %v870 = vld [vmem:[%s701 + $0x242] sm:$0xff]
    %v871 = vld [vmem:[%s701 + $0x24a] sm:$0xff]
    %v872 = vld [vmem:[%s701 + $0x25a] sm:$0xff]
    %v873 = vld [vmem:[%s701 + $0x262] sm:$0xff]
    %v874 = vld [vmem:[%s701 + $0x272] sm:$0xff]
    %v875 = vld [vmem:[%s701 + $0x27a] sm:$0xff]
    %v876 = vld [vmem:[%s701 + $0x28a] sm:$0xff]
    %v877 = vld [vmem:[%s701 + $0x292] sm:$0xff]
    %v878 = vld [vmem:[%s701 + $0x2a2] sm:$0xff]
    %v879 = vld [vmem:[%s701 + $0x2aa] sm:$0xff]
    %v880 = vld [vmem:[%s701 + $0x2ba] sm:$0xff]
    %v881 = vld [vmem:[%s701 + $0x2c2] sm:$0xff]
    %v882 = vld [vmem:[%s701 + $0x2d2] sm:$0xff]
    %v883 = vld [vmem:[%s701 + $0x2da] sm:$0xff]
    %v884 = vld [vmem:[%s701 + $0x2ea] sm:$0xff]
    %v885 = vld [vmem:[%s701 + $0x2f2] sm:$0xff]
    %v886 = vld [vmem:[%s701 + $0x302] sm:$0xff]
    %v887 = vld [vmem:[%s701 + $0x30a] sm:$0xff]
    %v888 = vld [vmem:[%s701 + $0x31a] sm:$0xff]
    %v889 = vld [vmem:[%s701 + $0x322] sm:$0xff]
    %v890 = vld [vmem:[%s701 + $0x332] sm:$0xff]
    %v891 = vld [vmem:[%s701 + $0x33a] sm:$0xff]
    %v892 = vld [vmem:[%s701 + $0x34a] sm:$0xff]
    %v893 = vld [vmem:[%s701 + $0x352] sm:$0xff]
    %v894 = vld [vmem:[%s701 + $0x3] sm:$0xff]
    %v895 = vld [vmem:[%s701 + $0xb] sm:$0xff]
    %v896 = vld [vmem:[%s701 + $0x1b] sm:$0xff]
    %v897 = vld [vmem:[%s701 + $0x23] sm:$0xff]
    %v898 = vld [vmem:[%s701 + $0x33] sm:$0xff]
    %v899 = vld [vmem:[%s701 + $0x3b] sm:$0xff]
    %v900 = vld [vmem:[%s701 + $0x4b] sm:$0xff]
    %v901 = vld [vmem:[%s701 + $0x53] sm:$0xff]
    %v902 = vld [vmem:[%s701 + $0x63] sm:$0xff]
    %v903 = vld [vmem:[%s701 + $0x6b] sm:$0xff]
    %v904 = vld [vmem:[%s701 + $0x7b] sm:$0xff]
    %v905 = vld [vmem:[%s701 + $0x83] sm:$0xff]
    %v906 = vld [vmem:[%s701 + $0x93] sm:$0xff]
    %v907 = vld [vmem:[%s701 + $0x9b] sm:$0xff]
    %v908 = vld [vmem:[%s701 + $0xab] sm:$0xff]
    %v909 = vld [vmem:[%s701 + $0xb3] sm:$0xff]
    %v910 = vld [vmem:[%s701 + $0xc3] sm:$0xff]
    %v911 = vld [vmem:[%s701 + $0xcb] sm:$0xff]
    %v912 = vld [vmem:[%s701 + $0xdb] sm:$0xff]
    %v913 = vld [vmem:[%s701 + $0xe3] sm:$0xff]
    %v914 = vld [vmem:[%s701 + $0xf3] sm:$0xff]
    %v915 = vld [vmem:[%s701 + $0xfb] sm:$0xff]
    %v916 = vld [vmem:[%s701 + $0x10b] sm:$0xff]
    %v917 = vld [vmem:[%s701 + $0x113] sm:$0xff]
    %v918 = vld [vmem:[%s701 + $0x123] sm:$0xff]
    %v919 = vld [vmem:[%s701 + $0x12b] sm:$0xff]
    %v920 = vld [vmem:[%s701 + $0x13b] sm:$0xff]
    %v921 = vld [vmem:[%s701 + $0x143] sm:$0xff]
    %v922 = vld [vmem:[%s701 + $0x153] sm:$0xff]
    %v923 = vld [vmem:[%s701 + $0x15b] sm:$0xff]
    %v924 = vld [vmem:[%s701 + $0x16b] sm:$0xff]
    %v925 = vld [vmem:[%s701 + $0x173] sm:$0xff]
    %v926 = vld [vmem:[%s701 + $0x1e3] sm:$0xff]
    %v927 = vld [vmem:[%s701 + $0x1eb] sm:$0xff]
    %v928 = vld [vmem:[%s701 + $0x1fb] sm:$0xff]
    %v929 = vld [vmem:[%s701 + $0x203] sm:$0xff]
    %v930 = vld [vmem:[%s701 + $0x213] sm:$0xff]
    %v931 = vld [vmem:[%s701 + $0x21b] sm:$0xff]
    %v932 = vld [vmem:[%s701 + $0x22b] sm:$0xff]
    %v933 = vld [vmem:[%s701 + $0x233] sm:$0xff]
    %v934 = vld [vmem:[%s701 + $0x243] sm:$0xff]
    %v935 = vld [vmem:[%s701 + $0x24b] sm:$0xff]
    %v936 = vld [vmem:[%s701 + $0x25b] sm:$0xff]
    %v937 = vld [vmem:[%s701 + $0x263] sm:$0xff]
    %v938 = vld [vmem:[%s701 + $0x273] sm:$0xff]
    %v939 = vld [vmem:[%s701 + $0x27b] sm:$0xff]
    %v940 = vld [vmem:[%s701 + $0x28b] sm:$0xff]
    %v941 = vld [vmem:[%s701 + $0x293] sm:$0xff]
    %v942 = vld [vmem:[%s701 + $0x2a3] sm:$0xff]
    %v943 = vld [vmem:[%s701 + $0x2ab] sm:$0xff]
    %v944 = vld [vmem:[%s701 + $0x2bb] sm:$0xff]
    %v945 = vld [vmem:[%s701 + $0x2c3] sm:$0xff]
    %v946 = vld [vmem:[%s701 + $0x2d3] sm:$0xff]
    %v947 = vld [vmem:[%s701 + $0x2db] sm:$0xff]
    %v948 = vld [vmem:[%s701 + $0x2eb] sm:$0xff]
    %v949 = vld [vmem:[%s701 + $0x2f3] sm:$0xff]
    %v950 = vld [vmem:[%s701 + $0x303] sm:$0xff]
    %v951 = vld [vmem:[%s701 + $0x30b] sm:$0xff]
    %v952 = vld [vmem:[%s701 + $0x31b] sm:$0xff]
    %v953 = vld [vmem:[%s701 + $0x323] sm:$0xff]
    %v954 = vld [vmem:[%s701 + $0x333] sm:$0xff]
    %v955 = vld [vmem:[%s701 + $0x33b] sm:$0xff]
    %v956 = vld [vmem:[%s701 + $0x34b] sm:$0xff]
    %v957 = vld [vmem:[%s701 + $0x353] sm:$0xff]
    %v958 = vld [vmem:[%s701 + $0x4] sm:$0xff]
    %v959 = vld [vmem:[%s701 + $0xc] sm:$0xff]
    %v960 = vld [vmem:[%s701 + $0x1c] sm:$0xff]
    %v961 = vld [vmem:[%s701 + $0x24] sm:$0xff]
    %v962 = vld [vmem:[%s701 + $0x34] sm:$0xff]
    %v963 = vld [vmem:[%s701 + $0x3c] sm:$0xff]
    %v964 = vld [vmem:[%s701 + $0x4c] sm:$0xff]
    %v965 = vld [vmem:[%s701 + $0x54] sm:$0xff]
    %v966 = vld [vmem:[%s701 + $0x64] sm:$0xff]
    %v967 = vld [vmem:[%s701 + $0x6c] sm:$0xff]
    %v968 = vld [vmem:[%s701 + $0x7c] sm:$0xff]
    %v969 = vld [vmem:[%s701 + $0x84] sm:$0xff]
    %v970 = vld [vmem:[%s701 + $0x94] sm:$0xff]
    %v971 = vld [vmem:[%s701 + $0x9c] sm:$0xff]
    %v972 = vld [vmem:[%s701 + $0xac] sm:$0xff]
    %v973 = vld [vmem:[%s701 + $0xb4] sm:$0xff]
    %v974 = vld [vmem:[%s701 + $0xc4] sm:$0xff]
    %v975 = vld [vmem:[%s701 + $0xcc] sm:$0xff]
    %v976 = vld [vmem:[%s701 + $0xdc] sm:$0xff]
    %v977 = vld [vmem:[%s701 + $0xe4] sm:$0xff]
    %v978 = vld [vmem:[%s701 + $0xf4] sm:$0xff]
    %v979 = vld [vmem:[%s701 + $0xfc] sm:$0xff]
    %v980 = vld [vmem:[%s701 + $0x10c] sm:$0xff]
    %v981 = vld [vmem:[%s701 + $0x114] sm:$0xff]
    %v982 = vld [vmem:[%s701 + $0x124] sm:$0xff]
    %v983 = vld [vmem:[%s701 + $0x12c] sm:$0xff]
    %v984 = vld [vmem:[%s701 + $0x13c] sm:$0xff]
    %v985 = vld [vmem:[%s701 + $0x144] sm:$0xff]
    %v986 = vld [vmem:[%s701 + $0x154] sm:$0xff]
    %v987 = vld [vmem:[%s701 + $0x15c] sm:$0xff]
    %v988 = vld [vmem:[%s701 + $0x16c] sm:$0xff]
    %v989 = vld [vmem:[%s701 + $0x174] sm:$0xff]
    %v990 = vld [vmem:[%s701 + $0x1e4] sm:$0xff]
    %v991 = vld [vmem:[%s701 + $0x1ec] sm:$0xff]
    %v992 = vld [vmem:[%s701 + $0x1fc] sm:$0xff]
    %v993 = vld [vmem:[%s701 + $0x204] sm:$0xff]
    %v994 = vld [vmem:[%s701 + $0x214] sm:$0xff]
    %v995 = vld [vmem:[%s701 + $0x21c] sm:$0xff]
    %v996 = vld [vmem:[%s701 + $0x22c] sm:$0xff]
    %v997 = vld [vmem:[%s701 + $0x234] sm:$0xff]
    %v998 = vld [vmem:[%s701 + $0x244] sm:$0xff]
    %v999 = vld [vmem:[%s701 + $0x24c] sm:$0xff]
    %v1000 = vld [vmem:[%s701 + $0x25c] sm:$0xff]
    %v1001 = vld [vmem:[%s701 + $0x264] sm:$0xff]
    %v1002 = vld [vmem:[%s701 + $0x274] sm:$0xff]
    %v1003 = vld [vmem:[%s701 + $0x27c] sm:$0xff]
    %v1004 = vld [vmem:[%s701 + $0x28c] sm:$0xff]
    %v1005 = vld [vmem:[%s701 + $0x294] sm:$0xff]
    %v1006 = vld [vmem:[%s701 + $0x2a4] sm:$0xff]
    %v1007 = vld [vmem:[%s701 + $0x2ac] sm:$0xff]
    %v1008 = vld [vmem:[%s701 + $0x2bc] sm:$0xff]
    %v1009 = vld [vmem:[%s701 + $0x2c4] sm:$0xff]
    %v1010 = vld [vmem:[%s701 + $0x2d4] sm:$0xff]
    %v1011 = vld [vmem:[%s701 + $0x2dc] sm:$0xff]
    %v1012 = vld [vmem:[%s701 + $0x2ec] sm:$0xff]
    %v1013 = vld [vmem:[%s701 + $0x2f4] sm:$0xff]
    %v1014 = vld [vmem:[%s701 + $0x304] sm:$0xff]
    %v1015 = vld [vmem:[%s701 + $0x30c] sm:$0xff]
    %v1016 = vld [vmem:[%s701 + $0x31c] sm:$0xff]
    %v1017 = vld [vmem:[%s701 + $0x324] sm:$0xff]
    %v1018 = vld [vmem:[%s701 + $0x334] sm:$0xff]
    %v1019 = vld [vmem:[%s701 + $0x33c] sm:$0xff]
    %v1020 = vld [vmem:[%s701 + $0x34c] sm:$0xff]
    %v1021 = vld [vmem:[%s701 + $0x354] sm:$0xff]
    %s1022 = scalar_lea.vmem %s0, 72
    %v1023 = vld [vmem:[%s1022] sm:$0xff]
    %v1024 = vld [vmem:[%s1022 + $0x8] sm:$0xff]
    %v1025 = vld [vmem:[%s1022 + $0x18] sm:$0xff]
    %v1026 = vld [vmem:[%s1022 + $0x20] sm:$0xff]
    %v1027 = vld [vmem:[%s1022 + $0x30] sm:$0xff]
    %v1028 = vld [vmem:[%s1022 + $0x38] sm:$0xff]
    %v1029 = vld [vmem:[%s1022 + $0x48] sm:$0xff]
    %v1030 = vld [vmem:[%s1022 + $0x50] sm:$0xff]
    %v1031 = vld [vmem:[%s1022 + $0x60] sm:$0xff]
    %v1032 = vld [vmem:[%s1022 + $0x68] sm:$0xff]
    %v1033 = vld [vmem:[%s1022 + $0x78] sm:$0xff]
    %v1034 = vld [vmem:[%s1022 + $0x80] sm:$0xff]
    %v1035 = vld [vmem:[%s1022 + $0x90] sm:$0xff]
    %v1036 = vld [vmem:[%s1022 + $0x98] sm:$0xff]
    %v1037 = vld [vmem:[%s1022 + $0xa8] sm:$0xff]
    %v1038 = vld [vmem:[%s1022 + $0xb0] sm:$0xff]
    %v1039 = vld [vmem:[%s1022 + $0xc0] sm:$0xff]
    %v1040 = vld [vmem:[%s1022 + $0xc8] sm:$0xff]
    %v1041 = vld [vmem:[%s1022 + $0xd8] sm:$0xff]
    %v1042 = vld [vmem:[%s1022 + $0xe0] sm:$0xff]
    %v1043 = vld [vmem:[%s1022 + $0xf0] sm:$0xff]
    %v1044 = vld [vmem:[%s1022 + $0xf8] sm:$0xff]
    %v1045 = vld [vmem:[%s1022 + $0x108] sm:$0xff]
    %v1046 = vld [vmem:[%s1022 + $0x110] sm:$0xff]
    %v1047 = vld [vmem:[%s1022 + $0x120] sm:$0xff]
    %v1048 = vld [vmem:[%s1022 + $0x128] sm:$0xff]
    %v1049 = vld [vmem:[%s1022 + $0x138] sm:$0xff]
    %v1050 = vld [vmem:[%s1022 + $0x140] sm:$0xff]
    %v1051 = vld [vmem:[%s1022 + $0x150] sm:$0xff]
    %v1052 = vld [vmem:[%s1022 + $0x158] sm:$0xff]
    %v1053 = vld [vmem:[%s1022 + $0x168] sm:$0xff]
    %v1054 = vld [vmem:[%s1022 + $0x170] sm:$0xff]
    %v1055 = vld [vmem:[%s1022 + $0x1e0] sm:$0xff]
    %v1056 = vld [vmem:[%s1022 + $0x1e8] sm:$0xff]
    %v1057 = vld [vmem:[%s1022 + $0x1f8] sm:$0xff]
    %v1058 = vld [vmem:[%s1022 + $0x200] sm:$0xff]
    %v1059 = vld [vmem:[%s1022 + $0x210] sm:$0xff]
    %v1060 = vld [vmem:[%s1022 + $0x218] sm:$0xff]
    %v1061 = vld [vmem:[%s1022 + $0x228] sm:$0xff]
    %v1062 = vld [vmem:[%s1022 + $0x230] sm:$0xff]
    %v1063 = vld [vmem:[%s1022 + $0x240] sm:$0xff]
    %v1064 = vld [vmem:[%s1022 + $0x248] sm:$0xff]
    %v1065 = vld [vmem:[%s1022 + $0x258] sm:$0xff]
    %v1066 = vld [vmem:[%s1022 + $0x260] sm:$0xff]
    %v1067 = vld [vmem:[%s1022 + $0x270] sm:$0xff]
    %v1068 = vld [vmem:[%s1022 + $0x278] sm:$0xff]
    %v1069 = vld [vmem:[%s1022 + $0x288] sm:$0xff]
    %v1070 = vld [vmem:[%s1022 + $0x290] sm:$0xff]
    %v1071 = vld [vmem:[%s1022 + $0x2a0] sm:$0xff]
    %v1072 = vld [vmem:[%s1022 + $0x2a8] sm:$0xff]
    %v1073 = vld [vmem:[%s1022 + $0x2b8] sm:$0xff]
    %v1074 = vld [vmem:[%s1022 + $0x2c0] sm:$0xff]
    %v1075 = vld [vmem:[%s1022 + $0x2d0] sm:$0xff]
    %v1076 = vld [vmem:[%s1022 + $0x2d8] sm:$0xff]
    %v1077 = vld [vmem:[%s1022 + $0x2e8] sm:$0xff]
    %v1078 = vld [vmem:[%s1022 + $0x2f0] sm:$0xff]
    %v1079 = vld [vmem:[%s1022 + $0x300] sm:$0xff]
    %v1080 = vld [vmem:[%s1022 + $0x308] sm:$0xff]
    %v1081 = vld [vmem:[%s1022 + $0x318] sm:$0xff]
    %v1082 = vld [vmem:[%s1022 + $0x320] sm:$0xff]
    %v1083 = vld [vmem:[%s1022 + $0x330] sm:$0xff]
    %v1084 = vld [vmem:[%s1022 + $0x338] sm:$0xff]
    %v1085 = vld [vmem:[%s1022 + $0x348] sm:$0xff]
    %v1086 = vld [vmem:[%s1022 + $0x350] sm:$0xff]
    %v1087 = vld [vmem:[%s1022 + $0x1] sm:$0xff]
    %v1088 = vld [vmem:[%s1022 + $0x9] sm:$0xff]
    %v1089 = vld [vmem:[%s1022 + $0x19] sm:$0xff]
    %v1090 = vld [vmem:[%s1022 + $0x21] sm:$0xff]
    %v1091 = vld [vmem:[%s1022 + $0x31] sm:$0xff]
    %v1092 = vld [vmem:[%s1022 + $0x39] sm:$0xff]
    %v1093 = vld [vmem:[%s1022 + $0x49] sm:$0xff]
    %v1094 = vld [vmem:[%s1022 + $0x51] sm:$0xff]
    %v1095 = vld [vmem:[%s1022 + $0x61] sm:$0xff]
    %v1096 = vld [vmem:[%s1022 + $0x69] sm:$0xff]
    %v1097 = vld [vmem:[%s1022 + $0x79] sm:$0xff]
    %v1098 = vld [vmem:[%s1022 + $0x81] sm:$0xff]
    %v1099 = vld [vmem:[%s1022 + $0x91] sm:$0xff]
    %v1100 = vld [vmem:[%s1022 + $0x99] sm:$0xff]
    %v1101 = vld [vmem:[%s1022 + $0xa9] sm:$0xff]
    %v1102 = vld [vmem:[%s1022 + $0xb1] sm:$0xff]
    %v1103 = vld [vmem:[%s1022 + $0xc1] sm:$0xff]
    %v1104 = vld [vmem:[%s1022 + $0xc9] sm:$0xff]
    %v1105 = vld [vmem:[%s1022 + $0xd9] sm:$0xff]
    %v1106 = vld [vmem:[%s1022 + $0xe1] sm:$0xff]
    %v1107 = vld [vmem:[%s1022 + $0xf1] sm:$0xff]
    %v1108 = vld [vmem:[%s1022 + $0xf9] sm:$0xff]
    %v1109 = vld [vmem:[%s1022 + $0x109] sm:$0xff]
    %v1110 = vld [vmem:[%s1022 + $0x111] sm:$0xff]
    %v1111 = vld [vmem:[%s1022 + $0x121] sm:$0xff]
    %v1112 = vld [vmem:[%s1022 + $0x129] sm:$0xff]
    %v1113 = vld [vmem:[%s1022 + $0x139] sm:$0xff]
    %v1114 = vld [vmem:[%s1022 + $0x141] sm:$0xff]
    %v1115 = vld [vmem:[%s1022 + $0x151] sm:$0xff]
    %v1116 = vld [vmem:[%s1022 + $0x159] sm:$0xff]
    %v1117 = vld [vmem:[%s1022 + $0x169] sm:$0xff]
    %v1118 = vld [vmem:[%s1022 + $0x171] sm:$0xff]
    %v1119 = vld [vmem:[%s1022 + $0x1e1] sm:$0xff]
    %v1120 = vld [vmem:[%s1022 + $0x1e9] sm:$0xff]
    %v1121 = vld [vmem:[%s1022 + $0x1f9] sm:$0xff]
    %v1122 = vld [vmem:[%s1022 + $0x201] sm:$0xff]
    %v1123 = vld [vmem:[%s1022 + $0x211] sm:$0xff]
    %v1124 = vld [vmem:[%s1022 + $0x219] sm:$0xff]
    %v1125 = vld [vmem:[%s1022 + $0x229] sm:$0xff]
    %v1126 = vld [vmem:[%s1022 + $0x231] sm:$0xff]
    %v1127 = vld [vmem:[%s1022 + $0x241] sm:$0xff]
    %v1128 = vld [vmem:[%s1022 + $0x249] sm:$0xff]
    %v1129 = vld [vmem:[%s1022 + $0x259] sm:$0xff]
    %v1130 = vld [vmem:[%s1022 + $0x261] sm:$0xff]
    %v1131 = vld [vmem:[%s1022 + $0x271] sm:$0xff]
    %v1132 = vld [vmem:[%s1022 + $0x279] sm:$0xff]
    %v1133 = vld [vmem:[%s1022 + $0x289] sm:$0xff]
    %v1134 = vld [vmem:[%s1022 + $0x291] sm:$0xff]
    %v1135 = vld [vmem:[%s1022 + $0x2a1] sm:$0xff]
    %v1136 = vld [vmem:[%s1022 + $0x2a9] sm:$0xff]
    %v1137 = vld [vmem:[%s1022 + $0x2b9] sm:$0xff]
    %v1138 = vld [vmem:[%s1022 + $0x2c1] sm:$0xff]
    %v1139 = vld [vmem:[%s1022 + $0x2d1] sm:$0xff]
    %v1140 = vld [vmem:[%s1022 + $0x2d9] sm:$0xff]
    %v1141 = vld [vmem:[%s1022 + $0x2e9] sm:$0xff]
    %v1142 = vld [vmem:[%s1022 + $0x2f1] sm:$0xff]
    %v1143 = vld [vmem:[%s1022 + $0x301] sm:$0xff]
    %v1144 = vld [vmem:[%s1022 + $0x309] sm:$0xff]
    %v1145 = vld [vmem:[%s1022 + $0x319] sm:$0xff]
    %v1146 = vld [vmem:[%s1022 + $0x321] sm:$0xff]
    %v1147 = vld [vmem:[%s1022 + $0x331] sm:$0xff]
    %v1148 = vld [vmem:[%s1022 + $0x339] sm:$0xff]
    %v1149 = vld [vmem:[%s1022 + $0x349] sm:$0xff]
    %v1150 = vld [vmem:[%s1022 + $0x351] sm:$0xff]
    %v1151 = vld [vmem:[%s1022 + $0x2] sm:$0xff]
    %v1152 = vld [vmem:[%s1022 + $0xa] sm:$0xff]
    %v1153 = vld [vmem:[%s1022 + $0x1a] sm:$0xff]
    %v1154 = vld [vmem:[%s1022 + $0x22] sm:$0xff]
    %v1155 = vld [vmem:[%s1022 + $0x32] sm:$0xff]
    %v1156 = vld [vmem:[%s1022 + $0x3a] sm:$0xff]
    %v1157 = vld [vmem:[%s1022 + $0x4a] sm:$0xff]
    %v1158 = vld [vmem:[%s1022 + $0x52] sm:$0xff]
    %v1159 = vld [vmem:[%s1022 + $0x62] sm:$0xff]
    %v1160 = vld [vmem:[%s1022 + $0x6a] sm:$0xff]
    %v1161 = vld [vmem:[%s1022 + $0x7a] sm:$0xff]
    %v1162 = vld [vmem:[%s1022 + $0x82] sm:$0xff]
    %v1163 = vld [vmem:[%s1022 + $0x92] sm:$0xff]
    %v1164 = vld [vmem:[%s1022 + $0x9a] sm:$0xff]
    %v1165 = vld [vmem:[%s1022 + $0xaa] sm:$0xff]
    %v1166 = vld [vmem:[%s1022 + $0xb2] sm:$0xff]
    %v1167 = vld [vmem:[%s1022 + $0xc2] sm:$0xff]
    %v1168 = vld [vmem:[%s1022 + $0xca] sm:$0xff]
    %v1169 = vld [vmem:[%s1022 + $0xda] sm:$0xff]
    %v1170 = vld [vmem:[%s1022 + $0xe2] sm:$0xff]
    %v1171 = vld [vmem:[%s1022 + $0xf2] sm:$0xff]
    %v1172 = vld [vmem:[%s1022 + $0xfa] sm:$0xff]
    %v1173 = vld [vmem:[%s1022 + $0x10a] sm:$0xff]
    %v1174 = vld [vmem:[%s1022 + $0x112] sm:$0xff]
    %v1175 = vld [vmem:[%s1022 + $0x122] sm:$0xff]
    %v1176 = vld [vmem:[%s1022 + $0x12a] sm:$0xff]
    %v1177 = vld [vmem:[%s1022 + $0x13a] sm:$0xff]
    %v1178 = vld [vmem:[%s1022 + $0x142] sm:$0xff]
    %v1179 = vld [vmem:[%s1022 + $0x152] sm:$0xff]
    %v1180 = vld [vmem:[%s1022 + $0x15a] sm:$0xff]
    %v1181 = vld [vmem:[%s1022 + $0x16a] sm:$0xff]
    %v1182 = vld [vmem:[%s1022 + $0x172] sm:$0xff]
    %v1183 = vld [vmem:[%s1022 + $0x1e2] sm:$0xff]
    %v1184 = vld [vmem:[%s1022 + $0x1ea] sm:$0xff]
    %v1185 = vld [vmem:[%s1022 + $0x1fa] sm:$0xff]
    %v1186 = vld [vmem:[%s1022 + $0x202] sm:$0xff]
    %v1187 = vld [vmem:[%s1022 + $0x212] sm:$0xff]
    %v1188 = vld [vmem:[%s1022 + $0x21a] sm:$0xff]
    %v1189 = vld [vmem:[%s1022 + $0x22a] sm:$0xff]
    %v1190 = vld [vmem:[%s1022 + $0x232] sm:$0xff]
    %v1191 = vld [vmem:[%s1022 + $0x242] sm:$0xff]
    %v1192 = vld [vmem:[%s1022 + $0x24a] sm:$0xff]
    %v1193 = vld [vmem:[%s1022 + $0x25a] sm:$0xff]
    %v1194 = vld [vmem:[%s1022 + $0x262] sm:$0xff]
    %v1195 = vld [vmem:[%s1022 + $0x272] sm:$0xff]
    %v1196 = vld [vmem:[%s1022 + $0x27a] sm:$0xff]
    %v1197 = vld [vmem:[%s1022 + $0x28a] sm:$0xff]
    %v1198 = vld [vmem:[%s1022 + $0x292] sm:$0xff]
    %v1199 = vld [vmem:[%s1022 + $0x2a2] sm:$0xff]
    %v1200 = vld [vmem:[%s1022 + $0x2aa] sm:$0xff]
    %v1201 = vld [vmem:[%s1022 + $0x2ba] sm:$0xff]
    %v1202 = vld [vmem:[%s1022 + $0x2c2] sm:$0xff]
    %v1203 = vld [vmem:[%s1022 + $0x2d2] sm:$0xff]
    %v1204 = vld [vmem:[%s1022 + $0x2da] sm:$0xff]
    %v1205 = vld [vmem:[%s1022 + $0x2ea] sm:$0xff]
    %v1206 = vld [vmem:[%s1022 + $0x2f2] sm:$0xff]
    %v1207 = vld [vmem:[%s1022 + $0x302] sm:$0xff]
    %v1208 = vld [vmem:[%s1022 + $0x30a] sm:$0xff]
    %v1209 = vld [vmem:[%s1022 + $0x31a] sm:$0xff]
    %v1210 = vld [vmem:[%s1022 + $0x322] sm:$0xff]
    %v1211 = vld [vmem:[%s1022 + $0x332] sm:$0xff]
    %v1212 = vld [vmem:[%s1022 + $0x33a] sm:$0xff]
    %v1213 = vld [vmem:[%s1022 + $0x34a] sm:$0xff]
    %v1214 = vld [vmem:[%s1022 + $0x352] sm:$0xff]
    %v1215 = vld [vmem:[%s1022 + $0x3] sm:$0xff]
    %v1216 = vld [vmem:[%s1022 + $0xb] sm:$0xff]
    %v1217 = vld [vmem:[%s1022 + $0x1b] sm:$0xff]
    %v1218 = vld [vmem:[%s1022 + $0x23] sm:$0xff]
    %v1219 = vld [vmem:[%s1022 + $0x33] sm:$0xff]
    %v1220 = vld [vmem:[%s1022 + $0x3b] sm:$0xff]
    %v1221 = vld [vmem:[%s1022 + $0x4b] sm:$0xff]
    %v1222 = vld [vmem:[%s1022 + $0x53] sm:$0xff]
    %v1223 = vld [vmem:[%s1022 + $0x63] sm:$0xff]
    %v1224 = vld [vmem:[%s1022 + $0x6b] sm:$0xff]
    %v1225 = vld [vmem:[%s1022 + $0x7b] sm:$0xff]
    %v1226 = vld [vmem:[%s1022 + $0x83] sm:$0xff]
    %v1227 = vld [vmem:[%s1022 + $0x93] sm:$0xff]
    %v1228 = vld [vmem:[%s1022 + $0x9b] sm:$0xff]
    %v1229 = vld [vmem:[%s1022 + $0xab] sm:$0xff]
    %v1230 = vld [vmem:[%s1022 + $0xb3] sm:$0xff]
    %v1231 = vld [vmem:[%s1022 + $0xc3] sm:$0xff]
    %v1232 = vld [vmem:[%s1022 + $0xcb] sm:$0xff]
    %v1233 = vld [vmem:[%s1022 + $0xdb] sm:$0xff]
    %v1234 = vld [vmem:[%s1022 + $0xe3] sm:$0xff]
    %v1235 = vld [vmem:[%s1022 + $0xf3] sm:$0xff]
    %v1236 = vld [vmem:[%s1022 + $0xfb] sm:$0xff]
    %v1237 = vld [vmem:[%s1022 + $0x10b] sm:$0xff]
    %v1238 = vld [vmem:[%s1022 + $0x113] sm:$0xff]
    %v1239 = vld [vmem:[%s1022 + $0x123] sm:$0xff]
    %v1240 = vld [vmem:[%s1022 + $0x12b] sm:$0xff]
    %v1241 = vld [vmem:[%s1022 + $0x13b] sm:$0xff]
    %v1242 = vld [vmem:[%s1022 + $0x143] sm:$0xff]
    %v1243 = vld [vmem:[%s1022 + $0x153] sm:$0xff]
    %v1244 = vld [vmem:[%s1022 + $0x15b] sm:$0xff]
    %v1245 = vld [vmem:[%s1022 + $0x16b] sm:$0xff]
    %v1246 = vld [vmem:[%s1022 + $0x173] sm:$0xff]
    %v1247 = vld [vmem:[%s1022 + $0x1e3] sm:$0xff]
    %v1248 = vld [vmem:[%s1022 + $0x1eb] sm:$0xff]
    %v1249 = vld [vmem:[%s1022 + $0x1fb] sm:$0xff]
    %v1250 = vld [vmem:[%s1022 + $0x203] sm:$0xff]
    %v1251 = vld [vmem:[%s1022 + $0x213] sm:$0xff]
    %v1252 = vld [vmem:[%s1022 + $0x21b] sm:$0xff]
    %v1253 = vld [vmem:[%s1022 + $0x22b] sm:$0xff]
    %v1254 = vld [vmem:[%s1022 + $0x233] sm:$0xff]
    %v1255 = vld [vmem:[%s1022 + $0x243] sm:$0xff]
    %v1256 = vld [vmem:[%s1022 + $0x24b] sm:$0xff]
    %v1257 = vld [vmem:[%s1022 + $0x25b] sm:$0xff]
    %v1258 = vld [vmem:[%s1022 + $0x263] sm:$0xff]
    %v1259 = vld [vmem:[%s1022 + $0x273] sm:$0xff]
    %v1260 = vld [vmem:[%s1022 + $0x27b] sm:$0xff]
    %v1261 = vld [vmem:[%s1022 + $0x28b] sm:$0xff]
    %v1262 = vld [vmem:[%s1022 + $0x293] sm:$0xff]
    %v1263 = vld [vmem:[%s1022 + $0x2a3] sm:$0xff]
    %v1264 = vld [vmem:[%s1022 + $0x2ab] sm:$0xff]
    %v1265 = vld [vmem:[%s1022 + $0x2bb] sm:$0xff]
    %v1266 = vld [vmem:[%s1022 + $0x2c3] sm:$0xff]
    %v1267 = vld [vmem:[%s1022 + $0x2d3] sm:$0xff]
    %v1268 = vld [vmem:[%s1022 + $0x2db] sm:$0xff]
    %v1269 = vld [vmem:[%s1022 + $0x2eb] sm:$0xff]
    %v1270 = vld [vmem:[%s1022 + $0x2f3] sm:$0xff]
    %v1271 = vld [vmem:[%s1022 + $0x303] sm:$0xff]
    %v1272 = vld [vmem:[%s1022 + $0x30b] sm:$0xff]
    %v1273 = vld [vmem:[%s1022 + $0x31b] sm:$0xff]
    %v1274 = vld [vmem:[%s1022 + $0x323] sm:$0xff]
    %v1275 = vld [vmem:[%s1022 + $0x333] sm:$0xff]
    %v1276 = vld [vmem:[%s1022 + $0x33b] sm:$0xff]
    %v1277 = vld [vmem:[%s1022 + $0x34b] sm:$0xff]
    %v1278 = vld [vmem:[%s1022 + $0x353] sm:$0xff]
    %v1279 = vld [vmem:[%s1022 + $0x4] sm:$0xff]
    %v1280 = vld [vmem:[%s1022 + $0xc] sm:$0xff]
    %v1281 = vld [vmem:[%s1022 + $0x1c] sm:$0xff]
    %v1282 = vld [vmem:[%s1022 + $0x24] sm:$0xff]
    %v1283 = vld [vmem:[%s1022 + $0x34] sm:$0xff]
    %v1284 = vld [vmem:[%s1022 + $0x3c] sm:$0xff]
    %v1285 = vld [vmem:[%s1022 + $0x4c] sm:$0xff]
    %v1286 = vld [vmem:[%s1022 + $0x54] sm:$0xff]
    %v1287 = vld [vmem:[%s1022 + $0x64] sm:$0xff]
    %v1288 = vld [vmem:[%s1022 + $0x6c] sm:$0xff]
    %v1289 = vld [vmem:[%s1022 + $0x7c] sm:$0xff]
    %v1290 = vld [vmem:[%s1022 + $0x84] sm:$0xff]
    %v1291 = vld [vmem:[%s1022 + $0x94] sm:$0xff]
    %v1292 = vld [vmem:[%s1022 + $0x9c] sm:$0xff]
    %v1293 = vld [vmem:[%s1022 + $0xac] sm:$0xff]
    %v1294 = vld [vmem:[%s1022 + $0xb4] sm:$0xff]
    %v1295 = vld [vmem:[%s1022 + $0xc4] sm:$0xff]
    %v1296 = vld [vmem:[%s1022 + $0xcc] sm:$0xff]
    %v1297 = vld [vmem:[%s1022 + $0xdc] sm:$0xff]
    %v1298 = vld [vmem:[%s1022 + $0xe4] sm:$0xff]
    %v1299 = vld [vmem:[%s1022 + $0xf4] sm:$0xff]
    %v1300 = vld [vmem:[%s1022 + $0xfc] sm:$0xff]
    %v1301 = vld [vmem:[%s1022 + $0x10c] sm:$0xff]
    %v1302 = vld [vmem:[%s1022 + $0x114] sm:$0xff]
    %v1303 = vld [vmem:[%s1022 + $0x124] sm:$0xff]
    %v1304 = vld [vmem:[%s1022 + $0x12c] sm:$0xff]
    %v1305 = vld [vmem:[%s1022 + $0x13c] sm:$0xff]
    %v1306 = vld [vmem:[%s1022 + $0x144] sm:$0xff]
    %v1307 = vld [vmem:[%s1022 + $0x154] sm:$0xff]
    %v1308 = vld [vmem:[%s1022 + $0x15c] sm:$0xff]
    %v1309 = vld [vmem:[%s1022 + $0x16c] sm:$0xff]
    %v1310 = vld [vmem:[%s1022 + $0x174] sm:$0xff]
    %v1311 = vld [vmem:[%s1022 + $0x1e4] sm:$0xff]
    %v1312 = vld [vmem:[%s1022 + $0x1ec] sm:$0xff]
    %v1313 = vld [vmem:[%s1022 + $0x1fc] sm:$0xff]
    %v1314 = vld [vmem:[%s1022 + $0x204] sm:$0xff]
    %v1315 = vld [vmem:[%s1022 + $0x214] sm:$0xff]
    %v1316 = vld [vmem:[%s1022 + $0x21c] sm:$0xff]
    %v1317 = vld [vmem:[%s1022 + $0x22c] sm:$0xff]
    %v1318 = vld [vmem:[%s1022 + $0x234] sm:$0xff]
    %v1319 = vld [vmem:[%s1022 + $0x244] sm:$0xff]
    %v1320 = vld [vmem:[%s1022 + $0x24c] sm:$0xff]
    %v1321 = vld [vmem:[%s1022 + $0x25c] sm:$0xff]
    %v1322 = vld [vmem:[%s1022 + $0x264] sm:$0xff]
    %v1323 = vld [vmem:[%s1022 + $0x274] sm:$0xff]
    %v1324 = vld [vmem:[%s1022 + $0x27c] sm:$0xff]
    %v1325 = vld [vmem:[%s1022 + $0x28c] sm:$0xff]
    %v1326 = vld [vmem:[%s1022 + $0x294] sm:$0xff]
    %v1327 = vld [vmem:[%s1022 + $0x2a4] sm:$0xff]
    %v1328 = vld [vmem:[%s1022 + $0x2ac] sm:$0xff]
    %v1329 = vld [vmem:[%s1022 + $0x2bc] sm:$0xff]
    %v1330 = vld [vmem:[%s1022 + $0x2c4] sm:$0xff]
    %v1331 = vld [vmem:[%s1022 + $0x2d4] sm:$0xff]
    %v1332 = vld [vmem:[%s1022 + $0x2dc] sm:$0xff]
    %v1333 = vld [vmem:[%s1022 + $0x2ec] sm:$0xff]
    %v1334 = vld [vmem:[%s1022 + $0x2f4] sm:$0xff]
    %v1335 = vld [vmem:[%s1022 + $0x304] sm:$0xff]
    %v1336 = vld [vmem:[%s1022 + $0x30c] sm:$0xff]
    %v1337 = vld [vmem:[%s1022 + $0x31c] sm:$0xff]
    %v1338 = vld [vmem:[%s1022 + $0x324] sm:$0xff]
    %v1339 = vld [vmem:[%s1022 + $0x334] sm:$0xff]
    %v1340 = vld [vmem:[%s1022 + $0x33c] sm:$0xff]
    %v1341 = vld [vmem:[%s1022 + $0x34c] sm:$0xff]
    %v1342 = vld [vmem:[%s1022 + $0x354] sm:$0xff]
    %s1343 = scalar_lea.vmem %s0, 96
    %v1344 = vld [vmem:[%s1343] sm:$0xff]
    %v1345 = vld [vmem:[%s1343 + $0x8] sm:$0xff]
    %v1346 = vld [vmem:[%s1343 + $0x18] sm:$0xff]
    %v1347 = vld [vmem:[%s1343 + $0x20] sm:$0xff]
    %v1348 = vld [vmem:[%s1343 + $0x30] sm:$0xff]
    %v1349 = vld [vmem:[%s1343 + $0x38] sm:$0xff]
    %v1350 = vld [vmem:[%s1343 + $0x48] sm:$0xff]
    %v1351 = vld [vmem:[%s1343 + $0x50] sm:$0xff]
    %v1352 = vld [vmem:[%s1343 + $0x60] sm:$0xff]
    %v1353 = vld [vmem:[%s1343 + $0x68] sm:$0xff]
    %v1354 = vld [vmem:[%s1343 + $0x78] sm:$0xff]
    %v1355 = vld [vmem:[%s1343 + $0x80] sm:$0xff]
    %v1356 = vld [vmem:[%s1343 + $0x90] sm:$0xff]
    %v1357 = vld [vmem:[%s1343 + $0x98] sm:$0xff]
    %v1358 = vld [vmem:[%s1343 + $0xa8] sm:$0xff]
    %v1359 = vld [vmem:[%s1343 + $0xb0] sm:$0xff]
    %v1360 = vld [vmem:[%s1343 + $0xc0] sm:$0xff]
    %v1361 = vld [vmem:[%s1343 + $0xc8] sm:$0xff]
    %v1362 = vld [vmem:[%s1343 + $0xd8] sm:$0xff]
    %v1363 = vld [vmem:[%s1343 + $0xe0] sm:$0xff]
    %v1364 = vld [vmem:[%s1343 + $0xf0] sm:$0xff]
    %v1365 = vld [vmem:[%s1343 + $0xf8] sm:$0xff]
    %v1366 = vld [vmem:[%s1343 + $0x108] sm:$0xff]
    %v1367 = vld [vmem:[%s1343 + $0x110] sm:$0xff]
    %v1368 = vld [vmem:[%s1343 + $0x120] sm:$0xff]
    %v1369 = vld [vmem:[%s1343 + $0x128] sm:$0xff]
    %v1370 = vld [vmem:[%s1343 + $0x138] sm:$0xff]
    %v1371 = vld [vmem:[%s1343 + $0x140] sm:$0xff]
    %v1372 = vld [vmem:[%s1343 + $0x150] sm:$0xff]
    %v1373 = vld [vmem:[%s1343 + $0x158] sm:$0xff]
    %v1374 = vld [vmem:[%s1343 + $0x168] sm:$0xff]
    %v1375 = vld [vmem:[%s1343 + $0x170] sm:$0xff]
    %v1376 = vld [vmem:[%s1343 + $0x1e0] sm:$0xff]
    %v1377 = vld [vmem:[%s1343 + $0x1e8] sm:$0xff]
    %v1378 = vld [vmem:[%s1343 + $0x1f8] sm:$0xff]
    %v1379 = vld [vmem:[%s1343 + $0x200] sm:$0xff]
    %v1380 = vld [vmem:[%s1343 + $0x210] sm:$0xff]
    %v1381 = vld [vmem:[%s1343 + $0x218] sm:$0xff]
    %v1382 = vld [vmem:[%s1343 + $0x228] sm:$0xff]
    %v1383 = vld [vmem:[%s1343 + $0x230] sm:$0xff]
    %v1384 = vld [vmem:[%s1343 + $0x240] sm:$0xff]
    %v1385 = vld [vmem:[%s1343 + $0x248] sm:$0xff]
    %v1386 = vld [vmem:[%s1343 + $0x258] sm:$0xff]
    %v1387 = vld [vmem:[%s1343 + $0x260] sm:$0xff]
    %v1388 = vld [vmem:[%s1343 + $0x270] sm:$0xff]
    %v1389 = vld [vmem:[%s1343 + $0x278] sm:$0xff]
    %v1390 = vld [vmem:[%s1343 + $0x288] sm:$0xff]
    %v1391 = vld [vmem:[%s1343 + $0x290] sm:$0xff]
    %v1392 = vld [vmem:[%s1343 + $0x2a0] sm:$0xff]
    %v1393 = vld [vmem:[%s1343 + $0x2a8] sm:$0xff]
    %v1394 = vld [vmem:[%s1343 + $0x2b8] sm:$0xff]
    %v1395 = vld [vmem:[%s1343 + $0x2c0] sm:$0xff]
    %v1396 = vld [vmem:[%s1343 + $0x2d0] sm:$0xff]
    %v1397 = vld [vmem:[%s1343 + $0x2d8] sm:$0xff]
    %v1398 = vld [vmem:[%s1343 + $0x2e8] sm:$0xff]
    %v1399 = vld [vmem:[%s1343 + $0x2f0] sm:$0xff]
    %v1400 = vld [vmem:[%s1343 + $0x300] sm:$0xff]
    %v1401 = vld [vmem:[%s1343 + $0x308] sm:$0xff]
    %v1402 = vld [vmem:[%s1343 + $0x318] sm:$0xff]
    %v1403 = vld [vmem:[%s1343 + $0x320] sm:$0xff]
    %v1404 = vld [vmem:[%s1343 + $0x330] sm:$0xff]
    %v1405 = vld [vmem:[%s1343 + $0x338] sm:$0xff]
    %v1406 = vld [vmem:[%s1343 + $0x348] sm:$0xff]
    %v1407 = vld [vmem:[%s1343 + $0x350] sm:$0xff]
    %v1408 = vld [vmem:[%s1343 + $0x1] sm:$0xff]
    %v1409 = vld [vmem:[%s1343 + $0x9] sm:$0xff]
    %v1410 = vld [vmem:[%s1343 + $0x19] sm:$0xff]
    %v1411 = vld [vmem:[%s1343 + $0x21] sm:$0xff]
    %v1412 = vld [vmem:[%s1343 + $0x31] sm:$0xff]
    %v1413 = vld [vmem:[%s1343 + $0x39] sm:$0xff]
    %v1414 = vld [vmem:[%s1343 + $0x49] sm:$0xff]
    %v1415 = vld [vmem:[%s1343 + $0x51] sm:$0xff]
    %v1416 = vld [vmem:[%s1343 + $0x61] sm:$0xff]
    %v1417 = vld [vmem:[%s1343 + $0x69] sm:$0xff]
    %v1418 = vld [vmem:[%s1343 + $0x79] sm:$0xff]
    %v1419 = vld [vmem:[%s1343 + $0x81] sm:$0xff]
    %v1420 = vld [vmem:[%s1343 + $0x91] sm:$0xff]
    %v1421 = vld [vmem:[%s1343 + $0x99] sm:$0xff]
    %v1422 = vld [vmem:[%s1343 + $0xa9] sm:$0xff]
    %v1423 = vld [vmem:[%s1343 + $0xb1] sm:$0xff]
    %v1424 = vld [vmem:[%s1343 + $0xc1] sm:$0xff]
    %v1425 = vld [vmem:[%s1343 + $0xc9] sm:$0xff]
    %v1426 = vld [vmem:[%s1343 + $0xd9] sm:$0xff]
    %v1427 = vld [vmem:[%s1343 + $0xe1] sm:$0xff]
    %v1428 = vld [vmem:[%s1343 + $0xf1] sm:$0xff]
    %v1429 = vld [vmem:[%s1343 + $0xf9] sm:$0xff]
    %v1430 = vld [vmem:[%s1343 + $0x109] sm:$0xff]
    %v1431 = vld [vmem:[%s1343 + $0x111] sm:$0xff]
    %v1432 = vld [vmem:[%s1343 + $0x121] sm:$0xff]
    %v1433 = vld [vmem:[%s1343 + $0x129] sm:$0xff]
    %v1434 = vld [vmem:[%s1343 + $0x139] sm:$0xff]
    %v1435 = vld [vmem:[%s1343 + $0x141] sm:$0xff]
    %v1436 = vld [vmem:[%s1343 + $0x151] sm:$0xff]
    %v1437 = vld [vmem:[%s1343 + $0x159] sm:$0xff]
    %v1438 = vld [vmem:[%s1343 + $0x169] sm:$0xff]
    %v1439 = vld [vmem:[%s1343 + $0x171] sm:$0xff]
    %v1440 = vld [vmem:[%s1343 + $0x1e1] sm:$0xff]
    %v1441 = vld [vmem:[%s1343 + $0x1e9] sm:$0xff]
    %v1442 = vld [vmem:[%s1343 + $0x1f9] sm:$0xff]
    %v1443 = vld [vmem:[%s1343 + $0x201] sm:$0xff]
    %v1444 = vld [vmem:[%s1343 + $0x211] sm:$0xff]
    %v1445 = vld [vmem:[%s1343 + $0x219] sm:$0xff]
    %v1446 = vld [vmem:[%s1343 + $0x229] sm:$0xff]
    %v1447 = vld [vmem:[%s1343 + $0x231] sm:$0xff]
    %v1448 = vld [vmem:[%s1343 + $0x241] sm:$0xff]
    %v1449 = vld [vmem:[%s1343 + $0x249] sm:$0xff]
    %v1450 = vld [vmem:[%s1343 + $0x259] sm:$0xff]
    %v1451 = vld [vmem:[%s1343 + $0x261] sm:$0xff]
    %v1452 = vld [vmem:[%s1343 + $0x271] sm:$0xff]
    %v1453 = vld [vmem:[%s1343 + $0x279] sm:$0xff]
    %v1454 = vld [vmem:[%s1343 + $0x289] sm:$0xff]
    %v1455 = vld [vmem:[%s1343 + $0x291] sm:$0xff]
    %v1456 = vld [vmem:[%s1343 + $0x2a1] sm:$0xff]
    %v1457 = vld [vmem:[%s1343 + $0x2a9] sm:$0xff]
    %v1458 = vld [vmem:[%s1343 + $0x2b9] sm:$0xff]
    %v1459 = vld [vmem:[%s1343 + $0x2c1] sm:$0xff]
    %v1460 = vld [vmem:[%s1343 + $0x2d1] sm:$0xff]
    %v1461 = vld [vmem:[%s1343 + $0x2d9] sm:$0xff]
    %v1462 = vld [vmem:[%s1343 + $0x2e9] sm:$0xff]
    %v1463 = vld [vmem:[%s1343 + $0x2f1] sm:$0xff]
    %v1464 = vld [vmem:[%s1343 + $0x301] sm:$0xff]
    %v1465 = vld [vmem:[%s1343 + $0x309] sm:$0xff]
    %v1466 = vld [vmem:[%s1343 + $0x319] sm:$0xff]
    %v1467 = vld [vmem:[%s1343 + $0x321] sm:$0xff]
    %v1468 = vld [vmem:[%s1343 + $0x331] sm:$0xff]
    %v1469 = vld [vmem:[%s1343 + $0x339] sm:$0xff]
    %v1470 = vld [vmem:[%s1343 + $0x349] sm:$0xff]
    %v1471 = vld [vmem:[%s1343 + $0x351] sm:$0xff]
    %v1472 = vld [vmem:[%s1343 + $0x2] sm:$0xff]
    %v1473 = vld [vmem:[%s1343 + $0xa] sm:$0xff]
    %v1474 = vld [vmem:[%s1343 + $0x1a] sm:$0xff]
    %v1475 = vld [vmem:[%s1343 + $0x22] sm:$0xff]
    %v1476 = vld [vmem:[%s1343 + $0x32] sm:$0xff]
    %v1477 = vld [vmem:[%s1343 + $0x3a] sm:$0xff]
    %v1478 = vld [vmem:[%s1343 + $0x4a] sm:$0xff]
    %v1479 = vld [vmem:[%s1343 + $0x52] sm:$0xff]
    %v1480 = vld [vmem:[%s1343 + $0x62] sm:$0xff]
    %v1481 = vld [vmem:[%s1343 + $0x6a] sm:$0xff]
    %v1482 = vld [vmem:[%s1343 + $0x7a] sm:$0xff]
    %v1483 = vld [vmem:[%s1343 + $0x82] sm:$0xff]
    %v1484 = vld [vmem:[%s1343 + $0x92] sm:$0xff]
    %v1485 = vld [vmem:[%s1343 + $0x9a] sm:$0xff]
    %v1486 = vld [vmem:[%s1343 + $0xaa] sm:$0xff]
    %v1487 = vld [vmem:[%s1343 + $0xb2] sm:$0xff]
    %v1488 = vld [vmem:[%s1343 + $0xc2] sm:$0xff]
    %v1489 = vld [vmem:[%s1343 + $0xca] sm:$0xff]
    %v1490 = vld [vmem:[%s1343 + $0xda] sm:$0xff]
    %v1491 = vld [vmem:[%s1343 + $0xe2] sm:$0xff]
    %v1492 = vld [vmem:[%s1343 + $0xf2] sm:$0xff]
    %v1493 = vld [vmem:[%s1343 + $0xfa] sm:$0xff]
    %v1494 = vld [vmem:[%s1343 + $0x10a] sm:$0xff]
    %v1495 = vld [vmem:[%s1343 + $0x112] sm:$0xff]
    %v1496 = vld [vmem:[%s1343 + $0x122] sm:$0xff]
    %v1497 = vld [vmem:[%s1343 + $0x12a] sm:$0xff]
    %v1498 = vld [vmem:[%s1343 + $0x13a] sm:$0xff]
    %v1499 = vld [vmem:[%s1343 + $0x142] sm:$0xff]
    %v1500 = vld [vmem:[%s1343 + $0x152] sm:$0xff]
    %v1501 = vld [vmem:[%s1343 + $0x15a] sm:$0xff]
    %v1502 = vld [vmem:[%s1343 + $0x16a] sm:$0xff]
    %v1503 = vld [vmem:[%s1343 + $0x172] sm:$0xff]
    %v1504 = vld [vmem:[%s1343 + $0x1e2] sm:$0xff]
    %v1505 = vld [vmem:[%s1343 + $0x1ea] sm:$0xff]
    %v1506 = vld [vmem:[%s1343 + $0x1fa] sm:$0xff]
    %v1507 = vld [vmem:[%s1343 + $0x202] sm:$0xff]
    %v1508 = vld [vmem:[%s1343 + $0x212] sm:$0xff]
    %v1509 = vld [vmem:[%s1343 + $0x21a] sm:$0xff]
    %v1510 = vld [vmem:[%s1343 + $0x22a] sm:$0xff]
    %v1511 = vld [vmem:[%s1343 + $0x232] sm:$0xff]
    %v1512 = vld [vmem:[%s1343 + $0x242] sm:$0xff]
    %v1513 = vld [vmem:[%s1343 + $0x24a] sm:$0xff]
    %v1514 = vld [vmem:[%s1343 + $0x25a] sm:$0xff]
    %v1515 = vld [vmem:[%s1343 + $0x262] sm:$0xff]
    %v1516 = vld [vmem:[%s1343 + $0x272] sm:$0xff]
    %v1517 = vld [vmem:[%s1343 + $0x27a] sm:$0xff]
    %v1518 = vld [vmem:[%s1343 + $0x28a] sm:$0xff]
    %v1519 = vld [vmem:[%s1343 + $0x292] sm:$0xff]
    %v1520 = vld [vmem:[%s1343 + $0x2a2] sm:$0xff]
    %v1521 = vld [vmem:[%s1343 + $0x2aa] sm:$0xff]
    %v1522 = vld [vmem:[%s1343 + $0x2ba] sm:$0xff]
    %v1523 = vld [vmem:[%s1343 + $0x2c2] sm:$0xff]
    %v1524 = vld [vmem:[%s1343 + $0x2d2] sm:$0xff]
    %v1525 = vld [vmem:[%s1343 + $0x2da] sm:$0xff]
    %v1526 = vld [vmem:[%s1343 + $0x2ea] sm:$0xff]
    %v1527 = vld [vmem:[%s1343 + $0x2f2] sm:$0xff]
    %v1528 = vld [vmem:[%s1343 + $0x302] sm:$0xff]
    %v1529 = vld [vmem:[%s1343 + $0x30a] sm:$0xff]
    %v1530 = vld [vmem:[%s1343 + $0x31a] sm:$0xff]
    %v1531 = vld [vmem:[%s1343 + $0x322] sm:$0xff]
    %v1532 = vld [vmem:[%s1343 + $0x332] sm:$0xff]
    %v1533 = vld [vmem:[%s1343 + $0x33a] sm:$0xff]
    %v1534 = vld [vmem:[%s1343 + $0x34a] sm:$0xff]
    %v1535 = vld [vmem:[%s1343 + $0x352] sm:$0xff]
    %v1536 = vld [vmem:[%s1343 + $0x3] sm:$0xff]
    %v1537 = vld [vmem:[%s1343 + $0xb] sm:$0xff]
    %v1538 = vld [vmem:[%s1343 + $0x1b] sm:$0xff]
    %v1539 = vld [vmem:[%s1343 + $0x23] sm:$0xff]
    %v1540 = vld [vmem:[%s1343 + $0x33] sm:$0xff]
    %v1541 = vld [vmem:[%s1343 + $0x3b] sm:$0xff]
    %v1542 = vld [vmem:[%s1343 + $0x4b] sm:$0xff]
    %v1543 = vld [vmem:[%s1343 + $0x53] sm:$0xff]
    %v1544 = vld [vmem:[%s1343 + $0x63] sm:$0xff]
    %v1545 = vld [vmem:[%s1343 + $0x6b] sm:$0xff]
    %v1546 = vld [vmem:[%s1343 + $0x7b] sm:$0xff]
    %v1547 = vld [vmem:[%s1343 + $0x83] sm:$0xff]
    %v1548 = vld [vmem:[%s1343 + $0x93] sm:$0xff]
    %v1549 = vld [vmem:[%s1343 + $0x9b] sm:$0xff]
    %v1550 = vld [vmem:[%s1343 + $0xab] sm:$0xff]
    %v1551 = vld [vmem:[%s1343 + $0xb3] sm:$0xff]
    %v1552 = vld [vmem:[%s1343 + $0xc3] sm:$0xff]
    %v1553 = vld [vmem:[%s1343 + $0xcb] sm:$0xff]
    %v1554 = vld [vmem:[%s1343 + $0xdb] sm:$0xff]
    %v1555 = vld [vmem:[%s1343 + $0xe3] sm:$0xff]
    %v1556 = vld [vmem:[%s1343 + $0xf3] sm:$0xff]
    %v1557 = vld [vmem:[%s1343 + $0xfb] sm:$0xff]
    %v1558 = vld [vmem:[%s1343 + $0x10b] sm:$0xff]
    %v1559 = vld [vmem:[%s1343 + $0x113] sm:$0xff]
    %v1560 = vld [vmem:[%s1343 + $0x123] sm:$0xff]
    %v1561 = vld [vmem:[%s1343 + $0x12b] sm:$0xff]
    %v1562 = vld [vmem:[%s1343 + $0x13b] sm:$0xff]
    %v1563 = vld [vmem:[%s1343 + $0x143] sm:$0xff]
    %v1564 = vld [vmem:[%s1343 + $0x153] sm:$0xff]
    %v1565 = vld [vmem:[%s1343 + $0x15b] sm:$0xff]
    %v1566 = vld [vmem:[%s1343 + $0x16b] sm:$0xff]
    %v1567 = vld [vmem:[%s1343 + $0x173] sm:$0xff]
    %v1568 = vld [vmem:[%s1343 + $0x1e3] sm:$0xff]
    %v1569 = vld [vmem:[%s1343 + $0x1eb] sm:$0xff]
    %v1570 = vld [vmem:[%s1343 + $0x1fb] sm:$0xff]
    %v1571 = vld [vmem:[%s1343 + $0x203] sm:$0xff]
    %v1572 = vld [vmem:[%s1343 + $0x213] sm:$0xff]
    %v1573 = vld [vmem:[%s1343 + $0x21b] sm:$0xff]
    %v1574 = vld [vmem:[%s1343 + $0x22b] sm:$0xff]
    %v1575 = vld [vmem:[%s1343 + $0x233] sm:$0xff]
    %v1576 = vld [vmem:[%s1343 + $0x243] sm:$0xff]
    %v1577 = vld [vmem:[%s1343 + $0x24b] sm:$0xff]
    %v1578 = vld [vmem:[%s1343 + $0x25b] sm:$0xff]
    %v1579 = vld [vmem:[%s1343 + $0x263] sm:$0xff]
    %v1580 = vld [vmem:[%s1343 + $0x273] sm:$0xff]
    %v1581 = vld [vmem:[%s1343 + $0x27b] sm:$0xff]
    %v1582 = vld [vmem:[%s1343 + $0x28b] sm:$0xff]
    %v1583 = vld [vmem:[%s1343 + $0x293] sm:$0xff]
    %v1584 = vld [vmem:[%s1343 + $0x2a3] sm:$0xff]
    %v1585 = vld [vmem:[%s1343 + $0x2ab] sm:$0xff]
    %v1586 = vld [vmem:[%s1343 + $0x2bb] sm:$0xff]
    %v1587 = vld [vmem:[%s1343 + $0x2c3] sm:$0xff]
    %v1588 = vld [vmem:[%s1343 + $0x2d3] sm:$0xff]
    %v1589 = vld [vmem:[%s1343 + $0x2db] sm:$0xff]
    %v1590 = vld [vmem:[%s1343 + $0x2eb] sm:$0xff]
    %v1591 = vld [vmem:[%s1343 + $0x2f3] sm:$0xff]
    %v1592 = vld [vmem:[%s1343 + $0x303] sm:$0xff]
    %v1593 = vld [vmem:[%s1343 + $0x30b] sm:$0xff]
    %v1594 = vld [vmem:[%s1343 + $0x31b] sm:$0xff]
    %v1595 = vld [vmem:[%s1343 + $0x323] sm:$0xff]
    %v1596 = vld [vmem:[%s1343 + $0x333] sm:$0xff]
    %v1597 = vld [vmem:[%s1343 + $0x33b] sm:$0xff]
    %v1598 = vld [vmem:[%s1343 + $0x34b] sm:$0xff]
    %v1599 = vld [vmem:[%s1343 + $0x353] sm:$0xff]
    %v1600 = vld [vmem:[%s1343 + $0x4] sm:$0xff]
    %v1601 = vld [vmem:[%s1343 + $0xc] sm:$0xff]
    %v1602 = vld [vmem:[%s1343 + $0x1c] sm:$0xff]
    %v1603 = vld [vmem:[%s1343 + $0x24] sm:$0xff]
    %v1604 = vld [vmem:[%s1343 + $0x34] sm:$0xff]
    %v1605 = vld [vmem:[%s1343 + $0x3c] sm:$0xff]
    %v1606 = vld [vmem:[%s1343 + $0x4c] sm:$0xff]
    %v1607 = vld [vmem:[%s1343 + $0x54] sm:$0xff]
    %v1608 = vld [vmem:[%s1343 + $0x64] sm:$0xff]
    %v1609 = vld [vmem:[%s1343 + $0x6c] sm:$0xff]
    %v1610 = vld [vmem:[%s1343 + $0x7c] sm:$0xff]
    %v1611 = vld [vmem:[%s1343 + $0x84] sm:$0xff]
    %v1612 = vld [vmem:[%s1343 + $0x94] sm:$0xff]
    %v1613 = vld [vmem:[%s1343 + $0x9c] sm:$0xff]
    %v1614 = vld [vmem:[%s1343 + $0xac] sm:$0xff]
    %v1615 = vld [vmem:[%s1343 + $0xb4] sm:$0xff]
    %v1616 = vld [vmem:[%s1343 + $0xc4] sm:$0xff]
    %v1617 = vld [vmem:[%s1343 + $0xcc] sm:$0xff]
    %v1618 = vld [vmem:[%s1343 + $0xdc] sm:$0xff]
    %v1619 = vld [vmem:[%s1343 + $0xe4] sm:$0xff]
    %v1620 = vld [vmem:[%s1343 + $0xf4] sm:$0xff]
    %v1621 = vld [vmem:[%s1343 + $0xfc] sm:$0xff]
    %v1622 = vld [vmem:[%s1343 + $0x10c] sm:$0xff]
    %v1623 = vld [vmem:[%s1343 + $0x114] sm:$0xff]
    %v1624 = vld [vmem:[%s1343 + $0x124] sm:$0xff]
    %v1625 = vld [vmem:[%s1343 + $0x12c] sm:$0xff]
    %v1626 = vld [vmem:[%s1343 + $0x13c] sm:$0xff]
    %v1627 = vld [vmem:[%s1343 + $0x144] sm:$0xff]
    %v1628 = vld [vmem:[%s1343 + $0x154] sm:$0xff]
    %v1629 = vld [vmem:[%s1343 + $0x15c] sm:$0xff]
    %v1630 = vld [vmem:[%s1343 + $0x16c] sm:$0xff]
    %v1631 = vld [vmem:[%s1343 + $0x174] sm:$0xff]
    %v1632 = vld [vmem:[%s1343 + $0x1e4] sm:$0xff]
    %v1633 = vld [vmem:[%s1343 + $0x1ec] sm:$0xff]
    %v1634 = vld [vmem:[%s1343 + $0x1fc] sm:$0xff]
    %v1635 = vld [vmem:[%s1343 + $0x204] sm:$0xff]
    %v1636 = vld [vmem:[%s1343 + $0x214] sm:$0xff]
    %v1637 = vld [vmem:[%s1343 + $0x21c] sm:$0xff]
    %v1638 = vld [vmem:[%s1343 + $0x22c] sm:$0xff]
    %v1639 = vld [vmem:[%s1343 + $0x234] sm:$0xff]
    %v1640 = vld [vmem:[%s1343 + $0x244] sm:$0xff]
    %v1641 = vld [vmem:[%s1343 + $0x24c] sm:$0xff]
    %v1642 = vld [vmem:[%s1343 + $0x25c] sm:$0xff]
    %v1643 = vld [vmem:[%s1343 + $0x264] sm:$0xff]
    %v1644 = vld [vmem:[%s1343 + $0x274] sm:$0xff]
    %v1645 = vld [vmem:[%s1343 + $0x27c] sm:$0xff]
    %v1646 = vld [vmem:[%s1343 + $0x28c] sm:$0xff]
    %v1647 = vld [vmem:[%s1343 + $0x294] sm:$0xff]
    %v1648 = vld [vmem:[%s1343 + $0x2a4] sm:$0xff]
    %v1649 = vld [vmem:[%s1343 + $0x2ac] sm:$0xff]
    %v1650 = vld [vmem:[%s1343 + $0x2bc] sm:$0xff]
    %v1651 = vld [vmem:[%s1343 + $0x2c4] sm:$0xff]
    %v1652 = vld [vmem:[%s1343 + $0x2d4] sm:$0xff]
    %v1653 = vld [vmem:[%s1343 + $0x2dc] sm:$0xff]
    %v1654 = vld [vmem:[%s1343 + $0x2ec] sm:$0xff]
    %v1655 = vld [vmem:[%s1343 + $0x2f4] sm:$0xff]
    %v1656 = vld [vmem:[%s1343 + $0x304] sm:$0xff]
    %v1657 = vld [vmem:[%s1343 + $0x30c] sm:$0xff]
    %v1658 = vld [vmem:[%s1343 + $0x31c] sm:$0xff]
    %v1659 = vld [vmem:[%s1343 + $0x324] sm:$0xff]
    %v1660 = vld [vmem:[%s1343 + $0x334] sm:$0xff]
    %v1661 = vld [vmem:[%s1343 + $0x33c] sm:$0xff]
    %v1662 = vld [vmem:[%s1343 + $0x34c] sm:$0xff]
    %v1663 = vld [vmem:[%s1343 + $0x354] sm:$0xff]
    %1728 = vrot.lane.b32.xlu0 %v124, 3
    %v1729 = vpop.permute.xlu0 %1728
    %1730 = vrot.lane.b32.xlu0 %v125, 3
    %v1731 = vpop.permute.xlu0 %1730
    %1732 = vrot.lane.b32.xlu0 %v126, 3
    %v1733 = vpop.permute.xlu0 %1732
    %1734 = vrot.lane.b32.xlu0 %v127, 3
    %v1735 = vpop.permute.xlu0 %1734
    %1736 = vrot.lane.b32.xlu0 %v128, 3
    %v1737 = vpop.permute.xlu0 %1736
    %1738 = vrot.lane.b32.xlu0 %v129, 3
    %v1739 = vpop.permute.xlu0 %1738
    %1740 = vrot.lane.b32.xlu0 %v130, 3
    %v1741 = vpop.permute.xlu0 %1740
    %1742 = vrot.lane.b32.xlu0 %v131, 3
    %v1743 = vpop.permute.xlu0 %1742
    %1744 = vrot.lane.b32.xlu0 %v132, 3
    %v1745 = vpop.permute.xlu0 %1744
    %1746 = vrot.lane.b32.xlu0 %v133, 3
    %v1747 = vpop.permute.xlu0 %1746
    %1748 = vrot.lane.b32.xlu0 %v134, 3
    %v1749 = vpop.permute.xlu0 %1748
    %1750 = vrot.lane.b32.xlu0 %v135, 3
    %v1751 = vpop.permute.xlu0 %1750
    %1752 = vrot.lane.b32.xlu0 %v136, 3
    %v1753 = vpop.permute.xlu0 %1752
    %1754 = vrot.lane.b32.xlu0 %v137, 3
    %v1755 = vpop.permute.xlu0 %1754
    %1756 = vrot.lane.b32.xlu0 %v138, 3
    %v1757 = vpop.permute.xlu0 %1756
    %1758 = vrot.lane.b32.xlu0 %v139, 3
    %v1759 = vpop.permute.xlu0 %1758
    %1760 = vrot.lane.b32.xlu0 %v140, 3
    %v1761 = vpop.permute.xlu0 %1760
    %1762 = vrot.lane.b32.xlu0 %v141, 3
    %v1763 = vpop.permute.xlu0 %1762
    %1764 = vrot.lane.b32.xlu0 %v142, 3
    %v1765 = vpop.permute.xlu0 %1764
    %1766 = vrot.lane.b32.xlu0 %v143, 3
    %v1767 = vpop.permute.xlu0 %1766
    %1768 = vrot.lane.b32.xlu0 %v144, 3
    %v1769 = vpop.permute.xlu0 %1768
    %1770 = vrot.lane.b32.xlu0 %v145, 3
    %v1771 = vpop.permute.xlu0 %1770
    %1772 = vrot.lane.b32.xlu0 %v146, 3
    %v1773 = vpop.permute.xlu0 %1772
    %1774 = vrot.lane.b32.xlu0 %v147, 3
    %v1775 = vpop.permute.xlu0 %1774
    %1776 = vrot.lane.b32.xlu0 %v148, 3
    %v1777 = vpop.permute.xlu0 %1776
    %1778 = vrot.lane.b32.xlu0 %v149, 3
    %v1779 = vpop.permute.xlu0 %1778
    %1780 = vrot.lane.b32.xlu0 %v150, 3
    %v1781 = vpop.permute.xlu0 %1780
    %1782 = vrot.lane.b32.xlu0 %v151, 3
    %v1783 = vpop.permute.xlu0 %1782
    %1784 = vrot.lane.b32.xlu0 %v152, 3
    %v1785 = vpop.permute.xlu0 %1784
    %1786 = vrot.lane.b32.xlu0 %v153, 3
    %v1787 = vpop.permute.xlu0 %1786
    %1788 = vrot.lane.b32.xlu0 %v154, 3
    %v1789 = vpop.permute.xlu0 %1788
    %1790 = vrot.lane.b32.xlu0 %v155, 3
    %v1791 = vpop.permute.xlu0 %1790
    %1792 = vrot.lane.b32.xlu0 %v156, 3
    %v1793 = vpop.permute.xlu0 %1792
    %1794 = vrot.lane.b32.xlu0 %v157, 3
    %v1795 = vpop.permute.xlu0 %1794
    %1796 = vrot.lane.b32.xlu0 %v158, 3
    %v1797 = vpop.permute.xlu0 %1796
    %1798 = vrot.lane.b32.xlu0 %v159, 3
    %v1799 = vpop.permute.xlu0 %1798
    %1800 = vrot.lane.b32.xlu0 %v160, 3
    %v1801 = vpop.permute.xlu0 %1800
    %1802 = vrot.lane.b32.xlu0 %v161, 3
    %v1803 = vpop.permute.xlu0 %1802
    %1804 = vrot.lane.b32.xlu0 %v162, 3
    %v1805 = vpop.permute.xlu0 %1804
    %1806 = vrot.lane.b32.xlu0 %v163, 3
    %v1807 = vpop.permute.xlu0 %1806
    %1808 = vrot.lane.b32.xlu0 %v164, 3
    %v1809 = vpop.permute.xlu0 %1808
    %1810 = vrot.lane.b32.xlu0 %v165, 3
    %v1811 = vpop.permute.xlu0 %1810
    %1812 = vrot.lane.b32.xlu0 %v166, 3
    %v1813 = vpop.permute.xlu0 %1812
    %1814 = vrot.lane.b32.xlu0 %v167, 3
    %v1815 = vpop.permute.xlu0 %1814
    %1816 = vrot.lane.b32.xlu0 %v168, 3
    %v1817 = vpop.permute.xlu0 %1816
    %1818 = vrot.lane.b32.xlu0 %v169, 3
    %v1819 = vpop.permute.xlu0 %1818
    %1820 = vrot.lane.b32.xlu0 %v170, 3
    %v1821 = vpop.permute.xlu0 %1820
    %1822 = vrot.lane.b32.xlu0 %v171, 3
    %v1823 = vpop.permute.xlu0 %1822
    %1824 = vrot.lane.b32.xlu0 %v172, 3
    %v1825 = vpop.permute.xlu0 %1824
    %1826 = vrot.lane.b32.xlu0 %v173, 3
    %v1827 = vpop.permute.xlu0 %1826
    %1828 = vrot.lane.b32.xlu0 %v174, 3
    %v1829 = vpop.permute.xlu0 %1828
    %1830 = vrot.lane.b32.xlu0 %v175, 3
    %v1831 = vpop.permute.xlu0 %1830
    %1832 = vrot.lane.b32.xlu0 %v176, 3
    %v1833 = vpop.permute.xlu0 %1832
    %1834 = vrot.lane.b32.xlu0 %v177, 3
    %v1835 = vpop.permute.xlu0 %1834
    %1836 = vrot.lane.b32.xlu0 %v178, 3
    %v1837 = vpop.permute.xlu0 %1836
    %1838 = vrot.lane.b32.xlu0 %v179, 3
    %v1839 = vpop.permute.xlu0 %1838
    %1840 = vrot.lane.b32.xlu0 %v180, 3
    %v1841 = vpop.permute.xlu0 %1840
    %1842 = vrot.lane.b32.xlu0 %v181, 3
    %v1843 = vpop.permute.xlu0 %1842
    %1844 = vrot.lane.b32.xlu0 %v182, 3
    %v1845 = vpop.permute.xlu0 %1844
    %1846 = vrot.lane.b32.xlu0 %v183, 3
    %v1847 = vpop.permute.xlu0 %1846
    %1848 = vrot.lane.b32.xlu0 %v184, 3
    %v1849 = vpop.permute.xlu0 %1848
    %1850 = vrot.lane.b32.xlu0 %v185, 3
    %v1851 = vpop.permute.xlu0 %1850
    %1852 = vrot.lane.b32.xlu0 %v186, 3
    %v1853 = vpop.permute.xlu0 %1852
    %1854 = vrot.lane.b32.xlu0 %v187, 3
    %v1855 = vpop.permute.xlu0 %1854
    %1984 = vrot.lane.b32.xlu0 %v188, 6
    %v1985 = vpop.permute.xlu0 %1984
    %1986 = vrot.lane.b32.xlu0 %v189, 6
    %v1987 = vpop.permute.xlu0 %1986
    %1988 = vrot.lane.b32.xlu0 %v190, 6
    %v1989 = vpop.permute.xlu0 %1988
    %1990 = vrot.lane.b32.xlu0 %v191, 6
    %v1991 = vpop.permute.xlu0 %1990
    %1992 = vrot.lane.b32.xlu0 %v192, 6
    %v1993 = vpop.permute.xlu0 %1992
    %1994 = vrot.lane.b32.xlu0 %v193, 6
    %v1995 = vpop.permute.xlu0 %1994
    %1996 = vrot.lane.b32.xlu0 %v194, 6
    %v1997 = vpop.permute.xlu0 %1996
    %1998 = vrot.lane.b32.xlu0 %v195, 6
    %v1999 = vpop.permute.xlu0 %1998
    %2000 = vrot.lane.b32.xlu0 %v196, 6
    %v2001 = vpop.permute.xlu0 %2000
    %2002 = vrot.lane.b32.xlu0 %v197, 6
    %v2003 = vpop.permute.xlu0 %2002
    %2004 = vrot.lane.b32.xlu0 %v198, 6
    %v2005 = vpop.permute.xlu0 %2004
    %2006 = vrot.lane.b32.xlu0 %v199, 6
    %v2007 = vpop.permute.xlu0 %2006
    %2008 = vrot.lane.b32.xlu0 %v200, 6
    %v2009 = vpop.permute.xlu0 %2008
    %2010 = vrot.lane.b32.xlu0 %v201, 6
    %v2011 = vpop.permute.xlu0 %2010
    %2012 = vrot.lane.b32.xlu0 %v202, 6
    %v2013 = vpop.permute.xlu0 %2012
    %2014 = vrot.lane.b32.xlu0 %v203, 6
    %v2015 = vpop.permute.xlu0 %2014
    %2016 = vrot.lane.b32.xlu0 %v204, 6
    %v2017 = vpop.permute.xlu0 %2016
    %2018 = vrot.lane.b32.xlu0 %v205, 6
    %v2019 = vpop.permute.xlu0 %2018
    %2020 = vrot.lane.b32.xlu0 %v206, 6
    %v2021 = vpop.permute.xlu0 %2020
    %2022 = vrot.lane.b32.xlu0 %v207, 6
    %v2023 = vpop.permute.xlu0 %2022
    %2024 = vrot.lane.b32.xlu0 %v208, 6
    %v2025 = vpop.permute.xlu0 %2024
    %2026 = vrot.lane.b32.xlu0 %v209, 6
    %v2027 = vpop.permute.xlu0 %2026
    %2028 = vrot.lane.b32.xlu0 %v210, 6
    %v2029 = vpop.permute.xlu0 %2028
    %2030 = vrot.lane.b32.xlu0 %v211, 6
    %v2031 = vpop.permute.xlu0 %2030
    %2032 = vrot.lane.b32.xlu0 %v212, 6
    %v2033 = vpop.permute.xlu0 %2032
    %2034 = vrot.lane.b32.xlu0 %v213, 6
    %v2035 = vpop.permute.xlu0 %2034
    %2036 = vrot.lane.b32.xlu0 %v214, 6
    %v2037 = vpop.permute.xlu0 %2036
    %2038 = vrot.lane.b32.xlu0 %v215, 6
    %v2039 = vpop.permute.xlu0 %2038
    %2040 = vrot.lane.b32.xlu0 %v216, 6
    %v2041 = vpop.permute.xlu0 %2040
    %2042 = vrot.lane.b32.xlu0 %v217, 6
    %v2043 = vpop.permute.xlu0 %2042
    %2044 = vrot.lane.b32.xlu0 %v218, 6
    %v2045 = vpop.permute.xlu0 %2044
    %2046 = vrot.lane.b32.xlu0 %v219, 6
    %v2047 = vpop.permute.xlu0 %2046
    %2048 = vrot.lane.b32.xlu0 %v220, 6
    %v2049 = vpop.permute.xlu0 %2048
    %2050 = vrot.lane.b32.xlu0 %v221, 6
    %v2051 = vpop.permute.xlu0 %2050
    %2052 = vrot.lane.b32.xlu0 %v222, 6
    %v2053 = vpop.permute.xlu0 %2052
    %2054 = vrot.lane.b32.xlu0 %v223, 6
    %v2055 = vpop.permute.xlu0 %2054
    %2056 = vrot.lane.b32.xlu0 %v224, 6
    %v2057 = vpop.permute.xlu0 %2056
    %2058 = vrot.lane.b32.xlu0 %v225, 6
    %v2059 = vpop.permute.xlu0 %2058
    %2060 = vrot.lane.b32.xlu0 %v226, 6
    %v2061 = vpop.permute.xlu0 %2060
    %2062 = vrot.lane.b32.xlu0 %v227, 6
    %v2063 = vpop.permute.xlu0 %2062
    %2064 = vrot.lane.b32.xlu0 %v228, 6
    %v2065 = vpop.permute.xlu0 %2064
    %2066 = vrot.lane.b32.xlu0 %v229, 6
    %v2067 = vpop.permute.xlu0 %2066
    %2068 = vrot.lane.b32.xlu0 %v230, 6
    %v2069 = vpop.permute.xlu0 %2068
    %2070 = vrot.lane.b32.xlu0 %v231, 6
    %v2071 = vpop.permute.xlu0 %2070
    %2072 = vrot.lane.b32.xlu0 %v232, 6
    %v2073 = vpop.permute.xlu0 %2072
    %2074 = vrot.lane.b32.xlu0 %v233, 6
    %v2075 = vpop.permute.xlu0 %2074
    %2076 = vrot.lane.b32.xlu0 %v234, 6
    %v2077 = vpop.permute.xlu0 %2076
    %2078 = vrot.lane.b32.xlu0 %v235, 6
    %v2079 = vpop.permute.xlu0 %2078
    %2080 = vrot.lane.b32.xlu0 %v236, 6
    %v2081 = vpop.permute.xlu0 %2080
    %2082 = vrot.lane.b32.xlu0 %v237, 6
    %v2083 = vpop.permute.xlu0 %2082
    %2084 = vrot.lane.b32.xlu0 %v238, 6
    %v2085 = vpop.permute.xlu0 %2084
    %2086 = vrot.lane.b32.xlu0 %v239, 6
    %v2087 = vpop.permute.xlu0 %2086
    %2088 = vrot.lane.b32.xlu0 %v240, 6
    %v2089 = vpop.permute.xlu0 %2088
    %2090 = vrot.lane.b32.xlu0 %v241, 6
    %v2091 = vpop.permute.xlu0 %2090
    %2092 = vrot.lane.b32.xlu0 %v242, 6
    %v2093 = vpop.permute.xlu0 %2092
    %2094 = vrot.lane.b32.xlu0 %v243, 6
    %v2095 = vpop.permute.xlu0 %2094
    %2096 = vrot.lane.b32.xlu0 %v244, 6
    %v2097 = vpop.permute.xlu0 %2096
    %2098 = vrot.lane.b32.xlu0 %v245, 6
    %v2099 = vpop.permute.xlu0 %2098
    %2100 = vrot.lane.b32.xlu0 %v246, 6
    %v2101 = vpop.permute.xlu0 %2100
    %2102 = vrot.lane.b32.xlu0 %v247, 6
    %v2103 = vpop.permute.xlu0 %2102
    %2104 = vrot.lane.b32.xlu0 %v248, 6
    %v2105 = vpop.permute.xlu0 %2104
    %2106 = vrot.lane.b32.xlu0 %v249, 6
    %v2107 = vpop.permute.xlu0 %2106
    %2108 = vrot.lane.b32.xlu0 %v250, 6
    %v2109 = vpop.permute.xlu0 %2108
    %2110 = vrot.lane.b32.xlu0 %v251, 6
    %v2111 = vpop.permute.xlu0 %2110
    %2240 = vrot.lane.b32.xlu0 %v252, 9
    %v2241 = vpop.permute.xlu0 %2240
    %2242 = vrot.lane.b32.xlu0 %v253, 9
    %v2243 = vpop.permute.xlu0 %2242
    %2244 = vrot.lane.b32.xlu0 %v254, 9
    %v2245 = vpop.permute.xlu0 %2244
    %2246 = vrot.lane.b32.xlu0 %v255, 9
    %v2247 = vpop.permute.xlu0 %2246
    %2248 = vrot.lane.b32.xlu0 %v256, 9
    %v2249 = vpop.permute.xlu0 %2248
    %2250 = vrot.lane.b32.xlu0 %v257, 9
    %v2251 = vpop.permute.xlu0 %2250
    %2252 = vrot.lane.b32.xlu0 %v258, 9
    %v2253 = vpop.permute.xlu0 %2252
    %2254 = vrot.lane.b32.xlu0 %v259, 9
    %v2255 = vpop.permute.xlu0 %2254
    %2256 = vrot.lane.b32.xlu0 %v260, 9
    %v2257 = vpop.permute.xlu0 %2256
    %2258 = vrot.lane.b32.xlu0 %v261, 9
    %v2259 = vpop.permute.xlu0 %2258
    %2260 = vrot.lane.b32.xlu0 %v262, 9
    %v2261 = vpop.permute.xlu0 %2260
    %2262 = vrot.lane.b32.xlu0 %v263, 9
    %v2263 = vpop.permute.xlu0 %2262
    %2264 = vrot.lane.b32.xlu0 %v264, 9
    %v2265 = vpop.permute.xlu0 %2264
    %2266 = vrot.lane.b32.xlu0 %v265, 9
    %v2267 = vpop.permute.xlu0 %2266
    %2268 = vrot.lane.b32.xlu0 %v266, 9
    %v2269 = vpop.permute.xlu0 %2268
    %2270 = vrot.lane.b32.xlu0 %v267, 9
    %v2271 = vpop.permute.xlu0 %2270
    %2272 = vrot.lane.b32.xlu0 %v268, 9
    %v2273 = vpop.permute.xlu0 %2272
    %2274 = vrot.lane.b32.xlu0 %v269, 9
    %v2275 = vpop.permute.xlu0 %2274
    %2276 = vrot.lane.b32.xlu0 %v270, 9
    %v2277 = vpop.permute.xlu0 %2276
    %2278 = vrot.lane.b32.xlu0 %v271, 9
    %v2279 = vpop.permute.xlu0 %2278
    %2280 = vrot.lane.b32.xlu0 %v272, 9
    %v2281 = vpop.permute.xlu0 %2280
    %2282 = vrot.lane.b32.xlu0 %v273, 9
    %v2283 = vpop.permute.xlu0 %2282
    %2284 = vrot.lane.b32.xlu0 %v274, 9
    %v2285 = vpop.permute.xlu0 %2284
    %2286 = vrot.lane.b32.xlu0 %v275, 9
    %v2287 = vpop.permute.xlu0 %2286
    %2288 = vrot.lane.b32.xlu0 %v276, 9
    %v2289 = vpop.permute.xlu0 %2288
    %2290 = vrot.lane.b32.xlu0 %v277, 9
    %v2291 = vpop.permute.xlu0 %2290
    %2292 = vrot.lane.b32.xlu0 %v278, 9
    %v2293 = vpop.permute.xlu0 %2292
    %2294 = vrot.lane.b32.xlu0 %v279, 9
    %v2295 = vpop.permute.xlu0 %2294
    %2296 = vrot.lane.b32.xlu0 %v280, 9
    %v2297 = vpop.permute.xlu0 %2296
    %2298 = vrot.lane.b32.xlu0 %v281, 9
    %v2299 = vpop.permute.xlu0 %2298
    %2300 = vrot.lane.b32.xlu0 %v282, 9
    %v2301 = vpop.permute.xlu0 %2300
    %2302 = vrot.lane.b32.xlu0 %v283, 9
    %v2303 = vpop.permute.xlu0 %2302
    %2304 = vrot.lane.b32.xlu0 %v284, 9
    %v2305 = vpop.permute.xlu0 %2304
    %2306 = vrot.lane.b32.xlu0 %v285, 9
    %v2307 = vpop.permute.xlu0 %2306
    %2308 = vrot.lane.b32.xlu0 %v286, 9
    %v2309 = vpop.permute.xlu0 %2308
    %2310 = vrot.lane.b32.xlu0 %v287, 9
    %v2311 = vpop.permute.xlu0 %2310
    %2312 = vrot.lane.b32.xlu0 %v288, 9
    %v2313 = vpop.permute.xlu0 %2312
    %2314 = vrot.lane.b32.xlu0 %v289, 9
    %v2315 = vpop.permute.xlu0 %2314
    %2316 = vrot.lane.b32.xlu0 %v290, 9
    %v2317 = vpop.permute.xlu0 %2316
    %2318 = vrot.lane.b32.xlu0 %v291, 9
    %v2319 = vpop.permute.xlu0 %2318
    %2320 = vrot.lane.b32.xlu0 %v292, 9
    %v2321 = vpop.permute.xlu0 %2320
    %2322 = vrot.lane.b32.xlu0 %v293, 9
    %v2323 = vpop.permute.xlu0 %2322
    %2324 = vrot.lane.b32.xlu0 %v294, 9
    %v2325 = vpop.permute.xlu0 %2324
    %2326 = vrot.lane.b32.xlu0 %v295, 9
    %v2327 = vpop.permute.xlu0 %2326
    %2328 = vrot.lane.b32.xlu0 %v296, 9
    %v2329 = vpop.permute.xlu0 %2328
    %2330 = vrot.lane.b32.xlu0 %v297, 9
    %v2331 = vpop.permute.xlu0 %2330
    %2332 = vrot.lane.b32.xlu0 %v298, 9
    %v2333 = vpop.permute.xlu0 %2332
    %2334 = vrot.lane.b32.xlu0 %v299, 9
    %v2335 = vpop.permute.xlu0 %2334
    %2336 = vrot.lane.b32.xlu0 %v300, 9
    %v2337 = vpop.permute.xlu0 %2336
    %2338 = vrot.lane.b32.xlu0 %v301, 9
    %v2339 = vpop.permute.xlu0 %2338
    %2340 = vrot.lane.b32.xlu0 %v302, 9
    %v2341 = vpop.permute.xlu0 %2340
    %2342 = vrot.lane.b32.xlu0 %v303, 9
    %v2343 = vpop.permute.xlu0 %2342
    %2344 = vrot.lane.b32.xlu0 %v304, 9
    %v2345 = vpop.permute.xlu0 %2344
    %2346 = vrot.lane.b32.xlu0 %v305, 9
    %v2347 = vpop.permute.xlu0 %2346
    %2348 = vrot.lane.b32.xlu0 %v306, 9
    %v2349 = vpop.permute.xlu0 %2348
    %2350 = vrot.lane.b32.xlu0 %v307, 9
    %v2351 = vpop.permute.xlu0 %2350
    %2352 = vrot.lane.b32.xlu0 %v308, 9
    %v2353 = vpop.permute.xlu0 %2352
    %2354 = vrot.lane.b32.xlu0 %v309, 9
    %v2355 = vpop.permute.xlu0 %2354
    %2356 = vrot.lane.b32.xlu0 %v310, 9
    %v2357 = vpop.permute.xlu0 %2356
    %2358 = vrot.lane.b32.xlu0 %v311, 9
    %v2359 = vpop.permute.xlu0 %2358
    %2360 = vrot.lane.b32.xlu0 %v312, 9
    %v2361 = vpop.permute.xlu0 %2360
    %2362 = vrot.lane.b32.xlu0 %v313, 9
    %v2363 = vpop.permute.xlu0 %2362
    %2364 = vrot.lane.b32.xlu0 %v314, 9
    %v2365 = vpop.permute.xlu0 %2364
    %2366 = vrot.lane.b32.xlu0 %v315, 9
    %v2367 = vpop.permute.xlu0 %2366
    %2496 = vrot.lane.b32.xlu0 %v316, 12
    %v2497 = vpop.permute.xlu0 %2496
    %2498 = vrot.lane.b32.xlu0 %v317, 12
    %v2499 = vpop.permute.xlu0 %2498
    %2500 = vrot.lane.b32.xlu0 %v318, 12
    %v2501 = vpop.permute.xlu0 %2500
    %2502 = vrot.lane.b32.xlu0 %v319, 12
    %v2503 = vpop.permute.xlu0 %2502
    %2504 = vrot.lane.b32.xlu0 %v320, 12
    %v2505 = vpop.permute.xlu0 %2504
    %2506 = vrot.lane.b32.xlu0 %v321, 12
    %v2507 = vpop.permute.xlu0 %2506
    %2508 = vrot.lane.b32.xlu0 %v322, 12
    %v2509 = vpop.permute.xlu0 %2508
    %2510 = vrot.lane.b32.xlu0 %v323, 12
    %v2511 = vpop.permute.xlu0 %2510
    %2512 = vrot.lane.b32.xlu0 %v324, 12
    %v2513 = vpop.permute.xlu0 %2512
    %2514 = vrot.lane.b32.xlu0 %v325, 12
    %v2515 = vpop.permute.xlu0 %2514
    %2516 = vrot.lane.b32.xlu0 %v326, 12
    %v2517 = vpop.permute.xlu0 %2516
    %2518 = vrot.lane.b32.xlu0 %v327, 12
    %v2519 = vpop.permute.xlu0 %2518
    %2520 = vrot.lane.b32.xlu0 %v328, 12
    %v2521 = vpop.permute.xlu0 %2520
    %2522 = vrot.lane.b32.xlu0 %v329, 12
    %v2523 = vpop.permute.xlu0 %2522
    %2524 = vrot.lane.b32.xlu0 %v330, 12
    %v2525 = vpop.permute.xlu0 %2524
    %2526 = vrot.lane.b32.xlu0 %v331, 12
    %v2527 = vpop.permute.xlu0 %2526
    %2528 = vrot.lane.b32.xlu0 %v332, 12
    %v2529 = vpop.permute.xlu0 %2528
    %2530 = vrot.lane.b32.xlu0 %v333, 12
    %v2531 = vpop.permute.xlu0 %2530
    %2532 = vrot.lane.b32.xlu0 %v334, 12
    %v2533 = vpop.permute.xlu0 %2532
    %2534 = vrot.lane.b32.xlu0 %v335, 12
    %v2535 = vpop.permute.xlu0 %2534
    %2536 = vrot.lane.b32.xlu0 %v336, 12
    %v2537 = vpop.permute.xlu0 %2536
    %2538 = vrot.lane.b32.xlu0 %v337, 12
    %v2539 = vpop.permute.xlu0 %2538
    %2540 = vrot.lane.b32.xlu0 %v338, 12
    %v2541 = vpop.permute.xlu0 %2540
    %2542 = vrot.lane.b32.xlu0 %v339, 12
    %v2543 = vpop.permute.xlu0 %2542
    %2544 = vrot.lane.b32.xlu0 %v340, 12
    %v2545 = vpop.permute.xlu0 %2544
    %2546 = vrot.lane.b32.xlu0 %v341, 12
    %v2547 = vpop.permute.xlu0 %2546
    %2548 = vrot.lane.b32.xlu0 %v342, 12
    %v2549 = vpop.permute.xlu0 %2548
    %2550 = vrot.lane.b32.xlu0 %v343, 12
    %v2551 = vpop.permute.xlu0 %2550
    %2552 = vrot.lane.b32.xlu0 %v344, 12
    %v2553 = vpop.permute.xlu0 %2552
    %2554 = vrot.lane.b32.xlu0 %v345, 12
    %v2555 = vpop.permute.xlu0 %2554
    %2556 = vrot.lane.b32.xlu0 %v346, 12
    %v2557 = vpop.permute.xlu0 %2556
    %2558 = vrot.lane.b32.xlu0 %v347, 12
    %v2559 = vpop.permute.xlu0 %2558
    %2560 = vrot.lane.b32.xlu0 %v348, 12
    %v2561 = vpop.permute.xlu0 %2560
    %2562 = vrot.lane.b32.xlu0 %v349, 12
    %v2563 = vpop.permute.xlu0 %2562
    %2564 = vrot.lane.b32.xlu0 %v350, 12
    %v2565 = vpop.permute.xlu0 %2564
    %2566 = vrot.lane.b32.xlu0 %v351, 12
    %v2567 = vpop.permute.xlu0 %2566
    %2568 = vrot.lane.b32.xlu0 %v352, 12
    %v2569 = vpop.permute.xlu0 %2568
    %2570 = vrot.lane.b32.xlu0 %v353, 12
    %v2571 = vpop.permute.xlu0 %2570
    %2572 = vrot.lane.b32.xlu0 %v354, 12
    %v2573 = vpop.permute.xlu0 %2572
    %2574 = vrot.lane.b32.xlu0 %v355, 12
    %v2575 = vpop.permute.xlu0 %2574
    %2576 = vrot.lane.b32.xlu0 %v356, 12
    %v2577 = vpop.permute.xlu0 %2576
    %2578 = vrot.lane.b32.xlu0 %v357, 12
    %v2579 = vpop.permute.xlu0 %2578
    %2580 = vrot.lane.b32.xlu0 %v358, 12
    %v2581 = vpop.permute.xlu0 %2580
    %2582 = vrot.lane.b32.xlu0 %v359, 12
    %v2583 = vpop.permute.xlu0 %2582
    %2584 = vrot.lane.b32.xlu0 %v360, 12
    %v2585 = vpop.permute.xlu0 %2584
    %2586 = vrot.lane.b32.xlu0 %v361, 12
    %v2587 = vpop.permute.xlu0 %2586
    %2588 = vrot.lane.b32.xlu0 %v362, 12
    %v2589 = vpop.permute.xlu0 %2588
    %2590 = vrot.lane.b32.xlu0 %v363, 12
    %v2591 = vpop.permute.xlu0 %2590
    %2592 = vrot.lane.b32.xlu0 %v364, 12
    %v2593 = vpop.permute.xlu0 %2592
    %2594 = vrot.lane.b32.xlu0 %v365, 12
    %v2595 = vpop.permute.xlu0 %2594
    %2596 = vrot.lane.b32.xlu0 %v366, 12
    %v2597 = vpop.permute.xlu0 %2596
    %2598 = vrot.lane.b32.xlu0 %v367, 12
    %v2599 = vpop.permute.xlu0 %2598
    %2600 = vrot.lane.b32.xlu0 %v368, 12
    %v2601 = vpop.permute.xlu0 %2600
    %2602 = vrot.lane.b32.xlu0 %v369, 12
    %v2603 = vpop.permute.xlu0 %2602
    %2604 = vrot.lane.b32.xlu0 %v370, 12
    %v2605 = vpop.permute.xlu0 %2604
    %2606 = vrot.lane.b32.xlu0 %v371, 12
    %v2607 = vpop.permute.xlu0 %2606
    %2608 = vrot.lane.b32.xlu0 %v372, 12
    %v2609 = vpop.permute.xlu0 %2608
    %2610 = vrot.lane.b32.xlu0 %v373, 12
    %v2611 = vpop.permute.xlu0 %2610
    %2612 = vrot.lane.b32.xlu0 %v374, 12
    %v2613 = vpop.permute.xlu0 %2612
    %2614 = vrot.lane.b32.xlu0 %v375, 12
    %v2615 = vpop.permute.xlu0 %2614
    %2616 = vrot.lane.b32.xlu0 %v376, 12
    %v2617 = vpop.permute.xlu0 %2616
    %2618 = vrot.lane.b32.xlu0 %v377, 12
    %v2619 = vpop.permute.xlu0 %2618
    %2620 = vrot.lane.b32.xlu0 %v378, 12
    %v2621 = vpop.permute.xlu0 %2620
    %2622 = vrot.lane.b32.xlu0 %v379, 12
    %v2623 = vpop.permute.xlu0 %2622
    %2752 = vrot.lane.b32.xlu0 %v381, 15
    %v2753 = vpop.permute.xlu0 %2752
    %2754 = vrot.lane.b32.xlu0 %v382, 15
    %v2755 = vpop.permute.xlu0 %2754
    %2756 = vrot.lane.b32.xlu0 %v383, 15
    %v2757 = vpop.permute.xlu0 %2756
    %2758 = vrot.lane.b32.xlu0 %v384, 15
    %v2759 = vpop.permute.xlu0 %2758
    %2760 = vrot.lane.b32.xlu0 %v385, 15
    %v2761 = vpop.permute.xlu0 %2760
    %2762 = vrot.lane.b32.xlu0 %v386, 15
    %v2763 = vpop.permute.xlu0 %2762
    %2764 = vrot.lane.b32.xlu0 %v387, 15
    %v2765 = vpop.permute.xlu0 %2764
    %2766 = vrot.lane.b32.xlu0 %v388, 15
    %v2767 = vpop.permute.xlu0 %2766
    %2768 = vrot.lane.b32.xlu0 %v389, 15
    %v2769 = vpop.permute.xlu0 %2768
    %2770 = vrot.lane.b32.xlu0 %v390, 15
    %v2771 = vpop.permute.xlu0 %2770
    %2772 = vrot.lane.b32.xlu0 %v391, 15
    %v2773 = vpop.permute.xlu0 %2772
    %2774 = vrot.lane.b32.xlu0 %v392, 15
    %v2775 = vpop.permute.xlu0 %2774
    %2776 = vrot.lane.b32.xlu0 %v393, 15
    %v2777 = vpop.permute.xlu0 %2776
    %2778 = vrot.lane.b32.xlu0 %v394, 15
    %v2779 = vpop.permute.xlu0 %2778
    %2780 = vrot.lane.b32.xlu0 %v395, 15
    %v2781 = vpop.permute.xlu0 %2780
    %2782 = vrot.lane.b32.xlu0 %v396, 15
    %v2783 = vpop.permute.xlu0 %2782
    %2784 = vrot.lane.b32.xlu0 %v397, 15
    %v2785 = vpop.permute.xlu0 %2784
    %2786 = vrot.lane.b32.xlu0 %v398, 15
    %v2787 = vpop.permute.xlu0 %2786
    %2788 = vrot.lane.b32.xlu0 %v399, 15
    %v2789 = vpop.permute.xlu0 %2788
    %2790 = vrot.lane.b32.xlu0 %v400, 15
    %v2791 = vpop.permute.xlu0 %2790
    %2792 = vrot.lane.b32.xlu0 %v401, 15
    %v2793 = vpop.permute.xlu0 %2792
    %2794 = vrot.lane.b32.xlu0 %v402, 15
    %v2795 = vpop.permute.xlu0 %2794
    %2796 = vrot.lane.b32.xlu0 %v403, 15
    %v2797 = vpop.permute.xlu0 %2796
    %2798 = vrot.lane.b32.xlu0 %v404, 15
    %v2799 = vpop.permute.xlu0 %2798
    %2800 = vrot.lane.b32.xlu0 %v405, 15
    %v2801 = vpop.permute.xlu0 %2800
    %2802 = vrot.lane.b32.xlu0 %v406, 15
    %v2803 = vpop.permute.xlu0 %2802
    %2804 = vrot.lane.b32.xlu0 %v407, 15
    %v2805 = vpop.permute.xlu0 %2804
    %2806 = vrot.lane.b32.xlu0 %v408, 15
    %v2807 = vpop.permute.xlu0 %2806
    %2808 = vrot.lane.b32.xlu0 %v409, 15
    %v2809 = vpop.permute.xlu0 %2808
    %2810 = vrot.lane.b32.xlu0 %v410, 15
    %v2811 = vpop.permute.xlu0 %2810
    %2812 = vrot.lane.b32.xlu0 %v411, 15
    %v2813 = vpop.permute.xlu0 %2812
    %2814 = vrot.lane.b32.xlu0 %v412, 15
    %v2815 = vpop.permute.xlu0 %2814
    %2816 = vrot.lane.b32.xlu0 %v413, 15
    %v2817 = vpop.permute.xlu0 %2816
    %2818 = vrot.lane.b32.xlu0 %v414, 15
    %v2819 = vpop.permute.xlu0 %2818
    %2820 = vrot.lane.b32.xlu0 %v415, 15
    %v2821 = vpop.permute.xlu0 %2820
    %2822 = vrot.lane.b32.xlu0 %v416, 15
    %v2823 = vpop.permute.xlu0 %2822
    %2824 = vrot.lane.b32.xlu0 %v417, 15
    %v2825 = vpop.permute.xlu0 %2824
    %2826 = vrot.lane.b32.xlu0 %v418, 15
    %v2827 = vpop.permute.xlu0 %2826
    %2828 = vrot.lane.b32.xlu0 %v419, 15
    %v2829 = vpop.permute.xlu0 %2828
    %2830 = vrot.lane.b32.xlu0 %v420, 15
    %v2831 = vpop.permute.xlu0 %2830
    %2832 = vrot.lane.b32.xlu0 %v421, 15
    %v2833 = vpop.permute.xlu0 %2832
    %2834 = vrot.lane.b32.xlu0 %v422, 15
    %v2835 = vpop.permute.xlu0 %2834
    %2836 = vrot.lane.b32.xlu0 %v423, 15
    %v2837 = vpop.permute.xlu0 %2836
    %2838 = vrot.lane.b32.xlu0 %v424, 15
    %v2839 = vpop.permute.xlu0 %2838
    %2840 = vrot.lane.b32.xlu0 %v425, 15
    %v2841 = vpop.permute.xlu0 %2840
    %2842 = vrot.lane.b32.xlu0 %v426, 15
    %v2843 = vpop.permute.xlu0 %2842
    %2844 = vrot.lane.b32.xlu0 %v427, 15
    %v2845 = vpop.permute.xlu0 %2844
    %2846 = vrot.lane.b32.xlu0 %v428, 15
    %v2847 = vpop.permute.xlu0 %2846
    %2848 = vrot.lane.b32.xlu0 %v429, 15
    %v2849 = vpop.permute.xlu0 %2848
    %2850 = vrot.lane.b32.xlu0 %v430, 15
    %v2851 = vpop.permute.xlu0 %2850
    %2852 = vrot.lane.b32.xlu0 %v431, 15
    %v2853 = vpop.permute.xlu0 %2852
    %2854 = vrot.lane.b32.xlu0 %v432, 15
    %v2855 = vpop.permute.xlu0 %2854
    %2856 = vrot.lane.b32.xlu0 %v433, 15
    %v2857 = vpop.permute.xlu0 %2856
    %2858 = vrot.lane.b32.xlu0 %v434, 15
    %v2859 = vpop.permute.xlu0 %2858
    %2860 = vrot.lane.b32.xlu0 %v435, 15
    %v2861 = vpop.permute.xlu0 %2860
    %2862 = vrot.lane.b32.xlu0 %v436, 15
    %v2863 = vpop.permute.xlu0 %2862
    %2864 = vrot.lane.b32.xlu0 %v437, 15
    %v2865 = vpop.permute.xlu0 %2864
    %2866 = vrot.lane.b32.xlu0 %v438, 15
    %v2867 = vpop.permute.xlu0 %2866
    %2868 = vrot.lane.b32.xlu0 %v439, 15
    %v2869 = vpop.permute.xlu0 %2868
    %2870 = vrot.lane.b32.xlu0 %v440, 15
    %v2871 = vpop.permute.xlu0 %2870
    %2872 = vrot.lane.b32.xlu0 %v441, 15
    %v2873 = vpop.permute.xlu0 %2872
    %2874 = vrot.lane.b32.xlu0 %v442, 15
    %v2875 = vpop.permute.xlu0 %2874
    %2876 = vrot.lane.b32.xlu0 %v443, 15
    %v2877 = vpop.permute.xlu0 %2876
    %2878 = vrot.lane.b32.xlu0 %v444, 15
    %v2879 = vpop.permute.xlu0 %2878
    %3008 = vrot.lane.b32.xlu0 %v445, 18
    %v3009 = vpop.permute.xlu0 %3008
    %3010 = vrot.lane.b32.xlu0 %v446, 18
    %v3011 = vpop.permute.xlu0 %3010
    %3012 = vrot.lane.b32.xlu0 %v447, 18
    %v3013 = vpop.permute.xlu0 %3012
    %3014 = vrot.lane.b32.xlu0 %v448, 18
    %v3015 = vpop.permute.xlu0 %3014
    %3016 = vrot.lane.b32.xlu0 %v449, 18
    %v3017 = vpop.permute.xlu0 %3016
    %3018 = vrot.lane.b32.xlu0 %v450, 18
    %v3019 = vpop.permute.xlu0 %3018
    %3020 = vrot.lane.b32.xlu0 %v451, 18
    %v3021 = vpop.permute.xlu0 %3020
    %3022 = vrot.lane.b32.xlu0 %v452, 18
    %v3023 = vpop.permute.xlu0 %3022
    %3024 = vrot.lane.b32.xlu0 %v453, 18
    %v3025 = vpop.permute.xlu0 %3024
    %3026 = vrot.lane.b32.xlu0 %v454, 18
    %v3027 = vpop.permute.xlu0 %3026
    %3028 = vrot.lane.b32.xlu0 %v455, 18
    %v3029 = vpop.permute.xlu0 %3028
    %3030 = vrot.lane.b32.xlu0 %v456, 18
    %v3031 = vpop.permute.xlu0 %3030
    %3032 = vrot.lane.b32.xlu0 %v457, 18
    %v3033 = vpop.permute.xlu0 %3032
    %3034 = vrot.lane.b32.xlu0 %v458, 18
    %v3035 = vpop.permute.xlu0 %3034
    %3036 = vrot.lane.b32.xlu0 %v459, 18
    %v3037 = vpop.permute.xlu0 %3036
    %3038 = vrot.lane.b32.xlu0 %v460, 18
    %v3039 = vpop.permute.xlu0 %3038
    %3040 = vrot.lane.b32.xlu0 %v461, 18
    %v3041 = vpop.permute.xlu0 %3040
    %3042 = vrot.lane.b32.xlu0 %v462, 18
    %v3043 = vpop.permute.xlu0 %3042
    %3044 = vrot.lane.b32.xlu0 %v463, 18
    %v3045 = vpop.permute.xlu0 %3044
    %3046 = vrot.lane.b32.xlu0 %v464, 18
    %v3047 = vpop.permute.xlu0 %3046
    %3048 = vrot.lane.b32.xlu0 %v465, 18
    %v3049 = vpop.permute.xlu0 %3048
    %3050 = vrot.lane.b32.xlu0 %v466, 18
    %v3051 = vpop.permute.xlu0 %3050
    %3052 = vrot.lane.b32.xlu0 %v467, 18
    %v3053 = vpop.permute.xlu0 %3052
    %3054 = vrot.lane.b32.xlu0 %v468, 18
    %v3055 = vpop.permute.xlu0 %3054
    %3056 = vrot.lane.b32.xlu0 %v469, 18
    %v3057 = vpop.permute.xlu0 %3056
    %3058 = vrot.lane.b32.xlu0 %v470, 18
    %v3059 = vpop.permute.xlu0 %3058
    %3060 = vrot.lane.b32.xlu0 %v471, 18
    %v3061 = vpop.permute.xlu0 %3060
    %3062 = vrot.lane.b32.xlu0 %v472, 18
    %v3063 = vpop.permute.xlu0 %3062
    %3064 = vrot.lane.b32.xlu0 %v473, 18
    %v3065 = vpop.permute.xlu0 %3064
    %3066 = vrot.lane.b32.xlu0 %v474, 18
    %v3067 = vpop.permute.xlu0 %3066
    %3068 = vrot.lane.b32.xlu0 %v475, 18
    %v3069 = vpop.permute.xlu0 %3068
    %3070 = vrot.lane.b32.xlu0 %v476, 18
    %v3071 = vpop.permute.xlu0 %3070
    %3072 = vrot.lane.b32.xlu0 %v477, 18
    %v3073 = vpop.permute.xlu0 %3072
    %3074 = vrot.lane.b32.xlu0 %v478, 18
    %v3075 = vpop.permute.xlu0 %3074
    %3076 = vrot.lane.b32.xlu0 %v479, 18
    %v3077 = vpop.permute.xlu0 %3076
    %3078 = vrot.lane.b32.xlu0 %v480, 18
    %v3079 = vpop.permute.xlu0 %3078
    %3080 = vrot.lane.b32.xlu0 %v481, 18
    %v3081 = vpop.permute.xlu0 %3080
    %3082 = vrot.lane.b32.xlu0 %v482, 18
    %v3083 = vpop.permute.xlu0 %3082
    %3084 = vrot.lane.b32.xlu0 %v483, 18
    %v3085 = vpop.permute.xlu0 %3084
    %3086 = vrot.lane.b32.xlu0 %v484, 18
    %v3087 = vpop.permute.xlu0 %3086
    %3088 = vrot.lane.b32.xlu0 %v485, 18
    %v3089 = vpop.permute.xlu0 %3088
    %3090 = vrot.lane.b32.xlu0 %v486, 18
    %v3091 = vpop.permute.xlu0 %3090
    %3092 = vrot.lane.b32.xlu0 %v487, 18
    %v3093 = vpop.permute.xlu0 %3092
    %3094 = vrot.lane.b32.xlu0 %v488, 18
    %v3095 = vpop.permute.xlu0 %3094
    %3096 = vrot.lane.b32.xlu0 %v489, 18
    %v3097 = vpop.permute.xlu0 %3096
    %3098 = vrot.lane.b32.xlu0 %v490, 18
    %v3099 = vpop.permute.xlu0 %3098
    %3100 = vrot.lane.b32.xlu0 %v491, 18
    %v3101 = vpop.permute.xlu0 %3100
    %3102 = vrot.lane.b32.xlu0 %v492, 18
    %v3103 = vpop.permute.xlu0 %3102
    %3104 = vrot.lane.b32.xlu0 %v493, 18
    %v3105 = vpop.permute.xlu0 %3104
    %3106 = vrot.lane.b32.xlu0 %v494, 18
    %v3107 = vpop.permute.xlu0 %3106
    %3108 = vrot.lane.b32.xlu0 %v495, 18
    %v3109 = vpop.permute.xlu0 %3108
    %3110 = vrot.lane.b32.xlu0 %v496, 18
    %v3111 = vpop.permute.xlu0 %3110
    %3112 = vrot.lane.b32.xlu0 %v497, 18
    %v3113 = vpop.permute.xlu0 %3112
    %3114 = vrot.lane.b32.xlu0 %v498, 18
    %v3115 = vpop.permute.xlu0 %3114
    %3116 = vrot.lane.b32.xlu0 %v499, 18
    %v3117 = vpop.permute.xlu0 %3116
    %3118 = vrot.lane.b32.xlu0 %v500, 18
    %v3119 = vpop.permute.xlu0 %3118
    %3120 = vrot.lane.b32.xlu0 %v501, 18
    %v3121 = vpop.permute.xlu0 %3120
    %3122 = vrot.lane.b32.xlu0 %v502, 18
    %v3123 = vpop.permute.xlu0 %3122
    %3124 = vrot.lane.b32.xlu0 %v503, 18
    %v3125 = vpop.permute.xlu0 %3124
    %3126 = vrot.lane.b32.xlu0 %v504, 18
    %v3127 = vpop.permute.xlu0 %3126
    %3128 = vrot.lane.b32.xlu0 %v505, 18
    %v3129 = vpop.permute.xlu0 %3128
    %3130 = vrot.lane.b32.xlu0 %v506, 18
    %v3131 = vpop.permute.xlu0 %3130
    %3132 = vrot.lane.b32.xlu0 %v507, 18
    %v3133 = vpop.permute.xlu0 %3132
    %3134 = vrot.lane.b32.xlu0 %v508, 18
    %v3135 = vpop.permute.xlu0 %3134
    %3264 = vrot.lane.b32.xlu0 %v509, 21
    %v3265 = vpop.permute.xlu0 %3264
    %3266 = vrot.lane.b32.xlu0 %v510, 21
    %v3267 = vpop.permute.xlu0 %3266
    %3268 = vrot.lane.b32.xlu0 %v511, 21
    %v3269 = vpop.permute.xlu0 %3268
    %3270 = vrot.lane.b32.xlu0 %v512, 21
    %v3271 = vpop.permute.xlu0 %3270
    %3272 = vrot.lane.b32.xlu0 %v513, 21
    %v3273 = vpop.permute.xlu0 %3272
    %3274 = vrot.lane.b32.xlu0 %v514, 21
    %v3275 = vpop.permute.xlu0 %3274
    %3276 = vrot.lane.b32.xlu0 %v515, 21
    %v3277 = vpop.permute.xlu0 %3276
    %3278 = vrot.lane.b32.xlu0 %v516, 21
    %v3279 = vpop.permute.xlu0 %3278
    %3280 = vrot.lane.b32.xlu0 %v517, 21
    %v3281 = vpop.permute.xlu0 %3280
    %3282 = vrot.lane.b32.xlu0 %v518, 21
    %v3283 = vpop.permute.xlu0 %3282
    %3284 = vrot.lane.b32.xlu0 %v519, 21
    %v3285 = vpop.permute.xlu0 %3284
    %3286 = vrot.lane.b32.xlu0 %v520, 21
    %v3287 = vpop.permute.xlu0 %3286
    %3288 = vrot.lane.b32.xlu0 %v521, 21
    %v3289 = vpop.permute.xlu0 %3288
    %3290 = vrot.lane.b32.xlu0 %v522, 21
    %v3291 = vpop.permute.xlu0 %3290
    %3292 = vrot.lane.b32.xlu0 %v523, 21
    %v3293 = vpop.permute.xlu0 %3292
    %3294 = vrot.lane.b32.xlu0 %v524, 21
    %v3295 = vpop.permute.xlu0 %3294
    %3296 = vrot.lane.b32.xlu0 %v525, 21
    %v3297 = vpop.permute.xlu0 %3296
    %3298 = vrot.lane.b32.xlu0 %v526, 21
    %v3299 = vpop.permute.xlu0 %3298
    %3300 = vrot.lane.b32.xlu0 %v527, 21
    %v3301 = vpop.permute.xlu0 %3300
    %3302 = vrot.lane.b32.xlu0 %v528, 21
    %v3303 = vpop.permute.xlu0 %3302
    %3304 = vrot.lane.b32.xlu0 %v529, 21
    %v3305 = vpop.permute.xlu0 %3304
    %3306 = vrot.lane.b32.xlu0 %v530, 21
    %v3307 = vpop.permute.xlu0 %3306
    %3308 = vrot.lane.b32.xlu0 %v531, 21
    %v3309 = vpop.permute.xlu0 %3308
    %3310 = vrot.lane.b32.xlu0 %v532, 21
    %v3311 = vpop.permute.xlu0 %3310
    %3312 = vrot.lane.b32.xlu0 %v533, 21
    %v3313 = vpop.permute.xlu0 %3312
    %3314 = vrot.lane.b32.xlu0 %v534, 21
    %v3315 = vpop.permute.xlu0 %3314
    %3316 = vrot.lane.b32.xlu0 %v535, 21
    %v3317 = vpop.permute.xlu0 %3316
    %3318 = vrot.lane.b32.xlu0 %v536, 21
    %v3319 = vpop.permute.xlu0 %3318
    %3320 = vrot.lane.b32.xlu0 %v537, 21
    %v3321 = vpop.permute.xlu0 %3320
    %3322 = vrot.lane.b32.xlu0 %v538, 21
    %v3323 = vpop.permute.xlu0 %3322
    %3324 = vrot.lane.b32.xlu0 %v539, 21
    %v3325 = vpop.permute.xlu0 %3324
    %3326 = vrot.lane.b32.xlu0 %v540, 21
    %v3327 = vpop.permute.xlu0 %3326
    %3328 = vrot.lane.b32.xlu0 %v541, 21
    %v3329 = vpop.permute.xlu0 %3328
    %3330 = vrot.lane.b32.xlu0 %v542, 21
    %v3331 = vpop.permute.xlu0 %3330
    %3332 = vrot.lane.b32.xlu0 %v543, 21
    %v3333 = vpop.permute.xlu0 %3332
    %3334 = vrot.lane.b32.xlu0 %v544, 21
    %v3335 = vpop.permute.xlu0 %3334
    %3336 = vrot.lane.b32.xlu0 %v545, 21
    %v3337 = vpop.permute.xlu0 %3336
    %3338 = vrot.lane.b32.xlu0 %v546, 21
    %v3339 = vpop.permute.xlu0 %3338
    %3340 = vrot.lane.b32.xlu0 %v547, 21
    %v3341 = vpop.permute.xlu0 %3340
    %3342 = vrot.lane.b32.xlu0 %v548, 21
    %v3343 = vpop.permute.xlu0 %3342
    %3344 = vrot.lane.b32.xlu0 %v549, 21
    %v3345 = vpop.permute.xlu0 %3344
    %3346 = vrot.lane.b32.xlu0 %v550, 21
    %v3347 = vpop.permute.xlu0 %3346
    %3348 = vrot.lane.b32.xlu0 %v551, 21
    %v3349 = vpop.permute.xlu0 %3348
    %3350 = vrot.lane.b32.xlu0 %v552, 21
    %v3351 = vpop.permute.xlu0 %3350
    %3352 = vrot.lane.b32.xlu0 %v553, 21
    %v3353 = vpop.permute.xlu0 %3352
    %3354 = vrot.lane.b32.xlu0 %v554, 21
    %v3355 = vpop.permute.xlu0 %3354
    %3356 = vrot.lane.b32.xlu0 %v555, 21
    %v3357 = vpop.permute.xlu0 %3356
    %3358 = vrot.lane.b32.xlu0 %v556, 21
    %v3359 = vpop.permute.xlu0 %3358
    %3360 = vrot.lane.b32.xlu0 %v557, 21
    %v3361 = vpop.permute.xlu0 %3360
    %3362 = vrot.lane.b32.xlu0 %v558, 21
    %v3363 = vpop.permute.xlu0 %3362
    %3364 = vrot.lane.b32.xlu0 %v559, 21
    %v3365 = vpop.permute.xlu0 %3364
    %3366 = vrot.lane.b32.xlu0 %v560, 21
    %v3367 = vpop.permute.xlu0 %3366
    %3368 = vrot.lane.b32.xlu0 %v561, 21
    %v3369 = vpop.permute.xlu0 %3368
    %3370 = vrot.lane.b32.xlu0 %v562, 21
    %v3371 = vpop.permute.xlu0 %3370
    %3372 = vrot.lane.b32.xlu0 %v563, 21
    %v3373 = vpop.permute.xlu0 %3372
    %3374 = vrot.lane.b32.xlu0 %v564, 21
    %v3375 = vpop.permute.xlu0 %3374
    %3376 = vrot.lane.b32.xlu0 %v565, 21
    %v3377 = vpop.permute.xlu0 %3376
    %3378 = vrot.lane.b32.xlu0 %v566, 21
    %v3379 = vpop.permute.xlu0 %3378
    %3380 = vrot.lane.b32.xlu0 %v567, 21
    %v3381 = vpop.permute.xlu0 %3380
    %3382 = vrot.lane.b32.xlu0 %v568, 21
    %v3383 = vpop.permute.xlu0 %3382
    %3384 = vrot.lane.b32.xlu0 %v569, 21
    %v3385 = vpop.permute.xlu0 %3384
    %3386 = vrot.lane.b32.xlu0 %v570, 21
    %v3387 = vpop.permute.xlu0 %3386
    %3388 = vrot.lane.b32.xlu0 %v571, 21
    %v3389 = vpop.permute.xlu0 %3388
    %3390 = vrot.lane.b32.xlu0 %v572, 21
    %v3391 = vpop.permute.xlu0 %3390
    %3520 = vrot.lane.b32.xlu0 %v573, 24
    %v3521 = vpop.permute.xlu0 %3520
    %3522 = vrot.lane.b32.xlu0 %v574, 24
    %v3523 = vpop.permute.xlu0 %3522
    %3524 = vrot.lane.b32.xlu0 %v575, 24
    %v3525 = vpop.permute.xlu0 %3524
    %3526 = vrot.lane.b32.xlu0 %v576, 24
    %v3527 = vpop.permute.xlu0 %3526
    %3528 = vrot.lane.b32.xlu0 %v577, 24
    %v3529 = vpop.permute.xlu0 %3528
    %3530 = vrot.lane.b32.xlu0 %v578, 24
    %v3531 = vpop.permute.xlu0 %3530
    %3532 = vrot.lane.b32.xlu0 %v579, 24
    %v3533 = vpop.permute.xlu0 %3532
    %3534 = vrot.lane.b32.xlu0 %v580, 24
    %v3535 = vpop.permute.xlu0 %3534
    %3536 = vrot.lane.b32.xlu0 %v581, 24
    %v3537 = vpop.permute.xlu0 %3536
    %3538 = vrot.lane.b32.xlu0 %v582, 24
    %v3539 = vpop.permute.xlu0 %3538
    %3540 = vrot.lane.b32.xlu0 %v583, 24
    %v3541 = vpop.permute.xlu0 %3540
    %3542 = vrot.lane.b32.xlu0 %v584, 24
    %v3543 = vpop.permute.xlu0 %3542
    %3544 = vrot.lane.b32.xlu0 %v585, 24
    %v3545 = vpop.permute.xlu0 %3544
    %3546 = vrot.lane.b32.xlu0 %v586, 24
    %v3547 = vpop.permute.xlu0 %3546
    %3548 = vrot.lane.b32.xlu0 %v587, 24
    %v3549 = vpop.permute.xlu0 %3548
    %3550 = vrot.lane.b32.xlu0 %v588, 24
    %v3551 = vpop.permute.xlu0 %3550
    %3552 = vrot.lane.b32.xlu0 %v589, 24
    %v3553 = vpop.permute.xlu0 %3552
    %3554 = vrot.lane.b32.xlu0 %v590, 24
    %v3555 = vpop.permute.xlu0 %3554
    %3556 = vrot.lane.b32.xlu0 %v591, 24
    %v3557 = vpop.permute.xlu0 %3556
    %3558 = vrot.lane.b32.xlu0 %v592, 24
    %v3559 = vpop.permute.xlu0 %3558
    %3560 = vrot.lane.b32.xlu0 %v593, 24
    %v3561 = vpop.permute.xlu0 %3560
    %3562 = vrot.lane.b32.xlu0 %v594, 24
    %v3563 = vpop.permute.xlu0 %3562
    %3564 = vrot.lane.b32.xlu0 %v595, 24
    %v3565 = vpop.permute.xlu0 %3564
    %3566 = vrot.lane.b32.xlu0 %v596, 24
    %v3567 = vpop.permute.xlu0 %3566
    %3568 = vrot.lane.b32.xlu0 %v597, 24
    %v3569 = vpop.permute.xlu0 %3568
    %3570 = vrot.lane.b32.xlu0 %v598, 24
    %v3571 = vpop.permute.xlu0 %3570
    %3572 = vrot.lane.b32.xlu0 %v599, 24
    %v3573 = vpop.permute.xlu0 %3572
    %3574 = vrot.lane.b32.xlu0 %v600, 24
    %v3575 = vpop.permute.xlu0 %3574
    %3576 = vrot.lane.b32.xlu0 %v601, 24
    %v3577 = vpop.permute.xlu0 %3576
    %3578 = vrot.lane.b32.xlu0 %v602, 24
    %v3579 = vpop.permute.xlu0 %3578
    %3580 = vrot.lane.b32.xlu0 %v603, 24
    %v3581 = vpop.permute.xlu0 %3580
    %3582 = vrot.lane.b32.xlu0 %v604, 24
    %v3583 = vpop.permute.xlu0 %3582
    %3584 = vrot.lane.b32.xlu0 %v605, 24
    %v3585 = vpop.permute.xlu0 %3584
    %3586 = vrot.lane.b32.xlu0 %v606, 24
    %v3587 = vpop.permute.xlu0 %3586
    %3588 = vrot.lane.b32.xlu0 %v607, 24
    %v3589 = vpop.permute.xlu0 %3588
    %3590 = vrot.lane.b32.xlu0 %v608, 24
    %v3591 = vpop.permute.xlu0 %3590
    %3592 = vrot.lane.b32.xlu0 %v609, 24
    %v3593 = vpop.permute.xlu0 %3592
    %3594 = vrot.lane.b32.xlu0 %v610, 24
    %v3595 = vpop.permute.xlu0 %3594
    %3596 = vrot.lane.b32.xlu0 %v611, 24
    %v3597 = vpop.permute.xlu0 %3596
    %3598 = vrot.lane.b32.xlu0 %v612, 24
    %v3599 = vpop.permute.xlu0 %3598
    %3600 = vrot.lane.b32.xlu0 %v613, 24
    %v3601 = vpop.permute.xlu0 %3600
    %3602 = vrot.lane.b32.xlu0 %v614, 24
    %v3603 = vpop.permute.xlu0 %3602
    %3604 = vrot.lane.b32.xlu0 %v615, 24
    %v3605 = vpop.permute.xlu0 %3604
    %3606 = vrot.lane.b32.xlu0 %v616, 24
    %v3607 = vpop.permute.xlu0 %3606
    %3608 = vrot.lane.b32.xlu0 %v617, 24
    %v3609 = vpop.permute.xlu0 %3608
    %3610 = vrot.lane.b32.xlu0 %v618, 24
    %v3611 = vpop.permute.xlu0 %3610
    %3612 = vrot.lane.b32.xlu0 %v619, 24
    %v3613 = vpop.permute.xlu0 %3612
    %3614 = vrot.lane.b32.xlu0 %v620, 24
    %v3615 = vpop.permute.xlu0 %3614
    %3616 = vrot.lane.b32.xlu0 %v621, 24
    %v3617 = vpop.permute.xlu0 %3616
    %3618 = vrot.lane.b32.xlu0 %v622, 24
    %v3619 = vpop.permute.xlu0 %3618
    %3620 = vrot.lane.b32.xlu0 %v623, 24
    %v3621 = vpop.permute.xlu0 %3620
    %3622 = vrot.lane.b32.xlu0 %v624, 24
    %v3623 = vpop.permute.xlu0 %3622
    %3624 = vrot.lane.b32.xlu0 %v625, 24
    %v3625 = vpop.permute.xlu0 %3624
    %3626 = vrot.lane.b32.xlu0 %v626, 24
    %v3627 = vpop.permute.xlu0 %3626
    %3628 = vrot.lane.b32.xlu0 %v627, 24
    %v3629 = vpop.permute.xlu0 %3628
    %3630 = vrot.lane.b32.xlu0 %v628, 24
    %v3631 = vpop.permute.xlu0 %3630
    %3632 = vrot.lane.b32.xlu0 %v629, 24
    %v3633 = vpop.permute.xlu0 %3632
    %3634 = vrot.lane.b32.xlu0 %v630, 24
    %v3635 = vpop.permute.xlu0 %3634
    %3636 = vrot.lane.b32.xlu0 %v631, 24
    %v3637 = vpop.permute.xlu0 %3636
    %3638 = vrot.lane.b32.xlu0 %v632, 24
    %v3639 = vpop.permute.xlu0 %3638
    %3640 = vrot.lane.b32.xlu0 %v633, 24
    %v3641 = vpop.permute.xlu0 %3640
    %3642 = vrot.lane.b32.xlu0 %v634, 24
    %v3643 = vpop.permute.xlu0 %3642
    %3644 = vrot.lane.b32.xlu0 %v635, 24
    %v3645 = vpop.permute.xlu0 %3644
    %3646 = vrot.lane.b32.xlu0 %v636, 24
    %v3647 = vpop.permute.xlu0 %3646
    %3776 = vrot.lane.b32.xlu0 %v637, 27
    %v3777 = vpop.permute.xlu0 %3776
    %3778 = vrot.lane.b32.xlu0 %v638, 27
    %v3779 = vpop.permute.xlu0 %3778
    %3780 = vrot.lane.b32.xlu0 %v639, 27
    %v3781 = vpop.permute.xlu0 %3780
    %3782 = vrot.lane.b32.xlu0 %v640, 27
    %v3783 = vpop.permute.xlu0 %3782
    %3784 = vrot.lane.b32.xlu0 %v641, 27
    %v3785 = vpop.permute.xlu0 %3784
    %3786 = vrot.lane.b32.xlu0 %v642, 27
    %v3787 = vpop.permute.xlu0 %3786
    %3788 = vrot.lane.b32.xlu0 %v643, 27
    %v3789 = vpop.permute.xlu0 %3788
    %3790 = vrot.lane.b32.xlu0 %v644, 27
    %v3791 = vpop.permute.xlu0 %3790
    %3792 = vrot.lane.b32.xlu0 %v645, 27
    %v3793 = vpop.permute.xlu0 %3792
    %3794 = vrot.lane.b32.xlu0 %v646, 27
    %v3795 = vpop.permute.xlu0 %3794
    %3796 = vrot.lane.b32.xlu0 %v647, 27
    %v3797 = vpop.permute.xlu0 %3796
    %3798 = vrot.lane.b32.xlu0 %v648, 27
    %v3799 = vpop.permute.xlu0 %3798
    %3800 = vrot.lane.b32.xlu0 %v649, 27
    %v3801 = vpop.permute.xlu0 %3800
    %3802 = vrot.lane.b32.xlu0 %v650, 27
    %v3803 = vpop.permute.xlu0 %3802
    %3804 = vrot.lane.b32.xlu0 %v651, 27
    %v3805 = vpop.permute.xlu0 %3804
    %3806 = vrot.lane.b32.xlu0 %v652, 27
    %v3807 = vpop.permute.xlu0 %3806
    %3808 = vrot.lane.b32.xlu0 %v653, 27
    %v3809 = vpop.permute.xlu0 %3808
    %3810 = vrot.lane.b32.xlu0 %v654, 27
    %v3811 = vpop.permute.xlu0 %3810
    %3812 = vrot.lane.b32.xlu0 %v655, 27
    %v3813 = vpop.permute.xlu0 %3812
    %3814 = vrot.lane.b32.xlu0 %v656, 27
    %v3815 = vpop.permute.xlu0 %3814
    %3816 = vrot.lane.b32.xlu0 %v657, 27
    %v3817 = vpop.permute.xlu0 %3816
    %3818 = vrot.lane.b32.xlu0 %v658, 27
    %v3819 = vpop.permute.xlu0 %3818
    %3820 = vrot.lane.b32.xlu0 %v659, 27
    %v3821 = vpop.permute.xlu0 %3820
    %3822 = vrot.lane.b32.xlu0 %v660, 27
    %v3823 = vpop.permute.xlu0 %3822
    %3824 = vrot.lane.b32.xlu0 %v661, 27
    %v3825 = vpop.permute.xlu0 %3824
    %3826 = vrot.lane.b32.xlu0 %v662, 27
    %v3827 = vpop.permute.xlu0 %3826
    %3828 = vrot.lane.b32.xlu0 %v663, 27
    %v3829 = vpop.permute.xlu0 %3828
    %3830 = vrot.lane.b32.xlu0 %v664, 27
    %v3831 = vpop.permute.xlu0 %3830
    %3832 = vrot.lane.b32.xlu0 %v665, 27
    %v3833 = vpop.permute.xlu0 %3832
    %3834 = vrot.lane.b32.xlu0 %v666, 27
    %v3835 = vpop.permute.xlu0 %3834
    %3836 = vrot.lane.b32.xlu0 %v667, 27
    %v3837 = vpop.permute.xlu0 %3836
    %3838 = vrot.lane.b32.xlu0 %v668, 27
    %v3839 = vpop.permute.xlu0 %3838
    %3840 = vrot.lane.b32.xlu0 %v669, 27
    %v3841 = vpop.permute.xlu0 %3840
    %3842 = vrot.lane.b32.xlu0 %v670, 27
    %v3843 = vpop.permute.xlu0 %3842
    %3844 = vrot.lane.b32.xlu0 %v671, 27
    %v3845 = vpop.permute.xlu0 %3844
    %3846 = vrot.lane.b32.xlu0 %v672, 27
    %v3847 = vpop.permute.xlu0 %3846
    %3848 = vrot.lane.b32.xlu0 %v673, 27
    %v3849 = vpop.permute.xlu0 %3848
    %3850 = vrot.lane.b32.xlu0 %v674, 27
    %v3851 = vpop.permute.xlu0 %3850
    %3852 = vrot.lane.b32.xlu0 %v675, 27
    %v3853 = vpop.permute.xlu0 %3852
    %3854 = vrot.lane.b32.xlu0 %v676, 27
    %v3855 = vpop.permute.xlu0 %3854
    %3856 = vrot.lane.b32.xlu0 %v677, 27
    %v3857 = vpop.permute.xlu0 %3856
    %3858 = vrot.lane.b32.xlu0 %v678, 27
    %v3859 = vpop.permute.xlu0 %3858
    %3860 = vrot.lane.b32.xlu0 %v679, 27
    %v3861 = vpop.permute.xlu0 %3860
    %3862 = vrot.lane.b32.xlu0 %v680, 27
    %v3863 = vpop.permute.xlu0 %3862
    %3864 = vrot.lane.b32.xlu0 %v681, 27
    %v3865 = vpop.permute.xlu0 %3864
    %3866 = vrot.lane.b32.xlu0 %v682, 27
    %v3867 = vpop.permute.xlu0 %3866
    %3868 = vrot.lane.b32.xlu0 %v683, 27
    %v3869 = vpop.permute.xlu0 %3868
    %3870 = vrot.lane.b32.xlu0 %v684, 27
    %v3871 = vpop.permute.xlu0 %3870
    %3872 = vrot.lane.b32.xlu0 %v685, 27
    %v3873 = vpop.permute.xlu0 %3872
    %3874 = vrot.lane.b32.xlu0 %v686, 27
    %v3875 = vpop.permute.xlu0 %3874
    %3876 = vrot.lane.b32.xlu0 %v687, 27
    %v3877 = vpop.permute.xlu0 %3876
    %3878 = vrot.lane.b32.xlu0 %v688, 27
    %v3879 = vpop.permute.xlu0 %3878
    %3880 = vrot.lane.b32.xlu0 %v689, 27
    %v3881 = vpop.permute.xlu0 %3880
    %3882 = vrot.lane.b32.xlu0 %v690, 27
    %v3883 = vpop.permute.xlu0 %3882
    %3884 = vrot.lane.b32.xlu0 %v691, 27
    %v3885 = vpop.permute.xlu0 %3884
    %3886 = vrot.lane.b32.xlu0 %v692, 27
    %v3887 = vpop.permute.xlu0 %3886
    %3888 = vrot.lane.b32.xlu0 %v693, 27
    %v3889 = vpop.permute.xlu0 %3888
    %3890 = vrot.lane.b32.xlu0 %v694, 27
    %v3891 = vpop.permute.xlu0 %3890
    %3892 = vrot.lane.b32.xlu0 %v695, 27
    %v3893 = vpop.permute.xlu0 %3892
    %3894 = vrot.lane.b32.xlu0 %v696, 27
    %v3895 = vpop.permute.xlu0 %3894
    %3896 = vrot.lane.b32.xlu0 %v697, 27
    %v3897 = vpop.permute.xlu0 %3896
    %3898 = vrot.lane.b32.xlu0 %v698, 27
    %v3899 = vpop.permute.xlu0 %3898
    %3900 = vrot.lane.b32.xlu0 %v699, 27
    %v3901 = vpop.permute.xlu0 %3900
    %3902 = vrot.lane.b32.xlu0 %v700, 27
    %v3903 = vpop.permute.xlu0 %3902
    %4032 = vrot.lane.b32.xlu0 %v702, 30
    %v4033 = vpop.permute.xlu0 %4032
    %4034 = vrot.lane.b32.xlu0 %v703, 30
    %v4035 = vpop.permute.xlu0 %4034
    %4036 = vrot.lane.b32.xlu0 %v704, 30
    %v4037 = vpop.permute.xlu0 %4036
    %4038 = vrot.lane.b32.xlu0 %v705, 30
    %v4039 = vpop.permute.xlu0 %4038
    %4040 = vrot.lane.b32.xlu0 %v706, 30
    %v4041 = vpop.permute.xlu0 %4040
    %4042 = vrot.lane.b32.xlu0 %v707, 30
    %v4043 = vpop.permute.xlu0 %4042
    %4044 = vrot.lane.b32.xlu0 %v708, 30
    %v4045 = vpop.permute.xlu0 %4044
    %4046 = vrot.lane.b32.xlu0 %v709, 30
    %v4047 = vpop.permute.xlu0 %4046
    %4048 = vrot.lane.b32.xlu0 %v710, 30
    %v4049 = vpop.permute.xlu0 %4048
    %4050 = vrot.lane.b32.xlu0 %v711, 30
    %v4051 = vpop.permute.xlu0 %4050
    %4052 = vrot.lane.b32.xlu0 %v712, 30
    %v4053 = vpop.permute.xlu0 %4052
    %4054 = vrot.lane.b32.xlu0 %v713, 30
    %v4055 = vpop.permute.xlu0 %4054
    %4056 = vrot.lane.b32.xlu0 %v714, 30
    %v4057 = vpop.permute.xlu0 %4056
    %4058 = vrot.lane.b32.xlu0 %v715, 30
    %v4059 = vpop.permute.xlu0 %4058
    %4060 = vrot.lane.b32.xlu0 %v716, 30
    %v4061 = vpop.permute.xlu0 %4060
    %4062 = vrot.lane.b32.xlu0 %v717, 30
    %v4063 = vpop.permute.xlu0 %4062
    %4064 = vrot.lane.b32.xlu0 %v718, 30
    %v4065 = vpop.permute.xlu0 %4064
    %4066 = vrot.lane.b32.xlu0 %v719, 30
    %v4067 = vpop.permute.xlu0 %4066
    %4068 = vrot.lane.b32.xlu0 %v720, 30
    %v4069 = vpop.permute.xlu0 %4068
    %4070 = vrot.lane.b32.xlu0 %v721, 30
    %v4071 = vpop.permute.xlu0 %4070
    %4072 = vrot.lane.b32.xlu0 %v722, 30
    %v4073 = vpop.permute.xlu0 %4072
    %4074 = vrot.lane.b32.xlu0 %v723, 30
    %v4075 = vpop.permute.xlu0 %4074
    %4076 = vrot.lane.b32.xlu0 %v724, 30
    %v4077 = vpop.permute.xlu0 %4076
    %4078 = vrot.lane.b32.xlu0 %v725, 30
    %v4079 = vpop.permute.xlu0 %4078
    %4080 = vrot.lane.b32.xlu0 %v726, 30
    %v4081 = vpop.permute.xlu0 %4080
    %4082 = vrot.lane.b32.xlu0 %v727, 30
    %v4083 = vpop.permute.xlu0 %4082
    %4084 = vrot.lane.b32.xlu0 %v728, 30
    %v4085 = vpop.permute.xlu0 %4084
    %4086 = vrot.lane.b32.xlu0 %v729, 30
    %v4087 = vpop.permute.xlu0 %4086
    %4088 = vrot.lane.b32.xlu0 %v730, 30
    %v4089 = vpop.permute.xlu0 %4088
    %4090 = vrot.lane.b32.xlu0 %v731, 30
    %v4091 = vpop.permute.xlu0 %4090
    %4092 = vrot.lane.b32.xlu0 %v732, 30
    %v4093 = vpop.permute.xlu0 %4092
    %4094 = vrot.lane.b32.xlu0 %v733, 30
    %v4095 = vpop.permute.xlu0 %4094
    %4096 = vrot.lane.b32.xlu0 %v734, 30
    %v4097 = vpop.permute.xlu0 %4096
    %4098 = vrot.lane.b32.xlu0 %v735, 30
    %v4099 = vpop.permute.xlu0 %4098
    %4100 = vrot.lane.b32.xlu0 %v736, 30
    %v4101 = vpop.permute.xlu0 %4100
    %4102 = vrot.lane.b32.xlu0 %v737, 30
    %v4103 = vpop.permute.xlu0 %4102
    %4104 = vrot.lane.b32.xlu0 %v738, 30
    %v4105 = vpop.permute.xlu0 %4104
    %4106 = vrot.lane.b32.xlu0 %v739, 30
    %v4107 = vpop.permute.xlu0 %4106
    %4108 = vrot.lane.b32.xlu0 %v740, 30
    %v4109 = vpop.permute.xlu0 %4108
    %4110 = vrot.lane.b32.xlu0 %v741, 30
    %v4111 = vpop.permute.xlu0 %4110
    %4112 = vrot.lane.b32.xlu0 %v742, 30
    %v4113 = vpop.permute.xlu0 %4112
    %4114 = vrot.lane.b32.xlu0 %v743, 30
    %v4115 = vpop.permute.xlu0 %4114
    %4116 = vrot.lane.b32.xlu0 %v744, 30
    %v4117 = vpop.permute.xlu0 %4116
    %4118 = vrot.lane.b32.xlu0 %v745, 30
    %v4119 = vpop.permute.xlu0 %4118
    %4120 = vrot.lane.b32.xlu0 %v746, 30
    %v4121 = vpop.permute.xlu0 %4120
    %4122 = vrot.lane.b32.xlu0 %v747, 30
    %v4123 = vpop.permute.xlu0 %4122
    %4124 = vrot.lane.b32.xlu0 %v748, 30
    %v4125 = vpop.permute.xlu0 %4124
    %4126 = vrot.lane.b32.xlu0 %v749, 30
    %v4127 = vpop.permute.xlu0 %4126
    %4128 = vrot.lane.b32.xlu0 %v750, 30
    %v4129 = vpop.permute.xlu0 %4128
    %4130 = vrot.lane.b32.xlu0 %v751, 30
    %v4131 = vpop.permute.xlu0 %4130
    %4132 = vrot.lane.b32.xlu0 %v752, 30
    %v4133 = vpop.permute.xlu0 %4132
    %4134 = vrot.lane.b32.xlu0 %v753, 30
    %v4135 = vpop.permute.xlu0 %4134
    %4136 = vrot.lane.b32.xlu0 %v754, 30
    %v4137 = vpop.permute.xlu0 %4136
    %4138 = vrot.lane.b32.xlu0 %v755, 30
    %v4139 = vpop.permute.xlu0 %4138
    %4140 = vrot.lane.b32.xlu0 %v756, 30
    %v4141 = vpop.permute.xlu0 %4140
    %4142 = vrot.lane.b32.xlu0 %v757, 30
    %v4143 = vpop.permute.xlu0 %4142
    %4144 = vrot.lane.b32.xlu0 %v758, 30
    %v4145 = vpop.permute.xlu0 %4144
    %4146 = vrot.lane.b32.xlu0 %v759, 30
    %v4147 = vpop.permute.xlu0 %4146
    %4148 = vrot.lane.b32.xlu0 %v760, 30
    %v4149 = vpop.permute.xlu0 %4148
    %4150 = vrot.lane.b32.xlu0 %v761, 30
    %v4151 = vpop.permute.xlu0 %4150
    %4152 = vrot.lane.b32.xlu0 %v762, 30
    %v4153 = vpop.permute.xlu0 %4152
    %4154 = vrot.lane.b32.xlu0 %v763, 30
    %v4155 = vpop.permute.xlu0 %4154
    %4156 = vrot.lane.b32.xlu0 %v764, 30
    %v4157 = vpop.permute.xlu0 %4156
    %4158 = vrot.lane.b32.xlu0 %v765, 30
    %v4159 = vpop.permute.xlu0 %4158
    %4288 = vrot.lane.b32.xlu0 %v766, 33
    %v4289 = vpop.permute.xlu0 %4288
    %4290 = vrot.lane.b32.xlu0 %v767, 33
    %v4291 = vpop.permute.xlu0 %4290
    %4292 = vrot.lane.b32.xlu0 %v768, 33
    %v4293 = vpop.permute.xlu0 %4292
    %4294 = vrot.lane.b32.xlu0 %v769, 33
    %v4295 = vpop.permute.xlu0 %4294
    %4296 = vrot.lane.b32.xlu0 %v770, 33
    %v4297 = vpop.permute.xlu0 %4296
    %4298 = vrot.lane.b32.xlu0 %v771, 33
    %v4299 = vpop.permute.xlu0 %4298
    %4300 = vrot.lane.b32.xlu0 %v772, 33
    %v4301 = vpop.permute.xlu0 %4300
    %4302 = vrot.lane.b32.xlu0 %v773, 33
    %v4303 = vpop.permute.xlu0 %4302
    %4304 = vrot.lane.b32.xlu0 %v774, 33
    %v4305 = vpop.permute.xlu0 %4304
    %4306 = vrot.lane.b32.xlu0 %v775, 33
    %v4307 = vpop.permute.xlu0 %4306
    %4308 = vrot.lane.b32.xlu0 %v776, 33
    %v4309 = vpop.permute.xlu0 %4308
    %4310 = vrot.lane.b32.xlu0 %v777, 33
    %v4311 = vpop.permute.xlu0 %4310
    %4312 = vrot.lane.b32.xlu0 %v778, 33
    %v4313 = vpop.permute.xlu0 %4312
    %4314 = vrot.lane.b32.xlu0 %v779, 33
    %v4315 = vpop.permute.xlu0 %4314
    %4316 = vrot.lane.b32.xlu0 %v780, 33
    %v4317 = vpop.permute.xlu0 %4316
    %4318 = vrot.lane.b32.xlu0 %v781, 33
    %v4319 = vpop.permute.xlu0 %4318
    %4320 = vrot.lane.b32.xlu0 %v782, 33
    %v4321 = vpop.permute.xlu0 %4320
    %4322 = vrot.lane.b32.xlu0 %v783, 33
    %v4323 = vpop.permute.xlu0 %4322
    %4324 = vrot.lane.b32.xlu0 %v784, 33
    %v4325 = vpop.permute.xlu0 %4324
    %4326 = vrot.lane.b32.xlu0 %v785, 33
    %v4327 = vpop.permute.xlu0 %4326
    %4328 = vrot.lane.b32.xlu0 %v786, 33
    %v4329 = vpop.permute.xlu0 %4328
    %4330 = vrot.lane.b32.xlu0 %v787, 33
    %v4331 = vpop.permute.xlu0 %4330
    %4332 = vrot.lane.b32.xlu0 %v788, 33
    %v4333 = vpop.permute.xlu0 %4332
    %4334 = vrot.lane.b32.xlu0 %v789, 33
    %v4335 = vpop.permute.xlu0 %4334
    %4336 = vrot.lane.b32.xlu0 %v790, 33
    %v4337 = vpop.permute.xlu0 %4336
    %4338 = vrot.lane.b32.xlu0 %v791, 33
    %v4339 = vpop.permute.xlu0 %4338
    %4340 = vrot.lane.b32.xlu0 %v792, 33
    %v4341 = vpop.permute.xlu0 %4340
    %4342 = vrot.lane.b32.xlu0 %v793, 33
    %v4343 = vpop.permute.xlu0 %4342
    %4344 = vrot.lane.b32.xlu0 %v794, 33
    %v4345 = vpop.permute.xlu0 %4344
    %4346 = vrot.lane.b32.xlu0 %v795, 33
    %v4347 = vpop.permute.xlu0 %4346
    %4348 = vrot.lane.b32.xlu0 %v796, 33
    %v4349 = vpop.permute.xlu0 %4348
    %4350 = vrot.lane.b32.xlu0 %v797, 33
    %v4351 = vpop.permute.xlu0 %4350
    %4352 = vrot.lane.b32.xlu0 %v798, 33
    %v4353 = vpop.permute.xlu0 %4352
    %4354 = vrot.lane.b32.xlu0 %v799, 33
    %v4355 = vpop.permute.xlu0 %4354
    %4356 = vrot.lane.b32.xlu0 %v800, 33
    %v4357 = vpop.permute.xlu0 %4356
    %4358 = vrot.lane.b32.xlu0 %v801, 33
    %v4359 = vpop.permute.xlu0 %4358
    %4360 = vrot.lane.b32.xlu0 %v802, 33
    %v4361 = vpop.permute.xlu0 %4360
    %4362 = vrot.lane.b32.xlu0 %v803, 33
    %v4363 = vpop.permute.xlu0 %4362
    %4364 = vrot.lane.b32.xlu0 %v804, 33
    %v4365 = vpop.permute.xlu0 %4364
    %4366 = vrot.lane.b32.xlu0 %v805, 33
    %v4367 = vpop.permute.xlu0 %4366
    %4368 = vrot.lane.b32.xlu0 %v806, 33
    %v4369 = vpop.permute.xlu0 %4368
    %4370 = vrot.lane.b32.xlu0 %v807, 33
    %v4371 = vpop.permute.xlu0 %4370
    %4372 = vrot.lane.b32.xlu0 %v808, 33
    %v4373 = vpop.permute.xlu0 %4372
    %4374 = vrot.lane.b32.xlu0 %v809, 33
    %v4375 = vpop.permute.xlu0 %4374
    %4376 = vrot.lane.b32.xlu0 %v810, 33
    %v4377 = vpop.permute.xlu0 %4376
    %4378 = vrot.lane.b32.xlu0 %v811, 33
    %v4379 = vpop.permute.xlu0 %4378
    %4380 = vrot.lane.b32.xlu0 %v812, 33
    %v4381 = vpop.permute.xlu0 %4380
    %4382 = vrot.lane.b32.xlu0 %v813, 33
    %v4383 = vpop.permute.xlu0 %4382
    %4384 = vrot.lane.b32.xlu0 %v814, 33
    %v4385 = vpop.permute.xlu0 %4384
    %4386 = vrot.lane.b32.xlu0 %v815, 33
    %v4387 = vpop.permute.xlu0 %4386
    %4388 = vrot.lane.b32.xlu0 %v816, 33
    %v4389 = vpop.permute.xlu0 %4388
    %4390 = vrot.lane.b32.xlu0 %v817, 33
    %v4391 = vpop.permute.xlu0 %4390
    %4392 = vrot.lane.b32.xlu0 %v818, 33
    %v4393 = vpop.permute.xlu0 %4392
    %4394 = vrot.lane.b32.xlu0 %v819, 33
    %v4395 = vpop.permute.xlu0 %4394
    %4396 = vrot.lane.b32.xlu0 %v820, 33
    %v4397 = vpop.permute.xlu0 %4396
    %4398 = vrot.lane.b32.xlu0 %v821, 33
    %v4399 = vpop.permute.xlu0 %4398
    %4400 = vrot.lane.b32.xlu0 %v822, 33
    %v4401 = vpop.permute.xlu0 %4400
    %4402 = vrot.lane.b32.xlu0 %v823, 33
    %v4403 = vpop.permute.xlu0 %4402
    %4404 = vrot.lane.b32.xlu0 %v824, 33
    %v4405 = vpop.permute.xlu0 %4404
    %4406 = vrot.lane.b32.xlu0 %v825, 33
    %v4407 = vpop.permute.xlu0 %4406
    %4408 = vrot.lane.b32.xlu0 %v826, 33
    %v4409 = vpop.permute.xlu0 %4408
    %4410 = vrot.lane.b32.xlu0 %v827, 33
    %v4411 = vpop.permute.xlu0 %4410
    %4412 = vrot.lane.b32.xlu0 %v828, 33
    %v4413 = vpop.permute.xlu0 %4412
    %4414 = vrot.lane.b32.xlu0 %v829, 33
    %v4415 = vpop.permute.xlu0 %4414
    %4544 = vrot.lane.b32.xlu0 %v830, 36
    %v4545 = vpop.permute.xlu0 %4544
    %4546 = vrot.lane.b32.xlu0 %v831, 36
    %v4547 = vpop.permute.xlu0 %4546
    %4548 = vrot.lane.b32.xlu0 %v832, 36
    %v4549 = vpop.permute.xlu0 %4548
    %4550 = vrot.lane.b32.xlu0 %v833, 36
    %v4551 = vpop.permute.xlu0 %4550
    %4552 = vrot.lane.b32.xlu0 %v834, 36
    %v4553 = vpop.permute.xlu0 %4552
    %4554 = vrot.lane.b32.xlu0 %v835, 36
    %v4555 = vpop.permute.xlu0 %4554
    %4556 = vrot.lane.b32.xlu0 %v836, 36
    %v4557 = vpop.permute.xlu0 %4556
    %4558 = vrot.lane.b32.xlu0 %v837, 36
    %v4559 = vpop.permute.xlu0 %4558
    %4560 = vrot.lane.b32.xlu0 %v838, 36
    %v4561 = vpop.permute.xlu0 %4560
    %4562 = vrot.lane.b32.xlu0 %v839, 36
    %v4563 = vpop.permute.xlu0 %4562
    %4564 = vrot.lane.b32.xlu0 %v840, 36
    %v4565 = vpop.permute.xlu0 %4564
    %4566 = vrot.lane.b32.xlu0 %v841, 36
    %v4567 = vpop.permute.xlu0 %4566
    %4568 = vrot.lane.b32.xlu0 %v842, 36
    %v4569 = vpop.permute.xlu0 %4568
    %4570 = vrot.lane.b32.xlu0 %v843, 36
    %v4571 = vpop.permute.xlu0 %4570
    %4572 = vrot.lane.b32.xlu0 %v844, 36
    %v4573 = vpop.permute.xlu0 %4572
    %4574 = vrot.lane.b32.xlu0 %v845, 36
    %v4575 = vpop.permute.xlu0 %4574
    %4576 = vrot.lane.b32.xlu0 %v846, 36
    %v4577 = vpop.permute.xlu0 %4576
    %4578 = vrot.lane.b32.xlu0 %v847, 36
    %v4579 = vpop.permute.xlu0 %4578
    %4580 = vrot.lane.b32.xlu0 %v848, 36
    %v4581 = vpop.permute.xlu0 %4580
    %4582 = vrot.lane.b32.xlu0 %v849, 36
    %v4583 = vpop.permute.xlu0 %4582
    %4584 = vrot.lane.b32.xlu0 %v850, 36
    %v4585 = vpop.permute.xlu0 %4584
    %4586 = vrot.lane.b32.xlu0 %v851, 36
    %v4587 = vpop.permute.xlu0 %4586
    %4588 = vrot.lane.b32.xlu0 %v852, 36
    %v4589 = vpop.permute.xlu0 %4588
    %4590 = vrot.lane.b32.xlu0 %v853, 36
    %v4591 = vpop.permute.xlu0 %4590
    %4592 = vrot.lane.b32.xlu0 %v854, 36
    %v4593 = vpop.permute.xlu0 %4592
    %4594 = vrot.lane.b32.xlu0 %v855, 36
    %v4595 = vpop.permute.xlu0 %4594
    %4596 = vrot.lane.b32.xlu0 %v856, 36
    %v4597 = vpop.permute.xlu0 %4596
    %4598 = vrot.lane.b32.xlu0 %v857, 36
    %v4599 = vpop.permute.xlu0 %4598
    %4600 = vrot.lane.b32.xlu0 %v858, 36
    %v4601 = vpop.permute.xlu0 %4600
    %4602 = vrot.lane.b32.xlu0 %v859, 36
    %v4603 = vpop.permute.xlu0 %4602
    %4604 = vrot.lane.b32.xlu0 %v860, 36
    %v4605 = vpop.permute.xlu0 %4604
    %4606 = vrot.lane.b32.xlu0 %v861, 36
    %v4607 = vpop.permute.xlu0 %4606
    %4608 = vrot.lane.b32.xlu0 %v862, 36
    %v4609 = vpop.permute.xlu0 %4608
    %4610 = vrot.lane.b32.xlu0 %v863, 36
    %v4611 = vpop.permute.xlu0 %4610
    %4612 = vrot.lane.b32.xlu0 %v864, 36
    %v4613 = vpop.permute.xlu0 %4612
    %4614 = vrot.lane.b32.xlu0 %v865, 36
    %v4615 = vpop.permute.xlu0 %4614
    %4616 = vrot.lane.b32.xlu0 %v866, 36
    %v4617 = vpop.permute.xlu0 %4616
    %4618 = vrot.lane.b32.xlu0 %v867, 36
    %v4619 = vpop.permute.xlu0 %4618
    %4620 = vrot.lane.b32.xlu0 %v868, 36
    %v4621 = vpop.permute.xlu0 %4620
    %4622 = vrot.lane.b32.xlu0 %v869, 36
    %v4623 = vpop.permute.xlu0 %4622
    %4624 = vrot.lane.b32.xlu0 %v870, 36
    %v4625 = vpop.permute.xlu0 %4624
    %4626 = vrot.lane.b32.xlu0 %v871, 36
    %v4627 = vpop.permute.xlu0 %4626
    %4628 = vrot.lane.b32.xlu0 %v872, 36
    %v4629 = vpop.permute.xlu0 %4628
    %4630 = vrot.lane.b32.xlu0 %v873, 36
    %v4631 = vpop.permute.xlu0 %4630
    %4632 = vrot.lane.b32.xlu0 %v874, 36
    %v4633 = vpop.permute.xlu0 %4632
    %4634 = vrot.lane.b32.xlu0 %v875, 36
    %v4635 = vpop.permute.xlu0 %4634
    %4636 = vrot.lane.b32.xlu0 %v876, 36
    %v4637 = vpop.permute.xlu0 %4636
    %4638 = vrot.lane.b32.xlu0 %v877, 36
    %v4639 = vpop.permute.xlu0 %4638
    %4640 = vrot.lane.b32.xlu0 %v878, 36
    %v4641 = vpop.permute.xlu0 %4640
    %4642 = vrot.lane.b32.xlu0 %v879, 36
    %v4643 = vpop.permute.xlu0 %4642
    %4644 = vrot.lane.b32.xlu0 %v880, 36
    %v4645 = vpop.permute.xlu0 %4644
    %4646 = vrot.lane.b32.xlu0 %v881, 36
    %v4647 = vpop.permute.xlu0 %4646
    %4648 = vrot.lane.b32.xlu0 %v882, 36
    %v4649 = vpop.permute.xlu0 %4648
    %4650 = vrot.lane.b32.xlu0 %v883, 36
    %v4651 = vpop.permute.xlu0 %4650
    %4652 = vrot.lane.b32.xlu0 %v884, 36
    %v4653 = vpop.permute.xlu0 %4652
    %4654 = vrot.lane.b32.xlu0 %v885, 36
    %v4655 = vpop.permute.xlu0 %4654
    %4656 = vrot.lane.b32.xlu0 %v886, 36
    %v4657 = vpop.permute.xlu0 %4656
    %4658 = vrot.lane.b32.xlu0 %v887, 36
    %v4659 = vpop.permute.xlu0 %4658
    %4660 = vrot.lane.b32.xlu0 %v888, 36
    %v4661 = vpop.permute.xlu0 %4660
    %4662 = vrot.lane.b32.xlu0 %v889, 36
    %v4663 = vpop.permute.xlu0 %4662
    %4664 = vrot.lane.b32.xlu0 %v890, 36
    %v4665 = vpop.permute.xlu0 %4664
    %4666 = vrot.lane.b32.xlu0 %v891, 36
    %v4667 = vpop.permute.xlu0 %4666
    %4668 = vrot.lane.b32.xlu0 %v892, 36
    %v4669 = vpop.permute.xlu0 %4668
    %4670 = vrot.lane.b32.xlu0 %v893, 36
    %v4671 = vpop.permute.xlu0 %4670
    %4800 = vrot.lane.b32.xlu0 %v894, 39
    %v4801 = vpop.permute.xlu0 %4800
    %4802 = vrot.lane.b32.xlu0 %v895, 39
    %v4803 = vpop.permute.xlu0 %4802
    %4804 = vrot.lane.b32.xlu0 %v896, 39
    %v4805 = vpop.permute.xlu0 %4804
    %4806 = vrot.lane.b32.xlu0 %v897, 39
    %v4807 = vpop.permute.xlu0 %4806
    %4808 = vrot.lane.b32.xlu0 %v898, 39
    %v4809 = vpop.permute.xlu0 %4808
    %4810 = vrot.lane.b32.xlu0 %v899, 39
    %v4811 = vpop.permute.xlu0 %4810
    %4812 = vrot.lane.b32.xlu0 %v900, 39
    %v4813 = vpop.permute.xlu0 %4812
    %4814 = vrot.lane.b32.xlu0 %v901, 39
    %v4815 = vpop.permute.xlu0 %4814
    %4816 = vrot.lane.b32.xlu0 %v902, 39
    %v4817 = vpop.permute.xlu0 %4816
    %4818 = vrot.lane.b32.xlu0 %v903, 39
    %v4819 = vpop.permute.xlu0 %4818
    %4820 = vrot.lane.b32.xlu0 %v904, 39
    %v4821 = vpop.permute.xlu0 %4820
    %4822 = vrot.lane.b32.xlu0 %v905, 39
    %v4823 = vpop.permute.xlu0 %4822
    %4824 = vrot.lane.b32.xlu0 %v906, 39
    %v4825 = vpop.permute.xlu0 %4824
    %4826 = vrot.lane.b32.xlu0 %v907, 39
    %v4827 = vpop.permute.xlu0 %4826
    %4828 = vrot.lane.b32.xlu0 %v908, 39
    %v4829 = vpop.permute.xlu0 %4828
    %4830 = vrot.lane.b32.xlu0 %v909, 39
    %v4831 = vpop.permute.xlu0 %4830
    %4832 = vrot.lane.b32.xlu0 %v910, 39
    %v4833 = vpop.permute.xlu0 %4832
    %4834 = vrot.lane.b32.xlu0 %v911, 39
    %v4835 = vpop.permute.xlu0 %4834
    %4836 = vrot.lane.b32.xlu0 %v912, 39
    %v4837 = vpop.permute.xlu0 %4836
    %4838 = vrot.lane.b32.xlu0 %v913, 39
    %v4839 = vpop.permute.xlu0 %4838
    %4840 = vrot.lane.b32.xlu0 %v914, 39
    %v4841 = vpop.permute.xlu0 %4840
    %4842 = vrot.lane.b32.xlu0 %v915, 39
    %v4843 = vpop.permute.xlu0 %4842
    %4844 = vrot.lane.b32.xlu0 %v916, 39
    %v4845 = vpop.permute.xlu0 %4844
    %4846 = vrot.lane.b32.xlu0 %v917, 39
    %v4847 = vpop.permute.xlu0 %4846
    %4848 = vrot.lane.b32.xlu0 %v918, 39
    %v4849 = vpop.permute.xlu0 %4848
    %4850 = vrot.lane.b32.xlu0 %v919, 39
    %v4851 = vpop.permute.xlu0 %4850
    %4852 = vrot.lane.b32.xlu0 %v920, 39
    %v4853 = vpop.permute.xlu0 %4852
    %4854 = vrot.lane.b32.xlu0 %v921, 39
    %v4855 = vpop.permute.xlu0 %4854
    %4856 = vrot.lane.b32.xlu0 %v922, 39
    %v4857 = vpop.permute.xlu0 %4856
    %4858 = vrot.lane.b32.xlu0 %v923, 39
    %v4859 = vpop.permute.xlu0 %4858
    %4860 = vrot.lane.b32.xlu0 %v924, 39
    %v4861 = vpop.permute.xlu0 %4860
    %4862 = vrot.lane.b32.xlu0 %v925, 39
    %v4863 = vpop.permute.xlu0 %4862
    %4864 = vrot.lane.b32.xlu0 %v926, 39
    %v4865 = vpop.permute.xlu0 %4864
    %4866 = vrot.lane.b32.xlu0 %v927, 39
    %v4867 = vpop.permute.xlu0 %4866
    %4868 = vrot.lane.b32.xlu0 %v928, 39
    %v4869 = vpop.permute.xlu0 %4868
    %4870 = vrot.lane.b32.xlu0 %v929, 39
    %v4871 = vpop.permute.xlu0 %4870
    %4872 = vrot.lane.b32.xlu0 %v930, 39
    %v4873 = vpop.permute.xlu0 %4872
    %4874 = vrot.lane.b32.xlu0 %v931, 39
    %v4875 = vpop.permute.xlu0 %4874
    %4876 = vrot.lane.b32.xlu0 %v932, 39
    %v4877 = vpop.permute.xlu0 %4876
    %4878 = vrot.lane.b32.xlu0 %v933, 39
    %v4879 = vpop.permute.xlu0 %4878
    %4880 = vrot.lane.b32.xlu0 %v934, 39
    %v4881 = vpop.permute.xlu0 %4880
    %4882 = vrot.lane.b32.xlu0 %v935, 39
    %v4883 = vpop.permute.xlu0 %4882
    %4884 = vrot.lane.b32.xlu0 %v936, 39
    %v4885 = vpop.permute.xlu0 %4884
    %4886 = vrot.lane.b32.xlu0 %v937, 39
    %v4887 = vpop.permute.xlu0 %4886
    %4888 = vrot.lane.b32.xlu0 %v938, 39
    %v4889 = vpop.permute.xlu0 %4888
    %4890 = vrot.lane.b32.xlu0 %v939, 39
    %v4891 = vpop.permute.xlu0 %4890
    %4892 = vrot.lane.b32.xlu0 %v940, 39
    %v4893 = vpop.permute.xlu0 %4892
    %4894 = vrot.lane.b32.xlu0 %v941, 39
    %v4895 = vpop.permute.xlu0 %4894
    %4896 = vrot.lane.b32.xlu0 %v942, 39
    %v4897 = vpop.permute.xlu0 %4896
    %4898 = vrot.lane.b32.xlu0 %v943, 39
    %v4899 = vpop.permute.xlu0 %4898
    %4900 = vrot.lane.b32.xlu0 %v944, 39
    %v4901 = vpop.permute.xlu0 %4900
    %4902 = vrot.lane.b32.xlu0 %v945, 39
    %v4903 = vpop.permute.xlu0 %4902
    %4904 = vrot.lane.b32.xlu0 %v946, 39
    %v4905 = vpop.permute.xlu0 %4904
    %4906 = vrot.lane.b32.xlu0 %v947, 39
    %v4907 = vpop.permute.xlu0 %4906
    %4908 = vrot.lane.b32.xlu0 %v948, 39
    %v4909 = vpop.permute.xlu0 %4908
    %4910 = vrot.lane.b32.xlu0 %v949, 39
    %v4911 = vpop.permute.xlu0 %4910
    %4912 = vrot.lane.b32.xlu0 %v950, 39
    %v4913 = vpop.permute.xlu0 %4912
    %4914 = vrot.lane.b32.xlu0 %v951, 39
    %v4915 = vpop.permute.xlu0 %4914
    %4916 = vrot.lane.b32.xlu0 %v952, 39
    %v4917 = vpop.permute.xlu0 %4916
    %4918 = vrot.lane.b32.xlu0 %v953, 39
    %v4919 = vpop.permute.xlu0 %4918
    %4920 = vrot.lane.b32.xlu0 %v954, 39
    %v4921 = vpop.permute.xlu0 %4920
    %4922 = vrot.lane.b32.xlu0 %v955, 39
    %v4923 = vpop.permute.xlu0 %4922
    %4924 = vrot.lane.b32.xlu0 %v956, 39
    %v4925 = vpop.permute.xlu0 %4924
    %4926 = vrot.lane.b32.xlu0 %v957, 39
    %v4927 = vpop.permute.xlu0 %4926
    %5056 = vrot.lane.b32.xlu0 %v958, 42
    %v5057 = vpop.permute.xlu0 %5056
    %5058 = vrot.lane.b32.xlu0 %v959, 42
    %v5059 = vpop.permute.xlu0 %5058
    %5060 = vrot.lane.b32.xlu0 %v960, 42
    %v5061 = vpop.permute.xlu0 %5060
    %5062 = vrot.lane.b32.xlu0 %v961, 42
    %v5063 = vpop.permute.xlu0 %5062
    %5064 = vrot.lane.b32.xlu0 %v962, 42
    %v5065 = vpop.permute.xlu0 %5064
    %5066 = vrot.lane.b32.xlu0 %v963, 42
    %v5067 = vpop.permute.xlu0 %5066
    %5068 = vrot.lane.b32.xlu0 %v964, 42
    %v5069 = vpop.permute.xlu0 %5068
    %5070 = vrot.lane.b32.xlu0 %v965, 42
    %v5071 = vpop.permute.xlu0 %5070
    %5072 = vrot.lane.b32.xlu0 %v966, 42
    %v5073 = vpop.permute.xlu0 %5072
    %5074 = vrot.lane.b32.xlu0 %v967, 42
    %v5075 = vpop.permute.xlu0 %5074
    %5076 = vrot.lane.b32.xlu0 %v968, 42
    %v5077 = vpop.permute.xlu0 %5076
    %5078 = vrot.lane.b32.xlu0 %v969, 42
    %v5079 = vpop.permute.xlu0 %5078
    %5080 = vrot.lane.b32.xlu0 %v970, 42
    %v5081 = vpop.permute.xlu0 %5080
    %5082 = vrot.lane.b32.xlu0 %v971, 42
    %v5083 = vpop.permute.xlu0 %5082
    %5084 = vrot.lane.b32.xlu0 %v972, 42
    %v5085 = vpop.permute.xlu0 %5084
    %5086 = vrot.lane.b32.xlu0 %v973, 42
    %v5087 = vpop.permute.xlu0 %5086
    %5088 = vrot.lane.b32.xlu0 %v974, 42
    %v5089 = vpop.permute.xlu0 %5088
    %5090 = vrot.lane.b32.xlu0 %v975, 42
    %v5091 = vpop.permute.xlu0 %5090
    %5092 = vrot.lane.b32.xlu0 %v976, 42
    %v5093 = vpop.permute.xlu0 %5092
    %5094 = vrot.lane.b32.xlu0 %v977, 42
    %v5095 = vpop.permute.xlu0 %5094
    %5096 = vrot.lane.b32.xlu0 %v978, 42
    %v5097 = vpop.permute.xlu0 %5096
    %5098 = vrot.lane.b32.xlu0 %v979, 42
    %v5099 = vpop.permute.xlu0 %5098
    %5100 = vrot.lane.b32.xlu0 %v980, 42
    %v5101 = vpop.permute.xlu0 %5100
    %5102 = vrot.lane.b32.xlu0 %v981, 42
    %v5103 = vpop.permute.xlu0 %5102
    %5104 = vrot.lane.b32.xlu0 %v982, 42
    %v5105 = vpop.permute.xlu0 %5104
    %5106 = vrot.lane.b32.xlu0 %v983, 42
    %v5107 = vpop.permute.xlu0 %5106
    %5108 = vrot.lane.b32.xlu0 %v984, 42
    %v5109 = vpop.permute.xlu0 %5108
    %5110 = vrot.lane.b32.xlu0 %v985, 42
    %v5111 = vpop.permute.xlu0 %5110
    %5112 = vrot.lane.b32.xlu0 %v986, 42
    %v5113 = vpop.permute.xlu0 %5112
    %5114 = vrot.lane.b32.xlu0 %v987, 42
    %v5115 = vpop.permute.xlu0 %5114
    %5116 = vrot.lane.b32.xlu0 %v988, 42
    %v5117 = vpop.permute.xlu0 %5116
    %5118 = vrot.lane.b32.xlu0 %v989, 42
    %v5119 = vpop.permute.xlu0 %5118
    %5120 = vrot.lane.b32.xlu0 %v990, 42
    %v5121 = vpop.permute.xlu0 %5120
    %5122 = vrot.lane.b32.xlu0 %v991, 42
    %v5123 = vpop.permute.xlu0 %5122
    %5124 = vrot.lane.b32.xlu0 %v992, 42
    %v5125 = vpop.permute.xlu0 %5124
    %5126 = vrot.lane.b32.xlu0 %v993, 42
    %v5127 = vpop.permute.xlu0 %5126
    %5128 = vrot.lane.b32.xlu0 %v994, 42
    %v5129 = vpop.permute.xlu0 %5128
    %5130 = vrot.lane.b32.xlu0 %v995, 42
    %v5131 = vpop.permute.xlu0 %5130
    %5132 = vrot.lane.b32.xlu0 %v996, 42
    %v5133 = vpop.permute.xlu0 %5132
    %5134 = vrot.lane.b32.xlu0 %v997, 42
    %v5135 = vpop.permute.xlu0 %5134
    %5136 = vrot.lane.b32.xlu0 %v998, 42
    %v5137 = vpop.permute.xlu0 %5136
    %5138 = vrot.lane.b32.xlu0 %v999, 42
    %v5139 = vpop.permute.xlu0 %5138
    %5140 = vrot.lane.b32.xlu0 %v1000, 42
    %v5141 = vpop.permute.xlu0 %5140
    %5142 = vrot.lane.b32.xlu0 %v1001, 42
    %v5143 = vpop.permute.xlu0 %5142
    %5144 = vrot.lane.b32.xlu0 %v1002, 42
    %v5145 = vpop.permute.xlu0 %5144
    %5146 = vrot.lane.b32.xlu0 %v1003, 42
    %v5147 = vpop.permute.xlu0 %5146
    %5148 = vrot.lane.b32.xlu0 %v1004, 42
    %v5149 = vpop.permute.xlu0 %5148
    %5150 = vrot.lane.b32.xlu0 %v1005, 42
    %v5151 = vpop.permute.xlu0 %5150
    %5152 = vrot.lane.b32.xlu0 %v1006, 42
    %v5153 = vpop.permute.xlu0 %5152
    %5154 = vrot.lane.b32.xlu0 %v1007, 42
    %v5155 = vpop.permute.xlu0 %5154
    %5156 = vrot.lane.b32.xlu0 %v1008, 42
    %v5157 = vpop.permute.xlu0 %5156
    %5158 = vrot.lane.b32.xlu0 %v1009, 42
    %v5159 = vpop.permute.xlu0 %5158
    %5160 = vrot.lane.b32.xlu0 %v1010, 42
    %v5161 = vpop.permute.xlu0 %5160
    %5162 = vrot.lane.b32.xlu0 %v1011, 42
    %v5163 = vpop.permute.xlu0 %5162
    %5164 = vrot.lane.b32.xlu0 %v1012, 42
    %v5165 = vpop.permute.xlu0 %5164
    %5166 = vrot.lane.b32.xlu0 %v1013, 42
    %v5167 = vpop.permute.xlu0 %5166
    %5168 = vrot.lane.b32.xlu0 %v1014, 42
    %v5169 = vpop.permute.xlu0 %5168
    %5170 = vrot.lane.b32.xlu0 %v1015, 42
    %v5171 = vpop.permute.xlu0 %5170
    %5172 = vrot.lane.b32.xlu0 %v1016, 42
    %v5173 = vpop.permute.xlu0 %5172
    %5174 = vrot.lane.b32.xlu0 %v1017, 42
    %v5175 = vpop.permute.xlu0 %5174
    %5176 = vrot.lane.b32.xlu0 %v1018, 42
    %v5177 = vpop.permute.xlu0 %5176
    %5178 = vrot.lane.b32.xlu0 %v1019, 42
    %v5179 = vpop.permute.xlu0 %5178
    %5180 = vrot.lane.b32.xlu0 %v1020, 42
    %v5181 = vpop.permute.xlu0 %5180
    %5182 = vrot.lane.b32.xlu0 %v1021, 42
    %v5183 = vpop.permute.xlu0 %5182
    %5312 = vrot.lane.b32.xlu0 %v1023, 45
    %v5313 = vpop.permute.xlu0 %5312
    %5314 = vrot.lane.b32.xlu0 %v1024, 45
    %v5315 = vpop.permute.xlu0 %5314
    %5316 = vrot.lane.b32.xlu0 %v1025, 45
    %v5317 = vpop.permute.xlu0 %5316
    %5318 = vrot.lane.b32.xlu0 %v1026, 45
    %v5319 = vpop.permute.xlu0 %5318
    %5320 = vrot.lane.b32.xlu0 %v1027, 45
    %v5321 = vpop.permute.xlu0 %5320
    %5322 = vrot.lane.b32.xlu0 %v1028, 45
    %v5323 = vpop.permute.xlu0 %5322
    %5324 = vrot.lane.b32.xlu0 %v1029, 45
    %v5325 = vpop.permute.xlu0 %5324
    %5326 = vrot.lane.b32.xlu0 %v1030, 45
    %v5327 = vpop.permute.xlu0 %5326
    %5328 = vrot.lane.b32.xlu0 %v1031, 45
    %v5329 = vpop.permute.xlu0 %5328
    %5330 = vrot.lane.b32.xlu0 %v1032, 45
    %v5331 = vpop.permute.xlu0 %5330
    %5332 = vrot.lane.b32.xlu0 %v1033, 45
    %v5333 = vpop.permute.xlu0 %5332
    %5334 = vrot.lane.b32.xlu0 %v1034, 45
    %v5335 = vpop.permute.xlu0 %5334
    %5336 = vrot.lane.b32.xlu0 %v1035, 45
    %v5337 = vpop.permute.xlu0 %5336
    %5338 = vrot.lane.b32.xlu0 %v1036, 45
    %v5339 = vpop.permute.xlu0 %5338
    %5340 = vrot.lane.b32.xlu0 %v1037, 45
    %v5341 = vpop.permute.xlu0 %5340
    %5342 = vrot.lane.b32.xlu0 %v1038, 45
    %v5343 = vpop.permute.xlu0 %5342
    %5344 = vrot.lane.b32.xlu0 %v1039, 45
    %v5345 = vpop.permute.xlu0 %5344
    %5346 = vrot.lane.b32.xlu0 %v1040, 45
    %v5347 = vpop.permute.xlu0 %5346
    %5348 = vrot.lane.b32.xlu0 %v1041, 45
    %v5349 = vpop.permute.xlu0 %5348
    %5350 = vrot.lane.b32.xlu0 %v1042, 45
    %v5351 = vpop.permute.xlu0 %5350
    %5352 = vrot.lane.b32.xlu0 %v1043, 45
    %v5353 = vpop.permute.xlu0 %5352
    %5354 = vrot.lane.b32.xlu0 %v1044, 45
    %v5355 = vpop.permute.xlu0 %5354
    %5356 = vrot.lane.b32.xlu0 %v1045, 45
    %v5357 = vpop.permute.xlu0 %5356
    %5358 = vrot.lane.b32.xlu0 %v1046, 45
    %v5359 = vpop.permute.xlu0 %5358
    %5360 = vrot.lane.b32.xlu0 %v1047, 45
    %v5361 = vpop.permute.xlu0 %5360
    %5362 = vrot.lane.b32.xlu0 %v1048, 45
    %v5363 = vpop.permute.xlu0 %5362
    %5364 = vrot.lane.b32.xlu0 %v1049, 45
    %v5365 = vpop.permute.xlu0 %5364
    %5366 = vrot.lane.b32.xlu0 %v1050, 45
    %v5367 = vpop.permute.xlu0 %5366
    %5368 = vrot.lane.b32.xlu0 %v1051, 45
    %v5369 = vpop.permute.xlu0 %5368
    %5370 = vrot.lane.b32.xlu0 %v1052, 45
    %v5371 = vpop.permute.xlu0 %5370
    %5372 = vrot.lane.b32.xlu0 %v1053, 45
    %v5373 = vpop.permute.xlu0 %5372
    %5374 = vrot.lane.b32.xlu0 %v1054, 45
    %v5375 = vpop.permute.xlu0 %5374
    %5376 = vrot.lane.b32.xlu0 %v1055, 45
    %v5377 = vpop.permute.xlu0 %5376
    %5378 = vrot.lane.b32.xlu0 %v1056, 45
    %v5379 = vpop.permute.xlu0 %5378
    %5380 = vrot.lane.b32.xlu0 %v1057, 45
    %v5381 = vpop.permute.xlu0 %5380
    %5382 = vrot.lane.b32.xlu0 %v1058, 45
    %v5383 = vpop.permute.xlu0 %5382
    %5384 = vrot.lane.b32.xlu0 %v1059, 45
    %v5385 = vpop.permute.xlu0 %5384
    %5386 = vrot.lane.b32.xlu0 %v1060, 45
    %v5387 = vpop.permute.xlu0 %5386
    %5388 = vrot.lane.b32.xlu0 %v1061, 45
    %v5389 = vpop.permute.xlu0 %5388
    %5390 = vrot.lane.b32.xlu0 %v1062, 45
    %v5391 = vpop.permute.xlu0 %5390
    %5392 = vrot.lane.b32.xlu0 %v1063, 45
    %v5393 = vpop.permute.xlu0 %5392
    %5394 = vrot.lane.b32.xlu0 %v1064, 45
    %v5395 = vpop.permute.xlu0 %5394
    %5396 = vrot.lane.b32.xlu0 %v1065, 45
    %v5397 = vpop.permute.xlu0 %5396
    %5398 = vrot.lane.b32.xlu0 %v1066, 45
    %v5399 = vpop.permute.xlu0 %5398
    %5400 = vrot.lane.b32.xlu0 %v1067, 45
    %v5401 = vpop.permute.xlu0 %5400
    %5402 = vrot.lane.b32.xlu0 %v1068, 45
    %v5403 = vpop.permute.xlu0 %5402
    %5404 = vrot.lane.b32.xlu0 %v1069, 45
    %v5405 = vpop.permute.xlu0 %5404
    %5406 = vrot.lane.b32.xlu0 %v1070, 45
    %v5407 = vpop.permute.xlu0 %5406
    %5408 = vrot.lane.b32.xlu0 %v1071, 45
    %v5409 = vpop.permute.xlu0 %5408
    %5410 = vrot.lane.b32.xlu0 %v1072, 45
    %v5411 = vpop.permute.xlu0 %5410
    %5412 = vrot.lane.b32.xlu0 %v1073, 45
    %v5413 = vpop.permute.xlu0 %5412
    %5414 = vrot.lane.b32.xlu0 %v1074, 45
    %v5415 = vpop.permute.xlu0 %5414
    %5416 = vrot.lane.b32.xlu0 %v1075, 45
    %v5417 = vpop.permute.xlu0 %5416
    %5418 = vrot.lane.b32.xlu0 %v1076, 45
    %v5419 = vpop.permute.xlu0 %5418
    %5420 = vrot.lane.b32.xlu0 %v1077, 45
    %v5421 = vpop.permute.xlu0 %5420
    %5422 = vrot.lane.b32.xlu0 %v1078, 45
    %v5423 = vpop.permute.xlu0 %5422
    %5424 = vrot.lane.b32.xlu0 %v1079, 45
    %v5425 = vpop.permute.xlu0 %5424
    %5426 = vrot.lane.b32.xlu0 %v1080, 45
    %v5427 = vpop.permute.xlu0 %5426
    %5428 = vrot.lane.b32.xlu0 %v1081, 45
    %v5429 = vpop.permute.xlu0 %5428
    %5430 = vrot.lane.b32.xlu0 %v1082, 45
    %v5431 = vpop.permute.xlu0 %5430
    %5432 = vrot.lane.b32.xlu0 %v1083, 45
    %v5433 = vpop.permute.xlu0 %5432
    %5434 = vrot.lane.b32.xlu0 %v1084, 45
    %v5435 = vpop.permute.xlu0 %5434
    %5436 = vrot.lane.b32.xlu0 %v1085, 45
    %v5437 = vpop.permute.xlu0 %5436
    %5438 = vrot.lane.b32.xlu0 %v1086, 45
    %v5439 = vpop.permute.xlu0 %5438
    %vm5504 = vcmask 23552
    %v5505 = vsel %vm5504, %v60, %v1729
    %v5506 = vsel %vm5504, %v61, %v1731
    %v5507 = vsel %vm5504, %v62, %v1733
    %v5508 = vsel %vm5504, %v63, %v1735
    %v5509 = vsel %vm5504, %v64, %v1737
    %v5510 = vsel %vm5504, %v65, %v1739
    %v5511 = vsel %vm5504, %v66, %v1741
    %v5512 = vsel %vm5504, %v67, %v1743
    %v5513 = vsel %vm5504, %v68, %v1745
    %v5514 = vsel %vm5504, %v69, %v1747
    %v5515 = vsel %vm5504, %v70, %v1749
    %v5516 = vsel %vm5504, %v71, %v1751
    %v5517 = vsel %vm5504, %v72, %v1753
    %v5518 = vsel %vm5504, %v73, %v1755
    %v5519 = vsel %vm5504, %v74, %v1757
    %v5520 = vsel %vm5504, %v75, %v1759
    %v5521 = vsel %vm5504, %v76, %v1761
    %v5522 = vsel %vm5504, %v77, %v1763
    %v5523 = vsel %vm5504, %v78, %v1765
    %v5524 = vsel %vm5504, %v79, %v1767
    %v5525 = vsel %vm5504, %v80, %v1769
    %v5526 = vsel %vm5504, %v81, %v1771
    %v5527 = vsel %vm5504, %v82, %v1773
    %v5528 = vsel %vm5504, %v83, %v1775
    %v5529 = vsel %vm5504, %v84, %v1777
    %v5530 = vsel %vm5504, %v85, %v1779
    %v5531 = vsel %vm5504, %v86, %v1781
    %v5532 = vsel %vm5504, %v87, %v1783
    %v5533 = vsel %vm5504, %v88, %v1785
    %v5534 = vsel %vm5504, %v89, %v1787
    %v5535 = vsel %vm5504, %v90, %v1789
    %v5536 = vsel %vm5504, %v91, %v1791
    %v5537 = vsel %vm5504, %v92, %v1793
    %v5538 = vsel %vm5504, %v93, %v1795
    %v5539 = vsel %vm5504, %v94, %v1797
    %v5540 = vsel %vm5504, %v95, %v1799
    %v5541 = vsel %vm5504, %v96, %v1801
    %v5542 = vsel %vm5504, %v97, %v1803
    %v5543 = vsel %vm5504, %v98, %v1805
    %v5544 = vsel %vm5504, %v99, %v1807
    %v5545 = vsel %vm5504, %v100, %v1809
    %v5546 = vsel %vm5504, %v101, %v1811
    %v5547 = vsel %vm5504, %v102, %v1813
    %v5548 = vsel %vm5504, %v103, %v1815
    %v5549 = vsel %vm5504, %v104, %v1817
    %v5550 = vsel %vm5504, %v105, %v1819
    %v5551 = vsel %vm5504, %v106, %v1821
    %v5552 = vsel %vm5504, %v107, %v1823
    %v5553 = vsel %vm5504, %v108, %v1825
    %v5554 = vsel %vm5504, %v109, %v1827
    %v5555 = vsel %vm5504, %v110, %v1829
    %v5556 = vsel %vm5504, %v111, %v1831
    %v5557 = vsel %vm5504, %v112, %v1833
    %v5558 = vsel %vm5504, %v113, %v1835
    %v5559 = vsel %vm5504, %v114, %v1837
    %v5560 = vsel %vm5504, %v115, %v1839
    %v5561 = vsel %vm5504, %v116, %v1841
    %v5562 = vsel %vm5504, %v117, %v1843
    %v5563 = vsel %vm5504, %v118, %v1845
    %v5564 = vsel %vm5504, %v119, %v1847
    %v5565 = vsel %vm5504, %v120, %v1849
    %v5566 = vsel %vm5504, %v121, %v1851
    %v5567 = vsel %vm5504, %v122, %v1853
    %v5568 = vsel %vm5504, %v123, %v1855
    %vm5569 = vcmask 48128
    %v5570 = vsel %vm5569, %v5505, %v1985
    %v5571 = vsel %vm5569, %v5506, %v1987
    %v5572 = vsel %vm5569, %v5507, %v1989
    %v5573 = vsel %vm5569, %v5508, %v1991
    %v5574 = vsel %vm5569, %v5509, %v1993
    %v5575 = vsel %vm5569, %v5510, %v1995
    %v5576 = vsel %vm5569, %v5511, %v1997
    %v5577 = vsel %vm5569, %v5512, %v1999
    %v5578 = vsel %vm5569, %v5513, %v2001
    %v5579 = vsel %vm5569, %v5514, %v2003
    %v5580 = vsel %vm5569, %v5515, %v2005
    %v5581 = vsel %vm5569, %v5516, %v2007
    %v5582 = vsel %vm5569, %v5517, %v2009
    %v5583 = vsel %vm5569, %v5518, %v2011
    %v5584 = vsel %vm5569, %v5519, %v2013
    %v5585 = vsel %vm5569, %v5520, %v2015
    %v5586 = vsel %vm5569, %v5521, %v2017
    %v5587 = vsel %vm5569, %v5522, %v2019
    %v5588 = vsel %vm5569, %v5523, %v2021
    %v5589 = vsel %vm5569, %v5524, %v2023
    %v5590 = vsel %vm5569, %v5525, %v2025
    %v5591 = vsel %vm5569, %v5526, %v2027
    %v5592 = vsel %vm5569, %v5527, %v2029
    %v5593 = vsel %vm5569, %v5528, %v2031
    %v5594 = vsel %vm5569, %v5529, %v2033
    %v5595 = vsel %vm5569, %v5530, %v2035
    %v5596 = vsel %vm5569, %v5531, %v2037
    %v5597 = vsel %vm5569, %v5532, %v2039
    %v5598 = vsel %vm5569, %v5533, %v2041
    %v5599 = vsel %vm5569, %v5534, %v2043
    %v5600 = vsel %vm5569, %v5535, %v2045
    %v5601 = vsel %vm5569, %v5536, %v2047
    %v5602 = vsel %vm5569, %v5537, %v2049
    %v5603 = vsel %vm5569, %v5538, %v2051
    %v5604 = vsel %vm5569, %v5539, %v2053
    %v5605 = vsel %vm5569, %v5540, %v2055
    %v5606 = vsel %vm5569, %v5541, %v2057
    %v5607 = vsel %vm5569, %v5542, %v2059
    %v5608 = vsel %vm5569, %v5543, %v2061
    %v5609 = vsel %vm5569, %v5544, %v2063
    %v5610 = vsel %vm5569, %v5545, %v2065
    %v5611 = vsel %vm5569, %v5546, %v2067
    %v5612 = vsel %vm5569, %v5547, %v2069
    %v5613 = vsel %vm5569, %v5548, %v2071
    %v5614 = vsel %vm5569, %v5549, %v2073
    %v5615 = vsel %vm5569, %v5550, %v2075
    %v5616 = vsel %vm5569, %v5551, %v2077
    %v5617 = vsel %vm5569, %v5552, %v2079
    %v5618 = vsel %vm5569, %v5553, %v2081
    %v5619 = vsel %vm5569, %v5554, %v2083
    %v5620 = vsel %vm5569, %v5555, %v2085
    %v5621 = vsel %vm5569, %v5556, %v2087
    %v5622 = vsel %vm5569, %v5557, %v2089
    %v5623 = vsel %vm5569, %v5558, %v2091
    %v5624 = vsel %vm5569, %v5559, %v2093
    %v5625 = vsel %vm5569, %v5560, %v2095
    %v5626 = vsel %vm5569, %v5561, %v2097
    %v5627 = vsel %vm5569, %v5562, %v2099
    %v5628 = vsel %vm5569, %v5563, %v2101
    %v5629 = vsel %vm5569, %v5564, %v2103
    %v5630 = vsel %vm5569, %v5565, %v2105
    %v5631 = vsel %vm5569, %v5566, %v2107
    %v5632 = vsel %vm5569, %v5567, %v2109
    %v5633 = vsel %vm5569, %v5568, %v2111
    %vm5634 = vcmask 72704
    %v5635 = vsel %vm5634, %v5570, %v2241
    %v5636 = vsel %vm5634, %v5571, %v2243
    %v5637 = vsel %vm5634, %v5572, %v2245
    %v5638 = vsel %vm5634, %v5573, %v2247
    %v5639 = vsel %vm5634, %v5574, %v2249
    %v5640 = vsel %vm5634, %v5575, %v2251
    %v5641 = vsel %vm5634, %v5576, %v2253
    %v5642 = vsel %vm5634, %v5577, %v2255
    %v5643 = vsel %vm5634, %v5578, %v2257
    %v5644 = vsel %vm5634, %v5579, %v2259
    %v5645 = vsel %vm5634, %v5580, %v2261
    %v5646 = vsel %vm5634, %v5581, %v2263
    %v5647 = vsel %vm5634, %v5582, %v2265
    %v5648 = vsel %vm5634, %v5583, %v2267
    %v5649 = vsel %vm5634, %v5584, %v2269
    %v5650 = vsel %vm5634, %v5585, %v2271
    %v5651 = vsel %vm5634, %v5586, %v2273
    %v5652 = vsel %vm5634, %v5587, %v2275
    %v5653 = vsel %vm5634, %v5588, %v2277
    %v5654 = vsel %vm5634, %v5589, %v2279
    %v5655 = vsel %vm5634, %v5590, %v2281
    %v5656 = vsel %vm5634, %v5591, %v2283
    %v5657 = vsel %vm5634, %v5592, %v2285
    %v5658 = vsel %vm5634, %v5593, %v2287
    %v5659 = vsel %vm5634, %v5594, %v2289
    %v5660 = vsel %vm5634, %v5595, %v2291
    %v5661 = vsel %vm5634, %v5596, %v2293
    %v5662 = vsel %vm5634, %v5597, %v2295
    %v5663 = vsel %vm5634, %v5598, %v2297
    %v5664 = vsel %vm5634, %v5599, %v2299
    %v5665 = vsel %vm5634, %v5600, %v2301
    %v5666 = vsel %vm5634, %v5601, %v2303
    %v5667 = vsel %vm5634, %v5602, %v2305
    %v5668 = vsel %vm5634, %v5603, %v2307
    %v5669 = vsel %vm5634, %v5604, %v2309
    %v5670 = vsel %vm5634, %v5605, %v2311
    %v5671 = vsel %vm5634, %v5606, %v2313
    %v5672 = vsel %vm5634, %v5607, %v2315
    %v5673 = vsel %vm5634, %v5608, %v2317
    %v5674 = vsel %vm5634, %v5609, %v2319
    %v5675 = vsel %vm5634, %v5610, %v2321
    %v5676 = vsel %vm5634, %v5611, %v2323
    %v5677 = vsel %vm5634, %v5612, %v2325
    %v5678 = vsel %vm5634, %v5613, %v2327
    %v5679 = vsel %vm5634, %v5614, %v2329
    %v5680 = vsel %vm5634, %v5615, %v2331
    %v5681 = vsel %vm5634, %v5616, %v2333
    %v5682 = vsel %vm5634, %v5617, %v2335
    %v5683 = vsel %vm5634, %v5618, %v2337
    %v5684 = vsel %vm5634, %v5619, %v2339
    %v5685 = vsel %vm5634, %v5620, %v2341
    %v5686 = vsel %vm5634, %v5621, %v2343
    %v5687 = vsel %vm5634, %v5622, %v2345
    %v5688 = vsel %vm5634, %v5623, %v2347
    %v5689 = vsel %vm5634, %v5624, %v2349
    %v5690 = vsel %vm5634, %v5625, %v2351
    %v5691 = vsel %vm5634, %v5626, %v2353
    %v5692 = vsel %vm5634, %v5627, %v2355
    %v5693 = vsel %vm5634, %v5628, %v2357
    %v5694 = vsel %vm5634, %v5629, %v2359
    %v5695 = vsel %vm5634, %v5630, %v2361
    %v5696 = vsel %vm5634, %v5631, %v2363
    %v5697 = vsel %vm5634, %v5632, %v2365
    %v5698 = vsel %vm5634, %v5633, %v2367
    %vm5699 = vcmask 97280
    %v5700 = vsel %vm5699, %v5635, %v2497
    %v5701 = vsel %vm5699, %v5636, %v2499
    %v5702 = vsel %vm5699, %v5637, %v2501
    %v5703 = vsel %vm5699, %v5638, %v2503
    %v5704 = vsel %vm5699, %v5639, %v2505
    %v5705 = vsel %vm5699, %v5640, %v2507
    %v5706 = vsel %vm5699, %v5641, %v2509
    %v5707 = vsel %vm5699, %v5642, %v2511
    %v5708 = vsel %vm5699, %v5643, %v2513
    %v5709 = vsel %vm5699, %v5644, %v2515
    %v5710 = vsel %vm5699, %v5645, %v2517
    %v5711 = vsel %vm5699, %v5646, %v2519
    %v5712 = vsel %vm5699, %v5647, %v2521
    %v5713 = vsel %vm5699, %v5648, %v2523
    %v5714 = vsel %vm5699, %v5649, %v2525
    %v5715 = vsel %vm5699, %v5650, %v2527
    %v5716 = vsel %vm5699, %v5651, %v2529
    %v5717 = vsel %vm5699, %v5652, %v2531
    %v5718 = vsel %vm5699, %v5653, %v2533
    %v5719 = vsel %vm5699, %v5654, %v2535
    %v5720 = vsel %vm5699, %v5655, %v2537
    %v5721 = vsel %vm5699, %v5656, %v2539
    %v5722 = vsel %vm5699, %v5657, %v2541
    %v5723 = vsel %vm5699, %v5658, %v2543
    %v5724 = vsel %vm5699, %v5659, %v2545
    %v5725 = vsel %vm5699, %v5660, %v2547
    %v5726 = vsel %vm5699, %v5661, %v2549
    %v5727 = vsel %vm5699, %v5662, %v2551
    %v5728 = vsel %vm5699, %v5663, %v2553
    %v5729 = vsel %vm5699, %v5664, %v2555
    %v5730 = vsel %vm5699, %v5665, %v2557
    %v5731 = vsel %vm5699, %v5666, %v2559
    %v5732 = vsel %vm5699, %v5667, %v2561
    %v5733 = vsel %vm5699, %v5668, %v2563
    %v5734 = vsel %vm5699, %v5669, %v2565
    %v5735 = vsel %vm5699, %v5670, %v2567
    %v5736 = vsel %vm5699, %v5671, %v2569
    %v5737 = vsel %vm5699, %v5672, %v2571
    %v5738 = vsel %vm5699, %v5673, %v2573
    %v5739 = vsel %vm5699, %v5674, %v2575
    %v5740 = vsel %vm5699, %v5675, %v2577
    %v5741 = vsel %vm5699, %v5676, %v2579
    %v5742 = vsel %vm5699, %v5677, %v2581
    %v5743 = vsel %vm5699, %v5678, %v2583
    %v5744 = vsel %vm5699, %v5679, %v2585
    %v5745 = vsel %vm5699, %v5680, %v2587
    %v5746 = vsel %vm5699, %v5681, %v2589
    %v5747 = vsel %vm5699, %v5682, %v2591
    %v5748 = vsel %vm5699, %v5683, %v2593
    %v5749 = vsel %vm5699, %v5684, %v2595
    %v5750 = vsel %vm5699, %v5685, %v2597
    %v5751 = vsel %vm5699, %v5686, %v2599
    %v5752 = vsel %vm5699, %v5687, %v2601
    %v5753 = vsel %vm5699, %v5688, %v2603
    %v5754 = vsel %vm5699, %v5689, %v2605
    %v5755 = vsel %vm5699, %v5690, %v2607
    %v5756 = vsel %vm5699, %v5691, %v2609
    %v5757 = vsel %vm5699, %v5692, %v2611
    %v5758 = vsel %vm5699, %v5693, %v2613
    %v5759 = vsel %vm5699, %v5694, %v2615
    %v5760 = vsel %vm5699, %v5695, %v2617
    %v5761 = vsel %vm5699, %v5696, %v2619
    %v5762 = vsel %vm5699, %v5697, %v2621
    %v5763 = vsel %vm5699, %v5698, %v2623
    %vm5764 = vcmask 121856
    %v5765 = vsel %vm5764, %v5700, %v2753
    %v5766 = vsel %vm5764, %v5701, %v2755
    %v5767 = vsel %vm5764, %v5702, %v2757
    %v5768 = vsel %vm5764, %v5703, %v2759
    %v5769 = vsel %vm5764, %v5704, %v2761
    %v5770 = vsel %vm5764, %v5705, %v2763
    %v5771 = vsel %vm5764, %v5706, %v2765
    %v5772 = vsel %vm5764, %v5707, %v2767
    %v5773 = vsel %vm5764, %v5708, %v2769
    %v5774 = vsel %vm5764, %v5709, %v2771
    %v5775 = vsel %vm5764, %v5710, %v2773
    %v5776 = vsel %vm5764, %v5711, %v2775
    %v5777 = vsel %vm5764, %v5712, %v2777
    %v5778 = vsel %vm5764, %v5713, %v2779
    %v5779 = vsel %vm5764, %v5714, %v2781
    %v5780 = vsel %vm5764, %v5715, %v2783
    %v5781 = vsel %vm5764, %v5716, %v2785
    %v5782 = vsel %vm5764, %v5717, %v2787
    %v5783 = vsel %vm5764, %v5718, %v2789
    %v5784 = vsel %vm5764, %v5719, %v2791
    %v5785 = vsel %vm5764, %v5720, %v2793
    %v5786 = vsel %vm5764, %v5721, %v2795
    %v5787 = vsel %vm5764, %v5722, %v2797
    %v5788 = vsel %vm5764, %v5723, %v2799
    %v5789 = vsel %vm5764, %v5724, %v2801
    %v5790 = vsel %vm5764, %v5725, %v2803
    %v5791 = vsel %vm5764, %v5726, %v2805
    %v5792 = vsel %vm5764, %v5727, %v2807
    %v5793 = vsel %vm5764, %v5728, %v2809
    %v5794 = vsel %vm5764, %v5729, %v2811
    %v5795 = vsel %vm5764, %v5730, %v2813
    %v5796 = vsel %vm5764, %v5731, %v2815
    %v5797 = vsel %vm5764, %v5732, %v2817
    %v5798 = vsel %vm5764, %v5733, %v2819
    %v5799 = vsel %vm5764, %v5734, %v2821
    %v5800 = vsel %vm5764, %v5735, %v2823
    %v5801 = vsel %vm5764, %v5736, %v2825
    %v5802 = vsel %vm5764, %v5737, %v2827
    %v5803 = vsel %vm5764, %v5738, %v2829
    %v5804 = vsel %vm5764, %v5739, %v2831
    %v5805 = vsel %vm5764, %v5740, %v2833
    %v5806 = vsel %vm5764, %v5741, %v2835
    %v5807 = vsel %vm5764, %v5742, %v2837
    %v5808 = vsel %vm5764, %v5743, %v2839
    %v5809 = vsel %vm5764, %v5744, %v2841
    %v5810 = vsel %vm5764, %v5745, %v2843
    %v5811 = vsel %vm5764, %v5746, %v2845
    %v5812 = vsel %vm5764, %v5747, %v2847
    %v5813 = vsel %vm5764, %v5748, %v2849
    %v5814 = vsel %vm5764, %v5749, %v2851
    %v5815 = vsel %vm5764, %v5750, %v2853
    %v5816 = vsel %vm5764, %v5751, %v2855
    %v5817 = vsel %vm5764, %v5752, %v2857
    %v5818 = vsel %vm5764, %v5753, %v2859
    %v5819 = vsel %vm5764, %v5754, %v2861
    %v5820 = vsel %vm5764, %v5755, %v2863
    %v5821 = vsel %vm5764, %v5756, %v2865
    %v5822 = vsel %vm5764, %v5757, %v2867
    %v5823 = vsel %vm5764, %v5758, %v2869
    %v5824 = vsel %vm5764, %v5759, %v2871
    %v5825 = vsel %vm5764, %v5760, %v2873
    %v5826 = vsel %vm5764, %v5761, %v2875
    %v5827 = vsel %vm5764, %v5762, %v2877
    %v5828 = vsel %vm5764, %v5763, %v2879
    %vm5829 = vcmask 146432
    %v5830 = vsel %vm5829, %v5765, %v3009
    %v5831 = vsel %vm5829, %v5766, %v3011
    %v5832 = vsel %vm5829, %v5767, %v3013
    %v5833 = vsel %vm5829, %v5768, %v3015
    %v5834 = vsel %vm5829, %v5769, %v3017
    %v5835 = vsel %vm5829, %v5770, %v3019
    %v5836 = vsel %vm5829, %v5771, %v3021
    %v5837 = vsel %vm5829, %v5772, %v3023
    %v5838 = vsel %vm5829, %v5773, %v3025
    %v5839 = vsel %vm5829, %v5774, %v3027
    %v5840 = vsel %vm5829, %v5775, %v3029
    %v5841 = vsel %vm5829, %v5776, %v3031
    %v5842 = vsel %vm5829, %v5777, %v3033
    %v5843 = vsel %vm5829, %v5778, %v3035
    %v5844 = vsel %vm5829, %v5779, %v3037
    %v5845 = vsel %vm5829, %v5780, %v3039
    %v5846 = vsel %vm5829, %v5781, %v3041
    %v5847 = vsel %vm5829, %v5782, %v3043
    %v5848 = vsel %vm5829, %v5783, %v3045
    %v5849 = vsel %vm5829, %v5784, %v3047
    %v5850 = vsel %vm5829, %v5785, %v3049
    %v5851 = vsel %vm5829, %v5786, %v3051
    %v5852 = vsel %vm5829, %v5787, %v3053
    %v5853 = vsel %vm5829, %v5788, %v3055
    %v5854 = vsel %vm5829, %v5789, %v3057
    %v5855 = vsel %vm5829, %v5790, %v3059
    %v5856 = vsel %vm5829, %v5791, %v3061
    %v5857 = vsel %vm5829, %v5792, %v3063
    %v5858 = vsel %vm5829, %v5793, %v3065
    %v5859 = vsel %vm5829, %v5794, %v3067
    %v5860 = vsel %vm5829, %v5795, %v3069
    %v5861 = vsel %vm5829, %v5796, %v3071
    %v5862 = vsel %vm5829, %v5797, %v3073
    %v5863 = vsel %vm5829, %v5798, %v3075
    %v5864 = vsel %vm5829, %v5799, %v3077
    %v5865 = vsel %vm5829, %v5800, %v3079
    %v5866 = vsel %vm5829, %v5801, %v3081
    %v5867 = vsel %vm5829, %v5802, %v3083
    %v5868 = vsel %vm5829, %v5803, %v3085
    %v5869 = vsel %vm5829, %v5804, %v3087
    %v5870 = vsel %vm5829, %v5805, %v3089
    %v5871 = vsel %vm5829, %v5806, %v3091
    %v5872 = vsel %vm5829, %v5807, %v3093
    %v5873 = vsel %vm5829, %v5808, %v3095
    %v5874 = vsel %vm5829, %v5809, %v3097
    %v5875 = vsel %vm5829, %v5810, %v3099
    %v5876 = vsel %vm5829, %v5811, %v3101
    %v5877 = vsel %vm5829, %v5812, %v3103
    %v5878 = vsel %vm5829, %v5813, %v3105
    %v5879 = vsel %vm5829, %v5814, %v3107
    %v5880 = vsel %vm5829, %v5815, %v3109
    %v5881 = vsel %vm5829, %v5816, %v3111
    %v5882 = vsel %vm5829, %v5817, %v3113
    %v5883 = vsel %vm5829, %v5818, %v3115
    %v5884 = vsel %vm5829, %v5819, %v3117
    %v5885 = vsel %vm5829, %v5820, %v3119
    %v5886 = vsel %vm5829, %v5821, %v3121
    %v5887 = vsel %vm5829, %v5822, %v3123
    %v5888 = vsel %vm5829, %v5823, %v3125
    %v5889 = vsel %vm5829, %v5824, %v3127
    %v5890 = vsel %vm5829, %v5825, %v3129
    %v5891 = vsel %vm5829, %v5826, %v3131
    %v5892 = vsel %vm5829, %v5827, %v3133
    %v5893 = vsel %vm5829, %v5828, %v3135
    %vm5894 = vcmask 171008
    %v5895 = vsel %vm5894, %v5830, %v3265
    %v5896 = vsel %vm5894, %v5831, %v3267
    %v5897 = vsel %vm5894, %v5832, %v3269
    %v5898 = vsel %vm5894, %v5833, %v3271
    %v5899 = vsel %vm5894, %v5834, %v3273
    %v5900 = vsel %vm5894, %v5835, %v3275
    %v5901 = vsel %vm5894, %v5836, %v3277
    %v5902 = vsel %vm5894, %v5837, %v3279
    %v5903 = vsel %vm5894, %v5838, %v3281
    %v5904 = vsel %vm5894, %v5839, %v3283
    %v5905 = vsel %vm5894, %v5840, %v3285
    %v5906 = vsel %vm5894, %v5841, %v3287
    %v5907 = vsel %vm5894, %v5842, %v3289
    %v5908 = vsel %vm5894, %v5843, %v3291
    %v5909 = vsel %vm5894, %v5844, %v3293
    %v5910 = vsel %vm5894, %v5845, %v3295
    %v5911 = vsel %vm5894, %v5846, %v3297
    %v5912 = vsel %vm5894, %v5847, %v3299
    %v5913 = vsel %vm5894, %v5848, %v3301
    %v5914 = vsel %vm5894, %v5849, %v3303
    %v5915 = vsel %vm5894, %v5850, %v3305
    %v5916 = vsel %vm5894, %v5851, %v3307
    %v5917 = vsel %vm5894, %v5852, %v3309
    %v5918 = vsel %vm5894, %v5853, %v3311
    %v5919 = vsel %vm5894, %v5854, %v3313
    %v5920 = vsel %vm5894, %v5855, %v3315
    %v5921 = vsel %vm5894, %v5856, %v3317
    %v5922 = vsel %vm5894, %v5857, %v3319
    %v5923 = vsel %vm5894, %v5858, %v3321
    %v5924 = vsel %vm5894, %v5859, %v3323
    %v5925 = vsel %vm5894, %v5860, %v3325
    %v5926 = vsel %vm5894, %v5861, %v3327
    %v5927 = vsel %vm5894, %v5862, %v3329
    %v5928 = vsel %vm5894, %v5863, %v3331
    %v5929 = vsel %vm5894, %v5864, %v3333
    %v5930 = vsel %vm5894, %v5865, %v3335
    %v5931 = vsel %vm5894, %v5866, %v3337
    %v5932 = vsel %vm5894, %v5867, %v3339
    %v5933 = vsel %vm5894, %v5868, %v3341
    %v5934 = vsel %vm5894, %v5869, %v3343
    %v5935 = vsel %vm5894, %v5870, %v3345
    %v5936 = vsel %vm5894, %v5871, %v3347
    %v5937 = vsel %vm5894, %v5872, %v3349
    %v5938 = vsel %vm5894, %v5873, %v3351
    %v5939 = vsel %vm5894, %v5874, %v3353
    %v5940 = vsel %vm5894, %v5875, %v3355
    %v5941 = vsel %vm5894, %v5876, %v3357
    %v5942 = vsel %vm5894, %v5877, %v3359
    %v5943 = vsel %vm5894, %v5878, %v3361
    %v5944 = vsel %vm5894, %v5879, %v3363
    %v5945 = vsel %vm5894, %v5880, %v3365
    %v5946 = vsel %vm5894, %v5881, %v3367
    %v5947 = vsel %vm5894, %v5882, %v3369
    %v5948 = vsel %vm5894, %v5883, %v3371
    %v5949 = vsel %vm5894, %v5884, %v3373
    %v5950 = vsel %vm5894, %v5885, %v3375
    %v5951 = vsel %vm5894, %v5886, %v3377
    %v5952 = vsel %vm5894, %v5887, %v3379
    %v5953 = vsel %vm5894, %v5888, %v3381
    %v5954 = vsel %vm5894, %v5889, %v3383
    %v5955 = vsel %vm5894, %v5890, %v3385
    %v5956 = vsel %vm5894, %v5891, %v3387
    %v5957 = vsel %vm5894, %v5892, %v3389
    %v5958 = vsel %vm5894, %v5893, %v3391
    %vm5959 = vcmask 195584
    %v5960 = vsel %vm5959, %v5895, %v3521
    %v5961 = vsel %vm5959, %v5896, %v3523
    %v5962 = vsel %vm5959, %v5897, %v3525
    %v5963 = vsel %vm5959, %v5898, %v3527
    %v5964 = vsel %vm5959, %v5899, %v3529
    %v5965 = vsel %vm5959, %v5900, %v3531
    %v5966 = vsel %vm5959, %v5901, %v3533
    %v5967 = vsel %vm5959, %v5902, %v3535
    %v5968 = vsel %vm5959, %v5903, %v3537
    %v5969 = vsel %vm5959, %v5904, %v3539
    %v5970 = vsel %vm5959, %v5905, %v3541
    %v5971 = vsel %vm5959, %v5906, %v3543
    %v5972 = vsel %vm5959, %v5907, %v3545
    %v5973 = vsel %vm5959, %v5908, %v3547
    %v5974 = vsel %vm5959, %v5909, %v3549
    %v5975 = vsel %vm5959, %v5910, %v3551
    %v5976 = vsel %vm5959, %v5911, %v3553
    %v5977 = vsel %vm5959, %v5912, %v3555
    %v5978 = vsel %vm5959, %v5913, %v3557
    %v5979 = vsel %vm5959, %v5914, %v3559
    %v5980 = vsel %vm5959, %v5915, %v3561
    %v5981 = vsel %vm5959, %v5916, %v3563
    %v5982 = vsel %vm5959, %v5917, %v3565
    %v5983 = vsel %vm5959, %v5918, %v3567
    %v5984 = vsel %vm5959, %v5919, %v3569
    %v5985 = vsel %vm5959, %v5920, %v3571
    %v5986 = vsel %vm5959, %v5921, %v3573
    %v5987 = vsel %vm5959, %v5922, %v3575
    %v5988 = vsel %vm5959, %v5923, %v3577
    %v5989 = vsel %vm5959, %v5924, %v3579
    %v5990 = vsel %vm5959, %v5925, %v3581
    %v5991 = vsel %vm5959, %v5926, %v3583
    %v5992 = vsel %vm5959, %v5927, %v3585
    %v5993 = vsel %vm5959, %v5928, %v3587
    %v5994 = vsel %vm5959, %v5929, %v3589
    %v5995 = vsel %vm5959, %v5930, %v3591
    %v5996 = vsel %vm5959, %v5931, %v3593
    %v5997 = vsel %vm5959, %v5932, %v3595
    %v5998 = vsel %vm5959, %v5933, %v3597
    %v5999 = vsel %vm5959, %v5934, %v3599
    %v6000 = vsel %vm5959, %v5935, %v3601
    %v6001 = vsel %vm5959, %v5936, %v3603
    %v6002 = vsel %vm5959, %v5937, %v3605
    %v6003 = vsel %vm5959, %v5938, %v3607
    %v6004 = vsel %vm5959, %v5939, %v3609
    %v6005 = vsel %vm5959, %v5940, %v3611
    %v6006 = vsel %vm5959, %v5941, %v3613
    %v6007 = vsel %vm5959, %v5942, %v3615
    %v6008 = vsel %vm5959, %v5943, %v3617
    %v6009 = vsel %vm5959, %v5944, %v3619
    %v6010 = vsel %vm5959, %v5945, %v3621
    %v6011 = vsel %vm5959, %v5946, %v3623
    %v6012 = vsel %vm5959, %v5947, %v3625
    %v6013 = vsel %vm5959, %v5948, %v3627
    %v6014 = vsel %vm5959, %v5949, %v3629
    %v6015 = vsel %vm5959, %v5950, %v3631
    %v6016 = vsel %vm5959, %v5951, %v3633
    %v6017 = vsel %vm5959, %v5952, %v3635
    %v6018 = vsel %vm5959, %v5953, %v3637
    %v6019 = vsel %vm5959, %v5954, %v3639
    %v6020 = vsel %vm5959, %v5955, %v3641
    %v6021 = vsel %vm5959, %v5956, %v3643
    %v6022 = vsel %vm5959, %v5957, %v3645
    %v6023 = vsel %vm5959, %v5958, %v3647
    %vm6024 = vcmask 220160
    %v6025 = vsel %vm6024, %v5960, %v3777
    %v6026 = vsel %vm6024, %v5961, %v3779
    %v6027 = vsel %vm6024, %v5962, %v3781
    %v6028 = vsel %vm6024, %v5963, %v3783
    %v6029 = vsel %vm6024, %v5964, %v3785
    %v6030 = vsel %vm6024, %v5965, %v3787
    %v6031 = vsel %vm6024, %v5966, %v3789
    %v6032 = vsel %vm6024, %v5967, %v3791
    %v6033 = vsel %vm6024, %v5968, %v3793
    %v6034 = vsel %vm6024, %v5969, %v3795
    %v6035 = vsel %vm6024, %v5970, %v3797
    %v6036 = vsel %vm6024, %v5971, %v3799
    %v6037 = vsel %vm6024, %v5972, %v3801
    %v6038 = vsel %vm6024, %v5973, %v3803
    %v6039 = vsel %vm6024, %v5974, %v3805
    %v6040 = vsel %vm6024, %v5975, %v3807
    %v6041 = vsel %vm6024, %v5976, %v3809
    %v6042 = vsel %vm6024, %v5977, %v3811
    %v6043 = vsel %vm6024, %v5978, %v3813
    %v6044 = vsel %vm6024, %v5979, %v3815
    %v6045 = vsel %vm6024, %v5980, %v3817
    %v6046 = vsel %vm6024, %v5981, %v3819
    %v6047 = vsel %vm6024, %v5982, %v3821
    %v6048 = vsel %vm6024, %v5983, %v3823
    %v6049 = vsel %vm6024, %v5984, %v3825
    %v6050 = vsel %vm6024, %v5985, %v3827
    %v6051 = vsel %vm6024, %v5986, %v3829
    %v6052 = vsel %vm6024, %v5987, %v3831
    %v6053 = vsel %vm6024, %v5988, %v3833
    %v6054 = vsel %vm6024, %v5989, %v3835
    %v6055 = vsel %vm6024, %v5990, %v3837
    %v6056 = vsel %vm6024, %v5991, %v3839
    %v6057 = vsel %vm6024, %v5992, %v3841
    %v6058 = vsel %vm6024, %v5993, %v3843
    %v6059 = vsel %vm6024, %v5994, %v3845
    %v6060 = vsel %vm6024, %v5995, %v3847
    %v6061 = vsel %vm6024, %v5996, %v3849
    %v6062 = vsel %vm6024, %v5997, %v3851
    %v6063 = vsel %vm6024, %v5998, %v3853
    %v6064 = vsel %vm6024, %v5999, %v3855
    %v6065 = vsel %vm6024, %v6000, %v3857
    %v6066 = vsel %vm6024, %v6001, %v3859
    %v6067 = vsel %vm6024, %v6002, %v3861
    %v6068 = vsel %vm6024, %v6003, %v3863
    %v6069 = vsel %vm6024, %v6004, %v3865
    %v6070 = vsel %vm6024, %v6005, %v3867
    %v6071 = vsel %vm6024, %v6006, %v3869
    %v6072 = vsel %vm6024, %v6007, %v3871
    %v6073 = vsel %vm6024, %v6008, %v3873
    %v6074 = vsel %vm6024, %v6009, %v3875
    %v6075 = vsel %vm6024, %v6010, %v3877
    %v6076 = vsel %vm6024, %v6011, %v3879
    %v6077 = vsel %vm6024, %v6012, %v3881
    %v6078 = vsel %vm6024, %v6013, %v3883
    %v6079 = vsel %vm6024, %v6014, %v3885
    %v6080 = vsel %vm6024, %v6015, %v3887
    %v6081 = vsel %vm6024, %v6016, %v3889
    %v6082 = vsel %vm6024, %v6017, %v3891
    %v6083 = vsel %vm6024, %v6018, %v3893
    %v6084 = vsel %vm6024, %v6019, %v3895
    %v6085 = vsel %vm6024, %v6020, %v3897
    %v6086 = vsel %vm6024, %v6021, %v3899
    %v6087 = vsel %vm6024, %v6022, %v3901
    %v6088 = vsel %vm6024, %v6023, %v3903
    %vm6089 = vcmask 244736
    %v6090 = vsel %vm6089, %v6025, %v4033
    %v6091 = vsel %vm6089, %v6026, %v4035
    %v6092 = vsel %vm6089, %v6027, %v4037
    %v6093 = vsel %vm6089, %v6028, %v4039
    %v6094 = vsel %vm6089, %v6029, %v4041
    %v6095 = vsel %vm6089, %v6030, %v4043
    %v6096 = vsel %vm6089, %v6031, %v4045
    %v6097 = vsel %vm6089, %v6032, %v4047
    %v6098 = vsel %vm6089, %v6033, %v4049
    %v6099 = vsel %vm6089, %v6034, %v4051
    %v6100 = vsel %vm6089, %v6035, %v4053
    %v6101 = vsel %vm6089, %v6036, %v4055
    %v6102 = vsel %vm6089, %v6037, %v4057
    %v6103 = vsel %vm6089, %v6038, %v4059
    %v6104 = vsel %vm6089, %v6039, %v4061
    %v6105 = vsel %vm6089, %v6040, %v4063
    %v6106 = vsel %vm6089, %v6041, %v4065
    %v6107 = vsel %vm6089, %v6042, %v4067
    %v6108 = vsel %vm6089, %v6043, %v4069
    %v6109 = vsel %vm6089, %v6044, %v4071
    %v6110 = vsel %vm6089, %v6045, %v4073
    %v6111 = vsel %vm6089, %v6046, %v4075
    %v6112 = vsel %vm6089, %v6047, %v4077
    %v6113 = vsel %vm6089, %v6048, %v4079
    %v6114 = vsel %vm6089, %v6049, %v4081
    %v6115 = vsel %vm6089, %v6050, %v4083
    %v6116 = vsel %vm6089, %v6051, %v4085
    %v6117 = vsel %vm6089, %v6052, %v4087
    %v6118 = vsel %vm6089, %v6053, %v4089
    %v6119 = vsel %vm6089, %v6054, %v4091
    %v6120 = vsel %vm6089, %v6055, %v4093
    %v6121 = vsel %vm6089, %v6056, %v4095
    %v6122 = vsel %vm6089, %v6057, %v4097
    %v6123 = vsel %vm6089, %v6058, %v4099
    %v6124 = vsel %vm6089, %v6059, %v4101
    %v6125 = vsel %vm6089, %v6060, %v4103
    %v6126 = vsel %vm6089, %v6061, %v4105
    %v6127 = vsel %vm6089, %v6062, %v4107
    %v6128 = vsel %vm6089, %v6063, %v4109
    %v6129 = vsel %vm6089, %v6064, %v4111
    %v6130 = vsel %vm6089, %v6065, %v4113
    %v6131 = vsel %vm6089, %v6066, %v4115
    %v6132 = vsel %vm6089, %v6067, %v4117
    %v6133 = vsel %vm6089, %v6068, %v4119
    %v6134 = vsel %vm6089, %v6069, %v4121
    %v6135 = vsel %vm6089, %v6070, %v4123
    %v6136 = vsel %vm6089, %v6071, %v4125
    %v6137 = vsel %vm6089, %v6072, %v4127
    %v6138 = vsel %vm6089, %v6073, %v4129
    %v6139 = vsel %vm6089, %v6074, %v4131
    %v6140 = vsel %vm6089, %v6075, %v4133
    %v6141 = vsel %vm6089, %v6076, %v4135
    %v6142 = vsel %vm6089, %v6077, %v4137
    %v6143 = vsel %vm6089, %v6078, %v4139
    %v6144 = vsel %vm6089, %v6079, %v4141
    %v6145 = vsel %vm6089, %v6080, %v4143
    %v6146 = vsel %vm6089, %v6081, %v4145
    %v6147 = vsel %vm6089, %v6082, %v4147
    %v6148 = vsel %vm6089, %v6083, %v4149
    %v6149 = vsel %vm6089, %v6084, %v4151
    %v6150 = vsel %vm6089, %v6085, %v4153
    %v6151 = vsel %vm6089, %v6086, %v4155
    %v6152 = vsel %vm6089, %v6087, %v4157
    %v6153 = vsel %vm6089, %v6088, %v4159
    %vm6154 = vcmask 269312
    %v6155 = vsel %vm6154, %v6090, %v4289
    %v6156 = vsel %vm6154, %v6091, %v4291
    %v6157 = vsel %vm6154, %v6092, %v4293
    %v6158 = vsel %vm6154, %v6093, %v4295
    %v6159 = vsel %vm6154, %v6094, %v4297
    %v6160 = vsel %vm6154, %v6095, %v4299
    %v6161 = vsel %vm6154, %v6096, %v4301
    %v6162 = vsel %vm6154, %v6097, %v4303
    %v6163 = vsel %vm6154, %v6098, %v4305
    %v6164 = vsel %vm6154, %v6099, %v4307
    %v6165 = vsel %vm6154, %v6100, %v4309
    %v6166 = vsel %vm6154, %v6101, %v4311
    %v6167 = vsel %vm6154, %v6102, %v4313
    %v6168 = vsel %vm6154, %v6103, %v4315
    %v6169 = vsel %vm6154, %v6104, %v4317
    %v6170 = vsel %vm6154, %v6105, %v4319
    %v6171 = vsel %vm6154, %v6106, %v4321
    %v6172 = vsel %vm6154, %v6107, %v4323
    %v6173 = vsel %vm6154, %v6108, %v4325
    %v6174 = vsel %vm6154, %v6109, %v4327
    %v6175 = vsel %vm6154, %v6110, %v4329
    %v6176 = vsel %vm6154, %v6111, %v4331
    %v6177 = vsel %vm6154, %v6112, %v4333
    %v6178 = vsel %vm6154, %v6113, %v4335
    %v6179 = vsel %vm6154, %v6114, %v4337
    %v6180 = vsel %vm6154, %v6115, %v4339
    %v6181 = vsel %vm6154, %v6116, %v4341
    %v6182 = vsel %vm6154, %v6117, %v4343
    %v6183 = vsel %vm6154, %v6118, %v4345
    %v6184 = vsel %vm6154, %v6119, %v4347
    %v6185 = vsel %vm6154, %v6120, %v4349
    %v6186 = vsel %vm6154, %v6121, %v4351
    %v6187 = vsel %vm6154, %v6122, %v4353
    %v6188 = vsel %vm6154, %v6123, %v4355
    %v6189 = vsel %vm6154, %v6124, %v4357
    %v6190 = vsel %vm6154, %v6125, %v4359
    %v6191 = vsel %vm6154, %v6126, %v4361
    %v6192 = vsel %vm6154, %v6127, %v4363
    %v6193 = vsel %vm6154, %v6128, %v4365
    %v6194 = vsel %vm6154, %v6129, %v4367
    %v6195 = vsel %vm6154, %v6130, %v4369
    %v6196 = vsel %vm6154, %v6131, %v4371
    %v6197 = vsel %vm6154, %v6132, %v4373
    %v6198 = vsel %vm6154, %v6133, %v4375
    %v6199 = vsel %vm6154, %v6134, %v4377
    %v6200 = vsel %vm6154, %v6135, %v4379
    %v6201 = vsel %vm6154, %v6136, %v4381
    %v6202 = vsel %vm6154, %v6137, %v4383
    %v6203 = vsel %vm6154, %v6138, %v4385
    %v6204 = vsel %vm6154, %v6139, %v4387
    %v6205 = vsel %vm6154, %v6140, %v4389
    %v6206 = vsel %vm6154, %v6141, %v4391
    %v6207 = vsel %vm6154, %v6142, %v4393
    %v6208 = vsel %vm6154, %v6143, %v4395
    %v6209 = vsel %vm6154, %v6144, %v4397
    %v6210 = vsel %vm6154, %v6145, %v4399
    %v6211 = vsel %vm6154, %v6146, %v4401
    %v6212 = vsel %vm6154, %v6147, %v4403
    %v6213 = vsel %vm6154, %v6148, %v4405
    %v6214 = vsel %vm6154, %v6149, %v4407
    %v6215 = vsel %vm6154, %v6150, %v4409
    %v6216 = vsel %vm6154, %v6151, %v4411
    %v6217 = vsel %vm6154, %v6152, %v4413
    %v6218 = vsel %vm6154, %v6153, %v4415
    %vm6219 = vcmask 293888
    %v6220 = vsel %vm6219, %v6155, %v4545
    %v6221 = vsel %vm6219, %v6156, %v4547
    %v6222 = vsel %vm6219, %v6157, %v4549
    %v6223 = vsel %vm6219, %v6158, %v4551
    %v6224 = vsel %vm6219, %v6159, %v4553
    %v6225 = vsel %vm6219, %v6160, %v4555
    %v6226 = vsel %vm6219, %v6161, %v4557
    %v6227 = vsel %vm6219, %v6162, %v4559
    %v6228 = vsel %vm6219, %v6163, %v4561
    %v6229 = vsel %vm6219, %v6164, %v4563
    %v6230 = vsel %vm6219, %v6165, %v4565
    %v6231 = vsel %vm6219, %v6166, %v4567
    %v6232 = vsel %vm6219, %v6167, %v4569
    %v6233 = vsel %vm6219, %v6168, %v4571
    %v6234 = vsel %vm6219, %v6169, %v4573
    %v6235 = vsel %vm6219, %v6170, %v4575
    %v6236 = vsel %vm6219, %v6171, %v4577
    %v6237 = vsel %vm6219, %v6172, %v4579
    %v6238 = vsel %vm6219, %v6173, %v4581
    %v6239 = vsel %vm6219, %v6174, %v4583
    %v6240 = vsel %vm6219, %v6175, %v4585
    %v6241 = vsel %vm6219, %v6176, %v4587
    %v6242 = vsel %vm6219, %v6177, %v4589
    %v6243 = vsel %vm6219, %v6178, %v4591
    %v6244 = vsel %vm6219, %v6179, %v4593
    %v6245 = vsel %vm6219, %v6180, %v4595
    %v6246 = vsel %vm6219, %v6181, %v4597
    %v6247 = vsel %vm6219, %v6182, %v4599
    %v6248 = vsel %vm6219, %v6183, %v4601
    %v6249 = vsel %vm6219, %v6184, %v4603
    %v6250 = vsel %vm6219, %v6185, %v4605
    %v6251 = vsel %vm6219, %v6186, %v4607
    %v6252 = vsel %vm6219, %v6187, %v4609
    %v6253 = vsel %vm6219, %v6188, %v4611
    %v6254 = vsel %vm6219, %v6189, %v4613
    %v6255 = vsel %vm6219, %v6190, %v4615
    %v6256 = vsel %vm6219, %v6191, %v4617
    %v6257 = vsel %vm6219, %v6192, %v4619
    %v6258 = vsel %vm6219, %v6193, %v4621
    %v6259 = vsel %vm6219, %v6194, %v4623
    %v6260 = vsel %vm6219, %v6195, %v4625
    %v6261 = vsel %vm6219, %v6196, %v4627
    %v6262 = vsel %vm6219, %v6197, %v4629
    %v6263 = vsel %vm6219, %v6198, %v4631
    %v6264 = vsel %vm6219, %v6199, %v4633
    %v6265 = vsel %vm6219, %v6200, %v4635
    %v6266 = vsel %vm6219, %v6201, %v4637
    %v6267 = vsel %vm6219, %v6202, %v4639
    %v6268 = vsel %vm6219, %v6203, %v4641
    %v6269 = vsel %vm6219, %v6204, %v4643
    %v6270 = vsel %vm6219, %v6205, %v4645
    %v6271 = vsel %vm6219, %v6206, %v4647
    %v6272 = vsel %vm6219, %v6207, %v4649
    %v6273 = vsel %vm6219, %v6208, %v4651
    %v6274 = vsel %vm6219, %v6209, %v4653
    %v6275 = vsel %vm6219, %v6210, %v4655
    %v6276 = vsel %vm6219, %v6211, %v4657
    %v6277 = vsel %vm6219, %v6212, %v4659
    %v6278 = vsel %vm6219, %v6213, %v4661
    %v6279 = vsel %vm6219, %v6214, %v4663
    %v6280 = vsel %vm6219, %v6215, %v4665
    %v6281 = vsel %vm6219, %v6216, %v4667
    %v6282 = vsel %vm6219, %v6217, %v4669
    %v6283 = vsel %vm6219, %v6218, %v4671
    %vm6284 = vcmask 318464
    %v6285 = vsel %vm6284, %v6220, %v4801
    %v6286 = vsel %vm6284, %v6221, %v4803
    %v6287 = vsel %vm6284, %v6222, %v4805
    %v6288 = vsel %vm6284, %v6223, %v4807
    %v6289 = vsel %vm6284, %v6224, %v4809
    %v6290 = vsel %vm6284, %v6225, %v4811
    %v6291 = vsel %vm6284, %v6226, %v4813
    %v6292 = vsel %vm6284, %v6227, %v4815
    %v6293 = vsel %vm6284, %v6228, %v4817
    %v6294 = vsel %vm6284, %v6229, %v4819
    %v6295 = vsel %vm6284, %v6230, %v4821
    %v6296 = vsel %vm6284, %v6231, %v4823
    %v6297 = vsel %vm6284, %v6232, %v4825
    %v6298 = vsel %vm6284, %v6233, %v4827
    %v6299 = vsel %vm6284, %v6234, %v4829
    %v6300 = vsel %vm6284, %v6235, %v4831
    %v6301 = vsel %vm6284, %v6236, %v4833
    %v6302 = vsel %vm6284, %v6237, %v4835
    %v6303 = vsel %vm6284, %v6238, %v4837
    %v6304 = vsel %vm6284, %v6239, %v4839
    %v6305 = vsel %vm6284, %v6240, %v4841
    %v6306 = vsel %vm6284, %v6241, %v4843
    %v6307 = vsel %vm6284, %v6242, %v4845
    %v6308 = vsel %vm6284, %v6243, %v4847
    %v6309 = vsel %vm6284, %v6244, %v4849
    %v6310 = vsel %vm6284, %v6245, %v4851
    %v6311 = vsel %vm6284, %v6246, %v4853
    %v6312 = vsel %vm6284, %v6247, %v4855
    %v6313 = vsel %vm6284, %v6248, %v4857
    %v6314 = vsel %vm6284, %v6249, %v4859
    %v6315 = vsel %vm6284, %v6250, %v4861
    %v6316 = vsel %vm6284, %v6251, %v4863
    %v6317 = vsel %vm6284, %v6252, %v4865
    %v6318 = vsel %vm6284, %v6253, %v4867
    %v6319 = vsel %vm6284, %v6254, %v4869
    %v6320 = vsel %vm6284, %v6255, %v4871
    %v6321 = vsel %vm6284, %v6256, %v4873
    %v6322 = vsel %vm6284, %v6257, %v4875
    %v6323 = vsel %vm6284, %v6258, %v4877
    %v6324 = vsel %vm6284, %v6259, %v4879
    %v6325 = vsel %vm6284, %v6260, %v4881
    %v6326 = vsel %vm6284, %v6261, %v4883
    %v6327 = vsel %vm6284, %v6262, %v4885
    %v6328 = vsel %vm6284, %v6263, %v4887
    %v6329 = vsel %vm6284, %v6264, %v4889
    %v6330 = vsel %vm6284, %v6265, %v4891
    %v6331 = vsel %vm6284, %v6266, %v4893
    %v6332 = vsel %vm6284, %v6267, %v4895
    %v6333 = vsel %vm6284, %v6268, %v4897
    %v6334 = vsel %vm6284, %v6269, %v4899
    %v6335 = vsel %vm6284, %v6270, %v4901
    %v6336 = vsel %vm6284, %v6271, %v4903
    %v6337 = vsel %vm6284, %v6272, %v4905
    %v6338 = vsel %vm6284, %v6273, %v4907
    %v6339 = vsel %vm6284, %v6274, %v4909
    %v6340 = vsel %vm6284, %v6275, %v4911
    %v6341 = vsel %vm6284, %v6276, %v4913
    %v6342 = vsel %vm6284, %v6277, %v4915
    %v6343 = vsel %vm6284, %v6278, %v4917
    %v6344 = vsel %vm6284, %v6279, %v4919
    %v6345 = vsel %vm6284, %v6280, %v4921
    %v6346 = vsel %vm6284, %v6281, %v4923
    %v6347 = vsel %vm6284, %v6282, %v4925
    %v6348 = vsel %vm6284, %v6283, %v4927
    %vm6349 = vcmask 343040
    %v6350 = vsel %vm6349, %v6285, %v5057
    %v6351 = vsel %vm6349, %v6286, %v5059
    %v6352 = vsel %vm6349, %v6287, %v5061
    %v6353 = vsel %vm6349, %v6288, %v5063
    %v6354 = vsel %vm6349, %v6289, %v5065
    %v6355 = vsel %vm6349, %v6290, %v5067
    %v6356 = vsel %vm6349, %v6291, %v5069
    %v6357 = vsel %vm6349, %v6292, %v5071
    %v6358 = vsel %vm6349, %v6293, %v5073
    %v6359 = vsel %vm6349, %v6294, %v5075
    %v6360 = vsel %vm6349, %v6295, %v5077
    %v6361 = vsel %vm6349, %v6296, %v5079
    %v6362 = vsel %vm6349, %v6297, %v5081
    %v6363 = vsel %vm6349, %v6298, %v5083
    %v6364 = vsel %vm6349, %v6299, %v5085
    %v6365 = vsel %vm6349, %v6300, %v5087
    %v6366 = vsel %vm6349, %v6301, %v5089
    %v6367 = vsel %vm6349, %v6302, %v5091
    %v6368 = vsel %vm6349, %v6303, %v5093
    %v6369 = vsel %vm6349, %v6304, %v5095
    %v6370 = vsel %vm6349, %v6305, %v5097
    %v6371 = vsel %vm6349, %v6306, %v5099
    %v6372 = vsel %vm6349, %v6307, %v5101
    %v6373 = vsel %vm6349, %v6308, %v5103
    %v6374 = vsel %vm6349, %v6309, %v5105
    %v6375 = vsel %vm6349, %v6310, %v5107
    %v6376 = vsel %vm6349, %v6311, %v5109
    %v6377 = vsel %vm6349, %v6312, %v5111
    %v6378 = vsel %vm6349, %v6313, %v5113
    %v6379 = vsel %vm6349, %v6314, %v5115
    %v6380 = vsel %vm6349, %v6315, %v5117
    %v6381 = vsel %vm6349, %v6316, %v5119
    %v6382 = vsel %vm6349, %v6317, %v5121
    %v6383 = vsel %vm6349, %v6318, %v5123
    %v6384 = vsel %vm6349, %v6319, %v5125
    %v6385 = vsel %vm6349, %v6320, %v5127
    %v6386 = vsel %vm6349, %v6321, %v5129
    %v6387 = vsel %vm6349, %v6322, %v5131
    %v6388 = vsel %vm6349, %v6323, %v5133
    %v6389 = vsel %vm6349, %v6324, %v5135
    %v6390 = vsel %vm6349, %v6325, %v5137
    %v6391 = vsel %vm6349, %v6326, %v5139
    %v6392 = vsel %vm6349, %v6327, %v5141
    %v6393 = vsel %vm6349, %v6328, %v5143
    %v6394 = vsel %vm6349, %v6329, %v5145
    %v6395 = vsel %vm6349, %v6330, %v5147
    %v6396 = vsel %vm6349, %v6331, %v5149
    %v6397 = vsel %vm6349, %v6332, %v5151
    %v6398 = vsel %vm6349, %v6333, %v5153
    %v6399 = vsel %vm6349, %v6334, %v5155
    %v6400 = vsel %vm6349, %v6335, %v5157
    %v6401 = vsel %vm6349, %v6336, %v5159
    %v6402 = vsel %vm6349, %v6337, %v5161
    %v6403 = vsel %vm6349, %v6338, %v5163
    %v6404 = vsel %vm6349, %v6339, %v5165
    %v6405 = vsel %vm6349, %v6340, %v5167
    %v6406 = vsel %vm6349, %v6341, %v5169
    %v6407 = vsel %vm6349, %v6342, %v5171
    %v6408 = vsel %vm6349, %v6343, %v5173
    %v6409 = vsel %vm6349, %v6344, %v5175
    %v6410 = vsel %vm6349, %v6345, %v5177
    %v6411 = vsel %vm6349, %v6346, %v5179
    %v6412 = vsel %vm6349, %v6347, %v5181
    %v6413 = vsel %vm6349, %v6348, %v5183
    %vm6414 = vcmask 367616
    %v6415 = vsel %vm6414, %v6350, %v5313
    %v6416 = vsel %vm6414, %v6351, %v5315
    %v6417 = vsel %vm6414, %v6352, %v5317
    %v6418 = vsel %vm6414, %v6353, %v5319
    %v6419 = vsel %vm6414, %v6354, %v5321
    %v6420 = vsel %vm6414, %v6355, %v5323
    %v6421 = vsel %vm6414, %v6356, %v5325
    %v6422 = vsel %vm6414, %v6357, %v5327
    %v6423 = vsel %vm6414, %v6358, %v5329
    %v6424 = vsel %vm6414, %v6359, %v5331
    %v6425 = vsel %vm6414, %v6360, %v5333
    %v6426 = vsel %vm6414, %v6361, %v5335
    %v6427 = vsel %vm6414, %v6362, %v5337
    %v6428 = vsel %vm6414, %v6363, %v5339
    %v6429 = vsel %vm6414, %v6364, %v5341
    %v6430 = vsel %vm6414, %v6365, %v5343
    %v6431 = vsel %vm6414, %v6366, %v5345
    %v6432 = vsel %vm6414, %v6367, %v5347
    %v6433 = vsel %vm6414, %v6368, %v5349
    %v6434 = vsel %vm6414, %v6369, %v5351
    %v6435 = vsel %vm6414, %v6370, %v5353
    %v6436 = vsel %vm6414, %v6371, %v5355
    %v6437 = vsel %vm6414, %v6372, %v5357
    %v6438 = vsel %vm6414, %v6373, %v5359
    %v6439 = vsel %vm6414, %v6374, %v5361
    %v6440 = vsel %vm6414, %v6375, %v5363
    %v6441 = vsel %vm6414, %v6376, %v5365
    %v6442 = vsel %vm6414, %v6377, %v5367
    %v6443 = vsel %vm6414, %v6378, %v5369
    %v6444 = vsel %vm6414, %v6379, %v5371
    %v6445 = vsel %vm6414, %v6380, %v5373
    %v6446 = vsel %vm6414, %v6381, %v5375
    %v6447 = vsel %vm6414, %v6382, %v5377
    %v6448 = vsel %vm6414, %v6383, %v5379
    %v6449 = vsel %vm6414, %v6384, %v5381
    %v6450 = vsel %vm6414, %v6385, %v5383
    %v6451 = vsel %vm6414, %v6386, %v5385
    %v6452 = vsel %vm6414, %v6387, %v5387
    %v6453 = vsel %vm6414, %v6388, %v5389
    %v6454 = vsel %vm6414, %v6389, %v5391
    %v6455 = vsel %vm6414, %v6390, %v5393
    %v6456 = vsel %vm6414, %v6391, %v5395
    %v6457 = vsel %vm6414, %v6392, %v5397
    %v6458 = vsel %vm6414, %v6393, %v5399
    %v6459 = vsel %vm6414, %v6394, %v5401
    %v6460 = vsel %vm6414, %v6395, %v5403
    %v6461 = vsel %vm6414, %v6396, %v5405
    %v6462 = vsel %vm6414, %v6397, %v5407
    %v6463 = vsel %vm6414, %v6398, %v5409
    %v6464 = vsel %vm6414, %v6399, %v5411
    %v6465 = vsel %vm6414, %v6400, %v5413
    %v6466 = vsel %vm6414, %v6401, %v5415
    %v6467 = vsel %vm6414, %v6402, %v5417
    %v6468 = vsel %vm6414, %v6403, %v5419
    %v6469 = vsel %vm6414, %v6404, %v5421
    %v6470 = vsel %vm6414, %v6405, %v5423
    %v6471 = vsel %vm6414, %v6406, %v5425
    %v6472 = vsel %vm6414, %v6407, %v5427
    %v6473 = vsel %vm6414, %v6408, %v5429
    %v6474 = vsel %vm6414, %v6409, %v5431
    %v6475 = vsel %vm6414, %v6410, %v5433
    %v6476 = vsel %vm6414, %v6411, %v5435
    %v6477 = vsel %vm6414, %v6412, %v5437
    %v6478 = vsel %vm6414, %v6413, %v5439
    %6543 = vrot.lane.b32.xlu0 %v1151, 3
    %v6544 = vpop.permute.xlu0 %6543
    %6545 = vrot.lane.b32.xlu0 %v1152, 3
    %v6546 = vpop.permute.xlu0 %6545
    %6547 = vrot.lane.b32.xlu0 %v1153, 3
    %v6548 = vpop.permute.xlu0 %6547
    %6549 = vrot.lane.b32.xlu0 %v1154, 3
    %v6550 = vpop.permute.xlu0 %6549
    %6551 = vrot.lane.b32.xlu0 %v1155, 3
    %v6552 = vpop.permute.xlu0 %6551
    %6553 = vrot.lane.b32.xlu0 %v1156, 3
    %v6554 = vpop.permute.xlu0 %6553
    %6555 = vrot.lane.b32.xlu0 %v1157, 3
    %v6556 = vpop.permute.xlu0 %6555
    %6557 = vrot.lane.b32.xlu0 %v1158, 3
    %v6558 = vpop.permute.xlu0 %6557
    %6559 = vrot.lane.b32.xlu0 %v1159, 3
    %v6560 = vpop.permute.xlu0 %6559
    %6561 = vrot.lane.b32.xlu0 %v1160, 3
    %v6562 = vpop.permute.xlu0 %6561
    %6563 = vrot.lane.b32.xlu0 %v1161, 3
    %v6564 = vpop.permute.xlu0 %6563
    %6565 = vrot.lane.b32.xlu0 %v1162, 3
    %v6566 = vpop.permute.xlu0 %6565
    %6567 = vrot.lane.b32.xlu0 %v1163, 3
    %v6568 = vpop.permute.xlu0 %6567
    %6569 = vrot.lane.b32.xlu0 %v1164, 3
    %v6570 = vpop.permute.xlu0 %6569
    %6571 = vrot.lane.b32.xlu0 %v1165, 3
    %v6572 = vpop.permute.xlu0 %6571
    %6573 = vrot.lane.b32.xlu0 %v1166, 3
    %v6574 = vpop.permute.xlu0 %6573
    %6575 = vrot.lane.b32.xlu0 %v1167, 3
    %v6576 = vpop.permute.xlu0 %6575
    %6577 = vrot.lane.b32.xlu0 %v1168, 3
    %v6578 = vpop.permute.xlu0 %6577
    %6579 = vrot.lane.b32.xlu0 %v1169, 3
    %v6580 = vpop.permute.xlu0 %6579
    %6581 = vrot.lane.b32.xlu0 %v1170, 3
    %v6582 = vpop.permute.xlu0 %6581
    %6583 = vrot.lane.b32.xlu0 %v1171, 3
    %v6584 = vpop.permute.xlu0 %6583
    %6585 = vrot.lane.b32.xlu0 %v1172, 3
    %v6586 = vpop.permute.xlu0 %6585
    %6587 = vrot.lane.b32.xlu0 %v1173, 3
    %v6588 = vpop.permute.xlu0 %6587
    %6589 = vrot.lane.b32.xlu0 %v1174, 3
    %v6590 = vpop.permute.xlu0 %6589
    %6591 = vrot.lane.b32.xlu0 %v1175, 3
    %v6592 = vpop.permute.xlu0 %6591
    %6593 = vrot.lane.b32.xlu0 %v1176, 3
    %v6594 = vpop.permute.xlu0 %6593
    %6595 = vrot.lane.b32.xlu0 %v1177, 3
    %v6596 = vpop.permute.xlu0 %6595
    %6597 = vrot.lane.b32.xlu0 %v1178, 3
    %v6598 = vpop.permute.xlu0 %6597
    %6599 = vrot.lane.b32.xlu0 %v1179, 3
    %v6600 = vpop.permute.xlu0 %6599
    %6601 = vrot.lane.b32.xlu0 %v1180, 3
    %v6602 = vpop.permute.xlu0 %6601
    %6603 = vrot.lane.b32.xlu0 %v1181, 3
    %v6604 = vpop.permute.xlu0 %6603
    %6605 = vrot.lane.b32.xlu0 %v1182, 3
    %v6606 = vpop.permute.xlu0 %6605
    %6607 = vrot.lane.b32.xlu0 %v1183, 3
    %v6608 = vpop.permute.xlu0 %6607
    %6609 = vrot.lane.b32.xlu0 %v1184, 3
    %v6610 = vpop.permute.xlu0 %6609
    %6611 = vrot.lane.b32.xlu0 %v1185, 3
    %v6612 = vpop.permute.xlu0 %6611
    %6613 = vrot.lane.b32.xlu0 %v1186, 3
    %v6614 = vpop.permute.xlu0 %6613
    %6615 = vrot.lane.b32.xlu0 %v1187, 3
    %v6616 = vpop.permute.xlu0 %6615
    %6617 = vrot.lane.b32.xlu0 %v1188, 3
    %v6618 = vpop.permute.xlu0 %6617
    %6619 = vrot.lane.b32.xlu0 %v1189, 3
    %v6620 = vpop.permute.xlu0 %6619
    %6621 = vrot.lane.b32.xlu0 %v1190, 3
    %v6622 = vpop.permute.xlu0 %6621
    %6623 = vrot.lane.b32.xlu0 %v1191, 3
    %v6624 = vpop.permute.xlu0 %6623
    %6625 = vrot.lane.b32.xlu0 %v1192, 3
    %v6626 = vpop.permute.xlu0 %6625
    %6627 = vrot.lane.b32.xlu0 %v1193, 3
    %v6628 = vpop.permute.xlu0 %6627
    %6629 = vrot.lane.b32.xlu0 %v1194, 3
    %v6630 = vpop.permute.xlu0 %6629
    %6631 = vrot.lane.b32.xlu0 %v1195, 3
    %v6632 = vpop.permute.xlu0 %6631
    %6633 = vrot.lane.b32.xlu0 %v1196, 3
    %v6634 = vpop.permute.xlu0 %6633
    %6635 = vrot.lane.b32.xlu0 %v1197, 3
    %v6636 = vpop.permute.xlu0 %6635
    %6637 = vrot.lane.b32.xlu0 %v1198, 3
    %v6638 = vpop.permute.xlu0 %6637
    %6639 = vrot.lane.b32.xlu0 %v1199, 3
    %v6640 = vpop.permute.xlu0 %6639
    %6641 = vrot.lane.b32.xlu0 %v1200, 3
    %v6642 = vpop.permute.xlu0 %6641
    %6643 = vrot.lane.b32.xlu0 %v1201, 3
    %v6644 = vpop.permute.xlu0 %6643
    %6645 = vrot.lane.b32.xlu0 %v1202, 3
    %v6646 = vpop.permute.xlu0 %6645
    %6647 = vrot.lane.b32.xlu0 %v1203, 3
    %v6648 = vpop.permute.xlu0 %6647
    %6649 = vrot.lane.b32.xlu0 %v1204, 3
    %v6650 = vpop.permute.xlu0 %6649
    %6651 = vrot.lane.b32.xlu0 %v1205, 3
    %v6652 = vpop.permute.xlu0 %6651
    %6653 = vrot.lane.b32.xlu0 %v1206, 3
    %v6654 = vpop.permute.xlu0 %6653
    %6655 = vrot.lane.b32.xlu0 %v1207, 3
    %v6656 = vpop.permute.xlu0 %6655
    %6657 = vrot.lane.b32.xlu0 %v1208, 3
    %v6658 = vpop.permute.xlu0 %6657
    %6659 = vrot.lane.b32.xlu0 %v1209, 3
    %v6660 = vpop.permute.xlu0 %6659
    %6661 = vrot.lane.b32.xlu0 %v1210, 3
    %v6662 = vpop.permute.xlu0 %6661
    %6663 = vrot.lane.b32.xlu0 %v1211, 3
    %v6664 = vpop.permute.xlu0 %6663
    %6665 = vrot.lane.b32.xlu0 %v1212, 3
    %v6666 = vpop.permute.xlu0 %6665
    %6667 = vrot.lane.b32.xlu0 %v1213, 3
    %v6668 = vpop.permute.xlu0 %6667
    %6669 = vrot.lane.b32.xlu0 %v1214, 3
    %v6670 = vpop.permute.xlu0 %6669
    %6799 = vrot.lane.b32.xlu0 %v1215, 6
    %v6800 = vpop.permute.xlu0 %6799
    %6801 = vrot.lane.b32.xlu0 %v1216, 6
    %v6802 = vpop.permute.xlu0 %6801
    %6803 = vrot.lane.b32.xlu0 %v1217, 6
    %v6804 = vpop.permute.xlu0 %6803
    %6805 = vrot.lane.b32.xlu0 %v1218, 6
    %v6806 = vpop.permute.xlu0 %6805
    %6807 = vrot.lane.b32.xlu0 %v1219, 6
    %v6808 = vpop.permute.xlu0 %6807
    %6809 = vrot.lane.b32.xlu0 %v1220, 6
    %v6810 = vpop.permute.xlu0 %6809
    %6811 = vrot.lane.b32.xlu0 %v1221, 6
    %v6812 = vpop.permute.xlu0 %6811
    %6813 = vrot.lane.b32.xlu0 %v1222, 6
    %v6814 = vpop.permute.xlu0 %6813
    %6815 = vrot.lane.b32.xlu0 %v1223, 6
    %v6816 = vpop.permute.xlu0 %6815
    %6817 = vrot.lane.b32.xlu0 %v1224, 6
    %v6818 = vpop.permute.xlu0 %6817
    %6819 = vrot.lane.b32.xlu0 %v1225, 6
    %v6820 = vpop.permute.xlu0 %6819
    %6821 = vrot.lane.b32.xlu0 %v1226, 6
    %v6822 = vpop.permute.xlu0 %6821
    %6823 = vrot.lane.b32.xlu0 %v1227, 6
    %v6824 = vpop.permute.xlu0 %6823
    %6825 = vrot.lane.b32.xlu0 %v1228, 6
    %v6826 = vpop.permute.xlu0 %6825
    %6827 = vrot.lane.b32.xlu0 %v1229, 6
    %v6828 = vpop.permute.xlu0 %6827
    %6829 = vrot.lane.b32.xlu0 %v1230, 6
    %v6830 = vpop.permute.xlu0 %6829
    %6831 = vrot.lane.b32.xlu0 %v1231, 6
    %v6832 = vpop.permute.xlu0 %6831
    %6833 = vrot.lane.b32.xlu0 %v1232, 6
    %v6834 = vpop.permute.xlu0 %6833
    %6835 = vrot.lane.b32.xlu0 %v1233, 6
    %v6836 = vpop.permute.xlu0 %6835
    %6837 = vrot.lane.b32.xlu0 %v1234, 6
    %v6838 = vpop.permute.xlu0 %6837
    %6839 = vrot.lane.b32.xlu0 %v1235, 6
    %v6840 = vpop.permute.xlu0 %6839
    %6841 = vrot.lane.b32.xlu0 %v1236, 6
    %v6842 = vpop.permute.xlu0 %6841
    %6843 = vrot.lane.b32.xlu0 %v1237, 6
    %v6844 = vpop.permute.xlu0 %6843
    %6845 = vrot.lane.b32.xlu0 %v1238, 6
    %v6846 = vpop.permute.xlu0 %6845
    %6847 = vrot.lane.b32.xlu0 %v1239, 6
    %v6848 = vpop.permute.xlu0 %6847
    %6849 = vrot.lane.b32.xlu0 %v1240, 6
    %v6850 = vpop.permute.xlu0 %6849
    %6851 = vrot.lane.b32.xlu0 %v1241, 6
    %v6852 = vpop.permute.xlu0 %6851
    %6853 = vrot.lane.b32.xlu0 %v1242, 6
    %v6854 = vpop.permute.xlu0 %6853
    %6855 = vrot.lane.b32.xlu0 %v1243, 6
    %v6856 = vpop.permute.xlu0 %6855
    %6857 = vrot.lane.b32.xlu0 %v1244, 6
    %v6858 = vpop.permute.xlu0 %6857
    %6859 = vrot.lane.b32.xlu0 %v1245, 6
    %v6860 = vpop.permute.xlu0 %6859
    %6861 = vrot.lane.b32.xlu0 %v1246, 6
    %v6862 = vpop.permute.xlu0 %6861
    %6863 = vrot.lane.b32.xlu0 %v1247, 6
    %v6864 = vpop.permute.xlu0 %6863
    %6865 = vrot.lane.b32.xlu0 %v1248, 6
    %v6866 = vpop.permute.xlu0 %6865
    %6867 = vrot.lane.b32.xlu0 %v1249, 6
    %v6868 = vpop.permute.xlu0 %6867
    %6869 = vrot.lane.b32.xlu0 %v1250, 6
    %v6870 = vpop.permute.xlu0 %6869
    %6871 = vrot.lane.b32.xlu0 %v1251, 6
    %v6872 = vpop.permute.xlu0 %6871
    %6873 = vrot.lane.b32.xlu0 %v1252, 6
    %v6874 = vpop.permute.xlu0 %6873
    %6875 = vrot.lane.b32.xlu0 %v1253, 6
    %v6876 = vpop.permute.xlu0 %6875
    %6877 = vrot.lane.b32.xlu0 %v1254, 6
    %v6878 = vpop.permute.xlu0 %6877
    %6879 = vrot.lane.b32.xlu0 %v1255, 6
    %v6880 = vpop.permute.xlu0 %6879
    %6881 = vrot.lane.b32.xlu0 %v1256, 6
    %v6882 = vpop.permute.xlu0 %6881
    %6883 = vrot.lane.b32.xlu0 %v1257, 6
    %v6884 = vpop.permute.xlu0 %6883
    %6885 = vrot.lane.b32.xlu0 %v1258, 6
    %v6886 = vpop.permute.xlu0 %6885
    %6887 = vrot.lane.b32.xlu0 %v1259, 6
    %v6888 = vpop.permute.xlu0 %6887
    %6889 = vrot.lane.b32.xlu0 %v1260, 6
    %v6890 = vpop.permute.xlu0 %6889
    %6891 = vrot.lane.b32.xlu0 %v1261, 6
    %v6892 = vpop.permute.xlu0 %6891
    %6893 = vrot.lane.b32.xlu0 %v1262, 6
    %v6894 = vpop.permute.xlu0 %6893
    %6895 = vrot.lane.b32.xlu0 %v1263, 6
    %v6896 = vpop.permute.xlu0 %6895
    %6897 = vrot.lane.b32.xlu0 %v1264, 6
    %v6898 = vpop.permute.xlu0 %6897
    %6899 = vrot.lane.b32.xlu0 %v1265, 6
    %v6900 = vpop.permute.xlu0 %6899
    %6901 = vrot.lane.b32.xlu0 %v1266, 6
    %v6902 = vpop.permute.xlu0 %6901
    %6903 = vrot.lane.b32.xlu0 %v1267, 6
    %v6904 = vpop.permute.xlu0 %6903
    %6905 = vrot.lane.b32.xlu0 %v1268, 6
    %v6906 = vpop.permute.xlu0 %6905
    %6907 = vrot.lane.b32.xlu0 %v1269, 6
    %v6908 = vpop.permute.xlu0 %6907
    %6909 = vrot.lane.b32.xlu0 %v1270, 6
    %v6910 = vpop.permute.xlu0 %6909
    %6911 = vrot.lane.b32.xlu0 %v1271, 6
    %v6912 = vpop.permute.xlu0 %6911
    %6913 = vrot.lane.b32.xlu0 %v1272, 6
    %v6914 = vpop.permute.xlu0 %6913
    %6915 = vrot.lane.b32.xlu0 %v1273, 6
    %v6916 = vpop.permute.xlu0 %6915
    %6917 = vrot.lane.b32.xlu0 %v1274, 6
    %v6918 = vpop.permute.xlu0 %6917
    %6919 = vrot.lane.b32.xlu0 %v1275, 6
    %v6920 = vpop.permute.xlu0 %6919
    %6921 = vrot.lane.b32.xlu0 %v1276, 6
    %v6922 = vpop.permute.xlu0 %6921
    %6923 = vrot.lane.b32.xlu0 %v1277, 6
    %v6924 = vpop.permute.xlu0 %6923
    %6925 = vrot.lane.b32.xlu0 %v1278, 6
    %v6926 = vpop.permute.xlu0 %6925
    %7055 = vrot.lane.b32.xlu0 %v1279, 9
    %v7056 = vpop.permute.xlu0 %7055
    %7057 = vrot.lane.b32.xlu0 %v1280, 9
    %v7058 = vpop.permute.xlu0 %7057
    %7059 = vrot.lane.b32.xlu0 %v1281, 9
    %v7060 = vpop.permute.xlu0 %7059
    %7061 = vrot.lane.b32.xlu0 %v1282, 9
    %v7062 = vpop.permute.xlu0 %7061
    %7063 = vrot.lane.b32.xlu0 %v1283, 9
    %v7064 = vpop.permute.xlu0 %7063
    %7065 = vrot.lane.b32.xlu0 %v1284, 9
    %v7066 = vpop.permute.xlu0 %7065
    %7067 = vrot.lane.b32.xlu0 %v1285, 9
    %v7068 = vpop.permute.xlu0 %7067
    %7069 = vrot.lane.b32.xlu0 %v1286, 9
    %v7070 = vpop.permute.xlu0 %7069
    %7071 = vrot.lane.b32.xlu0 %v1287, 9
    %v7072 = vpop.permute.xlu0 %7071
    %7073 = vrot.lane.b32.xlu0 %v1288, 9
    %v7074 = vpop.permute.xlu0 %7073
    %7075 = vrot.lane.b32.xlu0 %v1289, 9
    %v7076 = vpop.permute.xlu0 %7075
    %7077 = vrot.lane.b32.xlu0 %v1290, 9
    %v7078 = vpop.permute.xlu0 %7077
    %7079 = vrot.lane.b32.xlu0 %v1291, 9
    %v7080 = vpop.permute.xlu0 %7079
    %7081 = vrot.lane.b32.xlu0 %v1292, 9
    %v7082 = vpop.permute.xlu0 %7081
    %7083 = vrot.lane.b32.xlu0 %v1293, 9
    %v7084 = vpop.permute.xlu0 %7083
    %7085 = vrot.lane.b32.xlu0 %v1294, 9
    %v7086 = vpop.permute.xlu0 %7085
    %7087 = vrot.lane.b32.xlu0 %v1295, 9
    %v7088 = vpop.permute.xlu0 %7087
    %7089 = vrot.lane.b32.xlu0 %v1296, 9
    %v7090 = vpop.permute.xlu0 %7089
    %7091 = vrot.lane.b32.xlu0 %v1297, 9
    %v7092 = vpop.permute.xlu0 %7091
    %7093 = vrot.lane.b32.xlu0 %v1298, 9
    %v7094 = vpop.permute.xlu0 %7093
    %7095 = vrot.lane.b32.xlu0 %v1299, 9
    %v7096 = vpop.permute.xlu0 %7095
    %7097 = vrot.lane.b32.xlu0 %v1300, 9
    %v7098 = vpop.permute.xlu0 %7097
    %7099 = vrot.lane.b32.xlu0 %v1301, 9
    %v7100 = vpop.permute.xlu0 %7099
    %7101 = vrot.lane.b32.xlu0 %v1302, 9
    %v7102 = vpop.permute.xlu0 %7101
    %7103 = vrot.lane.b32.xlu0 %v1303, 9
    %v7104 = vpop.permute.xlu0 %7103
    %7105 = vrot.lane.b32.xlu0 %v1304, 9
    %v7106 = vpop.permute.xlu0 %7105
    %7107 = vrot.lane.b32.xlu0 %v1305, 9
    %v7108 = vpop.permute.xlu0 %7107
    %7109 = vrot.lane.b32.xlu0 %v1306, 9
    %v7110 = vpop.permute.xlu0 %7109
    %7111 = vrot.lane.b32.xlu0 %v1307, 9
    %v7112 = vpop.permute.xlu0 %7111
    %7113 = vrot.lane.b32.xlu0 %v1308, 9
    %v7114 = vpop.permute.xlu0 %7113
    %7115 = vrot.lane.b32.xlu0 %v1309, 9
    %v7116 = vpop.permute.xlu0 %7115
    %7117 = vrot.lane.b32.xlu0 %v1310, 9
    %v7118 = vpop.permute.xlu0 %7117
    %7119 = vrot.lane.b32.xlu0 %v1311, 9
    %v7120 = vpop.permute.xlu0 %7119
    %7121 = vrot.lane.b32.xlu0 %v1312, 9
    %v7122 = vpop.permute.xlu0 %7121
    %7123 = vrot.lane.b32.xlu0 %v1313, 9
    %v7124 = vpop.permute.xlu0 %7123
    %7125 = vrot.lane.b32.xlu0 %v1314, 9
    %v7126 = vpop.permute.xlu0 %7125
    %7127 = vrot.lane.b32.xlu0 %v1315, 9
    %v7128 = vpop.permute.xlu0 %7127
    %7129 = vrot.lane.b32.xlu0 %v1316, 9
    %v7130 = vpop.permute.xlu0 %7129
    %7131 = vrot.lane.b32.xlu0 %v1317, 9
    %v7132 = vpop.permute.xlu0 %7131
    %7133 = vrot.lane.b32.xlu0 %v1318, 9
    %v7134 = vpop.permute.xlu0 %7133
    %7135 = vrot.lane.b32.xlu0 %v1319, 9
    %v7136 = vpop.permute.xlu0 %7135
    %7137 = vrot.lane.b32.xlu0 %v1320, 9
    %v7138 = vpop.permute.xlu0 %7137
    %7139 = vrot.lane.b32.xlu0 %v1321, 9
    %v7140 = vpop.permute.xlu0 %7139
    %7141 = vrot.lane.b32.xlu0 %v1322, 9
    %v7142 = vpop.permute.xlu0 %7141
    %7143 = vrot.lane.b32.xlu0 %v1323, 9
    %v7144 = vpop.permute.xlu0 %7143
    %7145 = vrot.lane.b32.xlu0 %v1324, 9
    %v7146 = vpop.permute.xlu0 %7145
    %7147 = vrot.lane.b32.xlu0 %v1325, 9
    %v7148 = vpop.permute.xlu0 %7147
    %7149 = vrot.lane.b32.xlu0 %v1326, 9
    %v7150 = vpop.permute.xlu0 %7149
    %7151 = vrot.lane.b32.xlu0 %v1327, 9
    %v7152 = vpop.permute.xlu0 %7151
    %7153 = vrot.lane.b32.xlu0 %v1328, 9
    %v7154 = vpop.permute.xlu0 %7153
    %7155 = vrot.lane.b32.xlu0 %v1329, 9
    %v7156 = vpop.permute.xlu0 %7155
    %7157 = vrot.lane.b32.xlu0 %v1330, 9
    %v7158 = vpop.permute.xlu0 %7157
    %7159 = vrot.lane.b32.xlu0 %v1331, 9
    %v7160 = vpop.permute.xlu0 %7159
    %7161 = vrot.lane.b32.xlu0 %v1332, 9
    %v7162 = vpop.permute.xlu0 %7161
    %7163 = vrot.lane.b32.xlu0 %v1333, 9
    %v7164 = vpop.permute.xlu0 %7163
    %7165 = vrot.lane.b32.xlu0 %v1334, 9
    %v7166 = vpop.permute.xlu0 %7165
    %7167 = vrot.lane.b32.xlu0 %v1335, 9
    %v7168 = vpop.permute.xlu0 %7167
    %7169 = vrot.lane.b32.xlu0 %v1336, 9
    %v7170 = vpop.permute.xlu0 %7169
    %7171 = vrot.lane.b32.xlu0 %v1337, 9
    %v7172 = vpop.permute.xlu0 %7171
    %7173 = vrot.lane.b32.xlu0 %v1338, 9
    %v7174 = vpop.permute.xlu0 %7173
    %7175 = vrot.lane.b32.xlu0 %v1339, 9
    %v7176 = vpop.permute.xlu0 %7175
    %7177 = vrot.lane.b32.xlu0 %v1340, 9
    %v7178 = vpop.permute.xlu0 %7177
    %7179 = vrot.lane.b32.xlu0 %v1341, 9
    %v7180 = vpop.permute.xlu0 %7179
    %7181 = vrot.lane.b32.xlu0 %v1342, 9
    %v7182 = vpop.permute.xlu0 %7181
    %7311 = vrot.lane.b32.xlu0 %v1344, 12
    %v7312 = vpop.permute.xlu0 %7311
    %7313 = vrot.lane.b32.xlu0 %v1345, 12
    %v7314 = vpop.permute.xlu0 %7313
    %7315 = vrot.lane.b32.xlu0 %v1346, 12
    %v7316 = vpop.permute.xlu0 %7315
    %7317 = vrot.lane.b32.xlu0 %v1347, 12
    %v7318 = vpop.permute.xlu0 %7317
    %7319 = vrot.lane.b32.xlu0 %v1348, 12
    %v7320 = vpop.permute.xlu0 %7319
    %7321 = vrot.lane.b32.xlu0 %v1349, 12
    %v7322 = vpop.permute.xlu0 %7321
    %7323 = vrot.lane.b32.xlu0 %v1350, 12
    %v7324 = vpop.permute.xlu0 %7323
    %7325 = vrot.lane.b32.xlu0 %v1351, 12
    %v7326 = vpop.permute.xlu0 %7325
    %7327 = vrot.lane.b32.xlu0 %v1352, 12
    %v7328 = vpop.permute.xlu0 %7327
    %7329 = vrot.lane.b32.xlu0 %v1353, 12
    %v7330 = vpop.permute.xlu0 %7329
    %7331 = vrot.lane.b32.xlu0 %v1354, 12
    %v7332 = vpop.permute.xlu0 %7331
    %7333 = vrot.lane.b32.xlu0 %v1355, 12
    %v7334 = vpop.permute.xlu0 %7333
    %7335 = vrot.lane.b32.xlu0 %v1356, 12
    %v7336 = vpop.permute.xlu0 %7335
    %7337 = vrot.lane.b32.xlu0 %v1357, 12
    %v7338 = vpop.permute.xlu0 %7337
    %7339 = vrot.lane.b32.xlu0 %v1358, 12
    %v7340 = vpop.permute.xlu0 %7339
    %7341 = vrot.lane.b32.xlu0 %v1359, 12
    %v7342 = vpop.permute.xlu0 %7341
    %7343 = vrot.lane.b32.xlu0 %v1360, 12
    %v7344 = vpop.permute.xlu0 %7343
    %7345 = vrot.lane.b32.xlu0 %v1361, 12
    %v7346 = vpop.permute.xlu0 %7345
    %7347 = vrot.lane.b32.xlu0 %v1362, 12
    %v7348 = vpop.permute.xlu0 %7347
    %7349 = vrot.lane.b32.xlu0 %v1363, 12
    %v7350 = vpop.permute.xlu0 %7349
    %7351 = vrot.lane.b32.xlu0 %v1364, 12
    %v7352 = vpop.permute.xlu0 %7351
    %7353 = vrot.lane.b32.xlu0 %v1365, 12
    %v7354 = vpop.permute.xlu0 %7353
    %7355 = vrot.lane.b32.xlu0 %v1366, 12
    %v7356 = vpop.permute.xlu0 %7355
    %7357 = vrot.lane.b32.xlu0 %v1367, 12
    %v7358 = vpop.permute.xlu0 %7357
    %7359 = vrot.lane.b32.xlu0 %v1368, 12
    %v7360 = vpop.permute.xlu0 %7359
    %7361 = vrot.lane.b32.xlu0 %v1369, 12
    %v7362 = vpop.permute.xlu0 %7361
    %7363 = vrot.lane.b32.xlu0 %v1370, 12
    %v7364 = vpop.permute.xlu0 %7363
    %7365 = vrot.lane.b32.xlu0 %v1371, 12
    %v7366 = vpop.permute.xlu0 %7365
    %7367 = vrot.lane.b32.xlu0 %v1372, 12
    %v7368 = vpop.permute.xlu0 %7367
    %7369 = vrot.lane.b32.xlu0 %v1373, 12
    %v7370 = vpop.permute.xlu0 %7369
    %7371 = vrot.lane.b32.xlu0 %v1374, 12
    %v7372 = vpop.permute.xlu0 %7371
    %7373 = vrot.lane.b32.xlu0 %v1375, 12
    %v7374 = vpop.permute.xlu0 %7373
    %7375 = vrot.lane.b32.xlu0 %v1376, 12
    %v7376 = vpop.permute.xlu0 %7375
    %7377 = vrot.lane.b32.xlu0 %v1377, 12
    %v7378 = vpop.permute.xlu0 %7377
    %7379 = vrot.lane.b32.xlu0 %v1378, 12
    %v7380 = vpop.permute.xlu0 %7379
    %7381 = vrot.lane.b32.xlu0 %v1379, 12
    %v7382 = vpop.permute.xlu0 %7381
    %7383 = vrot.lane.b32.xlu0 %v1380, 12
    %v7384 = vpop.permute.xlu0 %7383
    %7385 = vrot.lane.b32.xlu0 %v1381, 12
    %v7386 = vpop.permute.xlu0 %7385
    %7387 = vrot.lane.b32.xlu0 %v1382, 12
    %v7388 = vpop.permute.xlu0 %7387
    %7389 = vrot.lane.b32.xlu0 %v1383, 12
    %v7390 = vpop.permute.xlu0 %7389
    %7391 = vrot.lane.b32.xlu0 %v1384, 12
    %v7392 = vpop.permute.xlu0 %7391
    %7393 = vrot.lane.b32.xlu0 %v1385, 12
    %v7394 = vpop.permute.xlu0 %7393
    %7395 = vrot.lane.b32.xlu0 %v1386, 12
    %v7396 = vpop.permute.xlu0 %7395
    %7397 = vrot.lane.b32.xlu0 %v1387, 12
    %v7398 = vpop.permute.xlu0 %7397
    %7399 = vrot.lane.b32.xlu0 %v1388, 12
    %v7400 = vpop.permute.xlu0 %7399
    %7401 = vrot.lane.b32.xlu0 %v1389, 12
    %v7402 = vpop.permute.xlu0 %7401
    %7403 = vrot.lane.b32.xlu0 %v1390, 12
    %v7404 = vpop.permute.xlu0 %7403
    %7405 = vrot.lane.b32.xlu0 %v1391, 12
    %v7406 = vpop.permute.xlu0 %7405
    %7407 = vrot.lane.b32.xlu0 %v1392, 12
    %v7408 = vpop.permute.xlu0 %7407
    %7409 = vrot.lane.b32.xlu0 %v1393, 12
    %v7410 = vpop.permute.xlu0 %7409
    %7411 = vrot.lane.b32.xlu0 %v1394, 12
    %v7412 = vpop.permute.xlu0 %7411
    %7413 = vrot.lane.b32.xlu0 %v1395, 12
    %v7414 = vpop.permute.xlu0 %7413
    %7415 = vrot.lane.b32.xlu0 %v1396, 12
    %v7416 = vpop.permute.xlu0 %7415
    %7417 = vrot.lane.b32.xlu0 %v1397, 12
    %v7418 = vpop.permute.xlu0 %7417
    %7419 = vrot.lane.b32.xlu0 %v1398, 12
    %v7420 = vpop.permute.xlu0 %7419
    %7421 = vrot.lane.b32.xlu0 %v1399, 12
    %v7422 = vpop.permute.xlu0 %7421
    %7423 = vrot.lane.b32.xlu0 %v1400, 12
    %v7424 = vpop.permute.xlu0 %7423
    %7425 = vrot.lane.b32.xlu0 %v1401, 12
    %v7426 = vpop.permute.xlu0 %7425
    %7427 = vrot.lane.b32.xlu0 %v1402, 12
    %v7428 = vpop.permute.xlu0 %7427
    %7429 = vrot.lane.b32.xlu0 %v1403, 12
    %v7430 = vpop.permute.xlu0 %7429
    %7431 = vrot.lane.b32.xlu0 %v1404, 12
    %v7432 = vpop.permute.xlu0 %7431
    %7433 = vrot.lane.b32.xlu0 %v1405, 12
    %v7434 = vpop.permute.xlu0 %7433
    %7435 = vrot.lane.b32.xlu0 %v1406, 12
    %v7436 = vpop.permute.xlu0 %7435
    %7437 = vrot.lane.b32.xlu0 %v1407, 12
    %v7438 = vpop.permute.xlu0 %7437
    %7567 = vrot.lane.b32.xlu0 %v1408, 15
    %v7568 = vpop.permute.xlu0 %7567
    %7569 = vrot.lane.b32.xlu0 %v1409, 15
    %v7570 = vpop.permute.xlu0 %7569
    %7571 = vrot.lane.b32.xlu0 %v1410, 15
    %v7572 = vpop.permute.xlu0 %7571
    %7573 = vrot.lane.b32.xlu0 %v1411, 15
    %v7574 = vpop.permute.xlu0 %7573
    %7575 = vrot.lane.b32.xlu0 %v1412, 15
    %v7576 = vpop.permute.xlu0 %7575
    %7577 = vrot.lane.b32.xlu0 %v1413, 15
    %v7578 = vpop.permute.xlu0 %7577
    %7579 = vrot.lane.b32.xlu0 %v1414, 15
    %v7580 = vpop.permute.xlu0 %7579
    %7581 = vrot.lane.b32.xlu0 %v1415, 15
    %v7582 = vpop.permute.xlu0 %7581
    %7583 = vrot.lane.b32.xlu0 %v1416, 15
    %v7584 = vpop.permute.xlu0 %7583
    %7585 = vrot.lane.b32.xlu0 %v1417, 15
    %v7586 = vpop.permute.xlu0 %7585
    %7587 = vrot.lane.b32.xlu0 %v1418, 15
    %v7588 = vpop.permute.xlu0 %7587
    %7589 = vrot.lane.b32.xlu0 %v1419, 15
    %v7590 = vpop.permute.xlu0 %7589
    %7591 = vrot.lane.b32.xlu0 %v1420, 15
    %v7592 = vpop.permute.xlu0 %7591
    %7593 = vrot.lane.b32.xlu0 %v1421, 15
    %v7594 = vpop.permute.xlu0 %7593
    %7595 = vrot.lane.b32.xlu0 %v1422, 15
    %v7596 = vpop.permute.xlu0 %7595
    %7597 = vrot.lane.b32.xlu0 %v1423, 15
    %v7598 = vpop.permute.xlu0 %7597
    %7599 = vrot.lane.b32.xlu0 %v1424, 15
    %v7600 = vpop.permute.xlu0 %7599
    %7601 = vrot.lane.b32.xlu0 %v1425, 15
    %v7602 = vpop.permute.xlu0 %7601
    %7603 = vrot.lane.b32.xlu0 %v1426, 15
    %v7604 = vpop.permute.xlu0 %7603
    %7605 = vrot.lane.b32.xlu0 %v1427, 15
    %v7606 = vpop.permute.xlu0 %7605
    %7607 = vrot.lane.b32.xlu0 %v1428, 15
    %v7608 = vpop.permute.xlu0 %7607
    %7609 = vrot.lane.b32.xlu0 %v1429, 15
    %v7610 = vpop.permute.xlu0 %7609
    %7611 = vrot.lane.b32.xlu0 %v1430, 15
    %v7612 = vpop.permute.xlu0 %7611
    %7613 = vrot.lane.b32.xlu0 %v1431, 15
    %v7614 = vpop.permute.xlu0 %7613
    %7615 = vrot.lane.b32.xlu0 %v1432, 15
    %v7616 = vpop.permute.xlu0 %7615
    %7617 = vrot.lane.b32.xlu0 %v1433, 15
    %v7618 = vpop.permute.xlu0 %7617
    %7619 = vrot.lane.b32.xlu0 %v1434, 15
    %v7620 = vpop.permute.xlu0 %7619
    %7621 = vrot.lane.b32.xlu0 %v1435, 15
    %v7622 = vpop.permute.xlu0 %7621
    %7623 = vrot.lane.b32.xlu0 %v1436, 15
    %v7624 = vpop.permute.xlu0 %7623
    %7625 = vrot.lane.b32.xlu0 %v1437, 15
    %v7626 = vpop.permute.xlu0 %7625
    %7627 = vrot.lane.b32.xlu0 %v1438, 15
    %v7628 = vpop.permute.xlu0 %7627
    %7629 = vrot.lane.b32.xlu0 %v1439, 15
    %v7630 = vpop.permute.xlu0 %7629
    %7631 = vrot.lane.b32.xlu0 %v1440, 15
    %v7632 = vpop.permute.xlu0 %7631
    %7633 = vrot.lane.b32.xlu0 %v1441, 15
    %v7634 = vpop.permute.xlu0 %7633
    %7635 = vrot.lane.b32.xlu0 %v1442, 15
    %v7636 = vpop.permute.xlu0 %7635
    %7637 = vrot.lane.b32.xlu0 %v1443, 15
    %v7638 = vpop.permute.xlu0 %7637
    %7639 = vrot.lane.b32.xlu0 %v1444, 15
    %v7640 = vpop.permute.xlu0 %7639
    %7641 = vrot.lane.b32.xlu0 %v1445, 15
    %v7642 = vpop.permute.xlu0 %7641
    %7643 = vrot.lane.b32.xlu0 %v1446, 15
    %v7644 = vpop.permute.xlu0 %7643
    %7645 = vrot.lane.b32.xlu0 %v1447, 15
    %v7646 = vpop.permute.xlu0 %7645
    %7647 = vrot.lane.b32.xlu0 %v1448, 15
    %v7648 = vpop.permute.xlu0 %7647
    %7649 = vrot.lane.b32.xlu0 %v1449, 15
    %v7650 = vpop.permute.xlu0 %7649
    %7651 = vrot.lane.b32.xlu0 %v1450, 15
    %v7652 = vpop.permute.xlu0 %7651
    %7653 = vrot.lane.b32.xlu0 %v1451, 15
    %v7654 = vpop.permute.xlu0 %7653
    %7655 = vrot.lane.b32.xlu0 %v1452, 15
    %v7656 = vpop.permute.xlu0 %7655
    %7657 = vrot.lane.b32.xlu0 %v1453, 15
    %v7658 = vpop.permute.xlu0 %7657
    %7659 = vrot.lane.b32.xlu0 %v1454, 15
    %v7660 = vpop.permute.xlu0 %7659
    %7661 = vrot.lane.b32.xlu0 %v1455, 15
    %v7662 = vpop.permute.xlu0 %7661
    %7663 = vrot.lane.b32.xlu0 %v1456, 15
    %v7664 = vpop.permute.xlu0 %7663
    %7665 = vrot.lane.b32.xlu0 %v1457, 15
    %v7666 = vpop.permute.xlu0 %7665
    %7667 = vrot.lane.b32.xlu0 %v1458, 15
    %v7668 = vpop.permute.xlu0 %7667
    %7669 = vrot.lane.b32.xlu0 %v1459, 15
    %v7670 = vpop.permute.xlu0 %7669
    %7671 = vrot.lane.b32.xlu0 %v1460, 15
    %v7672 = vpop.permute.xlu0 %7671
    %7673 = vrot.lane.b32.xlu0 %v1461, 15
    %v7674 = vpop.permute.xlu0 %7673
    %7675 = vrot.lane.b32.xlu0 %v1462, 15
    %v7676 = vpop.permute.xlu0 %7675
    %7677 = vrot.lane.b32.xlu0 %v1463, 15
    %v7678 = vpop.permute.xlu0 %7677
    %7679 = vrot.lane.b32.xlu0 %v1464, 15
    %v7680 = vpop.permute.xlu0 %7679
    %7681 = vrot.lane.b32.xlu0 %v1465, 15
    %v7682 = vpop.permute.xlu0 %7681
    %7683 = vrot.lane.b32.xlu0 %v1466, 15
    %v7684 = vpop.permute.xlu0 %7683
    %7685 = vrot.lane.b32.xlu0 %v1467, 15
    %v7686 = vpop.permute.xlu0 %7685
    %7687 = vrot.lane.b32.xlu0 %v1468, 15
    %v7688 = vpop.permute.xlu0 %7687
    %7689 = vrot.lane.b32.xlu0 %v1469, 15
    %v7690 = vpop.permute.xlu0 %7689
    %7691 = vrot.lane.b32.xlu0 %v1470, 15
    %v7692 = vpop.permute.xlu0 %7691
    %7693 = vrot.lane.b32.xlu0 %v1471, 15
    %v7694 = vpop.permute.xlu0 %7693
    %7823 = vrot.lane.b32.xlu0 %v1472, 18
    %v7824 = vpop.permute.xlu0 %7823
    %7825 = vrot.lane.b32.xlu0 %v1473, 18
    %v7826 = vpop.permute.xlu0 %7825
    %7827 = vrot.lane.b32.xlu0 %v1474, 18
    %v7828 = vpop.permute.xlu0 %7827
    %7829 = vrot.lane.b32.xlu0 %v1475, 18
    %v7830 = vpop.permute.xlu0 %7829
    %7831 = vrot.lane.b32.xlu0 %v1476, 18
    %v7832 = vpop.permute.xlu0 %7831
    %7833 = vrot.lane.b32.xlu0 %v1477, 18
    %v7834 = vpop.permute.xlu0 %7833
    %7835 = vrot.lane.b32.xlu0 %v1478, 18
    %v7836 = vpop.permute.xlu0 %7835
    %7837 = vrot.lane.b32.xlu0 %v1479, 18
    %v7838 = vpop.permute.xlu0 %7837
    %7839 = vrot.lane.b32.xlu0 %v1480, 18
    %v7840 = vpop.permute.xlu0 %7839
    %7841 = vrot.lane.b32.xlu0 %v1481, 18
    %v7842 = vpop.permute.xlu0 %7841
    %7843 = vrot.lane.b32.xlu0 %v1482, 18
    %v7844 = vpop.permute.xlu0 %7843
    %7845 = vrot.lane.b32.xlu0 %v1483, 18
    %v7846 = vpop.permute.xlu0 %7845
    %7847 = vrot.lane.b32.xlu0 %v1484, 18
    %v7848 = vpop.permute.xlu0 %7847
    %7849 = vrot.lane.b32.xlu0 %v1485, 18
    %v7850 = vpop.permute.xlu0 %7849
    %7851 = vrot.lane.b32.xlu0 %v1486, 18
    %v7852 = vpop.permute.xlu0 %7851
    %7853 = vrot.lane.b32.xlu0 %v1487, 18
    %v7854 = vpop.permute.xlu0 %7853
    %7855 = vrot.lane.b32.xlu0 %v1488, 18
    %v7856 = vpop.permute.xlu0 %7855
    %7857 = vrot.lane.b32.xlu0 %v1489, 18
    %v7858 = vpop.permute.xlu0 %7857
    %7859 = vrot.lane.b32.xlu0 %v1490, 18
    %v7860 = vpop.permute.xlu0 %7859
    %7861 = vrot.lane.b32.xlu0 %v1491, 18
    %v7862 = vpop.permute.xlu0 %7861
    %7863 = vrot.lane.b32.xlu0 %v1492, 18
    %v7864 = vpop.permute.xlu0 %7863
    %7865 = vrot.lane.b32.xlu0 %v1493, 18
    %v7866 = vpop.permute.xlu0 %7865
    %7867 = vrot.lane.b32.xlu0 %v1494, 18
    %v7868 = vpop.permute.xlu0 %7867
    %7869 = vrot.lane.b32.xlu0 %v1495, 18
    %v7870 = vpop.permute.xlu0 %7869
    %7871 = vrot.lane.b32.xlu0 %v1496, 18
    %v7872 = vpop.permute.xlu0 %7871
    %7873 = vrot.lane.b32.xlu0 %v1497, 18
    %v7874 = vpop.permute.xlu0 %7873
    %7875 = vrot.lane.b32.xlu0 %v1498, 18
    %v7876 = vpop.permute.xlu0 %7875
    %7877 = vrot.lane.b32.xlu0 %v1499, 18
    %v7878 = vpop.permute.xlu0 %7877
    %7879 = vrot.lane.b32.xlu0 %v1500, 18
    %v7880 = vpop.permute.xlu0 %7879
    %7881 = vrot.lane.b32.xlu0 %v1501, 18
    %v7882 = vpop.permute.xlu0 %7881
    %7883 = vrot.lane.b32.xlu0 %v1502, 18
    %v7884 = vpop.permute.xlu0 %7883
    %7885 = vrot.lane.b32.xlu0 %v1503, 18
    %v7886 = vpop.permute.xlu0 %7885
    %7887 = vrot.lane.b32.xlu0 %v1504, 18
    %v7888 = vpop.permute.xlu0 %7887
    %7889 = vrot.lane.b32.xlu0 %v1505, 18
    %v7890 = vpop.permute.xlu0 %7889
    %7891 = vrot.lane.b32.xlu0 %v1506, 18
    %v7892 = vpop.permute.xlu0 %7891
    %7893 = vrot.lane.b32.xlu0 %v1507, 18
    %v7894 = vpop.permute.xlu0 %7893
    %7895 = vrot.lane.b32.xlu0 %v1508, 18
    %v7896 = vpop.permute.xlu0 %7895
    %7897 = vrot.lane.b32.xlu0 %v1509, 18
    %v7898 = vpop.permute.xlu0 %7897
    %7899 = vrot.lane.b32.xlu0 %v1510, 18
    %v7900 = vpop.permute.xlu0 %7899
    %7901 = vrot.lane.b32.xlu0 %v1511, 18
    %v7902 = vpop.permute.xlu0 %7901
    %7903 = vrot.lane.b32.xlu0 %v1512, 18
    %v7904 = vpop.permute.xlu0 %7903
    %7905 = vrot.lane.b32.xlu0 %v1513, 18
    %v7906 = vpop.permute.xlu0 %7905
    %7907 = vrot.lane.b32.xlu0 %v1514, 18
    %v7908 = vpop.permute.xlu0 %7907
    %7909 = vrot.lane.b32.xlu0 %v1515, 18
    %v7910 = vpop.permute.xlu0 %7909
    %7911 = vrot.lane.b32.xlu0 %v1516, 18
    %v7912 = vpop.permute.xlu0 %7911
    %7913 = vrot.lane.b32.xlu0 %v1517, 18
    %v7914 = vpop.permute.xlu0 %7913
    %7915 = vrot.lane.b32.xlu0 %v1518, 18
    %v7916 = vpop.permute.xlu0 %7915
    %7917 = vrot.lane.b32.xlu0 %v1519, 18
    %v7918 = vpop.permute.xlu0 %7917
    %7919 = vrot.lane.b32.xlu0 %v1520, 18
    %v7920 = vpop.permute.xlu0 %7919
    %7921 = vrot.lane.b32.xlu0 %v1521, 18
    %v7922 = vpop.permute.xlu0 %7921
    %7923 = vrot.lane.b32.xlu0 %v1522, 18
    %v7924 = vpop.permute.xlu0 %7923
    %7925 = vrot.lane.b32.xlu0 %v1523, 18
    %v7926 = vpop.permute.xlu0 %7925
    %7927 = vrot.lane.b32.xlu0 %v1524, 18
    %v7928 = vpop.permute.xlu0 %7927
    %7929 = vrot.lane.b32.xlu0 %v1525, 18
    %v7930 = vpop.permute.xlu0 %7929
    %7931 = vrot.lane.b32.xlu0 %v1526, 18
    %v7932 = vpop.permute.xlu0 %7931
    %7933 = vrot.lane.b32.xlu0 %v1527, 18
    %v7934 = vpop.permute.xlu0 %7933
    %7935 = vrot.lane.b32.xlu0 %v1528, 18
    %v7936 = vpop.permute.xlu0 %7935
    %7937 = vrot.lane.b32.xlu0 %v1529, 18
    %v7938 = vpop.permute.xlu0 %7937
    %7939 = vrot.lane.b32.xlu0 %v1530, 18
    %v7940 = vpop.permute.xlu0 %7939
    %7941 = vrot.lane.b32.xlu0 %v1531, 18
    %v7942 = vpop.permute.xlu0 %7941
    %7943 = vrot.lane.b32.xlu0 %v1532, 18
    %v7944 = vpop.permute.xlu0 %7943
    %7945 = vrot.lane.b32.xlu0 %v1533, 18
    %v7946 = vpop.permute.xlu0 %7945
    %7947 = vrot.lane.b32.xlu0 %v1534, 18
    %v7948 = vpop.permute.xlu0 %7947
    %7949 = vrot.lane.b32.xlu0 %v1535, 18
    %v7950 = vpop.permute.xlu0 %7949
    %8079 = vrot.lane.b32.xlu0 %v1536, 21
    %v8080 = vpop.permute.xlu0 %8079
    %8081 = vrot.lane.b32.xlu0 %v1537, 21
    %v8082 = vpop.permute.xlu0 %8081
    %8083 = vrot.lane.b32.xlu0 %v1538, 21
    %v8084 = vpop.permute.xlu0 %8083
    %8085 = vrot.lane.b32.xlu0 %v1539, 21
    %v8086 = vpop.permute.xlu0 %8085
    %8087 = vrot.lane.b32.xlu0 %v1540, 21
    %v8088 = vpop.permute.xlu0 %8087
    %8089 = vrot.lane.b32.xlu0 %v1541, 21
    %v8090 = vpop.permute.xlu0 %8089
    %8091 = vrot.lane.b32.xlu0 %v1542, 21
    %v8092 = vpop.permute.xlu0 %8091
    %8093 = vrot.lane.b32.xlu0 %v1543, 21
    %v8094 = vpop.permute.xlu0 %8093
    %8095 = vrot.lane.b32.xlu0 %v1544, 21
    %v8096 = vpop.permute.xlu0 %8095
    %8097 = vrot.lane.b32.xlu0 %v1545, 21
    %v8098 = vpop.permute.xlu0 %8097
    %8099 = vrot.lane.b32.xlu0 %v1546, 21
    %v8100 = vpop.permute.xlu0 %8099
    %8101 = vrot.lane.b32.xlu0 %v1547, 21
    %v8102 = vpop.permute.xlu0 %8101
    %8103 = vrot.lane.b32.xlu0 %v1548, 21
    %v8104 = vpop.permute.xlu0 %8103
    %8105 = vrot.lane.b32.xlu0 %v1549, 21
    %v8106 = vpop.permute.xlu0 %8105
    %8107 = vrot.lane.b32.xlu0 %v1550, 21
    %v8108 = vpop.permute.xlu0 %8107
    %8109 = vrot.lane.b32.xlu0 %v1551, 21
    %v8110 = vpop.permute.xlu0 %8109
    %8111 = vrot.lane.b32.xlu0 %v1552, 21
    %v8112 = vpop.permute.xlu0 %8111
    %8113 = vrot.lane.b32.xlu0 %v1553, 21
    %v8114 = vpop.permute.xlu0 %8113
    %8115 = vrot.lane.b32.xlu0 %v1554, 21
    %v8116 = vpop.permute.xlu0 %8115
    %8117 = vrot.lane.b32.xlu0 %v1555, 21
    %v8118 = vpop.permute.xlu0 %8117
    %8119 = vrot.lane.b32.xlu0 %v1556, 21
    %v8120 = vpop.permute.xlu0 %8119
    %8121 = vrot.lane.b32.xlu0 %v1557, 21
    %v8122 = vpop.permute.xlu0 %8121
    %8123 = vrot.lane.b32.xlu0 %v1558, 21
    %v8124 = vpop.permute.xlu0 %8123
    %8125 = vrot.lane.b32.xlu0 %v1559, 21
    %v8126 = vpop.permute.xlu0 %8125
    %8127 = vrot.lane.b32.xlu0 %v1560, 21
    %v8128 = vpop.permute.xlu0 %8127
    %8129 = vrot.lane.b32.xlu0 %v1561, 21
    %v8130 = vpop.permute.xlu0 %8129
    %8131 = vrot.lane.b32.xlu0 %v1562, 21
    %v8132 = vpop.permute.xlu0 %8131
    %8133 = vrot.lane.b32.xlu0 %v1563, 21
    %v8134 = vpop.permute.xlu0 %8133
    %8135 = vrot.lane.b32.xlu0 %v1564, 21
    %v8136 = vpop.permute.xlu0 %8135
    %8137 = vrot.lane.b32.xlu0 %v1565, 21
    %v8138 = vpop.permute.xlu0 %8137
    %8139 = vrot.lane.b32.xlu0 %v1566, 21
    %v8140 = vpop.permute.xlu0 %8139
    %8141 = vrot.lane.b32.xlu0 %v1567, 21
    %v8142 = vpop.permute.xlu0 %8141
    %8143 = vrot.lane.b32.xlu0 %v1568, 21
    %v8144 = vpop.permute.xlu0 %8143
    %8145 = vrot.lane.b32.xlu0 %v1569, 21
    %v8146 = vpop.permute.xlu0 %8145
    %8147 = vrot.lane.b32.xlu0 %v1570, 21
    %v8148 = vpop.permute.xlu0 %8147
    %8149 = vrot.lane.b32.xlu0 %v1571, 21
    %v8150 = vpop.permute.xlu0 %8149
    %8151 = vrot.lane.b32.xlu0 %v1572, 21
    %v8152 = vpop.permute.xlu0 %8151
    %8153 = vrot.lane.b32.xlu0 %v1573, 21
    %v8154 = vpop.permute.xlu0 %8153
    %8155 = vrot.lane.b32.xlu0 %v1574, 21
    %v8156 = vpop.permute.xlu0 %8155
    %8157 = vrot.lane.b32.xlu0 %v1575, 21
    %v8158 = vpop.permute.xlu0 %8157
    %8159 = vrot.lane.b32.xlu0 %v1576, 21
    %v8160 = vpop.permute.xlu0 %8159
    %8161 = vrot.lane.b32.xlu0 %v1577, 21
    %v8162 = vpop.permute.xlu0 %8161
    %8163 = vrot.lane.b32.xlu0 %v1578, 21
    %v8164 = vpop.permute.xlu0 %8163
    %8165 = vrot.lane.b32.xlu0 %v1579, 21
    %v8166 = vpop.permute.xlu0 %8165
    %8167 = vrot.lane.b32.xlu0 %v1580, 21
    %v8168 = vpop.permute.xlu0 %8167
    %8169 = vrot.lane.b32.xlu0 %v1581, 21
    %v8170 = vpop.permute.xlu0 %8169
    %8171 = vrot.lane.b32.xlu0 %v1582, 21
    %v8172 = vpop.permute.xlu0 %8171
    %8173 = vrot.lane.b32.xlu0 %v1583, 21
    %v8174 = vpop.permute.xlu0 %8173
    %8175 = vrot.lane.b32.xlu0 %v1584, 21
    %v8176 = vpop.permute.xlu0 %8175
    %8177 = vrot.lane.b32.xlu0 %v1585, 21
    %v8178 = vpop.permute.xlu0 %8177
    %8179 = vrot.lane.b32.xlu0 %v1586, 21
    %v8180 = vpop.permute.xlu0 %8179
    %8181 = vrot.lane.b32.xlu0 %v1587, 21
    %v8182 = vpop.permute.xlu0 %8181
    %8183 = vrot.lane.b32.xlu0 %v1588, 21
    %v8184 = vpop.permute.xlu0 %8183
    %8185 = vrot.lane.b32.xlu0 %v1589, 21
    %v8186 = vpop.permute.xlu0 %8185
    %8187 = vrot.lane.b32.xlu0 %v1590, 21
    %v8188 = vpop.permute.xlu0 %8187
    %8189 = vrot.lane.b32.xlu0 %v1591, 21
    %v8190 = vpop.permute.xlu0 %8189
    %8191 = vrot.lane.b32.xlu0 %v1592, 21
    %v8192 = vpop.permute.xlu0 %8191
    %8193 = vrot.lane.b32.xlu0 %v1593, 21
    %v8194 = vpop.permute.xlu0 %8193
    %8195 = vrot.lane.b32.xlu0 %v1594, 21
    %v8196 = vpop.permute.xlu0 %8195
    %8197 = vrot.lane.b32.xlu0 %v1595, 21
    %v8198 = vpop.permute.xlu0 %8197
    %8199 = vrot.lane.b32.xlu0 %v1596, 21
    %v8200 = vpop.permute.xlu0 %8199
    %8201 = vrot.lane.b32.xlu0 %v1597, 21
    %v8202 = vpop.permute.xlu0 %8201
    %8203 = vrot.lane.b32.xlu0 %v1598, 21
    %v8204 = vpop.permute.xlu0 %8203
    %8205 = vrot.lane.b32.xlu0 %v1599, 21
    %v8206 = vpop.permute.xlu0 %8205
    %8335 = vrot.lane.b32.xlu0 %v1600, 24
    %v8336 = vpop.permute.xlu0 %8335
    %8337 = vrot.lane.b32.xlu0 %v1601, 24
    %v8338 = vpop.permute.xlu0 %8337
    %8339 = vrot.lane.b32.xlu0 %v1602, 24
    %v8340 = vpop.permute.xlu0 %8339
    %8341 = vrot.lane.b32.xlu0 %v1603, 24
    %v8342 = vpop.permute.xlu0 %8341
    %8343 = vrot.lane.b32.xlu0 %v1604, 24
    %v8344 = vpop.permute.xlu0 %8343
    %8345 = vrot.lane.b32.xlu0 %v1605, 24
    %v8346 = vpop.permute.xlu0 %8345
    %8347 = vrot.lane.b32.xlu0 %v1606, 24
    %v8348 = vpop.permute.xlu0 %8347
    %8349 = vrot.lane.b32.xlu0 %v1607, 24
    %v8350 = vpop.permute.xlu0 %8349
    %8351 = vrot.lane.b32.xlu0 %v1608, 24
    %v8352 = vpop.permute.xlu0 %8351
    %8353 = vrot.lane.b32.xlu0 %v1609, 24
    %v8354 = vpop.permute.xlu0 %8353
    %8355 = vrot.lane.b32.xlu0 %v1610, 24
    %v8356 = vpop.permute.xlu0 %8355
    %8357 = vrot.lane.b32.xlu0 %v1611, 24
    %v8358 = vpop.permute.xlu0 %8357
    %8359 = vrot.lane.b32.xlu0 %v1612, 24
    %v8360 = vpop.permute.xlu0 %8359
    %8361 = vrot.lane.b32.xlu0 %v1613, 24
    %v8362 = vpop.permute.xlu0 %8361
    %8363 = vrot.lane.b32.xlu0 %v1614, 24
    %v8364 = vpop.permute.xlu0 %8363
    %8365 = vrot.lane.b32.xlu0 %v1615, 24
    %v8366 = vpop.permute.xlu0 %8365
    %8367 = vrot.lane.b32.xlu0 %v1616, 24
    %v8368 = vpop.permute.xlu0 %8367
    %8369 = vrot.lane.b32.xlu0 %v1617, 24
    %v8370 = vpop.permute.xlu0 %8369
    %8371 = vrot.lane.b32.xlu0 %v1618, 24
    %v8372 = vpop.permute.xlu0 %8371
    %8373 = vrot.lane.b32.xlu0 %v1619, 24
    %v8374 = vpop.permute.xlu0 %8373
    %8375 = vrot.lane.b32.xlu0 %v1620, 24
    %v8376 = vpop.permute.xlu0 %8375
    %8377 = vrot.lane.b32.xlu0 %v1621, 24
    %v8378 = vpop.permute.xlu0 %8377
    %8379 = vrot.lane.b32.xlu0 %v1622, 24
    %v8380 = vpop.permute.xlu0 %8379
    %8381 = vrot.lane.b32.xlu0 %v1623, 24
    %v8382 = vpop.permute.xlu0 %8381
    %8383 = vrot.lane.b32.xlu0 %v1624, 24
    %v8384 = vpop.permute.xlu0 %8383
    %8385 = vrot.lane.b32.xlu0 %v1625, 24
    %v8386 = vpop.permute.xlu0 %8385
    %8387 = vrot.lane.b32.xlu0 %v1626, 24
    %v8388 = vpop.permute.xlu0 %8387
    %8389 = vrot.lane.b32.xlu0 %v1627, 24
    %v8390 = vpop.permute.xlu0 %8389
    %8391 = vrot.lane.b32.xlu0 %v1628, 24
    %v8392 = vpop.permute.xlu0 %8391
    %8393 = vrot.lane.b32.xlu0 %v1629, 24
    %v8394 = vpop.permute.xlu0 %8393
    %8395 = vrot.lane.b32.xlu0 %v1630, 24
    %v8396 = vpop.permute.xlu0 %8395
    %8397 = vrot.lane.b32.xlu0 %v1631, 24
    %v8398 = vpop.permute.xlu0 %8397
    %8399 = vrot.lane.b32.xlu0 %v1632, 24
    %v8400 = vpop.permute.xlu0 %8399
    %8401 = vrot.lane.b32.xlu0 %v1633, 24
    %v8402 = vpop.permute.xlu0 %8401
    %8403 = vrot.lane.b32.xlu0 %v1634, 24
    %v8404 = vpop.permute.xlu0 %8403
    %8405 = vrot.lane.b32.xlu0 %v1635, 24
    %v8406 = vpop.permute.xlu0 %8405
    %8407 = vrot.lane.b32.xlu0 %v1636, 24
    %v8408 = vpop.permute.xlu0 %8407
    %8409 = vrot.lane.b32.xlu0 %v1637, 24
    %v8410 = vpop.permute.xlu0 %8409
    %8411 = vrot.lane.b32.xlu0 %v1638, 24
    %v8412 = vpop.permute.xlu0 %8411
    %8413 = vrot.lane.b32.xlu0 %v1639, 24
    %v8414 = vpop.permute.xlu0 %8413
    %8415 = vrot.lane.b32.xlu0 %v1640, 24
    %v8416 = vpop.permute.xlu0 %8415
    %8417 = vrot.lane.b32.xlu0 %v1641, 24
    %v8418 = vpop.permute.xlu0 %8417
    %8419 = vrot.lane.b32.xlu0 %v1642, 24
    %v8420 = vpop.permute.xlu0 %8419
    %8421 = vrot.lane.b32.xlu0 %v1643, 24
    %v8422 = vpop.permute.xlu0 %8421
    %8423 = vrot.lane.b32.xlu0 %v1644, 24
    %v8424 = vpop.permute.xlu0 %8423
    %8425 = vrot.lane.b32.xlu0 %v1645, 24
    %v8426 = vpop.permute.xlu0 %8425
    %8427 = vrot.lane.b32.xlu0 %v1646, 24
    %v8428 = vpop.permute.xlu0 %8427
    %8429 = vrot.lane.b32.xlu0 %v1647, 24
    %v8430 = vpop.permute.xlu0 %8429
    %8431 = vrot.lane.b32.xlu0 %v1648, 24
    %v8432 = vpop.permute.xlu0 %8431
    %8433 = vrot.lane.b32.xlu0 %v1649, 24
    %v8434 = vpop.permute.xlu0 %8433
    %8435 = vrot.lane.b32.xlu0 %v1650, 24
    %v8436 = vpop.permute.xlu0 %8435
    %8437 = vrot.lane.b32.xlu0 %v1651, 24
    %v8438 = vpop.permute.xlu0 %8437
    %8439 = vrot.lane.b32.xlu0 %v1652, 24
    %v8440 = vpop.permute.xlu0 %8439
    %8441 = vrot.lane.b32.xlu0 %v1653, 24
    %v8442 = vpop.permute.xlu0 %8441
    %8443 = vrot.lane.b32.xlu0 %v1654, 24
    %v8444 = vpop.permute.xlu0 %8443
    %8445 = vrot.lane.b32.xlu0 %v1655, 24
    %v8446 = vpop.permute.xlu0 %8445
    %8447 = vrot.lane.b32.xlu0 %v1656, 24
    %v8448 = vpop.permute.xlu0 %8447
    %8449 = vrot.lane.b32.xlu0 %v1657, 24
    %v8450 = vpop.permute.xlu0 %8449
    %8451 = vrot.lane.b32.xlu0 %v1658, 24
    %v8452 = vpop.permute.xlu0 %8451
    %8453 = vrot.lane.b32.xlu0 %v1659, 24
    %v8454 = vpop.permute.xlu0 %8453
    %8455 = vrot.lane.b32.xlu0 %v1660, 24
    %v8456 = vpop.permute.xlu0 %8455
    %8457 = vrot.lane.b32.xlu0 %v1661, 24
    %v8458 = vpop.permute.xlu0 %8457
    %8459 = vrot.lane.b32.xlu0 %v1662, 24
    %v8460 = vpop.permute.xlu0 %8459
    %8461 = vrot.lane.b32.xlu0 %v1663, 24
    %v8462 = vpop.permute.xlu0 %8461
    %v8527 = vsel %vm5504, %v1087, %v6544
    %v8528 = vsel %vm5504, %v1088, %v6546
    %v8529 = vsel %vm5504, %v1089, %v6548
    %v8530 = vsel %vm5504, %v1090, %v6550
    %v8531 = vsel %vm5504, %v1091, %v6552
    %v8532 = vsel %vm5504, %v1092, %v6554
    %v8533 = vsel %vm5504, %v1093, %v6556
    %v8534 = vsel %vm5504, %v1094, %v6558
    %v8535 = vsel %vm5504, %v1095, %v6560
    %v8536 = vsel %vm5504, %v1096, %v6562
    %v8537 = vsel %vm5504, %v1097, %v6564
    %v8538 = vsel %vm5504, %v1098, %v6566
    %v8539 = vsel %vm5504, %v1099, %v6568
    %v8540 = vsel %vm5504, %v1100, %v6570
    %v8541 = vsel %vm5504, %v1101, %v6572
    %v8542 = vsel %vm5504, %v1102, %v6574
    %v8543 = vsel %vm5504, %v1103, %v6576
    %v8544 = vsel %vm5504, %v1104, %v6578
    %v8545 = vsel %vm5504, %v1105, %v6580
    %v8546 = vsel %vm5504, %v1106, %v6582
    %v8547 = vsel %vm5504, %v1107, %v6584
    %v8548 = vsel %vm5504, %v1108, %v6586
    %v8549 = vsel %vm5504, %v1109, %v6588
    %v8550 = vsel %vm5504, %v1110, %v6590
    %v8551 = vsel %vm5504, %v1111, %v6592
    %v8552 = vsel %vm5504, %v1112, %v6594
    %v8553 = vsel %vm5504, %v1113, %v6596
    %v8554 = vsel %vm5504, %v1114, %v6598
    %v8555 = vsel %vm5504, %v1115, %v6600
    %v8556 = vsel %vm5504, %v1116, %v6602
    %v8557 = vsel %vm5504, %v1117, %v6604
    %v8558 = vsel %vm5504, %v1118, %v6606
    %v8559 = vsel %vm5504, %v1119, %v6608
    %v8560 = vsel %vm5504, %v1120, %v6610
    %v8561 = vsel %vm5504, %v1121, %v6612
    %v8562 = vsel %vm5504, %v1122, %v6614
    %v8563 = vsel %vm5504, %v1123, %v6616
    %v8564 = vsel %vm5504, %v1124, %v6618
    %v8565 = vsel %vm5504, %v1125, %v6620
    %v8566 = vsel %vm5504, %v1126, %v6622
    %v8567 = vsel %vm5504, %v1127, %v6624
    %v8568 = vsel %vm5504, %v1128, %v6626
    %v8569 = vsel %vm5504, %v1129, %v6628
    %v8570 = vsel %vm5504, %v1130, %v6630
    %v8571 = vsel %vm5504, %v1131, %v6632
    %v8572 = vsel %vm5504, %v1132, %v6634
    %v8573 = vsel %vm5504, %v1133, %v6636
    %v8574 = vsel %vm5504, %v1134, %v6638
    %v8575 = vsel %vm5504, %v1135, %v6640
    %v8576 = vsel %vm5504, %v1136, %v6642
    %v8577 = vsel %vm5504, %v1137, %v6644
    %v8578 = vsel %vm5504, %v1138, %v6646
    %v8579 = vsel %vm5504, %v1139, %v6648
    %v8580 = vsel %vm5504, %v1140, %v6650
    %v8581 = vsel %vm5504, %v1141, %v6652
    %v8582 = vsel %vm5504, %v1142, %v6654
    %v8583 = vsel %vm5504, %v1143, %v6656
    %v8584 = vsel %vm5504, %v1144, %v6658
    %v8585 = vsel %vm5504, %v1145, %v6660
    %v8586 = vsel %vm5504, %v1146, %v6662
    %v8587 = vsel %vm5504, %v1147, %v6664
    %v8588 = vsel %vm5504, %v1148, %v6666
    %v8589 = vsel %vm5504, %v1149, %v6668
    %v8590 = vsel %vm5504, %v1150, %v6670
    %v8591 = vsel %vm5569, %v8527, %v6800
    %v8592 = vsel %vm5569, %v8528, %v6802
    %v8593 = vsel %vm5569, %v8529, %v6804
    %v8594 = vsel %vm5569, %v8530, %v6806
    %v8595 = vsel %vm5569, %v8531, %v6808
    %v8596 = vsel %vm5569, %v8532, %v6810
    %v8597 = vsel %vm5569, %v8533, %v6812
    %v8598 = vsel %vm5569, %v8534, %v6814
    %v8599 = vsel %vm5569, %v8535, %v6816
    %v8600 = vsel %vm5569, %v8536, %v6818
    %v8601 = vsel %vm5569, %v8537, %v6820
    %v8602 = vsel %vm5569, %v8538, %v6822
    %v8603 = vsel %vm5569, %v8539, %v6824
    %v8604 = vsel %vm5569, %v8540, %v6826
    %v8605 = vsel %vm5569, %v8541, %v6828
    %v8606 = vsel %vm5569, %v8542, %v6830
    %v8607 = vsel %vm5569, %v8543, %v6832
    %v8608 = vsel %vm5569, %v8544, %v6834
    %v8609 = vsel %vm5569, %v8545, %v6836
    %v8610 = vsel %vm5569, %v8546, %v6838
    %v8611 = vsel %vm5569, %v8547, %v6840
    %v8612 = vsel %vm5569, %v8548, %v6842
    %v8613 = vsel %vm5569, %v8549, %v6844
    %v8614 = vsel %vm5569, %v8550, %v6846
    %v8615 = vsel %vm5569, %v8551, %v6848
    %v8616 = vsel %vm5569, %v8552, %v6850
    %v8617 = vsel %vm5569, %v8553, %v6852
    %v8618 = vsel %vm5569, %v8554, %v6854
    %v8619 = vsel %vm5569, %v8555, %v6856
    %v8620 = vsel %vm5569, %v8556, %v6858
    %v8621 = vsel %vm5569, %v8557, %v6860
    %v8622 = vsel %vm5569, %v8558, %v6862
    %v8623 = vsel %vm5569, %v8559, %v6864
    %v8624 = vsel %vm5569, %v8560, %v6866
    %v8625 = vsel %vm5569, %v8561, %v6868
    %v8626 = vsel %vm5569, %v8562, %v6870
    %v8627 = vsel %vm5569, %v8563, %v6872
    %v8628 = vsel %vm5569, %v8564, %v6874
    %v8629 = vsel %vm5569, %v8565, %v6876
    %v8630 = vsel %vm5569, %v8566, %v6878
    %v8631 = vsel %vm5569, %v8567, %v6880
    %v8632 = vsel %vm5569, %v8568, %v6882
    %v8633 = vsel %vm5569, %v8569, %v6884
    %v8634 = vsel %vm5569, %v8570, %v6886
    %v8635 = vsel %vm5569, %v8571, %v6888
    %v8636 = vsel %vm5569, %v8572, %v6890
    %v8637 = vsel %vm5569, %v8573, %v6892
    %v8638 = vsel %vm5569, %v8574, %v6894
    %v8639 = vsel %vm5569, %v8575, %v6896
    %v8640 = vsel %vm5569, %v8576, %v6898
    %v8641 = vsel %vm5569, %v8577, %v6900
    %v8642 = vsel %vm5569, %v8578, %v6902
    %v8643 = vsel %vm5569, %v8579, %v6904
    %v8644 = vsel %vm5569, %v8580, %v6906
    %v8645 = vsel %vm5569, %v8581, %v6908
    %v8646 = vsel %vm5569, %v8582, %v6910
    %v8647 = vsel %vm5569, %v8583, %v6912
    %v8648 = vsel %vm5569, %v8584, %v6914
    %v8649 = vsel %vm5569, %v8585, %v6916
    %v8650 = vsel %vm5569, %v8586, %v6918
    %v8651 = vsel %vm5569, %v8587, %v6920
    %v8652 = vsel %vm5569, %v8588, %v6922
    %v8653 = vsel %vm5569, %v8589, %v6924
    %v8654 = vsel %vm5569, %v8590, %v6926
    %v8655 = vsel %vm5634, %v8591, %v7056
    %v8656 = vsel %vm5634, %v8592, %v7058
    %v8657 = vsel %vm5634, %v8593, %v7060
    %v8658 = vsel %vm5634, %v8594, %v7062
    %v8659 = vsel %vm5634, %v8595, %v7064
    %v8660 = vsel %vm5634, %v8596, %v7066
    %v8661 = vsel %vm5634, %v8597, %v7068
    %v8662 = vsel %vm5634, %v8598, %v7070
    %v8663 = vsel %vm5634, %v8599, %v7072
    %v8664 = vsel %vm5634, %v8600, %v7074
    %v8665 = vsel %vm5634, %v8601, %v7076
    %v8666 = vsel %vm5634, %v8602, %v7078
    %v8667 = vsel %vm5634, %v8603, %v7080
    %v8668 = vsel %vm5634, %v8604, %v7082
    %v8669 = vsel %vm5634, %v8605, %v7084
    %v8670 = vsel %vm5634, %v8606, %v7086
    %v8671 = vsel %vm5634, %v8607, %v7088
    %v8672 = vsel %vm5634, %v8608, %v7090
    %v8673 = vsel %vm5634, %v8609, %v7092
    %v8674 = vsel %vm5634, %v8610, %v7094
    %v8675 = vsel %vm5634, %v8611, %v7096
    %v8676 = vsel %vm5634, %v8612, %v7098
    %v8677 = vsel %vm5634, %v8613, %v7100
    %v8678 = vsel %vm5634, %v8614, %v7102
    %v8679 = vsel %vm5634, %v8615, %v7104
    %v8680 = vsel %vm5634, %v8616, %v7106
    %v8681 = vsel %vm5634, %v8617, %v7108
    %v8682 = vsel %vm5634, %v8618, %v7110
    %v8683 = vsel %vm5634, %v8619, %v7112
    %v8684 = vsel %vm5634, %v8620, %v7114
    %v8685 = vsel %vm5634, %v8621, %v7116
    %v8686 = vsel %vm5634, %v8622, %v7118
    %v8687 = vsel %vm5634, %v8623, %v7120
    %v8688 = vsel %vm5634, %v8624, %v7122
    %v8689 = vsel %vm5634, %v8625, %v7124
    %v8690 = vsel %vm5634, %v8626, %v7126
    %v8691 = vsel %vm5634, %v8627, %v7128
    %v8692 = vsel %vm5634, %v8628, %v7130
    %v8693 = vsel %vm5634, %v8629, %v7132
    %v8694 = vsel %vm5634, %v8630, %v7134
    %v8695 = vsel %vm5634, %v8631, %v7136
    %v8696 = vsel %vm5634, %v8632, %v7138
    %v8697 = vsel %vm5634, %v8633, %v7140
    %v8698 = vsel %vm5634, %v8634, %v7142
    %v8699 = vsel %vm5634, %v8635, %v7144
    %v8700 = vsel %vm5634, %v8636, %v7146
    %v8701 = vsel %vm5634, %v8637, %v7148
    %v8702 = vsel %vm5634, %v8638, %v7150
    %v8703 = vsel %vm5634, %v8639, %v7152
    %v8704 = vsel %vm5634, %v8640, %v7154
    %v8705 = vsel %vm5634, %v8641, %v7156
    %v8706 = vsel %vm5634, %v8642, %v7158
    %v8707 = vsel %vm5634, %v8643, %v7160
    %v8708 = vsel %vm5634, %v8644, %v7162
    %v8709 = vsel %vm5634, %v8645, %v7164
    %v8710 = vsel %vm5634, %v8646, %v7166
    %v8711 = vsel %vm5634, %v8647, %v7168
    %v8712 = vsel %vm5634, %v8648, %v7170
    %v8713 = vsel %vm5634, %v8649, %v7172
    %v8714 = vsel %vm5634, %v8650, %v7174
    %v8715 = vsel %vm5634, %v8651, %v7176
    %v8716 = vsel %vm5634, %v8652, %v7178
    %v8717 = vsel %vm5634, %v8653, %v7180
    %v8718 = vsel %vm5634, %v8654, %v7182
    %v8719 = vsel %vm5699, %v8655, %v7312
    %v8720 = vsel %vm5699, %v8656, %v7314
    %v8721 = vsel %vm5699, %v8657, %v7316
    %v8722 = vsel %vm5699, %v8658, %v7318
    %v8723 = vsel %vm5699, %v8659, %v7320
    %v8724 = vsel %vm5699, %v8660, %v7322
    %v8725 = vsel %vm5699, %v8661, %v7324
    %v8726 = vsel %vm5699, %v8662, %v7326
    %v8727 = vsel %vm5699, %v8663, %v7328
    %v8728 = vsel %vm5699, %v8664, %v7330
    %v8729 = vsel %vm5699, %v8665, %v7332
    %v8730 = vsel %vm5699, %v8666, %v7334
    %v8731 = vsel %vm5699, %v8667, %v7336
    %v8732 = vsel %vm5699, %v8668, %v7338
    %v8733 = vsel %vm5699, %v8669, %v7340
    %v8734 = vsel %vm5699, %v8670, %v7342
    %v8735 = vsel %vm5699, %v8671, %v7344
    %v8736 = vsel %vm5699, %v8672, %v7346
    %v8737 = vsel %vm5699, %v8673, %v7348
    %v8738 = vsel %vm5699, %v8674, %v7350
    %v8739 = vsel %vm5699, %v8675, %v7352
    %v8740 = vsel %vm5699, %v8676, %v7354
    %v8741 = vsel %vm5699, %v8677, %v7356
    %v8742 = vsel %vm5699, %v8678, %v7358
    %v8743 = vsel %vm5699, %v8679, %v7360
    %v8744 = vsel %vm5699, %v8680, %v7362
    %v8745 = vsel %vm5699, %v8681, %v7364
    %v8746 = vsel %vm5699, %v8682, %v7366
    %v8747 = vsel %vm5699, %v8683, %v7368
    %v8748 = vsel %vm5699, %v8684, %v7370
    %v8749 = vsel %vm5699, %v8685, %v7372
    %v8750 = vsel %vm5699, %v8686, %v7374
    %v8751 = vsel %vm5699, %v8687, %v7376
    %v8752 = vsel %vm5699, %v8688, %v7378
    %v8753 = vsel %vm5699, %v8689, %v7380
    %v8754 = vsel %vm5699, %v8690, %v7382
    %v8755 = vsel %vm5699, %v8691, %v7384
    %v8756 = vsel %vm5699, %v8692, %v7386
    %v8757 = vsel %vm5699, %v8693, %v7388
    %v8758 = vsel %vm5699, %v8694, %v7390
    %v8759 = vsel %vm5699, %v8695, %v7392
    %v8760 = vsel %vm5699, %v8696, %v7394
    %v8761 = vsel %vm5699, %v8697, %v7396
    %v8762 = vsel %vm5699, %v8698, %v7398
    %v8763 = vsel %vm5699, %v8699, %v7400
    %v8764 = vsel %vm5699, %v8700, %v7402
    %v8765 = vsel %vm5699, %v8701, %v7404
    %v8766 = vsel %vm5699, %v8702, %v7406
    %v8767 = vsel %vm5699, %v8703, %v7408
    %v8768 = vsel %vm5699, %v8704, %v7410
    %v8769 = vsel %vm5699, %v8705, %v7412
    %v8770 = vsel %vm5699, %v8706, %v7414
    %v8771 = vsel %vm5699, %v8707, %v7416
    %v8772 = vsel %vm5699, %v8708, %v7418
    %v8773 = vsel %vm5699, %v8709, %v7420
    %v8774 = vsel %vm5699, %v8710, %v7422
    %v8775 = vsel %vm5699, %v8711, %v7424
    %v8776 = vsel %vm5699, %v8712, %v7426
    %v8777 = vsel %vm5699, %v8713, %v7428
    %v8778 = vsel %vm5699, %v8714, %v7430
    %v8779 = vsel %vm5699, %v8715, %v7432
    %v8780 = vsel %vm5699, %v8716, %v7434
    %v8781 = vsel %vm5699, %v8717, %v7436
    %v8782 = vsel %vm5699, %v8718, %v7438
    %v8783 = vsel %vm5764, %v8719, %v7568
    %v8784 = vsel %vm5764, %v8720, %v7570
    %v8785 = vsel %vm5764, %v8721, %v7572
    %v8786 = vsel %vm5764, %v8722, %v7574
    %v8787 = vsel %vm5764, %v8723, %v7576
    %v8788 = vsel %vm5764, %v8724, %v7578
    %v8789 = vsel %vm5764, %v8725, %v7580
    %v8790 = vsel %vm5764, %v8726, %v7582
    %v8791 = vsel %vm5764, %v8727, %v7584
    %v8792 = vsel %vm5764, %v8728, %v7586
    %v8793 = vsel %vm5764, %v8729, %v7588
    %v8794 = vsel %vm5764, %v8730, %v7590
    %v8795 = vsel %vm5764, %v8731, %v7592
    %v8796 = vsel %vm5764, %v8732, %v7594
    %v8797 = vsel %vm5764, %v8733, %v7596
    %v8798 = vsel %vm5764, %v8734, %v7598
    %v8799 = vsel %vm5764, %v8735, %v7600
    %v8800 = vsel %vm5764, %v8736, %v7602
    %v8801 = vsel %vm5764, %v8737, %v7604
    %v8802 = vsel %vm5764, %v8738, %v7606
    %v8803 = vsel %vm5764, %v8739, %v7608
    %v8804 = vsel %vm5764, %v8740, %v7610
    %v8805 = vsel %vm5764, %v8741, %v7612
    %v8806 = vsel %vm5764, %v8742, %v7614
    %v8807 = vsel %vm5764, %v8743, %v7616
    %v8808 = vsel %vm5764, %v8744, %v7618
    %v8809 = vsel %vm5764, %v8745, %v7620
    %v8810 = vsel %vm5764, %v8746, %v7622
    %v8811 = vsel %vm5764, %v8747, %v7624
    %v8812 = vsel %vm5764, %v8748, %v7626
    %v8813 = vsel %vm5764, %v8749, %v7628
    %v8814 = vsel %vm5764, %v8750, %v7630
    %v8815 = vsel %vm5764, %v8751, %v7632
    %v8816 = vsel %vm5764, %v8752, %v7634
    %v8817 = vsel %vm5764, %v8753, %v7636
    %v8818 = vsel %vm5764, %v8754, %v7638
    %v8819 = vsel %vm5764, %v8755, %v7640
    %v8820 = vsel %vm5764, %v8756, %v7642
    %v8821 = vsel %vm5764, %v8757, %v7644
    %v8822 = vsel %vm5764, %v8758, %v7646
    %v8823 = vsel %vm5764, %v8759, %v7648
    %v8824 = vsel %vm5764, %v8760, %v7650
    %v8825 = vsel %vm5764, %v8761, %v7652
    %v8826 = vsel %vm5764, %v8762, %v7654
    %v8827 = vsel %vm5764, %v8763, %v7656
    %v8828 = vsel %vm5764, %v8764, %v7658
    %v8829 = vsel %vm5764, %v8765, %v7660
    %v8830 = vsel %vm5764, %v8766, %v7662
    %v8831 = vsel %vm5764, %v8767, %v7664
    %v8832 = vsel %vm5764, %v8768, %v7666
    %v8833 = vsel %vm5764, %v8769, %v7668
    %v8834 = vsel %vm5764, %v8770, %v7670
    %v8835 = vsel %vm5764, %v8771, %v7672
    %v8836 = vsel %vm5764, %v8772, %v7674
    %v8837 = vsel %vm5764, %v8773, %v7676
    %v8838 = vsel %vm5764, %v8774, %v7678
    %v8839 = vsel %vm5764, %v8775, %v7680
    %v8840 = vsel %vm5764, %v8776, %v7682
    %v8841 = vsel %vm5764, %v8777, %v7684
    %v8842 = vsel %vm5764, %v8778, %v7686
    %v8843 = vsel %vm5764, %v8779, %v7688
    %v8844 = vsel %vm5764, %v8780, %v7690
    %v8845 = vsel %vm5764, %v8781, %v7692
    %v8846 = vsel %vm5764, %v8782, %v7694
    %v8847 = vsel %vm5829, %v8783, %v7824
    %v8848 = vsel %vm5829, %v8784, %v7826
    %v8849 = vsel %vm5829, %v8785, %v7828
    %v8850 = vsel %vm5829, %v8786, %v7830
    %v8851 = vsel %vm5829, %v8787, %v7832
    %v8852 = vsel %vm5829, %v8788, %v7834
    %v8853 = vsel %vm5829, %v8789, %v7836
    %v8854 = vsel %vm5829, %v8790, %v7838
    %v8855 = vsel %vm5829, %v8791, %v7840
    %v8856 = vsel %vm5829, %v8792, %v7842
    %v8857 = vsel %vm5829, %v8793, %v7844
    %v8858 = vsel %vm5829, %v8794, %v7846
    %v8859 = vsel %vm5829, %v8795, %v7848
    %v8860 = vsel %vm5829, %v8796, %v7850
    %v8861 = vsel %vm5829, %v8797, %v7852
    %v8862 = vsel %vm5829, %v8798, %v7854
    %v8863 = vsel %vm5829, %v8799, %v7856
    %v8864 = vsel %vm5829, %v8800, %v7858
    %v8865 = vsel %vm5829, %v8801, %v7860
    %v8866 = vsel %vm5829, %v8802, %v7862
    %v8867 = vsel %vm5829, %v8803, %v7864
    %v8868 = vsel %vm5829, %v8804, %v7866
    %v8869 = vsel %vm5829, %v8805, %v7868
    %v8870 = vsel %vm5829, %v8806, %v7870
    %v8871 = vsel %vm5829, %v8807, %v7872
    %v8872 = vsel %vm5829, %v8808, %v7874
    %v8873 = vsel %vm5829, %v8809, %v7876
    %v8874 = vsel %vm5829, %v8810, %v7878
    %v8875 = vsel %vm5829, %v8811, %v7880
    %v8876 = vsel %vm5829, %v8812, %v7882
    %v8877 = vsel %vm5829, %v8813, %v7884
    %v8878 = vsel %vm5829, %v8814, %v7886
    %v8879 = vsel %vm5829, %v8815, %v7888
    %v8880 = vsel %vm5829, %v8816, %v7890
    %v8881 = vsel %vm5829, %v8817, %v7892
    %v8882 = vsel %vm5829, %v8818, %v7894
    %v8883 = vsel %vm5829, %v8819, %v7896
    %v8884 = vsel %vm5829, %v8820, %v7898
    %v8885 = vsel %vm5829, %v8821, %v7900
    %v8886 = vsel %vm5829, %v8822, %v7902
    %v8887 = vsel %vm5829, %v8823, %v7904
    %v8888 = vsel %vm5829, %v8824, %v7906
    %v8889 = vsel %vm5829, %v8825, %v7908
    %v8890 = vsel %vm5829, %v8826, %v7910
    %v8891 = vsel %vm5829, %v8827, %v7912
    %v8892 = vsel %vm5829, %v8828, %v7914
    %v8893 = vsel %vm5829, %v8829, %v7916
    %v8894 = vsel %vm5829, %v8830, %v7918
    %v8895 = vsel %vm5829, %v8831, %v7920
    %v8896 = vsel %vm5829, %v8832, %v7922
    %v8897 = vsel %vm5829, %v8833, %v7924
    %v8898 = vsel %vm5829, %v8834, %v7926
    %v8899 = vsel %vm5829, %v8835, %v7928
    %v8900 = vsel %vm5829, %v8836, %v7930
    %v8901 = vsel %vm5829, %v8837, %v7932
    %v8902 = vsel %vm5829, %v8838, %v7934
    %v8903 = vsel %vm5829, %v8839, %v7936
    %v8904 = vsel %vm5829, %v8840, %v7938
    %v8905 = vsel %vm5829, %v8841, %v7940
    %v8906 = vsel %vm5829, %v8842, %v7942
    %v8907 = vsel %vm5829, %v8843, %v7944
    %v8908 = vsel %vm5829, %v8844, %v7946
    %v8909 = vsel %vm5829, %v8845, %v7948
    %v8910 = vsel %vm5829, %v8846, %v7950
    %v8911 = vsel %vm5894, %v8847, %v8080
    %v8912 = vsel %vm5894, %v8848, %v8082
    %v8913 = vsel %vm5894, %v8849, %v8084
    %v8914 = vsel %vm5894, %v8850, %v8086
    %v8915 = vsel %vm5894, %v8851, %v8088
    %v8916 = vsel %vm5894, %v8852, %v8090
    %v8917 = vsel %vm5894, %v8853, %v8092
    %v8918 = vsel %vm5894, %v8854, %v8094
    %v8919 = vsel %vm5894, %v8855, %v8096
    %v8920 = vsel %vm5894, %v8856, %v8098
    %v8921 = vsel %vm5894, %v8857, %v8100
    %v8922 = vsel %vm5894, %v8858, %v8102
    %v8923 = vsel %vm5894, %v8859, %v8104
    %v8924 = vsel %vm5894, %v8860, %v8106
    %v8925 = vsel %vm5894, %v8861, %v8108
    %v8926 = vsel %vm5894, %v8862, %v8110
    %v8927 = vsel %vm5894, %v8863, %v8112
    %v8928 = vsel %vm5894, %v8864, %v8114
    %v8929 = vsel %vm5894, %v8865, %v8116
    %v8930 = vsel %vm5894, %v8866, %v8118
    %v8931 = vsel %vm5894, %v8867, %v8120
    %v8932 = vsel %vm5894, %v8868, %v8122
    %v8933 = vsel %vm5894, %v8869, %v8124
    %v8934 = vsel %vm5894, %v8870, %v8126
    %v8935 = vsel %vm5894, %v8871, %v8128
    %v8936 = vsel %vm5894, %v8872, %v8130
    %v8937 = vsel %vm5894, %v8873, %v8132
    %v8938 = vsel %vm5894, %v8874, %v8134
    %v8939 = vsel %vm5894, %v8875, %v8136
    %v8940 = vsel %vm5894, %v8876, %v8138
    %v8941 = vsel %vm5894, %v8877, %v8140
    %v8942 = vsel %vm5894, %v8878, %v8142
    %v8943 = vsel %vm5894, %v8879, %v8144
    %v8944 = vsel %vm5894, %v8880, %v8146
    %v8945 = vsel %vm5894, %v8881, %v8148
    %v8946 = vsel %vm5894, %v8882, %v8150
    %v8947 = vsel %vm5894, %v8883, %v8152
    %v8948 = vsel %vm5894, %v8884, %v8154
    %v8949 = vsel %vm5894, %v8885, %v8156
    %v8950 = vsel %vm5894, %v8886, %v8158
    %v8951 = vsel %vm5894, %v8887, %v8160
    %v8952 = vsel %vm5894, %v8888, %v8162
    %v8953 = vsel %vm5894, %v8889, %v8164
    %v8954 = vsel %vm5894, %v8890, %v8166
    %v8955 = vsel %vm5894, %v8891, %v8168
    %v8956 = vsel %vm5894, %v8892, %v8170
    %v8957 = vsel %vm5894, %v8893, %v8172
    %v8958 = vsel %vm5894, %v8894, %v8174
    %v8959 = vsel %vm5894, %v8895, %v8176
    %v8960 = vsel %vm5894, %v8896, %v8178
    %v8961 = vsel %vm5894, %v8897, %v8180
    %v8962 = vsel %vm5894, %v8898, %v8182
    %v8963 = vsel %vm5894, %v8899, %v8184
    %v8964 = vsel %vm5894, %v8900, %v8186
    %v8965 = vsel %vm5894, %v8901, %v8188
    %v8966 = vsel %vm5894, %v8902, %v8190
    %v8967 = vsel %vm5894, %v8903, %v8192
    %v8968 = vsel %vm5894, %v8904, %v8194
    %v8969 = vsel %vm5894, %v8905, %v8196
    %v8970 = vsel %vm5894, %v8906, %v8198
    %v8971 = vsel %vm5894, %v8907, %v8200
    %v8972 = vsel %vm5894, %v8908, %v8202
    %v8973 = vsel %vm5894, %v8909, %v8204
    %v8974 = vsel %vm5894, %v8910, %v8206
    %v8975 = vsel %vm5959, %v8911, %v8336
    %v8976 = vsel %vm5959, %v8912, %v8338
    %v8977 = vsel %vm5959, %v8913, %v8340
    %v8978 = vsel %vm5959, %v8914, %v8342
    %v8979 = vsel %vm5959, %v8915, %v8344
    %v8980 = vsel %vm5959, %v8916, %v8346
    %v8981 = vsel %vm5959, %v8917, %v8348
    %v8982 = vsel %vm5959, %v8918, %v8350
    %v8983 = vsel %vm5959, %v8919, %v8352
    %v8984 = vsel %vm5959, %v8920, %v8354
    %v8985 = vsel %vm5959, %v8921, %v8356
    %v8986 = vsel %vm5959, %v8922, %v8358
    %v8987 = vsel %vm5959, %v8923, %v8360
    %v8988 = vsel %vm5959, %v8924, %v8362
    %v8989 = vsel %vm5959, %v8925, %v8364
    %v8990 = vsel %vm5959, %v8926, %v8366
    %v8991 = vsel %vm5959, %v8927, %v8368
    %v8992 = vsel %vm5959, %v8928, %v8370
    %v8993 = vsel %vm5959, %v8929, %v8372
    %v8994 = vsel %vm5959, %v8930, %v8374
    %v8995 = vsel %vm5959, %v8931, %v8376
    %v8996 = vsel %vm5959, %v8932, %v8378
    %v8997 = vsel %vm5959, %v8933, %v8380
    %v8998 = vsel %vm5959, %v8934, %v8382
    %v8999 = vsel %vm5959, %v8935, %v8384
    %v9000 = vsel %vm5959, %v8936, %v8386
    %v9001 = vsel %vm5959, %v8937, %v8388
    %v9002 = vsel %vm5959, %v8938, %v8390
    %v9003 = vsel %vm5959, %v8939, %v8392
    %v9004 = vsel %vm5959, %v8940, %v8394
    %v9005 = vsel %vm5959, %v8941, %v8396
    %v9006 = vsel %vm5959, %v8942, %v8398
    %v9007 = vsel %vm5959, %v8943, %v8400
    %v9008 = vsel %vm5959, %v8944, %v8402
    %v9009 = vsel %vm5959, %v8945, %v8404
    %v9010 = vsel %vm5959, %v8946, %v8406
    %v9011 = vsel %vm5959, %v8947, %v8408
    %v9012 = vsel %vm5959, %v8948, %v8410
    %v9013 = vsel %vm5959, %v8949, %v8412
    %v9014 = vsel %vm5959, %v8950, %v8414
    %v9015 = vsel %vm5959, %v8951, %v8416
    %v9016 = vsel %vm5959, %v8952, %v8418
    %v9017 = vsel %vm5959, %v8953, %v8420
    %v9018 = vsel %vm5959, %v8954, %v8422
    %v9019 = vsel %vm5959, %v8955, %v8424
    %v9020 = vsel %vm5959, %v8956, %v8426
    %v9021 = vsel %vm5959, %v8957, %v8428
    %v9022 = vsel %vm5959, %v8958, %v8430
    %v9023 = vsel %vm5959, %v8959, %v8432
    %v9024 = vsel %vm5959, %v8960, %v8434
    %v9025 = vsel %vm5959, %v8961, %v8436
    %v9026 = vsel %vm5959, %v8962, %v8438
    %v9027 = vsel %vm5959, %v8963, %v8440
    %v9028 = vsel %vm5959, %v8964, %v8442
    %v9029 = vsel %vm5959, %v8965, %v8444
    %v9030 = vsel %vm5959, %v8966, %v8446
    %v9031 = vsel %vm5959, %v8967, %v8448
    %v9032 = vsel %vm5959, %v8968, %v8450
    %v9033 = vsel %vm5959, %v8969, %v8452
    %v9034 = vsel %vm5959, %v8970, %v8454
    %v9035 = vsel %vm5959, %v8971, %v8456
    %v9036 = vsel %vm5959, %v8972, %v8458
    %v9037 = vsel %vm5959, %v8973, %v8460
    %v9038 = vsel %vm5959, %v8974, %v8462
    %9103 = vrot.lane.b32.xlu0 %v8975, 48
    %v9104 = vpop.permute.xlu0 %9103
    %9105 = vrot.lane.b32.xlu0 %v8976, 48
    %v9106 = vpop.permute.xlu0 %9105
    %9107 = vrot.lane.b32.xlu0 %v8977, 48
    %v9108 = vpop.permute.xlu0 %9107
    %9109 = vrot.lane.b32.xlu0 %v8978, 48
    %v9110 = vpop.permute.xlu0 %9109
    %9111 = vrot.lane.b32.xlu0 %v8979, 48
    %v9112 = vpop.permute.xlu0 %9111
    %9113 = vrot.lane.b32.xlu0 %v8980, 48
    %v9114 = vpop.permute.xlu0 %9113
    %9115 = vrot.lane.b32.xlu0 %v8981, 48
    %v9116 = vpop.permute.xlu0 %9115
    %9117 = vrot.lane.b32.xlu0 %v8982, 48
    %v9118 = vpop.permute.xlu0 %9117
    %9119 = vrot.lane.b32.xlu0 %v8983, 48
    %v9120 = vpop.permute.xlu0 %9119
    %9121 = vrot.lane.b32.xlu0 %v8984, 48
    %v9122 = vpop.permute.xlu0 %9121
    %9123 = vrot.lane.b32.xlu0 %v8985, 48
    %v9124 = vpop.permute.xlu0 %9123
    %9125 = vrot.lane.b32.xlu0 %v8986, 48
    %v9126 = vpop.permute.xlu0 %9125
    %9127 = vrot.lane.b32.xlu0 %v8987, 48
    %v9128 = vpop.permute.xlu0 %9127
    %9129 = vrot.lane.b32.xlu0 %v8988, 48
    %v9130 = vpop.permute.xlu0 %9129
    %9131 = vrot.lane.b32.xlu0 %v8989, 48
    %v9132 = vpop.permute.xlu0 %9131
    %9133 = vrot.lane.b32.xlu0 %v8990, 48
    %v9134 = vpop.permute.xlu0 %9133
    %9135 = vrot.lane.b32.xlu0 %v8991, 48
    %v9136 = vpop.permute.xlu0 %9135
    %9137 = vrot.lane.b32.xlu0 %v8992, 48
    %v9138 = vpop.permute.xlu0 %9137
    %9139 = vrot.lane.b32.xlu0 %v8993, 48
    %v9140 = vpop.permute.xlu0 %9139
    %9141 = vrot.lane.b32.xlu0 %v8994, 48
    %v9142 = vpop.permute.xlu0 %9141
    %9143 = vrot.lane.b32.xlu0 %v8995, 48
    %v9144 = vpop.permute.xlu0 %9143
    %9145 = vrot.lane.b32.xlu0 %v8996, 48
    %v9146 = vpop.permute.xlu0 %9145
    %9147 = vrot.lane.b32.xlu0 %v8997, 48
    %v9148 = vpop.permute.xlu0 %9147
    %9149 = vrot.lane.b32.xlu0 %v8998, 48
    %v9150 = vpop.permute.xlu0 %9149
    %9151 = vrot.lane.b32.xlu0 %v8999, 48
    %v9152 = vpop.permute.xlu0 %9151
    %9153 = vrot.lane.b32.xlu0 %v9000, 48
    %v9154 = vpop.permute.xlu0 %9153
    %9155 = vrot.lane.b32.xlu0 %v9001, 48
    %v9156 = vpop.permute.xlu0 %9155
    %9157 = vrot.lane.b32.xlu0 %v9002, 48
    %v9158 = vpop.permute.xlu0 %9157
    %9159 = vrot.lane.b32.xlu0 %v9003, 48
    %v9160 = vpop.permute.xlu0 %9159
    %9161 = vrot.lane.b32.xlu0 %v9004, 48
    %v9162 = vpop.permute.xlu0 %9161
    %9163 = vrot.lane.b32.xlu0 %v9005, 48
    %v9164 = vpop.permute.xlu0 %9163
    %9165 = vrot.lane.b32.xlu0 %v9006, 48
    %v9166 = vpop.permute.xlu0 %9165
    %9167 = vrot.lane.b32.xlu0 %v9007, 48
    %v9168 = vpop.permute.xlu0 %9167
    %9169 = vrot.lane.b32.xlu0 %v9008, 48
    %v9170 = vpop.permute.xlu0 %9169
    %9171 = vrot.lane.b32.xlu0 %v9009, 48
    %v9172 = vpop.permute.xlu0 %9171
    %9173 = vrot.lane.b32.xlu0 %v9010, 48
    %v9174 = vpop.permute.xlu0 %9173
    %9175 = vrot.lane.b32.xlu0 %v9011, 48
    %v9176 = vpop.permute.xlu0 %9175
    %9177 = vrot.lane.b32.xlu0 %v9012, 48
    %v9178 = vpop.permute.xlu0 %9177
    %9179 = vrot.lane.b32.xlu0 %v9013, 48
    %v9180 = vpop.permute.xlu0 %9179
    %9181 = vrot.lane.b32.xlu0 %v9014, 48
    %v9182 = vpop.permute.xlu0 %9181
    %9183 = vrot.lane.b32.xlu0 %v9015, 48
    %v9184 = vpop.permute.xlu0 %9183
    %9185 = vrot.lane.b32.xlu0 %v9016, 48
    %v9186 = vpop.permute.xlu0 %9185
    %9187 = vrot.lane.b32.xlu0 %v9017, 48
    %v9188 = vpop.permute.xlu0 %9187
    %9189 = vrot.lane.b32.xlu0 %v9018, 48
    %v9190 = vpop.permute.xlu0 %9189
    %9191 = vrot.lane.b32.xlu0 %v9019, 48
    %v9192 = vpop.permute.xlu0 %9191
    %9193 = vrot.lane.b32.xlu0 %v9020, 48
    %v9194 = vpop.permute.xlu0 %9193
    %9195 = vrot.lane.b32.xlu0 %v9021, 48
    %v9196 = vpop.permute.xlu0 %9195
    %9197 = vrot.lane.b32.xlu0 %v9022, 48
    %v9198 = vpop.permute.xlu0 %9197
    %9199 = vrot.lane.b32.xlu0 %v9023, 48
    %v9200 = vpop.permute.xlu0 %9199
    %9201 = vrot.lane.b32.xlu0 %v9024, 48
    %v9202 = vpop.permute.xlu0 %9201
    %9203 = vrot.lane.b32.xlu0 %v9025, 48
    %v9204 = vpop.permute.xlu0 %9203
    %9205 = vrot.lane.b32.xlu0 %v9026, 48
    %v9206 = vpop.permute.xlu0 %9205
    %9207 = vrot.lane.b32.xlu0 %v9027, 48
    %v9208 = vpop.permute.xlu0 %9207
    %9209 = vrot.lane.b32.xlu0 %v9028, 48
    %v9210 = vpop.permute.xlu0 %9209
    %9211 = vrot.lane.b32.xlu0 %v9029, 48
    %v9212 = vpop.permute.xlu0 %9211
    %9213 = vrot.lane.b32.xlu0 %v9030, 48
    %v9214 = vpop.permute.xlu0 %9213
    %9215 = vrot.lane.b32.xlu0 %v9031, 48
    %v9216 = vpop.permute.xlu0 %9215
    %9217 = vrot.lane.b32.xlu0 %v9032, 48
    %v9218 = vpop.permute.xlu0 %9217
    %9219 = vrot.lane.b32.xlu0 %v9033, 48
    %v9220 = vpop.permute.xlu0 %9219
    %9221 = vrot.lane.b32.xlu0 %v9034, 48
    %v9222 = vpop.permute.xlu0 %9221
    %9223 = vrot.lane.b32.xlu0 %v9035, 48
    %v9224 = vpop.permute.xlu0 %9223
    %9225 = vrot.lane.b32.xlu0 %v9036, 48
    %v9226 = vpop.permute.xlu0 %9225
    %9227 = vrot.lane.b32.xlu0 %v9037, 48
    %v9228 = vpop.permute.xlu0 %9227
    %9229 = vrot.lane.b32.xlu0 %v9038, 48
    %v9230 = vpop.permute.xlu0 %9229
    %vm9295 = vcmask 392192
    %v9296 = vsel %vm9295, %v6415, %v9104
    %v9297 = vsel %vm9295, %v6416, %v9106
    %v9298 = vsel %vm9295, %v6417, %v9108
    %v9299 = vsel %vm9295, %v6418, %v9110
    %v9300 = vsel %vm9295, %v6419, %v9112
    %v9301 = vsel %vm9295, %v6420, %v9114
    %v9302 = vsel %vm9295, %v6421, %v9116
    %v9303 = vsel %vm9295, %v6422, %v9118
    %v9304 = vsel %vm9295, %v6423, %v9120
    %v9305 = vsel %vm9295, %v6424, %v9122
    %v9306 = vsel %vm9295, %v6425, %v9124
    %v9307 = vsel %vm9295, %v6426, %v9126
    %v9308 = vsel %vm9295, %v6427, %v9128
    %v9309 = vsel %vm9295, %v6428, %v9130
    %v9310 = vsel %vm9295, %v6429, %v9132
    %v9311 = vsel %vm9295, %v6430, %v9134
    %v9312 = vsel %vm9295, %v6431, %v9136
    %v9313 = vsel %vm9295, %v6432, %v9138
    %v9314 = vsel %vm9295, %v6433, %v9140
    %v9315 = vsel %vm9295, %v6434, %v9142
    %v9316 = vsel %vm9295, %v6435, %v9144
    %v9317 = vsel %vm9295, %v6436, %v9146
    %v9318 = vsel %vm9295, %v6437, %v9148
    %v9319 = vsel %vm9295, %v6438, %v9150
    %v9320 = vsel %vm9295, %v6439, %v9152
    %v9321 = vsel %vm9295, %v6440, %v9154
    %v9322 = vsel %vm9295, %v6441, %v9156
    %v9323 = vsel %vm9295, %v6442, %v9158
    %v9324 = vsel %vm9295, %v6443, %v9160
    %v9325 = vsel %vm9295, %v6444, %v9162
    %v9326 = vsel %vm9295, %v6445, %v9164
    %v9327 = vsel %vm9295, %v6446, %v9166
    %v9328 = vsel %vm9295, %v6447, %v9168
    %v9329 = vsel %vm9295, %v6448, %v9170
    %v9330 = vsel %vm9295, %v6449, %v9172
    %v9331 = vsel %vm9295, %v6450, %v9174
    %v9332 = vsel %vm9295, %v6451, %v9176
    %v9333 = vsel %vm9295, %v6452, %v9178
    %v9334 = vsel %vm9295, %v6453, %v9180
    %v9335 = vsel %vm9295, %v6454, %v9182
    %v9336 = vsel %vm9295, %v6455, %v9184
    %v9337 = vsel %vm9295, %v6456, %v9186
    %v9338 = vsel %vm9295, %v6457, %v9188
    %v9339 = vsel %vm9295, %v6458, %v9190
    %v9340 = vsel %vm9295, %v6459, %v9192
    %v9341 = vsel %vm9295, %v6460, %v9194
    %v9342 = vsel %vm9295, %v6461, %v9196
    %v9343 = vsel %vm9295, %v6462, %v9198
    %v9344 = vsel %vm9295, %v6463, %v9200
    %v9345 = vsel %vm9295, %v6464, %v9202
    %v9346 = vsel %vm9295, %v6465, %v9204
    %v9347 = vsel %vm9295, %v6466, %v9206
    %v9348 = vsel %vm9295, %v6467, %v9208
    %v9349 = vsel %vm9295, %v6468, %v9210
    %v9350 = vsel %vm9295, %v6469, %v9212
    %v9351 = vsel %vm9295, %v6470, %v9214
    %v9352 = vsel %vm9295, %v6471, %v9216
    %v9353 = vsel %vm9295, %v6472, %v9218
    %v9354 = vsel %vm9295, %v6473, %v9220
    %v9355 = vsel %vm9295, %v6474, %v9222
    %v9356 = vsel %vm9295, %v6475, %v9224
    %v9357 = vsel %vm9295, %v6476, %v9226
    %v9358 = vsel %vm9295, %v6477, %v9228
    %v9359 = vsel %vm9295, %v6478, %v9230
    %v9360 = vld [vmem:[%s1] sm:$0xff]
    %v9361 = vld [vmem:[%s1 + $0x8] sm:$0xff]
    %v9362 = vld [vmem:[%s1 + $0x10] sm:$0xff]
    %v9363 = vld [vmem:[%s1 + $0x18] sm:$0xff]
    %v9364 = vld [vmem:[%s1 + $0x20] sm:$0xff]
    %v9365 = vld [vmem:[%s1 + $0x28] sm:$0xff]
    %v9366 = vld [vmem:[%s1 + $0x30] sm:$0xff]
    %v9367 = vld [vmem:[%s1 + $0x38] sm:$0xff]
    %v9368 = vld [vmem:[%s1 + $0x40] sm:$0xff]
    %v9369 = vld [vmem:[%s1 + $0x48] sm:$0x7]
    %vm9370 = vcmask 613376
    %v9372 = vsel %vm9370, %v9296, 0
    %v9375 = vsel %vm9370, %v9297, 0
    %v9378 = vsel %vm9370, %v9298, 0
    %v9381 = vsel %vm9370, %v9299, 0
    %v9384 = vsel %vm9370, %v9300, 0
    %v9387 = vsel %vm9370, %v9301, 0
    %v9390 = vsel %vm9370, %v9302, 0
    %v9393 = vsel %vm9370, %v9303, 0
    %v9396 = vsel %vm9370, %v9304, 0
    %v9399 = vsel %vm9370, %v9305, 0
    %v9402 = vsel %vm9370, %v9306, 0
    %v9405 = vsel %vm9370, %v9307, 0
    %v9408 = vsel %vm9370, %v9308, 0
    %v9411 = vsel %vm9370, %v9309, 0
    %v9414 = vsel %vm9370, %v9310, 0
    %v9417 = vsel %vm9370, %v9311, 0
    %v9420 = vsel %vm9370, %v9312, 0
    %v9423 = vsel %vm9370, %v9313, 0
    %v9426 = vsel %vm9370, %v9314, 0
    %v9429 = vsel %vm9370, %v9315, 0
    %v9432 = vsel %vm9370, %v9316, 0
    %v9435 = vsel %vm9370, %v9317, 0
    %v9438 = vsel %vm9370, %v9318, 0
    %v9441 = vsel %vm9370, %v9319, 0
    %v9444 = vsel %vm9370, %v9320, 0
    %v9447 = vsel %vm9370, %v9321, 0
    %v9450 = vsel %vm9370, %v9322, 0
    %v9453 = vsel %vm9370, %v9323, 0
    %v9456 = vsel %vm9370, %v9324, 0
    %v9459 = vsel %vm9370, %v9325, 0
    %v9462 = vsel %vm9370, %v9326, 0
    %v9465 = vsel %vm9370, %v9327, 0
    %v9468 = vsel %vm9370, %v9328, 0
    %v9471 = vsel %vm9370, %v9329, 0
    %v9474 = vsel %vm9370, %v9330, 0
    %v9477 = vsel %vm9370, %v9331, 0
    %v9480 = vsel %vm9370, %v9332, 0
    %v9483 = vsel %vm9370, %v9333, 0
    %v9486 = vsel %vm9370, %v9334, 0
    %v9489 = vsel %vm9370, %v9335, 0
    %v9492 = vsel %vm9370, %v9336, 0
    %v9495 = vsel %vm9370, %v9337, 0
    %v9498 = vsel %vm9370, %v9338, 0
    %v9501 = vsel %vm9370, %v9339, 0
    %v9504 = vsel %vm9370, %v9340, 0
    %v9507 = vsel %vm9370, %v9341, 0
    %v9510 = vsel %vm9370, %v9342, 0
    %v9513 = vsel %vm9370, %v9343, 0
    %v9516 = vsel %vm9370, %v9344, 0
    %v9519 = vsel %vm9370, %v9345, 0
    %v9522 = vsel %vm9370, %v9346, 0
    %v9525 = vsel %vm9370, %v9347, 0
    %v9528 = vsel %vm9370, %v9348, 0
    %v9531 = vsel %vm9370, %v9349, 0
    %v9534 = vsel %vm9370, %v9350, 0
    %v9537 = vsel %vm9370, %v9351, 0
    %v9540 = vsel %vm9370, %v9352, 0
    %v9543 = vsel %vm9370, %v9353, 0
    %v9546 = vsel %vm9370, %v9354, 0
    %v9549 = vsel %vm9370, %v9355, 0
    %v9552 = vsel %vm9370, %v9356, 0
    %v9555 = vsel %vm9370, %v9357, 0
    %v9558 = vsel %vm9370, %v9358, 0
    %v9561 = vsel %vm9370, %v9359, 0
    %vm9563 = vcmask 1042432
    %v9565 = vsel %vm9563, %v9369, 0
    %9567 = vmatprep.subr.mxu0 0.0
    %9568 = vmatpush1.msra.mxu0 %v9360
    %9569 = vmatprep.subr.mxu0 0.0
    %9570 = vmatpush1.msra.mxu0 %v9361
    %9571 = vmatprep.subr.mxu0 0.0
    %9572 = vmatpush1.msra.mxu0 %v9362
    %9573 = vmatprep.subr.mxu0 0.0
    %9574 = vmatpush1.msra.mxu0 %v9363
    %9575 = vmatprep.subr.mxu0 0.0
    %9576 = vmatpush1.msra.mxu0 %v9364
    %9577 = vmatprep.subr.mxu0 0.0
    %9578 = vmatpush1.msra.mxu0 %v9365
    %9579 = vmatprep.subr.mxu0 0.0
    %9580 = vmatpush1.msra.mxu0 %v9366
    %9581 = vmatprep.subr.mxu0 0.0
    %9582 = vmatpush1.msra.mxu0 %v9367
    %9583 = vmatprep.subr.mxu0 0.0
    %9584 = vmatpush1.msra.mxu0 %v9368
    %9585 = vmatprep.subr.mxu0 0.0
    %9586 = vmatpush1.msra.mxu0 %v9565
    %9587 = vmatprep.subr.mxu0 0.0
    %9588 = vmatpush1.msra.mxu0 0.0
    %9589 = vmatprep.subr.mxu0 0.0
    %9590 = vmatpush1.msra.mxu0 0.0
    %9591 = vmatprep.subr.mxu0 0.0
    %9592 = vmatpush1.msra.mxu0 0.0
    %9593 = vmatprep.subr.mxu0 0.0
    %9594 = vmatpush1.msra.mxu0 0.0
    %9595 = vmatprep.subr.mxu0 0.0
    %9596 = vmatpush1.msra.mxu0 0.0
    %9597 = vmatprep.subr.mxu0 0.0
    %9598 = vmatpush1.msra.mxu0 0.0
    %9599 = vmatprep.subr.mxu0 0.0
    %9600 = vmatpush1.msra.mxu0 0.0
    %9601 = vmatprep.subr.mxu0 0.0
    %9602 = vmatpush1.msra.mxu0 0.0
    %9603 = vmatprep.subr.mxu0 0.0
    %9604 = vmatpush1.msra.mxu0 0.0
    %9605 = vmatprep.subr.mxu0 0.0
    %9606 = vmatpush1.msra.mxu0 0.0
    %9607 = vmatprep.subr.mxu0 0.0
    %9608 = vmatpush1.msra.mxu0 0.0
    %9609 = vmatprep.subr.mxu0 0.0
    %9610 = vmatpush1.msra.mxu0 0.0
    %9611 = vmatprep.subr.mxu0 0.0
    %9612 = vmatpush1.msra.mxu0 0.0
    %9613 = vmatprep.subr.mxu0 0.0
    %9614 = vmatpush1.msra.mxu0 0.0
    %9615 = vmatprep.subr.mxu0 0.0
    %9616 = vmatpush1.msra.mxu0 0.0
    %9617 = vmatprep.subr.mxu0 0.0
    %9618 = vmatpush1.msra.mxu0 0.0
    %9619 = vmatprep.subr.mxu0 0.0
    %9620 = vmatpush1.msra.mxu0 0.0
    %9621 = vmatprep.subr.mxu0 0.0
    %9622 = vmatpush1.msra.mxu0 0.0
    %9623 = vmatprep.subr.mxu0 0.0
    %9624 = vmatpush1.msra.mxu0 0.0
    %9625 = vmatprep.subr.mxu0 0.0
    %9626 = vmatpush1.msra.mxu0 0.0
    %9627 = vmatprep.subr.mxu0 0.0
    %9628 = vmatpush1.msra.mxu0 0.0
    %9629 = vmatprep.subr.mxu0 0.0
    %9630 = vmatpush1.msra.mxu0 0.0
    %9631 = vmatprep.mubr.f32.mxu0 0.0
    %9632 = vmatmul.mubr.f32.gmra.mrb[0].mxu0 %v9372
    %v9633 = vpop.f32.mrb[0].mxu0
    %v9634 = vadd.f32 0.0, %v9633
    %v9635 = vpop.f32.mrb[0].mxu0
    %9636 = vmatprep.mubr.f32.mxu0 0.0
    %9637 = vmatmul.mubr.f32.gmra.mrb[0].mxu0 %v9375
    %v9638 = vpop.f32.mrb[0].mxu0
    %v9639 = vadd.f32 0.0, %v9638
    %v9640 = vpop.f32.mrb[0].mxu0
    %9641 = vmatprep.mubr.f32.mxu0 0.0
    %9642 = vmatmul.mubr.f32.gmra.mrb[0].mxu0 %v9378
    %v9643 = vpop.f32.mrb[0].mxu0
    %v9644 = vadd.f32 0.0, %v9643
    %v9645 = vpop.f32.mrb[0].mxu0
    %9646 = vmatprep.mubr.f32.mxu0 0.0
    %9647 = vmatmul.mubr.f32.gmra.mrb[0].mxu0 %v9381
    %v9648 = vpop.f32.mrb[0].mxu0
    %v9649 = vadd.f32 0.0, %v9648
    %v9650 = vpop.f32.mrb[0].mxu0
    %9651 = vmatprep.mubr.f32.mxu0 0.0
    %9652 = vmatmul.mubr.f32.gmra.mrb[0].mxu0 %v9384
    %v9653 = vpop.f32.mrb[0].mxu0
    %v9654 = vadd.f32 0.0, %v9653
    %v9655 = vpop.f32.mrb[0].mxu0
    %9656 = vmatprep.mubr.f32.mxu0 0.0
    %9657 = vmatmul.mubr.f32.gmra.mrb[0].mxu0 %v9387
    %v9658 = vpop.f32.mrb[0].mxu0
    %v9659 = vadd.f32 0.0, %v9658
    %v9660 = vpop.f32.mrb[0].mxu0
    %9661 = vmatprep.mubr.f32.mxu0 0.0
    %9662 = vmatmul.mubr.f32.gmra.mrb[0].mxu0 %v9390
    %v9663 = vpop.f32.mrb[0].mxu0
    %v9664 = vadd.f32 0.0, %v9663
    %v9665 = vpop.f32.mrb[0].mxu0
    %9666 = vmatprep.mubr.f32.mxu0 0.0
    %9667 = vmatmul.mubr.f32.gmra.mrb[0].mxu0 %v9393
    %v9668 = vpop.f32.mrb[0].mxu0
    %v9669 = vadd.f32 0.0, %v9668
    %v9670 = vpop.f32.mrb[0].mxu0
    %9671 = vmatprep.mubr.f32.mxu0 0.0
    %9672 = vmatmul.mubr.f32.gmra.mrb[0].mxu0 %v9396
    %v9673 = vpop.f32.mrb[0].mxu0
    %v9674 = vadd.f32 0.0, %v9673
    %v9675 = vpop.f32.mrb[0].mxu0
    %9676 = vmatprep.mubr.f32.mxu0 0.0
    %9677 = vmatmul.mubr.f32.gmra.mrb[0].mxu0 %v9399
    %v9678 = vpop.f32.mrb[0].mxu0
    %v9679 = vadd.f32 0.0, %v9678
    %v9680 = vpop.f32.mrb[0].mxu0
    %9681 = vmatprep.mubr.f32.mxu0 0.0
    %9682 = vmatmul.mubr.f32.gmra.mrb[0].mxu0 %v9402
    %v9683 = vpop.f32.mrb[0].mxu0
    %v9684 = vadd.f32 0.0, %v9683
    %v9685 = vpop.f32.mrb[0].mxu0
    %9686 = vmatprep.mubr.f32.mxu0 0.0
    %9687 = vmatmul.mubr.f32.gmra.mrb[0].mxu0 %v9405
    %v9688 = vpop.f32.mrb[0].mxu0
    %v9689 = vadd.f32 0.0, %v9688
    %v9690 = vpop.f32.mrb[0].mxu0
    %9691 = vmatprep.mubr.f32.mxu0 0.0
    %9692 = vmatmul.mubr.f32.gmra.mrb[0].mxu0 %v9408
    %v9693 = vpop.f32.mrb[0].mxu0
    %v9694 = vadd.f32 0.0, %v9693
    %v9695 = vpop.f32.mrb[0].mxu0
    %9696 = vmatprep.mubr.f32.mxu0 0.0
    %9697 = vmatmul.mubr.f32.gmra.mrb[0].mxu0 %v9411
    %v9698 = vpop.f32.mrb[0].mxu0
    %v9699 = vadd.f32 0.0, %v9698
    %v9700 = vpop.f32.mrb[0].mxu0
    %9701 = vmatprep.mubr.f32.mxu0 0.0
    %9702 = vmatmul.mubr.f32.gmra.mrb[0].mxu0 %v9414
    %v9703 = vpop.f32.mrb[0].mxu0
    %v9704 = vadd.f32 0.0, %v9703
    %v9705 = vpop.f32.mrb[0].mxu0
    %9706 = vmatprep.mubr.f32.mxu0 0.0
    %9707 = vmatmul.mubr.f32.gmra.mrb[0].mxu0 %v9417
    %v9708 = vpop.f32.mrb[0].mxu0
    %v9709 = vadd.f32 0.0, %v9708
    %v9710 = vpop.f32.mrb[0].mxu0
    %9711 = vmatprep.mubr.f32.mxu0 0.0
    %9712 = vmatmul.mubr.f32.gmra.mrb[0].mxu0 %v9420
    %v9713 = vpop.f32.mrb[0].mxu0
    %v9714 = vadd.f32 0.0, %v9713
    %v9715 = vpop.f32.mrb[0].mxu0
    %9716 = vmatprep.mubr.f32.mxu0 0.0
    %9717 = vmatmul.mubr.f32.gmra.mrb[0].mxu0 %v9423
    %v9718 = vpop.f32.mrb[0].mxu0
    %v9719 = vadd.f32 0.0, %v9718
    %v9720 = vpop.f32.mrb[0].mxu0
    %9721 = vmatprep.mubr.f32.mxu0 0.0
    %9722 = vmatmul.mubr.f32.gmra.mrb[0].mxu0 %v9426
    %v9723 = vpop.f32.mrb[0].mxu0
    %v9724 = vadd.f32 0.0, %v9723
    %v9725 = vpop.f32.mrb[0].mxu0
    %9726 = vmatprep.mubr.f32.mxu0 0.0
    %9727 = vmatmul.mubr.f32.gmra.mrb[0].mxu0 %v9429
    %v9728 = vpop.f32.mrb[0].mxu0
    %v9729 = vadd.f32 0.0, %v9728
    %v9730 = vpop.f32.mrb[0].mxu0
    %9731 = vmatprep.mubr.f32.mxu0 0.0
    %9732 = vmatmul.mubr.f32.gmra.mrb[0].mxu0 %v9432
    %v9733 = vpop.f32.mrb[0].mxu0
    %v9734 = vadd.f32 0.0, %v9733
    %v9735 = vpop.f32.mrb[0].mxu0
    %9736 = vmatprep.mubr.f32.mxu0 0.0
    %9737 = vmatmul.mubr.f32.gmra.mrb[0].mxu0 %v9435
    %v9738 = vpop.f32.mrb[0].mxu0
    %v9739 = vadd.f32 0.0, %v9738
    %v9740 = vpop.f32.mrb[0].mxu0
    %9741 = vmatprep.mubr.f32.mxu0 0.0
    %9742 = vmatmul.mubr.f32.gmra.mrb[0].mxu0 %v9438
    %v9743 = vpop.f32.mrb[0].mxu0
    %v9744 = vadd.f32 0.0, %v9743
    %v9745 = vpop.f32.mrb[0].mxu0
    %9746 = vmatprep.mubr.f32.mxu0 0.0
    %9747 = vmatmul.mubr.f32.gmra.mrb[0].mxu0 %v9441
    %v9748 = vpop.f32.mrb[0].mxu0
    %v9749 = vadd.f32 0.0, %v9748
    %v9750 = vpop.f32.mrb[0].mxu0
    %9751 = vmatprep.mubr.f32.mxu0 0.0
    %9752 = vmatmul.mubr.f32.gmra.mrb[0].mxu0 %v9444
    %v9753 = vpop.f32.mrb[0].mxu0
    %v9754 = vadd.f32 0.0, %v9753
    %v9755 = vpop.f32.mrb[0].mxu0
    %9756 = vmatprep.mubr.f32.mxu0 0.0
    %9757 = vmatmul.mubr.f32.gmra.mrb[0].mxu0 %v9447
    %v9758 = vpop.f32.mrb[0].mxu0
    %v9759 = vadd.f32 0.0, %v9758
    %v9760 = vpop.f32.mrb[0].mxu0
    %9761 = vmatprep.mubr.f32.mxu0 0.0
    %9762 = vmatmul.mubr.f32.gmra.mrb[0].mxu0 %v9450
    %v9763 = vpop.f32.mrb[0].mxu0
    %v9764 = vadd.f32 0.0, %v9763
    %v9765 = vpop.f32.mrb[0].mxu0
    %9766 = vmatprep.mubr.f32.mxu0 0.0
    %9767 = vmatmul.mubr.f32.gmra.mrb[0].mxu0 %v9453
    %v9768 = vpop.f32.mrb[0].mxu0
    %v9769 = vadd.f32 0.0, %v9768
    %v9770 = vpop.f32.mrb[0].mxu0
    %9771 = vmatprep.mubr.f32.mxu0 0.0
    %9772 = vmatmul.mubr.f32.gmra.mrb[0].mxu0 %v9456
    %v9773 = vpop.f32.mrb[0].mxu0
    %v9774 = vadd.f32 0.0, %v9773
    %v9775 = vpop.f32.mrb[0].mxu0
    %9776 = vmatprep.mubr.f32.mxu0 0.0
    %9777 = vmatmul.mubr.f32.gmra.mrb[0].mxu0 %v9459
    %v9778 = vpop.f32.mrb[0].mxu0
    %v9779 = vadd.f32 0.0, %v9778
    %v9780 = vpop.f32.mrb[0].mxu0
    %9781 = vmatprep.mubr.f32.mxu0 0.0
    %9782 = vmatmul.mubr.f32.gmra.mrb[0].mxu0 %v9462
    %v9783 = vpop.f32.mrb[0].mxu0
    %v9784 = vadd.f32 0.0, %v9783
    %v9785 = vpop.f32.mrb[0].mxu0
    %9786 = vmatprep.mubr.f32.mxu0 0.0
    %9787 = vmatmul.mubr.f32.gmra.mrb[0].mxu0 %v9465
    %v9788 = vpop.f32.mrb[0].mxu0
    %v9789 = vadd.f32 0.0, %v9788
    %v9790 = vpop.f32.mrb[0].mxu0
    %9791 = vmatprep.mubr.f32.mxu0 0.0
    %9792 = vmatmul.mubr.f32.gmra.mrb[0].mxu0 %v9468
    %v9793 = vpop.f32.mrb[0].mxu0
    %v9794 = vadd.f32 0.0, %v9793
    %v9795 = vpop.f32.mrb[0].mxu0
    %9796 = vmatprep.mubr.f32.mxu0 0.0
    %9797 = vmatmul.mubr.f32.gmra.mrb[0].mxu0 %v9471
    %v9798 = vpop.f32.mrb[0].mxu0
    %v9799 = vadd.f32 0.0, %v9798
    %v9800 = vpop.f32.mrb[0].mxu0
    %9801 = vmatprep.mubr.f32.mxu0 0.0
    %9802 = vmatmul.mubr.f32.gmra.mrb[0].mxu0 %v9474
    %v9803 = vpop.f32.mrb[0].mxu0
    %v9804 = vadd.f32 0.0, %v9803
    %v9805 = vpop.f32.mrb[0].mxu0
    %9806 = vmatprep.mubr.f32.mxu0 0.0
    %9807 = vmatmul.mubr.f32.gmra.mrb[0].mxu0 %v9477
    %v9808 = vpop.f32.mrb[0].mxu0
    %v9809 = vadd.f32 0.0, %v9808
    %v9810 = vpop.f32.mrb[0].mxu0
    %9811 = vmatprep.mubr.f32.mxu0 0.0
    %9812 = vmatmul.mubr.f32.gmra.mrb[0].mxu0 %v9480
    %v9813 = vpop.f32.mrb[0].mxu0
    %v9814 = vadd.f32 0.0, %v9813
    %v9815 = vpop.f32.mrb[0].mxu0
    %9816 = vmatprep.mubr.f32.mxu0 0.0
    %9817 = vmatmul.mubr.f32.gmra.mrb[0].mxu0 %v9483
    %v9818 = vpop.f32.mrb[0].mxu0
    %v9819 = vadd.f32 0.0, %v9818
    %v9820 = vpop.f32.mrb[0].mxu0
    %9821 = vmatprep.mubr.f32.mxu0 0.0
    %9822 = vmatmul.mubr.f32.gmra.mrb[0].mxu0 %v9486
    %v9823 = vpop.f32.mrb[0].mxu0
    %v9824 = vadd.f32 0.0, %v9823
    %v9825 = vpop.f32.mrb[0].mxu0
    %9826 = vmatprep.mubr.f32.mxu0 0.0
    %9827 = vmatmul.mubr.f32.gmra.mrb[0].mxu0 %v9489
    %v9828 = vpop.f32.mrb[0].mxu0
    %v9829 = vadd.f32 0.0, %v9828
    %v9830 = vpop.f32.mrb[0].mxu0
    %9831 = vmatprep.mubr.f32.mxu0 0.0
    %9832 = vmatmul.mubr.f32.gmra.mrb[0].mxu0 %v9492
    %v9833 = vpop.f32.mrb[0].mxu0
    %v9834 = vadd.f32 0.0, %v9833
    %v9835 = vpop.f32.mrb[0].mxu0
    %9836 = vmatprep.mubr.f32.mxu0 0.0
    %9837 = vmatmul.mubr.f32.gmra.mrb[0].mxu0 %v9495
    %v9838 = vpop.f32.mrb[0].mxu0
    %v9839 = vadd.f32 0.0, %v9838
    %v9840 = vpop.f32.mrb[0].mxu0
    %9841 = vmatprep.mubr.f32.mxu0 0.0
    %9842 = vmatmul.mubr.f32.gmra.mrb[0].mxu0 %v9498
    %v9843 = vpop.f32.mrb[0].mxu0
    %v9844 = vadd.f32 0.0, %v9843
    %v9845 = vpop.f32.mrb[0].mxu0
    %9846 = vmatprep.mubr.f32.mxu0 0.0
    %9847 = vmatmul.mubr.f32.gmra.mrb[0].mxu0 %v9501
    %v9848 = vpop.f32.mrb[0].mxu0
    %v9849 = vadd.f32 0.0, %v9848
    %v9850 = vpop.f32.mrb[0].mxu0
    %9851 = vmatprep.mubr.f32.mxu0 0.0
    %9852 = vmatmul.mubr.f32.gmra.mrb[0].mxu0 %v9504
    %v9853 = vpop.f32.mrb[0].mxu0
    %v9854 = vadd.f32 0.0, %v9853
    %v9855 = vpop.f32.mrb[0].mxu0
    %9856 = vmatprep.mubr.f32.mxu0 0.0
    %9857 = vmatmul.mubr.f32.gmra.mrb[0].mxu0 %v9507
    %v9858 = vpop.f32.mrb[0].mxu0
    %v9859 = vadd.f32 0.0, %v9858
    %v9860 = vpop.f32.mrb[0].mxu0
    %9861 = vmatprep.mubr.f32.mxu0 0.0
    %9862 = vmatmul.mubr.f32.gmra.mrb[0].mxu0 %v9510
    %v9863 = vpop.f32.mrb[0].mxu0
    %v9864 = vadd.f32 0.0, %v9863
    %v9865 = vpop.f32.mrb[0].mxu0
    %9866 = vmatprep.mubr.f32.mxu0 0.0
    %9867 = vmatmul.mubr.f32.gmra.mrb[0].mxu0 %v9513
    %v9868 = vpop.f32.mrb[0].mxu0
    %v9869 = vadd.f32 0.0, %v9868
    %v9870 = vpop.f32.mrb[0].mxu0
    %9871 = vmatprep.mubr.f32.mxu0 0.0
    %9872 = vmatmul.mubr.f32.gmra.mrb[0].mxu0 %v9516
    %v9873 = vpop.f32.mrb[0].mxu0
    %v9874 = vadd.f32 0.0, %v9873
    %v9875 = vpop.f32.mrb[0].mxu0
    %9876 = vmatprep.mubr.f32.mxu0 0.0
    %9877 = vmatmul.mubr.f32.gmra.mrb[0].mxu0 %v9519
    %v9878 = vpop.f32.mrb[0].mxu0
    %v9879 = vadd.f32 0.0, %v9878
    %v9880 = vpop.f32.mrb[0].mxu0
    %9881 = vmatprep.mubr.f32.mxu0 0.0
    %9882 = vmatmul.mubr.f32.gmra.mrb[0].mxu0 %v9522
    %v9883 = vpop.f32.mrb[0].mxu0
    %v9884 = vadd.f32 0.0, %v9883
    %v9885 = vpop.f32.mrb[0].mxu0
    %9886 = vmatprep.mubr.f32.mxu0 0.0
    %9887 = vmatmul.mubr.f32.gmra.mrb[0].mxu0 %v9525
    %v9888 = vpop.f32.mrb[0].mxu0
    %v9889 = vadd.f32 0.0, %v9888
    %v9890 = vpop.f32.mrb[0].mxu0
    %9891 = vmatprep.mubr.f32.mxu0 0.0
    %9892 = vmatmul.mubr.f32.gmra.mrb[0].mxu0 %v9528
    %v9893 = vpop.f32.mrb[0].mxu0
    %v9894 = vadd.f32 0.0, %v9893
    %v9895 = vpop.f32.mrb[0].mxu0
    %9896 = vmatprep.mubr.f32.mxu0 0.0
    %9897 = vmatmul.mubr.f32.gmra.mrb[0].mxu0 %v9531
    %v9898 = vpop.f32.mrb[0].mxu0
    %v9899 = vadd.f32 0.0, %v9898
    %v9900 = vpop.f32.mrb[0].mxu0
    %9901 = vmatprep.mubr.f32.mxu0 0.0
    %9902 = vmatmul.mubr.f32.gmra.mrb[0].mxu0 %v9534
    %v9903 = vpop.f32.mrb[0].mxu0
    %v9904 = vadd.f32 0.0, %v9903
    %v9905 = vpop.f32.mrb[0].mxu0
    %9906 = vmatprep.mubr.f32.mxu0 0.0
    %9907 = vmatmul.mubr.f32.gmra.mrb[0].mxu0 %v9537
    %v9908 = vpop.f32.mrb[0].mxu0
    %v9909 = vadd.f32 0.0, %v9908
    %v9910 = vpop.f32.mrb[0].mxu0
    %9911 = vmatprep.mubr.f32.mxu0 0.0
    %9912 = vmatmul.mubr.f32.gmra.mrb[0].mxu0 %v9540
    %v9913 = vpop.f32.mrb[0].mxu0
    %v9914 = vadd.f32 0.0, %v9913
    %v9915 = vpop.f32.mrb[0].mxu0
    %9916 = vmatprep.mubr.f32.mxu0 0.0
    %9917 = vmatmul.mubr.f32.gmra.mrb[0].mxu0 %v9543
    %v9918 = vpop.f32.mrb[0].mxu0
    %v9919 = vadd.f32 0.0, %v9918
    %v9920 = vpop.f32.mrb[0].mxu0
    %9921 = vmatprep.mubr.f32.mxu0 0.0
    %9922 = vmatmul.mubr.f32.gmra.mrb[0].mxu0 %v9546
    %v9923 = vpop.f32.mrb[0].mxu0
    %v9924 = vadd.f32 0.0, %v9923
    %v9925 = vpop.f32.mrb[0].mxu0
    %9926 = vmatprep.mubr.f32.mxu0 0.0
    %9927 = vmatmul.mubr.f32.gmra.mrb[0].mxu0 %v9549
    %v9928 = vpop.f32.mrb[0].mxu0
    %v9929 = vadd.f32 0.0, %v9928
    %v9930 = vpop.f32.mrb[0].mxu0
    %9931 = vmatprep.mubr.f32.mxu0 0.0
    %9932 = vmatmul.mubr.f32.gmra.mrb[0].mxu0 %v9552
    %v9933 = vpop.f32.mrb[0].mxu0
    %v9934 = vadd.f32 0.0, %v9933
    %v9935 = vpop.f32.mrb[0].mxu0
    %9936 = vmatprep.mubr.f32.mxu0 0.0
    %9937 = vmatmul.mubr.f32.gmra.mrb[0].mxu0 %v9555
    %v9938 = vpop.f32.mrb[0].mxu0
    %v9939 = vadd.f32 0.0, %v9938
    %v9940 = vpop.f32.mrb[0].mxu0
    %9941 = vmatprep.mubr.f32.mxu0 0.0
    %9942 = vmatmul.mubr.f32.gmra.mrb[0].mxu0 %v9558
    %v9943 = vpop.f32.mrb[0].mxu0
    %v9944 = vadd.f32 0.0, %v9943
    %v9945 = vpop.f32.mrb[0].mxu0
    %9946 = vmatprep.mubr.f32.mxu0 0.0
    %9947 = vmatmul.mubr.f32.gmra.mrb[0].mxu0 %v9561
    %v9948 = vpop.f32.mrb[0].mxu0
    %v9949 = vadd.f32 0.0, %v9948
    %v9950 = vpop.f32.mrb[0].mxu0
    %9951 = vdwg.mxu0
    %v9952 = vsel %vm5569, %v9634, 0.0
    %v9953 = vsel %vm5569, %v9639, 0.0
    %v9954 = vadd.f32 %v9952, %v9953
    %v9955 = vsel %vm5569, %v9644, 0.0
    %v9956 = vadd.f32 %v9954, %v9955
    %v9957 = vsel %vm5569, %v9649, 0.0
    %v9958 = vadd.f32 %v9956, %v9957
    %v9959 = vsel %vm5569, %v9654, 0.0
    %v9960 = vadd.f32 %v9958, %v9959
    %v9961 = vsel %vm5569, %v9659, 0.0
    %v9962 = vadd.f32 %v9960, %v9961
    %v9963 = vsel %vm5569, %v9664, 0.0
    %v9964 = vadd.f32 %v9962, %v9963
    %v9965 = vsel %vm5569, %v9669, 0.0
    %v9966 = vadd.f32 %v9964, %v9965
    %v9967 = vsel %vm5569, %v9674, 0.0
    %v9968 = vadd.f32 %v9966, %v9967
    %v9969 = vsel %vm5569, %v9679, 0.0
    %v9970 = vadd.f32 %v9968, %v9969
    %v9971 = vsel %vm5569, %v9684, 0.0
    %v9972 = vadd.f32 %v9970, %v9971
    %v9973 = vsel %vm5569, %v9689, 0.0
    %v9974 = vadd.f32 %v9972, %v9973
    %v9975 = vsel %vm5569, %v9694, 0.0
    %v9976 = vadd.f32 %v9974, %v9975
    %v9977 = vsel %vm5569, %v9699, 0.0
    %v9978 = vadd.f32 %v9976, %v9977
    %v9979 = vsel %vm5569, %v9704, 0.0
    %v9980 = vadd.f32 %v9978, %v9979
    %v9981 = vsel %vm5569, %v9709, 0.0
    %v9982 = vadd.f32 %v9980, %v9981
    %v9983 = vsel %vm5569, %v9714, 0.0
    %v9984 = vadd.f32 %v9982, %v9983
    %v9985 = vsel %vm5569, %v9719, 0.0
    %v9986 = vadd.f32 %v9984, %v9985
    %v9987 = vsel %vm5569, %v9724, 0.0
    %v9988 = vadd.f32 %v9986, %v9987
    %v9989 = vsel %vm5569, %v9729, 0.0
    %v9990 = vadd.f32 %v9988, %v9989
    %v9991 = vsel %vm5569, %v9734, 0.0
    %v9992 = vadd.f32 %v9990, %v9991
    %v9993 = vsel %vm5569, %v9739, 0.0
    %v9994 = vadd.f32 %v9992, %v9993
    %v9995 = vsel %vm5569, %v9744, 0.0
    %v9996 = vadd.f32 %v9994, %v9995
    %v9997 = vsel %vm5569, %v9749, 0.0
    %v9998 = vadd.f32 %v9996, %v9997
    %v9999 = vsel %vm5569, %v9754, 0.0
    %v10000 = vadd.f32 %v9998, %v9999
    %v10001 = vsel %vm5569, %v9759, 0.0
    %v10002 = vadd.f32 %v10000, %v10001
    %v10003 = vsel %vm5569, %v9764, 0.0
    %v10004 = vadd.f32 %v10002, %v10003
    %v10005 = vsel %vm5569, %v9769, 0.0
    %v10006 = vadd.f32 %v10004, %v10005
    %v10007 = vsel %vm5569, %v9774, 0.0
    %v10008 = vadd.f32 %v10006, %v10007
    %v10009 = vsel %vm5569, %v9779, 0.0
    %v10010 = vadd.f32 %v10008, %v10009
    %v10011 = vsel %vm5569, %v9784, 0.0
    %v10012 = vadd.f32 %v10010, %v10011
    %v10013 = vsel %vm5569, %v9789, 0.0
    %v10014 = vadd.f32 %v10012, %v10013
    %v10015 = vsel %vm5569, %v9794, 0.0
    %v10016 = vadd.f32 %v10014, %v10015
    %v10017 = vsel %vm5569, %v9799, 0.0
    %v10018 = vadd.f32 %v10016, %v10017
    %v10019 = vsel %vm5569, %v9804, 0.0
    %v10020 = vadd.f32 %v10018, %v10019
    %v10021 = vsel %vm5569, %v9809, 0.0
    %v10022 = vadd.f32 %v10020, %v10021
    %v10023 = vsel %vm5569, %v9814, 0.0
    %v10024 = vadd.f32 %v10022, %v10023
    %v10025 = vsel %vm5569, %v9819, 0.0
    %v10026 = vadd.f32 %v10024, %v10025
    %v10027 = vsel %vm5569, %v9824, 0.0
    %v10028 = vadd.f32 %v10026, %v10027
    %v10029 = vsel %vm5569, %v9829, 0.0
    %v10030 = vadd.f32 %v10028, %v10029
    %v10031 = vsel %vm5569, %v9834, 0.0
    %v10032 = vadd.f32 %v10030, %v10031
    %v10033 = vsel %vm5569, %v9839, 0.0
    %v10034 = vadd.f32 %v10032, %v10033
    %v10035 = vsel %vm5569, %v9844, 0.0
    %v10036 = vadd.f32 %v10034, %v10035
    %v10037 = vsel %vm5569, %v9849, 0.0
    %v10038 = vadd.f32 %v10036, %v10037
    %v10039 = vsel %vm5569, %v9854, 0.0
    %v10040 = vadd.f32 %v10038, %v10039
    %v10041 = vsel %vm5569, %v9859, 0.0
    %v10042 = vadd.f32 %v10040, %v10041
    %v10043 = vsel %vm5569, %v9864, 0.0
    %v10044 = vadd.f32 %v10042, %v10043
    %v10045 = vsel %vm5569, %v9869, 0.0
    %v10046 = vadd.f32 %v10044, %v10045
    %v10047 = vsel %vm5569, %v9874, 0.0
    %v10048 = vadd.f32 %v10046, %v10047
    %v10049 = vsel %vm5569, %v9879, 0.0
    %v10050 = vadd.f32 %v10048, %v10049
    %v10051 = vsel %vm5569, %v9884, 0.0
    %v10052 = vadd.f32 %v10050, %v10051
    %v10053 = vsel %vm5569, %v9889, 0.0
    %v10054 = vadd.f32 %v10052, %v10053
    %v10055 = vsel %vm5569, %v9894, 0.0
    %v10056 = vadd.f32 %v10054, %v10055
    %v10057 = vsel %vm5569, %v9899, 0.0
    %v10058 = vadd.f32 %v10056, %v10057
    %v10059 = vsel %vm5569, %v9904, 0.0
    %v10060 = vadd.f32 %v10058, %v10059
    %v10061 = vsel %vm5569, %v9909, 0.0
    %v10062 = vadd.f32 %v10060, %v10061
    %v10063 = vsel %vm5569, %v9914, 0.0
    %v10064 = vadd.f32 %v10062, %v10063
    %v10065 = vsel %vm5569, %v9919, 0.0
    %v10066 = vadd.f32 %v10064, %v10065
    %v10067 = vsel %vm5569, %v9924, 0.0
    %v10068 = vadd.f32 %v10066, %v10067
    %v10069 = vsel %vm5569, %v9929, 0.0
    %v10070 = vadd.f32 %v10068, %v10069
    %v10071 = vsel %vm5569, %v9934, 0.0
    %v10072 = vadd.f32 %v10070, %v10071
    %v10073 = vsel %vm5569, %v9939, 0.0
    %v10074 = vadd.f32 %v10072, %v10073
    %v10075 = vsel %vm5569, %v9944, 0.0
    %v10076 = vadd.f32 %v10074, %v10075
    %v10077 = vsel %vm5569, %v9949, 0.0
    %v10078 = vadd.f32 %v10076, %v10077
    %v10079 = vrot.slane %v10078, 4
    %v10080 = vadd.f32 %v10078, %v10079
    %v10081 = vrot.slane %v10080, 2
    %v10082 = vadd.f32 %v10080, %v10081
    %v10083 = vrot.slane %v10082, 1
    %v10084 = vadd.f32 %v10082, %v10083
    %v10085 = vrcp.pop 512.0
    %v10086 = vmul.f32 %v10084, %v10085
    %v10087 = vmul.f32 %v9634, %v9634
    %v10088 = vmul.f32 %v9639, %v9639
    %v10089 = vmul.f32 %v9644, %v9644
    %v10090 = vmul.f32 %v9649, %v9649
    %v10091 = vmul.f32 %v9654, %v9654
    %v10092 = vmul.f32 %v9659, %v9659
    %v10093 = vmul.f32 %v9664, %v9664
    %v10094 = vmul.f32 %v9669, %v9669
    %v10095 = vmul.f32 %v9674, %v9674
    %v10096 = vmul.f32 %v9679, %v9679
    %v10097 = vmul.f32 %v9684, %v9684
    %v10098 = vmul.f32 %v9689, %v9689
    %v10099 = vmul.f32 %v9694, %v9694
    %v10100 = vmul.f32 %v9699, %v9699
    %v10101 = vmul.f32 %v9704, %v9704
    %v10102 = vmul.f32 %v9709, %v9709
    %v10103 = vmul.f32 %v9714, %v9714
    %v10104 = vmul.f32 %v9719, %v9719
    %v10105 = vmul.f32 %v9724, %v9724
    %v10106 = vmul.f32 %v9729, %v9729
    %v10107 = vmul.f32 %v9734, %v9734
    %v10108 = vmul.f32 %v9739, %v9739
    %v10109 = vmul.f32 %v9744, %v9744
    %v10110 = vmul.f32 %v9749, %v9749
    %v10111 = vmul.f32 %v9754, %v9754
    %v10112 = vmul.f32 %v9759, %v9759
    %v10113 = vmul.f32 %v9764, %v9764
    %v10114 = vmul.f32 %v9769, %v9769
    %v10115 = vmul.f32 %v9774, %v9774
    %v10116 = vmul.f32 %v9779, %v9779
    %v10117 = vmul.f32 %v9784, %v9784
    %v10118 = vmul.f32 %v9789, %v9789
    %v10119 = vmul.f32 %v9794, %v9794
    %v10120 = vmul.f32 %v9799, %v9799
    %v10121 = vmul.f32 %v9804, %v9804
    %v10122 = vmul.f32 %v9809, %v9809
    %v10123 = vmul.f32 %v9814, %v9814
    %v10124 = vmul.f32 %v9819, %v9819
    %v10125 = vmul.f32 %v9824, %v9824
    %v10126 = vmul.f32 %v9829, %v9829
    %v10127 = vmul.f32 %v9834, %v9834
    %v10128 = vmul.f32 %v9839, %v9839
    %v10129 = vmul.f32 %v9844, %v9844
    %v10130 = vmul.f32 %v9849, %v9849
    %v10131 = vmul.f32 %v9854, %v9854
    %v10132 = vmul.f32 %v9859, %v9859
    %v10133 = vmul.f32 %v9864, %v9864
    %v10134 = vmul.f32 %v9869, %v9869
    %v10135 = vmul.f32 %v9874, %v9874
    %v10136 = vmul.f32 %v9879, %v9879
    %v10137 = vmul.f32 %v9884, %v9884
    %v10138 = vmul.f32 %v9889, %v9889
    %v10139 = vmul.f32 %v9894, %v9894
    %v10140 = vmul.f32 %v9899, %v9899
    %v10141 = vmul.f32 %v9904, %v9904
    %v10142 = vmul.f32 %v9909, %v9909
    %v10143 = vmul.f32 %v9914, %v9914
    %v10144 = vmul.f32 %v9919, %v9919
    %v10145 = vmul.f32 %v9924, %v9924
    %v10146 = vmul.f32 %v9929, %v9929
    %v10147 = vmul.f32 %v9934, %v9934
    %v10148 = vmul.f32 %v9939, %v9939
    %v10149 = vmul.f32 %v9944, %v9944
    %v10150 = vmul.f32 %v9949, %v9949
    %v10151 = vsel %vm5569, %v10087, 0.0
    %v10152 = vsel %vm5569, %v10088, 0.0
    %v10153 = vadd.f32 %v10151, %v10152
    %v10154 = vsel %vm5569, %v10089, 0.0
    %v10155 = vadd.f32 %v10153, %v10154
    %v10156 = vsel %vm5569, %v10090, 0.0
    %v10157 = vadd.f32 %v10155, %v10156
    %v10158 = vsel %vm5569, %v10091, 0.0
    %v10159 = vadd.f32 %v10157, %v10158
    %v10160 = vsel %vm5569, %v10092, 0.0
    %v10161 = vadd.f32 %v10159, %v10160
    %v10162 = vsel %vm5569, %v10093, 0.0
    %v10163 = vadd.f32 %v10161, %v10162
    %v10164 = vsel %vm5569, %v10094, 0.0
    %v10165 = vadd.f32 %v10163, %v10164
    %v10166 = vsel %vm5569, %v10095, 0.0
    %v10167 = vadd.f32 %v10165, %v10166
    %v10168 = vsel %vm5569, %v10096, 0.0
    %v10169 = vadd.f32 %v10167, %v10168
    %v10170 = vsel %vm5569, %v10097, 0.0
    %v10171 = vadd.f32 %v10169, %v10170
    %v10172 = vsel %vm5569, %v10098, 0.0
    %v10173 = vadd.f32 %v10171, %v10172
    %v10174 = vsel %vm5569, %v10099, 0.0
    %v10175 = vadd.f32 %v10173, %v10174
    %v10176 = vsel %vm5569, %v10100, 0.0
    %v10177 = vadd.f32 %v10175, %v10176
    %v10178 = vsel %vm5569, %v10101, 0.0
    %v10179 = vadd.f32 %v10177, %v10178
    %v10180 = vsel %vm5569, %v10102, 0.0
    %v10181 = vadd.f32 %v10179, %v10180
    %v10182 = vsel %vm5569, %v10103, 0.0
    %v10183 = vadd.f32 %v10181, %v10182
    %v10184 = vsel %vm5569, %v10104, 0.0
    %v10185 = vadd.f32 %v10183, %v10184
    %v10186 = vsel %vm5569, %v10105, 0.0
    %v10187 = vadd.f32 %v10185, %v10186
    %v10188 = vsel %vm5569, %v10106, 0.0
    %v10189 = vadd.f32 %v10187, %v10188
    %v10190 = vsel %vm5569, %v10107, 0.0
    %v10191 = vadd.f32 %v10189, %v10190
    %v10192 = vsel %vm5569, %v10108, 0.0
    %v10193 = vadd.f32 %v10191, %v10192
    %v10194 = vsel %vm5569, %v10109, 0.0
    %v10195 = vadd.f32 %v10193, %v10194
    %v10196 = vsel %vm5569, %v10110, 0.0
    %v10197 = vadd.f32 %v10195, %v10196
    %v10198 = vsel %vm5569, %v10111, 0.0
    %v10199 = vadd.f32 %v10197, %v10198
    %v10200 = vsel %vm5569, %v10112, 0.0
    %v10201 = vadd.f32 %v10199, %v10200
    %v10202 = vsel %vm5569, %v10113, 0.0
    %v10203 = vadd.f32 %v10201, %v10202
    %v10204 = vsel %vm5569, %v10114, 0.0
    %v10205 = vadd.f32 %v10203, %v10204
    %v10206 = vsel %vm5569, %v10115, 0.0
    %v10207 = vadd.f32 %v10205, %v10206
    %v10208 = vsel %vm5569, %v10116, 0.0
    %v10209 = vadd.f32 %v10207, %v10208
    %v10210 = vsel %vm5569, %v10117, 0.0
    %v10211 = vadd.f32 %v10209, %v10210
    %v10212 = vsel %vm5569, %v10118, 0.0
    %v10213 = vadd.f32 %v10211, %v10212
    %v10214 = vsel %vm5569, %v10119, 0.0
    %v10215 = vadd.f32 %v10213, %v10214
    %v10216 = vsel %vm5569, %v10120, 0.0
    %v10217 = vadd.f32 %v10215, %v10216
    %v10218 = vsel %vm5569, %v10121, 0.0
    %v10219 = vadd.f32 %v10217, %v10218
    %v10220 = vsel %vm5569, %v10122, 0.0
    %v10221 = vadd.f32 %v10219, %v10220
    %v10222 = vsel %vm5569, %v10123, 0.0
    %v10223 = vadd.f32 %v10221, %v10222
    %v10224 = vsel %vm5569, %v10124, 0.0
    %v10225 = vadd.f32 %v10223, %v10224
    %v10226 = vsel %vm5569, %v10125, 0.0
    %v10227 = vadd.f32 %v10225, %v10226
    %v10228 = vsel %vm5569, %v10126, 0.0
    %v10229 = vadd.f32 %v10227, %v10228
    %v10230 = vsel %vm5569, %v10127, 0.0
    %v10231 = vadd.f32 %v10229, %v10230
    %v10232 = vsel %vm5569, %v10128, 0.0
    %v10233 = vadd.f32 %v10231, %v10232
    %v10234 = vsel %vm5569, %v10129, 0.0
    %v10235 = vadd.f32 %v10233, %v10234
    %v10236 = vsel %vm5569, %v10130, 0.0
    %v10237 = vadd.f32 %v10235, %v10236
    %v10238 = vsel %vm5569, %v10131, 0.0
    %v10239 = vadd.f32 %v10237, %v10238
    %v10240 = vsel %vm5569, %v10132, 0.0
    %v10241 = vadd.f32 %v10239, %v10240
    %v10242 = vsel %vm5569, %v10133, 0.0
    %v10243 = vadd.f32 %v10241, %v10242
    %v10244 = vsel %vm5569, %v10134, 0.0
    %v10245 = vadd.f32 %v10243, %v10244
    %v10246 = vsel %vm5569, %v10135, 0.0
    %v10247 = vadd.f32 %v10245, %v10246
    %v10248 = vsel %vm5569, %v10136, 0.0
    %v10249 = vadd.f32 %v10247, %v10248
    %v10250 = vsel %vm5569, %v10137, 0.0
    %v10251 = vadd.f32 %v10249, %v10250
    %v10252 = vsel %vm5569, %v10138, 0.0
    %v10253 = vadd.f32 %v10251, %v10252
    %v10254 = vsel %vm5569, %v10139, 0.0
    %v10255 = vadd.f32 %v10253, %v10254
    %v10256 = vsel %vm5569, %v10140, 0.0
    %v10257 = vadd.f32 %v10255, %v10256
    %v10258 = vsel %vm5569, %v10141, 0.0
    %v10259 = vadd.f32 %v10257, %v10258
    %v10260 = vsel %vm5569, %v10142, 0.0
    %v10261 = vadd.f32 %v10259, %v10260
    %v10262 = vsel %vm5569, %v10143, 0.0
    %v10263 = vadd.f32 %v10261, %v10262
    %v10264 = vsel %vm5569, %v10144, 0.0
    %v10265 = vadd.f32 %v10263, %v10264
    %v10266 = vsel %vm5569, %v10145, 0.0
    %v10267 = vadd.f32 %v10265, %v10266
    %v10268 = vsel %vm5569, %v10146, 0.0
    %v10269 = vadd.f32 %v10267, %v10268
    %v10270 = vsel %vm5569, %v10147, 0.0
    %v10271 = vadd.f32 %v10269, %v10270
    %v10272 = vsel %vm5569, %v10148, 0.0
    %v10273 = vadd.f32 %v10271, %v10272
    %v10274 = vsel %vm5569, %v10149, 0.0
    %v10275 = vadd.f32 %v10273, %v10274
    %v10276 = vsel %vm5569, %v10150, 0.0
    %v10277 = vadd.f32 %v10275, %v10276
    %v10278 = vrot.slane %v10277, 4
    %v10279 = vadd.f32 %v10277, %v10278
    %v10280 = vrot.slane %v10279, 2
    %v10281 = vadd.f32 %v10279, %v10280
    %v10282 = vrot.slane %v10281, 1
    %v10283 = vadd.f32 %v10281, %v10282
    %v10284 = vmul.f32 %v10283, %v10085
    %v10285 = vmul.f32 %v10086, %v10086
    %v10286 = vsub.f32 %v10284, %v10285
    %v10287 = vmax.f32 %v10286, 0.0
    %v10288 = vsub.f32 %v9634, %v10086
    %v10289 = vsub.f32 %v9639, %v10086
    %v10290 = vsub.f32 %v9644, %v10086
    %v10291 = vsub.f32 %v9649, %v10086
    %v10292 = vsub.f32 %v9654, %v10086
    %v10293 = vsub.f32 %v9659, %v10086
    %v10294 = vsub.f32 %v9664, %v10086
    %v10295 = vsub.f32 %v9669, %v10086
    %v10296 = vsub.f32 %v9674, %v10086
    %v10297 = vsub.f32 %v9679, %v10086
    %v10298 = vsub.f32 %v9684, %v10086
    %v10299 = vsub.f32 %v9689, %v10086
    %v10300 = vsub.f32 %v9694, %v10086
    %v10301 = vsub.f32 %v9699, %v10086
    %v10302 = vsub.f32 %v9704, %v10086
    %v10303 = vsub.f32 %v9709, %v10086
    %v10304 = vsub.f32 %v9714, %v10086
    %v10305 = vsub.f32 %v9719, %v10086
    %v10306 = vsub.f32 %v9724, %v10086
    %v10307 = vsub.f32 %v9729, %v10086
    %v10308 = vsub.f32 %v9734, %v10086
    %v10309 = vsub.f32 %v9739, %v10086
    %v10310 = vsub.f32 %v9744, %v10086
    %v10311 = vsub.f32 %v9749, %v10086
    %v10312 = vsub.f32 %v9754, %v10086
    %v10313 = vsub.f32 %v9759, %v10086
    %v10314 = vsub.f32 %v9764, %v10086
    %v10315 = vsub.f32 %v9769, %v10086
    %v10316 = vsub.f32 %v9774, %v10086
    %v10317 = vsub.f32 %v9779, %v10086
    %v10318 = vsub.f32 %v9784, %v10086
    %v10319 = vsub.f32 %v9789, %v10086
    %v10320 = vsub.f32 %v9794, %v10086
    %v10321 = vsub.f32 %v9799, %v10086
    %v10322 = vsub.f32 %v9804, %v10086
    %v10323 = vsub.f32 %v9809, %v10086
    %v10324 = vsub.f32 %v9814, %v10086
    %v10325 = vsub.f32 %v9819, %v10086
    %v10326 = vsub.f32 %v9824, %v10086
    %v10327 = vsub.f32 %v9829, %v10086
    %v10328 = vsub.f32 %v9834, %v10086
    %v10329 = vsub.f32 %v9839, %v10086
    %v10330 = vsub.f32 %v9844, %v10086
    %v10331 = vsub.f32 %v9849, %v10086
    %v10332 = vsub.f32 %v9854, %v10086
    %v10333 = vsub.f32 %v9859, %v10086
    %v10334 = vsub.f32 %v9864, %v10086
    %v10335 = vsub.f32 %v9869, %v10086
    %v10336 = vsub.f32 %v9874, %v10086
    %v10337 = vsub.f32 %v9879, %v10086
    %v10338 = vsub.f32 %v9884, %v10086
    %v10339 = vsub.f32 %v9889, %v10086
    %v10340 = vsub.f32 %v9894, %v10086
    %v10341 = vsub.f32 %v9899, %v10086
    %v10342 = vsub.f32 %v9904, %v10086
    %v10343 = vsub.f32 %v9909, %v10086
    %v10344 = vsub.f32 %v9914, %v10086
    %v10345 = vsub.f32 %v9919, %v10086
    %v10346 = vsub.f32 %v9924, %v10086
    %v10347 = vsub.f32 %v9929, %v10086
    %v10348 = vsub.f32 %v9934, %v10086
    %v10349 = vsub.f32 %v9939, %v10086
    %v10350 = vsub.f32 %v9944, %v10086
    %v10351 = vsub.f32 %v9949, %v10086
    %v10352 = vadd.f32 %v10287, 1e-05
    %v10353 = vrsqrt.pop %v10352
    %v10354 = vmul.f32 %v10288, %v10353
    %v10355 = vmul.f32 %v10289, %v10353
    %v10356 = vmul.f32 %v10290, %v10353
    %v10357 = vmul.f32 %v10291, %v10353
    %v10358 = vmul.f32 %v10292, %v10353
    %v10359 = vmul.f32 %v10293, %v10353
    %v10360 = vmul.f32 %v10294, %v10353
    %v10361 = vmul.f32 %v10295, %v10353
    %v10362 = vmul.f32 %v10296, %v10353
    %v10363 = vmul.f32 %v10297, %v10353
    %v10364 = vmul.f32 %v10298, %v10353
    %v10365 = vmul.f32 %v10299, %v10353
    %v10366 = vmul.f32 %v10300, %v10353
    %v10367 = vmul.f32 %v10301, %v10353
    %v10368 = vmul.f32 %v10302, %v10353
    %v10369 = vmul.f32 %v10303, %v10353
    %v10370 = vmul.f32 %v10304, %v10353
    %v10371 = vmul.f32 %v10305, %v10353
    %v10372 = vmul.f32 %v10306, %v10353
    %v10373 = vmul.f32 %v10307, %v10353
    %v10374 = vmul.f32 %v10308, %v10353
    %v10375 = vmul.f32 %v10309, %v10353
    %v10376 = vmul.f32 %v10310, %v10353
    %v10377 = vmul.f32 %v10311, %v10353
    %v10378 = vmul.f32 %v10312, %v10353
    %v10379 = vmul.f32 %v10313, %v10353
    %v10380 = vmul.f32 %v10314, %v10353
    %v10381 = vmul.f32 %v10315, %v10353
    %v10382 = vmul.f32 %v10316, %v10353
    %v10383 = vmul.f32 %v10317, %v10353
    %v10384 = vmul.f32 %v10318, %v10353
    %v10385 = vmul.f32 %v10319, %v10353
    %v10386 = vmul.f32 %v10320, %v10353
    %v10387 = vmul.f32 %v10321, %v10353
    %v10388 = vmul.f32 %v10322, %v10353
    %v10389 = vmul.f32 %v10323, %v10353
    %v10390 = vmul.f32 %v10324, %v10353
    %v10391 = vmul.f32 %v10325, %v10353
    %v10392 = vmul.f32 %v10326, %v10353
    %v10393 = vmul.f32 %v10327, %v10353
    %v10394 = vmul.f32 %v10328, %v10353
    %v10395 = vmul.f32 %v10329, %v10353
    %v10396 = vmul.f32 %v10330, %v10353
    %v10397 = vmul.f32 %v10331, %v10353
    %v10398 = vmul.f32 %v10332, %v10353
    %v10399 = vmul.f32 %v10333, %v10353
    %v10400 = vmul.f32 %v10334, %v10353
    %v10401 = vmul.f32 %v10335, %v10353
    %v10402 = vmul.f32 %v10336, %v10353
    %v10403 = vmul.f32 %v10337, %v10353
    %v10404 = vmul.f32 %v10338, %v10353
    %v10405 = vmul.f32 %v10339, %v10353
    %v10406 = vmul.f32 %v10340, %v10353
    %v10407 = vmul.f32 %v10341, %v10353
    %v10408 = vmul.f32 %v10342, %v10353
    %v10409 = vmul.f32 %v10343, %v10353
    %v10410 = vmul.f32 %v10344, %v10353
    %v10411 = vmul.f32 %v10345, %v10353
    %v10412 = vmul.f32 %v10346, %v10353
    %v10413 = vmul.f32 %v10347, %v10353
    %v10414 = vmul.f32 %v10348, %v10353
    %v10415 = vmul.f32 %v10349, %v10353
    %v10416 = vmul.f32 %v10350, %v10353
    %v10417 = vmul.f32 %v10351, %v10353
    %v10418 = vld [vmem:[%s2] sm:$0x1]
    %v10420 = vlaneseq
    %v10421 = vshrl.u32 %v10420, 7
    %v10422 = vsub.s32 0, %v10421
    %v10423 = vrot.slane %v10418, %v10422
    %v10425 = vmul.f32 %v10354, %v10423
    %v10426 = vmul.f32 %v10355, %v10423
    %v10427 = vmul.f32 %v10356, %v10423
    %v10428 = vmul.f32 %v10357, %v10423
    %v10429 = vmul.f32 %v10358, %v10423
    %v10430 = vmul.f32 %v10359, %v10423
    %v10431 = vmul.f32 %v10360, %v10423
    %v10432 = vmul.f32 %v10361, %v10423
    %v10433 = vmul.f32 %v10362, %v10423
    %v10434 = vmul.f32 %v10363, %v10423
    %v10435 = vmul.f32 %v10364, %v10423
    %v10436 = vmul.f32 %v10365, %v10423
    %v10437 = vmul.f32 %v10366, %v10423
    %v10438 = vmul.f32 %v10367, %v10423
    %v10439 = vmul.f32 %v10368, %v10423
    %v10440 = vmul.f32 %v10369, %v10423
    %v10441 = vmul.f32 %v10370, %v10423
    %v10442 = vmul.f32 %v10371, %v10423
    %v10443 = vmul.f32 %v10372, %v10423
    %v10444 = vmul.f32 %v10373, %v10423
    %v10445 = vmul.f32 %v10374, %v10423
    %v10446 = vmul.f32 %v10375, %v10423
    %v10447 = vmul.f32 %v10376, %v10423
    %v10448 = vmul.f32 %v10377, %v10423
    %v10449 = vmul.f32 %v10378, %v10423
    %v10450 = vmul.f32 %v10379, %v10423
    %v10451 = vmul.f32 %v10380, %v10423
    %v10452 = vmul.f32 %v10381, %v10423
    %v10453 = vmul.f32 %v10382, %v10423
    %v10454 = vmul.f32 %v10383, %v10423
    %v10455 = vmul.f32 %v10384, %v10423
    %v10456 = vmul.f32 %v10385, %v10423
    %v10457 = vmul.f32 %v10386, %v10423
    %v10458 = vmul.f32 %v10387, %v10423
    %v10459 = vmul.f32 %v10388, %v10423
    %v10460 = vmul.f32 %v10389, %v10423
    %v10461 = vmul.f32 %v10390, %v10423
    %v10462 = vmul.f32 %v10391, %v10423
    %v10463 = vmul.f32 %v10392, %v10423
    %v10464 = vmul.f32 %v10393, %v10423
    %v10465 = vmul.f32 %v10394, %v10423
    %v10466 = vmul.f32 %v10395, %v10423
    %v10467 = vmul.f32 %v10396, %v10423
    %v10468 = vmul.f32 %v10397, %v10423
    %v10469 = vmul.f32 %v10398, %v10423
    %v10470 = vmul.f32 %v10399, %v10423
    %v10471 = vmul.f32 %v10400, %v10423
    %v10472 = vmul.f32 %v10401, %v10423
    %v10473 = vmul.f32 %v10402, %v10423
    %v10474 = vmul.f32 %v10403, %v10423
    %v10475 = vmul.f32 %v10404, %v10423
    %v10476 = vmul.f32 %v10405, %v10423
    %v10477 = vmul.f32 %v10406, %v10423
    %v10478 = vmul.f32 %v10407, %v10423
    %v10479 = vmul.f32 %v10408, %v10423
    %v10480 = vmul.f32 %v10409, %v10423
    %v10481 = vmul.f32 %v10410, %v10423
    %v10482 = vmul.f32 %v10411, %v10423
    %v10483 = vmul.f32 %v10412, %v10423
    %v10484 = vmul.f32 %v10413, %v10423
    %v10485 = vmul.f32 %v10414, %v10423
    %v10486 = vmul.f32 %v10415, %v10423
    %v10487 = vmul.f32 %v10416, %v10423
    %v10488 = vmul.f32 %v10417, %v10423
    %v10489 = vld [vmem:[%s3] sm:$0x1]
    %v10491 = vlaneseq
    %v10492 = vshrl.u32 %v10491, 7
    %v10493 = vsub.s32 0, %v10492
    %v10494 = vrot.slane %v10489, %v10493
    %v10496 = vadd.f32 %v10425, %v10494
    %v10497 = vadd.f32 %v10426, %v10494
    %v10498 = vadd.f32 %v10427, %v10494
    %v10499 = vadd.f32 %v10428, %v10494
    %v10500 = vadd.f32 %v10429, %v10494
    %v10501 = vadd.f32 %v10430, %v10494
    %v10502 = vadd.f32 %v10431, %v10494
    %v10503 = vadd.f32 %v10432, %v10494
    %v10504 = vadd.f32 %v10433, %v10494
    %v10505 = vadd.f32 %v10434, %v10494
    %v10506 = vadd.f32 %v10435, %v10494
    %v10507 = vadd.f32 %v10436, %v10494
    %v10508 = vadd.f32 %v10437, %v10494
    %v10509 = vadd.f32 %v10438, %v10494
    %v10510 = vadd.f32 %v10439, %v10494
    %v10511 = vadd.f32 %v10440, %v10494
    %v10512 = vadd.f32 %v10441, %v10494
    %v10513 = vadd.f32 %v10442, %v10494
    %v10514 = vadd.f32 %v10443, %v10494
    %v10515 = vadd.f32 %v10444, %v10494
    %v10516 = vadd.f32 %v10445, %v10494
    %v10517 = vadd.f32 %v10446, %v10494
    %v10518 = vadd.f32 %v10447, %v10494
    %v10519 = vadd.f32 %v10448, %v10494
    %v10520 = vadd.f32 %v10449, %v10494
    %v10521 = vadd.f32 %v10450, %v10494
    %v10522 = vadd.f32 %v10451, %v10494
    %v10523 = vadd.f32 %v10452, %v10494
    %v10524 = vadd.f32 %v10453, %v10494
    %v10525 = vadd.f32 %v10454, %v10494
    %v10526 = vadd.f32 %v10455, %v10494
    %v10527 = vadd.f32 %v10456, %v10494
    %v10528 = vadd.f32 %v10457, %v10494
    %v10529 = vadd.f32 %v10458, %v10494
    %v10530 = vadd.f32 %v10459, %v10494
    %v10531 = vadd.f32 %v10460, %v10494
    %v10532 = vadd.f32 %v10461, %v10494
    %v10533 = vadd.f32 %v10462, %v10494
    %v10534 = vadd.f32 %v10463, %v10494
    %v10535 = vadd.f32 %v10464, %v10494
    %v10536 = vadd.f32 %v10465, %v10494
    %v10537 = vadd.f32 %v10466, %v10494
    %v10538 = vadd.f32 %v10467, %v10494
    %v10539 = vadd.f32 %v10468, %v10494
    %v10540 = vadd.f32 %v10469, %v10494
    %v10541 = vadd.f32 %v10470, %v10494
    %v10542 = vadd.f32 %v10471, %v10494
    %v10543 = vadd.f32 %v10472, %v10494
    %v10544 = vadd.f32 %v10473, %v10494
    %v10545 = vadd.f32 %v10474, %v10494
    %v10546 = vadd.f32 %v10475, %v10494
    %v10547 = vadd.f32 %v10476, %v10494
    %v10548 = vadd.f32 %v10477, %v10494
    %v10549 = vadd.f32 %v10478, %v10494
    %v10550 = vadd.f32 %v10479, %v10494
    %v10551 = vadd.f32 %v10480, %v10494
    %v10552 = vadd.f32 %v10481, %v10494
    %v10553 = vadd.f32 %v10482, %v10494
    %v10554 = vadd.f32 %v10483, %v10494
    %v10555 = vadd.f32 %v10484, %v10494
    %v10556 = vadd.f32 %v10485, %v10494
    %v10557 = vadd.f32 %v10486, %v10494
    %v10558 = vadd.f32 %v10487, %v10494
    %v10559 = vadd.f32 %v10488, %v10494
    %v10560 = vmax.f32 %v10496, 0.0
    %v10561 = vmax.f32 %v10497, 0.0
    %v10562 = vmax.f32 %v10498, 0.0
    %v10563 = vmax.f32 %v10499, 0.0
    %v10564 = vmax.f32 %v10500, 0.0
    %v10565 = vmax.f32 %v10501, 0.0
    %v10566 = vmax.f32 %v10502, 0.0
    %v10567 = vmax.f32 %v10503, 0.0
    %v10568 = vmax.f32 %v10504, 0.0
    %v10569 = vmax.f32 %v10505, 0.0
    %v10570 = vmax.f32 %v10506, 0.0
    %v10571 = vmax.f32 %v10507, 0.0
    %v10572 = vmax.f32 %v10508, 0.0
    %v10573 = vmax.f32 %v10509, 0.0
    %v10574 = vmax.f32 %v10510, 0.0
    %v10575 = vmax.f32 %v10511, 0.0
    %v10576 = vmax.f32 %v10512, 0.0
    %v10577 = vmax.f32 %v10513, 0.0
    %v10578 = vmax.f32 %v10514, 0.0
    %v10579 = vmax.f32 %v10515, 0.0
    %v10580 = vmax.f32 %v10516, 0.0
    %v10581 = vmax.f32 %v10517, 0.0
    %v10582 = vmax.f32 %v10518, 0.0
    %v10583 = vmax.f32 %v10519, 0.0
    %v10584 = vmax.f32 %v10520, 0.0
    %v10585 = vmax.f32 %v10521, 0.0
    %v10586 = vmax.f32 %v10522, 0.0
    %v10587 = vmax.f32 %v10523, 0.0
    %v10588 = vmax.f32 %v10524, 0.0
    %v10589 = vmax.f32 %v10525, 0.0
    %v10590 = vmax.f32 %v10526, 0.0
    %v10591 = vmax.f32 %v10527, 0.0
    %v10592 = vmax.f32 %v10528, 0.0
    %v10593 = vmax.f32 %v10529, 0.0
    %v10594 = vmax.f32 %v10530, 0.0
    %v10595 = vmax.f32 %v10531, 0.0
    %v10596 = vmax.f32 %v10532, 0.0
    %v10597 = vmax.f32 %v10533, 0.0
    %v10598 = vmax.f32 %v10534, 0.0
    %v10599 = vmax.f32 %v10535, 0.0
    %v10600 = vmax.f32 %v10536, 0.0
    %v10601 = vmax.f32 %v10537, 0.0
    %v10602 = vmax.f32 %v10538, 0.0
    %v10603 = vmax.f32 %v10539, 0.0
    %v10604 = vmax.f32 %v10540, 0.0
    %v10605 = vmax.f32 %v10541, 0.0
    %v10606 = vmax.f32 %v10542, 0.0
    %v10607 = vmax.f32 %v10543, 0.0
    %v10608 = vmax.f32 %v10544, 0.0
    %v10609 = vmax.f32 %v10545, 0.0
    %v10610 = vmax.f32 %v10546, 0.0
    %v10611 = vmax.f32 %v10547, 0.0
    %v10612 = vmax.f32 %v10548, 0.0
    %v10613 = vmax.f32 %v10549, 0.0
    %v10614 = vmax.f32 %v10550, 0.0
    %v10615 = vmax.f32 %v10551, 0.0
    %v10616 = vmax.f32 %v10552, 0.0
    %v10617 = vmax.f32 %v10553, 0.0
    %v10618 = vmax.f32 %v10554, 0.0
    %v10619 = vmax.f32 %v10555, 0.0
    %v10620 = vmax.f32 %v10556, 0.0
    %v10621 = vmax.f32 %v10557, 0.0
    %v10622 = vmax.f32 %v10558, 0.0
    %v10623 = vmax.f32 %v10559, 0.0
    %v10624 = vld [vmem:[%s4] sm:$0xff]
    %v10625 = vld [vmem:[%s4 + $0x8] sm:$0xff]
    %v10626 = vld [vmem:[%s4 + $0x10] sm:$0xff]
    %v10627 = vld [vmem:[%s4 + $0x18] sm:$0xff]
    %v10628 = vld [vmem:[%s4 + $0x20] sm:$0xff]
    %v10629 = vld [vmem:[%s4 + $0x28] sm:$0xff]
    %v10630 = vld [vmem:[%s4 + $0x30] sm:$0xff]
    %v10631 = vld [vmem:[%s4 + $0x38] sm:$0xff]
    %v10632 = vld [vmem:[%s4 + $0x40] sm:$0xff]
    %v10633 = vld [vmem:[%s4 + $0x48] sm:$0xff]
    %v10634 = vld [vmem:[%s4 + $0x50] sm:$0xff]
    %v10635 = vld [vmem:[%s4 + $0x58] sm:$0xff]
    %v10636 = vld [vmem:[%s4 + $0x60] sm:$0xff]
    %v10637 = vld [vmem:[%s4 + $0x68] sm:$0xff]
    %v10638 = vld [vmem:[%s4 + $0x70] sm:$0xff]
    %v10639 = vld [vmem:[%s4 + $0x78] sm:$0xff]
    %v10640 = vld [vmem:[%s4 + $0x80] sm:$0xff]
    %v10641 = vld [vmem:[%s4 + $0x88] sm:$0xff]
    %v10642 = vld [vmem:[%s4 + $0x90] sm:$0xff]
    %v10643 = vld [vmem:[%s4 + $0x98] sm:$0xff]
    %v10644 = vld [vmem:[%s4 + $0xa0] sm:$0xff]
    %v10645 = vld [vmem:[%s4 + $0xa8] sm:$0xff]
    %v10646 = vld [vmem:[%s4 + $0xb0] sm:$0xff]
    %v10647 = vld [vmem:[%s4 + $0xb8] sm:$0xff]
    %v10648 = vld [vmem:[%s4 + $0xc0] sm:$0xff]
    %v10649 = vld [vmem:[%s4 + $0xc8] sm:$0xff]
    %v10650 = vld [vmem:[%s4 + $0xd0] sm:$0xff]
    %v10651 = vld [vmem:[%s4 + $0xd8] sm:$0xff]
    %v10652 = vld [vmem:[%s4 + $0xe0] sm:$0xff]
    %v10653 = vld [vmem:[%s4 + $0xe8] sm:$0xff]
    %v10654 = vld [vmem:[%s4 + $0xf0] sm:$0xff]
    %v10655 = vld [vmem:[%s4 + $0xf8] sm:$0xff]
    %v10656 = vld [vmem:[%s4 + $0x100] sm:$0xff]
    %v10657 = vld [vmem:[%s4 + $0x108] sm:$0xff]
    %v10658 = vld [vmem:[%s4 + $0x110] sm:$0xff]
    %v10659 = vld [vmem:[%s4 + $0x118] sm:$0xff]
    %v10660 = vld [vmem:[%s4 + $0x120] sm:$0xff]
    %v10661 = vld [vmem:[%s4 + $0x128] sm:$0xff]
    %v10662 = vld [vmem:[%s4 + $0x130] sm:$0xff]
    %v10663 = vld [vmem:[%s4 + $0x138] sm:$0xff]
    %v10664 = vld [vmem:[%s4 + $0x140] sm:$0xff]
    %v10665 = vld [vmem:[%s4 + $0x148] sm:$0xff]
    %v10666 = vld [vmem:[%s4 + $0x150] sm:$0xff]
    %v10667 = vld [vmem:[%s4 + $0x158] sm:$0xff]
    %v10668 = vld [vmem:[%s4 + $0x160] sm:$0xff]
    %v10669 = vld [vmem:[%s4 + $0x168] sm:$0xff]
    %v10670 = vld [vmem:[%s4 + $0x170] sm:$0xff]
    %v10671 = vld [vmem:[%s4 + $0x178] sm:$0xff]
    %v10672 = vld [vmem:[%s4 + $0x180] sm:$0xff]
    %v10673 = vld [vmem:[%s4 + $0x188] sm:$0xff]
    %v10674 = vld [vmem:[%s4 + $0x190] sm:$0xff]
    %v10675 = vld [vmem:[%s4 + $0x198] sm:$0xff]
    %v10676 = vld [vmem:[%s4 + $0x1a0] sm:$0xff]
    %v10677 = vld [vmem:[%s4 + $0x1a8] sm:$0xff]
    %v10678 = vld [vmem:[%s4 + $0x1b0] sm:$0xff]
    %v10679 = vld [vmem:[%s4 + $0x1b8] sm:$0xff]
    %v10680 = vld [vmem:[%s4 + $0x1c0] sm:$0xff]
    %v10681 = vld [vmem:[%s4 + $0x1c8] sm:$0xff]
    %v10682 = vld [vmem:[%s4 + $0x1d0] sm:$0xff]
    %v10683 = vld [vmem:[%s4 + $0x1d8] sm:$0xff]
    %v10684 = vld [vmem:[%s4 + $0x1e0] sm:$0xff]
    %v10685 = vld [vmem:[%s4 + $0x1e8] sm:$0xff]
    %v10686 = vld [vmem:[%s4 + $0x1f0] sm:$0xff]
    %v10687 = vld [vmem:[%s4 + $0x1f8] sm:$0xff]
    %10688 = vmatprep.subr.mxu0 0.0
    %10689 = vmatpush1.msra.mxu0 %v10560
    %10690 = vmatprep.subr.mxu0 0.0
    %10691 = vmatpush1.msra.mxu0 %v10561
    %10692 = vmatprep.subr.mxu0 0.0
    %10693 = vmatpush1.msra.mxu0 %v10562
    %10694 = vmatprep.subr.mxu0 0.0
    %10695 = vmatpush1.msra.mxu0 %v10563
    %10696 = vmatprep.subr.mxu0 0.0
    %10697 = vmatpush1.msra.mxu0 %v10564
    %10698 = vmatprep.subr.mxu0 0.0
    %10699 = vmatpush1.msra.mxu0 %v10565
    %10700 = vmatprep.subr.mxu0 0.0
    %10701 = vmatpush1.msra.mxu0 %v10566
    %10702 = vmatprep.subr.mxu0 0.0
    %10703 = vmatpush1.msra.mxu0 %v10567
    %10704 = vmatprep.subr.mxu0 0.0
    %10705 = vmatpush1.msra.mxu0 %v10568
    %10706 = vmatprep.subr.mxu0 0.0
    %10707 = vmatpush1.msra.mxu0 %v10569
    %10708 = vmatprep.subr.mxu0 0.0
    %10709 = vmatpush1.msra.mxu0 %v10570
    %10710 = vmatprep.subr.mxu0 0.0
    %10711 = vmatpush1.msra.mxu0 %v10571
    %10712 = vmatprep.subr.mxu0 0.0
    %10713 = vmatpush1.msra.mxu0 %v10572
    %10714 = vmatprep.subr.mxu0 0.0
    %10715 = vmatpush1.msra.mxu0 %v10573
    %10716 = vmatprep.subr.mxu0 0.0
    %10717 = vmatpush1.msra.mxu0 %v10574
    %10718 = vmatprep.subr.mxu0 0.0
    %10719 = vmatpush1.msra.mxu0 %v10575
    %10720 = vmatprep.subr.mxu0 0.0
    %10721 = vmatpush1.msra.mxu0 %v10576
    %10722 = vmatprep.subr.mxu0 0.0
    %10723 = vmatpush1.msra.mxu0 %v10577
    %10724 = vmatprep.subr.mxu0 0.0
    %10725 = vmatpush1.msra.mxu0 %v10578
    %10726 = vmatprep.subr.mxu0 0.0
    %10727 = vmatpush1.msra.mxu0 %v10579
    %10728 = vmatprep.subr.mxu0 0.0
    %10729 = vmatpush1.msra.mxu0 %v10580
    %10730 = vmatprep.subr.mxu0 0.0
    %10731 = vmatpush1.msra.mxu0 %v10581
    %10732 = vmatprep.subr.mxu0 0.0
    %10733 = vmatpush1.msra.mxu0 %v10582
    %10734 = vmatprep.subr.mxu0 0.0
    %10735 = vmatpush1.msra.mxu0 %v10583
    %10736 = vmatprep.subr.mxu0 0.0
    %10737 = vmatpush1.msra.mxu0 %v10584
    %10738 = vmatprep.subr.mxu0 0.0
    %10739 = vmatpush1.msra.mxu0 %v10585
    %10740 = vmatprep.subr.mxu0 0.0
    %10741 = vmatpush1.msra.mxu0 %v10586
    %10742 = vmatprep.subr.mxu0 0.0
    %10743 = vmatpush1.msra.mxu0 %v10587
    %10744 = vmatprep.subr.mxu0 0.0
    %10745 = vmatpush1.msra.mxu0 %v10588
    %10746 = vmatprep.subr.mxu0 0.0
    %10747 = vmatpush1.msra.mxu0 %v10589
    %10748 = vmatprep.subr.mxu0 0.0
    %10749 = vmatpush1.msra.mxu0 %v10590
    %10750 = vmatprep.subr.mxu0 0.0
    %10751 = vmatpush1.msra.mxu0 %v10591
    %10752 = vmatprep.mubr.f32.mxu0 %v10625
    %10753 = vmatmul.mubr.f32.gmra.mrb[0].mxu0 %v10624
    %v10754 = vpop.f32.mrb[0].mxu0
    %v10755 = vadd.f32 0.0, %v10754
    %v10756 = vpop.f32.mrb[0].mxu0
    %10757 = vmatprep.mubr.f32.mxu0 %v10629
    %10758 = vmatmul.mubr.f32.gmra.mrb[0].mxu0 %v10628
    %v10759 = vpop.f32.mrb[0].mxu0
    %v10760 = vadd.f32 0.0, %v10759
    %v10761 = vpop.f32.mrb[0].mxu0
    %10762 = vmatprep.mubr.f32.mxu0 %v10633
    %10763 = vmatmul.mubr.f32.gmra.mrb[0].mxu0 %v10632
    %v10764 = vpop.f32.mrb[0].mxu0
    %v10765 = vadd.f32 0.0, %v10764
    %v10766 = vpop.f32.mrb[0].mxu0
    %10767 = vmatprep.mubr.f32.mxu0 %v10637
    %10768 = vmatmul.mubr.f32.gmra.mrb[0].mxu0 %v10636
    %v10769 = vpop.f32.mrb[0].mxu0
    %v10770 = vadd.f32 0.0, %v10769
    %v10771 = vpop.f32.mrb[0].mxu0
    %10772 = vmatprep.mubr.f32.mxu0 %v10641
    %10773 = vmatmul.mubr.f32.gmra.mrb[0].mxu0 %v10640
    %v10774 = vpop.f32.mrb[0].mxu0
    %v10775 = vadd.f32 0.0, %v10774
    %v10776 = vpop.f32.mrb[0].mxu0
    %10777 = vmatprep.mubr.f32.mxu0 %v10645
    %10778 = vmatmul.mubr.f32.gmra.mrb[0].mxu0 %v10644
    %v10779 = vpop.f32.mrb[0].mxu0
    %v10780 = vadd.f32 0.0, %v10779
    %v10781 = vpop.f32.mrb[0].mxu0
    %10782 = vmatprep.mubr.f32.mxu0 %v10649
    %10783 = vmatmul.mubr.f32.gmra.mrb[0].mxu0 %v10648
    %v10784 = vpop.f32.mrb[0].mxu0
    %v10785 = vadd.f32 0.0, %v10784
    %v10786 = vpop.f32.mrb[0].mxu0
    %10787 = vmatprep.mubr.f32.mxu0 %v10653
    %10788 = vmatmul.mubr.f32.gmra.mrb[0].mxu0 %v10652
    %v10789 = vpop.f32.mrb[0].mxu0
    %v10790 = vadd.f32 0.0, %v10789
    %v10791 = vpop.f32.mrb[0].mxu0
    %10792 = vmatprep.mubr.f32.mxu0 %v10657
    %10793 = vmatmul.mubr.f32.gmra.mrb[0].mxu0 %v10656
    %v10794 = vpop.f32.mrb[0].mxu0
    %v10795 = vadd.f32 0.0, %v10794
    %v10796 = vpop.f32.mrb[0].mxu0
    %10797 = vmatprep.mubr.f32.mxu0 %v10661
    %10798 = vmatmul.mubr.f32.gmra.mrb[0].mxu0 %v10660
    %v10799 = vpop.f32.mrb[0].mxu0
    %v10800 = vadd.f32 0.0, %v10799
    %v10801 = vpop.f32.mrb[0].mxu0
    %10802 = vmatprep.mubr.f32.mxu0 %v10665
    %10803 = vmatmul.mubr.f32.gmra.mrb[0].mxu0 %v10664
    %v10804 = vpop.f32.mrb[0].mxu0
    %v10805 = vadd.f32 0.0, %v10804
    %v10806 = vpop.f32.mrb[0].mxu0
    %10807 = vmatprep.mubr.f32.mxu0 %v10669
    %10808 = vmatmul.mubr.f32.gmra.mrb[0].mxu0 %v10668
    %v10809 = vpop.f32.mrb[0].mxu0
    %v10810 = vadd.f32 0.0, %v10809
    %v10811 = vpop.f32.mrb[0].mxu0
    %10812 = vmatprep.mubr.f32.mxu0 %v10673
    %10813 = vmatmul.mubr.f32.gmra.mrb[0].mxu0 %v10672
    %v10814 = vpop.f32.mrb[0].mxu0
    %v10815 = vadd.f32 0.0, %v10814
    %v10816 = vpop.f32.mrb[0].mxu0
    %10817 = vmatprep.mubr.f32.mxu0 %v10677
    %10818 = vmatmul.mubr.f32.gmra.mrb[0].mxu0 %v10676
    %v10819 = vpop.f32.mrb[0].mxu0
    %v10820 = vadd.f32 0.0, %v10819
    %v10821 = vpop.f32.mrb[0].mxu0
    %10822 = vmatprep.mubr.f32.mxu0 %v10681
    %10823 = vmatmul.mubr.f32.gmra.mrb[0].mxu0 %v10680
    %v10824 = vpop.f32.mrb[0].mxu0
    %v10825 = vadd.f32 0.0, %v10824
    %v10826 = vpop.f32.mrb[0].mxu0
    %10827 = vmatprep.mubr.f32.mxu0 %v10685
    %10828 = vmatmul.mubr.f32.gmra.mrb[0].mxu0 %v10684
    %v10829 = vpop.f32.mrb[0].mxu0
    %v10830 = vadd.f32 0.0, %v10829
    %v10831 = vpop.f32.mrb[0].mxu0
    %10832 = vdwg.mxu0
    %10833 = vmatprep.subr.mxu0 0.0
    %10834 = vmatpush1.msra.mxu0 %v10592
    %10835 = vmatprep.subr.mxu0 0.0
    %10836 = vmatpush1.msra.mxu0 %v10593
    %10837 = vmatprep.subr.mxu0 0.0
    %10838 = vmatpush1.msra.mxu0 %v10594
    %10839 = vmatprep.subr.mxu0 0.0
    %10840 = vmatpush1.msra.mxu0 %v10595
    %10841 = vmatprep.subr.mxu0 0.0
    %10842 = vmatpush1.msra.mxu0 %v10596
    %10843 = vmatprep.subr.mxu0 0.0
    %10844 = vmatpush1.msra.mxu0 %v10597
    %10845 = vmatprep.subr.mxu0 0.0
    %10846 = vmatpush1.msra.mxu0 %v10598
    %10847 = vmatprep.subr.mxu0 0.0
    %10848 = vmatpush1.msra.mxu0 %v10599
    %10849 = vmatprep.subr.mxu0 0.0
    %10850 = vmatpush1.msra.mxu0 %v10600
    %10851 = vmatprep.subr.mxu0 0.0
    %10852 = vmatpush1.msra.mxu0 %v10601
    %10853 = vmatprep.subr.mxu0 0.0
    %10854 = vmatpush1.msra.mxu0 %v10602
    %10855 = vmatprep.subr.mxu0 0.0
    %10856 = vmatpush1.msra.mxu0 %v10603
    %10857 = vmatprep.subr.mxu0 0.0
    %10858 = vmatpush1.msra.mxu0 %v10604
    %10859 = vmatprep.subr.mxu0 0.0
    %10860 = vmatpush1.msra.mxu0 %v10605
    %10861 = vmatprep.subr.mxu0 0.0
    %10862 = vmatpush1.msra.mxu0 %v10606
    %10863 = vmatprep.subr.mxu0 0.0
    %10864 = vmatpush1.msra.mxu0 %v10607
    %10865 = vmatprep.subr.mxu0 0.0
    %10866 = vmatpush1.msra.mxu0 %v10608
    %10867 = vmatprep.subr.mxu0 0.0
    %10868 = vmatpush1.msra.mxu0 %v10609
    %10869 = vmatprep.subr.mxu0 0.0
    %10870 = vmatpush1.msra.mxu0 %v10610
    %10871 = vmatprep.subr.mxu0 0.0
    %10872 = vmatpush1.msra.mxu0 %v10611
    %10873 = vmatprep.subr.mxu0 0.0
    %10874 = vmatpush1.msra.mxu0 %v10612
    %10875 = vmatprep.subr.mxu0 0.0
    %10876 = vmatpush1.msra.mxu0 %v10613
    %10877 = vmatprep.subr.mxu0 0.0
    %10878 = vmatpush1.msra.mxu0 %v10614
    %10879 = vmatprep.subr.mxu0 0.0
    %10880 = vmatpush1.msra.mxu0 %v10615
    %10881 = vmatprep.subr.mxu0 0.0
    %10882 = vmatpush1.msra.mxu0 %v10616
    %10883 = vmatprep.subr.mxu0 0.0
    %10884 = vmatpush1.msra.mxu0 %v10617
    %10885 = vmatprep.subr.mxu0 0.0
    %10886 = vmatpush1.msra.mxu0 %v10618
    %10887 = vmatprep.subr.mxu0 0.0
    %10888 = vmatpush1.msra.mxu0 %v10619
    %10889 = vmatprep.subr.mxu0 0.0
    %10890 = vmatpush1.msra.mxu0 %v10620
    %10891 = vmatprep.subr.mxu0 0.0
    %10892 = vmatpush1.msra.mxu0 %v10621
    %10893 = vmatprep.subr.mxu0 0.0
    %10894 = vmatpush1.msra.mxu0 %v10622
    %10895 = vmatprep.subr.mxu0 0.0
    %10896 = vmatpush1.msra.mxu0 %v10623
    %10897 = vmatprep.mubr.f32.mxu0 %v10627
    %10898 = vmatmul.mubr.f32.gmra.mrb[0].mxu0 %v10626
    %v10899 = vpop.f32.mrb[0].mxu0
    %v10900 = vadd.f32 %v10755, %v10899
    %v10901 = vpop.f32.mrb[0].mxu0
    %10902 = vmatprep.mubr.f32.mxu0 %v10631
    %10903 = vmatmul.mubr.f32.gmra.mrb[0].mxu0 %v10630
    %v10904 = vpop.f32.mrb[0].mxu0
    %v10905 = vadd.f32 %v10760, %v10904
    %v10906 = vpop.f32.mrb[0].mxu0
    %10907 = vmatprep.mubr.f32.mxu0 %v10635
    %10908 = vmatmul.mubr.f32.gmra.mrb[0].mxu0 %v10634
    %v10909 = vpop.f32.mrb[0].mxu0
    %v10910 = vadd.f32 %v10765, %v10909
    %v10911 = vpop.f32.mrb[0].mxu0
    %10912 = vmatprep.mubr.f32.mxu0 %v10639
    %10913 = vmatmul.mubr.f32.gmra.mrb[0].mxu0 %v10638
    %v10914 = vpop.f32.mrb[0].mxu0
    %v10915 = vadd.f32 %v10770, %v10914
    %v10916 = vpop.f32.mrb[0].mxu0
    %10917 = vmatprep.mubr.f32.mxu0 %v10643
    %10918 = vmatmul.mubr.f32.gmra.mrb[0].mxu0 %v10642
    %v10919 = vpop.f32.mrb[0].mxu0
    %v10920 = vadd.f32 %v10775, %v10919
    %v10921 = vpop.f32.mrb[0].mxu0
    %10922 = vmatprep.mubr.f32.mxu0 %v10647
    %10923 = vmatmul.mubr.f32.gmra.mrb[0].mxu0 %v10646
    %v10924 = vpop.f32.mrb[0].mxu0
    %v10925 = vadd.f32 %v10780, %v10924
    %v10926 = vpop.f32.mrb[0].mxu0
    %10927 = vmatprep.mubr.f32.mxu0 %v10651
    %10928 = vmatmul.mubr.f32.gmra.mrb[0].mxu0 %v10650
    %v10929 = vpop.f32.mrb[0].mxu0
    %v10930 = vadd.f32 %v10785, %v10929
    %v10931 = vpop.f32.mrb[0].mxu0
    %10932 = vmatprep.mubr.f32.mxu0 %v10655
    %10933 = vmatmul.mubr.f32.gmra.mrb[0].mxu0 %v10654
    %v10934 = vpop.f32.mrb[0].mxu0
    %v10935 = vadd.f32 %v10790, %v10934
    %v10936 = vpop.f32.mrb[0].mxu0
    %10937 = vmatprep.mubr.f32.mxu0 %v10659
    %10938 = vmatmul.mubr.f32.gmra.mrb[0].mxu0 %v10658
    %v10939 = vpop.f32.mrb[0].mxu0
    %v10940 = vadd.f32 %v10795, %v10939
    %v10941 = vpop.f32.mrb[0].mxu0
    %10942 = vmatprep.mubr.f32.mxu0 %v10663
    %10943 = vmatmul.mubr.f32.gmra.mrb[0].mxu0 %v10662
    %v10944 = vpop.f32.mrb[0].mxu0
    %v10945 = vadd.f32 %v10800, %v10944
    %v10946 = vpop.f32.mrb[0].mxu0
    %10947 = vmatprep.mubr.f32.mxu0 %v10667
    %10948 = vmatmul.mubr.f32.gmra.mrb[0].mxu0 %v10666
    %v10949 = vpop.f32.mrb[0].mxu0
    %v10950 = vadd.f32 %v10805, %v10949
    %v10951 = vpop.f32.mrb[0].mxu0
    %10952 = vmatprep.mubr.f32.mxu0 %v10671
    %10953 = vmatmul.mubr.f32.gmra.mrb[0].mxu0 %v10670
    %v10954 = vpop.f32.mrb[0].mxu0
    %v10955 = vadd.f32 %v10810, %v10954
    %v10956 = vpop.f32.mrb[0].mxu0
    %10957 = vmatprep.mubr.f32.mxu0 %v10675
    %10958 = vmatmul.mubr.f32.gmra.mrb[0].mxu0 %v10674
    %v10959 = vpop.f32.mrb[0].mxu0
    %v10960 = vadd.f32 %v10815, %v10959
    %v10961 = vpop.f32.mrb[0].mxu0
    %10962 = vmatprep.mubr.f32.mxu0 %v10679
    %10963 = vmatmul.mubr.f32.gmra.mrb[0].mxu0 %v10678
    %v10964 = vpop.f32.mrb[0].mxu0
    %v10965 = vadd.f32 %v10820, %v10964
    %v10966 = vpop.f32.mrb[0].mxu0
    %10967 = vmatprep.mubr.f32.mxu0 %v10683
    %10968 = vmatmul.mubr.f32.gmra.mrb[0].mxu0 %v10682
    %v10969 = vpop.f32.mrb[0].mxu0
    %v10970 = vadd.f32 %v10825, %v10969
    %v10971 = vpop.f32.mrb[0].mxu0
    %10972 = vmatprep.mubr.f32.mxu0 %v10687
    %10973 = vmatmul.mubr.f32.gmra.mrb[0].mxu0 %v10686
    %v10974 = vpop.f32.mrb[0].mxu0
    %v10975 = vadd.f32 %v10830, %v10974
    %v10976 = vpop.f32.mrb[0].mxu0
    %10977 = vdwg.mxu0
    %v10978 = vld [vmem:[%s5] sm:$0xff]
    %v10979 = vld [vmem:[%s5 + $0x8] sm:$0xff]
    %v10980 = vld [vmem:[%s5 + $0x10] sm:$0xff]
    %v10981 = vld [vmem:[%s5 + $0x18] sm:$0xff]
    %v10982 = vld [vmem:[%s5 + $0x20] sm:$0xff]
    %v10983 = vld [vmem:[%s5 + $0x28] sm:$0xff]
    %v10984 = vld [vmem:[%s5 + $0x30] sm:$0xff]
    %v10985 = vld [vmem:[%s5 + $0x38] sm:$0xff]
    %v10986 = vld [vmem:[%s5 + $0x40] sm:$0xff]
    %v10987 = vld [vmem:[%s5 + $0x48] sm:$0xff]
    %v10988 = vld [vmem:[%s5 + $0x50] sm:$0xff]
    %v10989 = vld [vmem:[%s5 + $0x58] sm:$0xff]
    %v10990 = vld [vmem:[%s5 + $0x60] sm:$0xff]
    %v10991 = vld [vmem:[%s5 + $0x68] sm:$0xff]
    %v10992 = vld [vmem:[%s5 + $0x70] sm:$0xff]
    %v10993 = vld [vmem:[%s5 + $0x78] sm:$0xff]
    %v10994 = vld [vmem:[%s5 + $0x80] sm:$0xff]
    %v10995 = vld [vmem:[%s5 + $0x88] sm:$0xff]
    %v10996 = vld [vmem:[%s5 + $0x90] sm:$0xff]
    %v10997 = vld [vmem:[%s5 + $0x98] sm:$0xff]
    %v10998 = vld [vmem:[%s5 + $0xa0] sm:$0xff]
    %v10999 = vld [vmem:[%s5 + $0xa8] sm:$0xff]
    %v11000 = vld [vmem:[%s5 + $0xb0] sm:$0xff]
    %v11001 = vld [vmem:[%s5 + $0xb8] sm:$0xff]
    %v11002 = vld [vmem:[%s5 + $0xc0] sm:$0xff]
    %v11003 = vld [vmem:[%s5 + $0xc8] sm:$0xff]
    %v11004 = vld [vmem:[%s5 + $0xd0] sm:$0xff]
    %v11005 = vld [vmem:[%s5 + $0xd8] sm:$0xff]
    %v11006 = vld [vmem:[%s5 + $0xe0] sm:$0xff]
    %v11007 = vld [vmem:[%s5 + $0xe8] sm:$0xff]
    %v11008 = vld [vmem:[%s5 + $0xf0] sm:$0xff]
    %v11009 = vld [vmem:[%s5 + $0xf8] sm:$0xff]
    %v11010 = vld [vmem:[%s5 + $0x100] sm:$0xff]
    %v11011 = vld [vmem:[%s5 + $0x108] sm:$0xff]
    %v11012 = vld [vmem:[%s5 + $0x110] sm:$0xff]
    %v11013 = vld [vmem:[%s5 + $0x118] sm:$0xff]
    %v11014 = vld [vmem:[%s5 + $0x120] sm:$0xff]
    %v11015 = vld [vmem:[%s5 + $0x128] sm:$0xff]
    %v11016 = vld [vmem:[%s5 + $0x130] sm:$0xff]
    %v11017 = vld [vmem:[%s5 + $0x138] sm:$0xff]
    %v11018 = vld [vmem:[%s5 + $0x140] sm:$0xff]
    %v11019 = vld [vmem:[%s5 + $0x148] sm:$0xff]
    %v11020 = vld [vmem:[%s5 + $0x150] sm:$0xff]
    %v11021 = vld [vmem:[%s5 + $0x158] sm:$0xff]
    %v11022 = vld [vmem:[%s5 + $0x160] sm:$0xff]
    %v11023 = vld [vmem:[%s5 + $0x168] sm:$0xff]
    %v11024 = vld [vmem:[%s5 + $0x170] sm:$0xff]
    %v11025 = vld [vmem:[%s5 + $0x178] sm:$0xff]
    %v11026 = vld [vmem:[%s5 + $0x180] sm:$0xff]
    %v11027 = vld [vmem:[%s5 + $0x188] sm:$0xff]
    %v11028 = vld [vmem:[%s5 + $0x190] sm:$0xff]
    %v11029 = vld [vmem:[%s5 + $0x198] sm:$0xff]
    %v11030 = vld [vmem:[%s5 + $0x1a0] sm:$0xff]
    %v11031 = vld [vmem:[%s5 + $0x1a8] sm:$0xff]
    %v11032 = vld [vmem:[%s5 + $0x1b0] sm:$0xff]
    %v11033 = vld [vmem:[%s5 + $0x1b8] sm:$0xff]
    %v11034 = vld [vmem:[%s5 + $0x1c0] sm:$0xff]
    %v11035 = vld [vmem:[%s5 + $0x1c8] sm:$0xff]
    %v11036 = vld [vmem:[%s5 + $0x1d0] sm:$0xff]
    %v11037 = vld [vmem:[%s5 + $0x1d8] sm:$0xff]
    %v11038 = vld [vmem:[%s5 + $0x1e0] sm:$0xff]
    %v11039 = vld [vmem:[%s5 + $0x1e8] sm:$0xff]
    %v11040 = vld [vmem:[%s5 + $0x1f0] sm:$0xff]
    %v11041 = vld [vmem:[%s5 + $0x1f8] sm:$0xff]
    %v11042 = vld [vmem:[%s5 + $0x200] sm:$0xff]
    %v11043 = vld [vmem:[%s5 + $0x208] sm:$0xff]
    %v11044 = vld [vmem:[%s5 + $0x210] sm:$0xff]
    %v11045 = vld [vmem:[%s5 + $0x218] sm:$0xff]
    %v11046 = vld [vmem:[%s5 + $0x220] sm:$0xff]
    %v11047 = vld [vmem:[%s5 + $0x228] sm:$0xff]
    %v11048 = vld [vmem:[%s5 + $0x230] sm:$0xff]
    %v11049 = vld [vmem:[%s5 + $0x238] sm:$0xff]
    %v11050 = vld [vmem:[%s5 + $0x240] sm:$0xff]
    %v11051 = vld [vmem:[%s5 + $0x248] sm:$0xff]
    %v11052 = vld [vmem:[%s5 + $0x250] sm:$0xff]
    %v11053 = vld [vmem:[%s5 + $0x258] sm:$0xff]
    %v11054 = vld [vmem:[%s5 + $0x260] sm:$0xff]
    %v11055 = vld [vmem:[%s5 + $0x268] sm:$0xff]
    %v11056 = vld [vmem:[%s5 + $0x270] sm:$0xff]
    %v11057 = vld [vmem:[%s5 + $0x278] sm:$0xff]
    %v11058 = vld [vmem:[%s5 + $0x280] sm:$0xff]
    %v11059 = vld [vmem:[%s5 + $0x288] sm:$0xff]
    %v11060 = vld [vmem:[%s5 + $0x290] sm:$0xff]
    %v11061 = vld [vmem:[%s5 + $0x298] sm:$0xff]
    %v11062 = vld [vmem:[%s5 + $0x2a0] sm:$0xff]
    %v11063 = vld [vmem:[%s5 + $0x2a8] sm:$0xff]
    %v11064 = vld [vmem:[%s5 + $0x2b0] sm:$0xff]
    %v11065 = vld [vmem:[%s5 + $0x2b8] sm:$0xff]
    %v11066 = vld [vmem:[%s5 + $0x2c0] sm:$0xff]
    %v11067 = vld [vmem:[%s5 + $0x2c8] sm:$0xff]
    %v11068 = vld [vmem:[%s5 + $0x2d0] sm:$0xff]
    %v11069 = vld [vmem:[%s5 + $0x2d8] sm:$0xff]
    %v11070 = vld [vmem:[%s5 + $0x2e0] sm:$0xff]
    %v11071 = vld [vmem:[%s5 + $0x2e8] sm:$0xff]
    %v11072 = vld [vmem:[%s5 + $0x2f0] sm:$0xff]
    %v11073 = vld [vmem:[%s5 + $0x2f8] sm:$0xff]
    %v11074 = vld [vmem:[%s5 + $0x300] sm:$0xff]
    %v11075 = vld [vmem:[%s5 + $0x308] sm:$0xff]
    %v11076 = vld [vmem:[%s5 + $0x310] sm:$0xff]
    %v11077 = vld [vmem:[%s5 + $0x318] sm:$0xff]
    %11078 = vmatprep.subr.mxu0 0.0
    %11079 = vmatpush1.msra.mxu0 %v10900
    %11080 = vmatprep.subr.mxu0 0.0
    %11081 = vmatpush1.msra.mxu0 %v10905
    %11082 = vmatprep.subr.mxu0 0.0
    %11083 = vmatpush1.msra.mxu0 %v10910
    %11084 = vmatprep.subr.mxu0 0.0
    %11085 = vmatpush1.msra.mxu0 %v10915
    %11086 = vmatprep.subr.mxu0 0.0
    %11087 = vmatpush1.msra.mxu0 %v10920
    %11088 = vmatprep.subr.mxu0 0.0
    %11089 = vmatpush1.msra.mxu0 %v10925
    %11090 = vmatprep.subr.mxu0 0.0
    %11091 = vmatpush1.msra.mxu0 %v10930
    %11092 = vmatprep.subr.mxu0 0.0
    %11093 = vmatpush1.msra.mxu0 %v10935
    %11094 = vmatprep.subr.mxu0 0.0
    %11095 = vmatpush1.msra.mxu0 %v10940
    %11096 = vmatprep.subr.mxu0 0.0
    %11097 = vmatpush1.msra.mxu0 %v10945
    %11098 = vmatprep.subr.mxu0 0.0
    %11099 = vmatpush1.msra.mxu0 %v10950
    %11100 = vmatprep.subr.mxu0 0.0
    %11101 = vmatpush1.msra.mxu0 %v10955
    %11102 = vmatprep.subr.mxu0 0.0
    %11103 = vmatpush1.msra.mxu0 %v10960
    %11104 = vmatprep.subr.mxu0 0.0
    %11105 = vmatpush1.msra.mxu0 %v10965
    %11106 = vmatprep.subr.mxu0 0.0
    %11107 = vmatpush1.msra.mxu0 %v10970
    %11108 = vmatprep.subr.mxu0 0.0
    %11109 = vmatpush1.msra.mxu0 %v10975
    %11110 = vmatprep.subr.mxu0 0.0
    %11111 = vmatpush1.msra.mxu0 0.0
    %11112 = vmatprep.subr.mxu0 0.0
    %11113 = vmatpush1.msra.mxu0 0.0
    %11114 = vmatprep.subr.mxu0 0.0
    %11115 = vmatpush1.msra.mxu0 0.0
    %11116 = vmatprep.subr.mxu0 0.0
    %11117 = vmatpush1.msra.mxu0 0.0
    %11118 = vmatprep.subr.mxu0 0.0
    %11119 = vmatpush1.msra.mxu0 0.0
    %11120 = vmatprep.subr.mxu0 0.0
    %11121 = vmatpush1.msra.mxu0 0.0
    %11122 = vmatprep.subr.mxu0 0.0
    %11123 = vmatpush1.msra.mxu0 0.0
    %11124 = vmatprep.subr.mxu0 0.0
    %11125 = vmatpush1.msra.mxu0 0.0
    %11126 = vmatprep.subr.mxu0 0.0
    %11127 = vmatpush1.msra.mxu0 0.0
    %11128 = vmatprep.subr.mxu0 0.0
    %11129 = vmatpush1.msra.mxu0 0.0
    %11130 = vmatprep.subr.mxu0 0.0
    %11131 = vmatpush1.msra.mxu0 0.0
    %11132 = vmatprep.subr.mxu0 0.0
    %11133 = vmatpush1.msra.mxu0 0.0
    %11134 = vmatprep.subr.mxu0 0.0
    %11135 = vmatpush1.msra.mxu0 0.0
    %11136 = vmatprep.subr.mxu0 0.0
    %11137 = vmatpush1.msra.mxu0 0.0
    %11138 = vmatprep.subr.mxu0 0.0
    %11139 = vmatpush1.msra.mxu0 0.0
    %11140 = vmatprep.subr.mxu0 0.0
    %11141 = vmatpush1.msra.mxu0 0.0
    %11142 = vmatprep.mubr.f32.mxu0 0.0
    %11143 = vmatmul.mubr.f32.gmra.mrb[0].mxu0 %v10978
    %v11144 = vpop.f32.mrb[0].mxu0
    %v11145 = vadd.f32 0.0, %v11144
    %v11146 = vpop.f32.mrb[0].mxu0
    %11147 = vmatprep.mubr.f32.mxu0 0.0
    %11148 = vmatmul.mubr.f32.gmra.mrb[0].mxu0 %v10979
    %v11149 = vpop.f32.mrb[0].mxu0
    %v11150 = vadd.f32 0.0, %v11149
    %v11151 = vpop.f32.mrb[0].mxu0
    %11152 = vmatprep.mubr.f32.mxu0 0.0
    %11153 = vmatmul.mubr.f32.gmra.mrb[0].mxu0 %v10980
    %v11154 = vpop.f32.mrb[0].mxu0
    %v11155 = vadd.f32 0.0, %v11154
    %v11156 = vpop.f32.mrb[0].mxu0
    %11157 = vmatprep.mubr.f32.mxu0 0.0
    %11158 = vmatmul.mubr.f32.gmra.mrb[0].mxu0 %v10981
    %v11159 = vpop.f32.mrb[0].mxu0
    %v11160 = vadd.f32 0.0, %v11159
    %v11161 = vpop.f32.mrb[0].mxu0
    %11162 = vmatprep.mubr.f32.mxu0 0.0
    %11163 = vmatmul.mubr.f32.gmra.mrb[0].mxu0 %v10982
    %v11164 = vpop.f32.mrb[0].mxu0
    %v11165 = vadd.f32 0.0, %v11164
    %v11166 = vpop.f32.mrb[0].mxu0
    %11167 = vmatprep.mubr.f32.mxu0 0.0
    %11168 = vmatmul.mubr.f32.gmra.mrb[0].mxu0 %v10983
    %v11169 = vpop.f32.mrb[0].mxu0
    %v11170 = vadd.f32 0.0, %v11169
    %v11171 = vpop.f32.mrb[0].mxu0
    %11172 = vmatprep.mubr.f32.mxu0 0.0
    %11173 = vmatmul.mubr.f32.gmra.mrb[0].mxu0 %v10984
    %v11174 = vpop.f32.mrb[0].mxu0
    %v11175 = vadd.f32 0.0, %v11174
    %v11176 = vpop.f32.mrb[0].mxu0
    %11177 = vmatprep.mubr.f32.mxu0 0.0
    %11178 = vmatmul.mubr.f32.gmra.mrb[0].mxu0 %v10985
    %v11179 = vpop.f32.mrb[0].mxu0
    %v11180 = vadd.f32 0.0, %v11179
    %v11181 = vpop.f32.mrb[0].mxu0
    %11182 = vmatprep.mubr.f32.mxu0 0.0
    %11183 = vmatmul.mubr.f32.gmra.mrb[0].mxu0 %v10986
    %v11184 = vpop.f32.mrb[0].mxu0
    %v11185 = vadd.f32 0.0, %v11184
    %v11186 = vpop.f32.mrb[0].mxu0
    %11187 = vmatprep.mubr.f32.mxu0 0.0
    %11188 = vmatmul.mubr.f32.gmra.mrb[0].mxu0 %v10987
    %v11189 = vpop.f32.mrb[0].mxu0
    %v11190 = vadd.f32 0.0, %v11189
    %v11191 = vpop.f32.mrb[0].mxu0
    %11192 = vmatprep.mubr.f32.mxu0 0.0
    %11193 = vmatmul.mubr.f32.gmra.mrb[0].mxu0 %v10988
    %v11194 = vpop.f32.mrb[0].mxu0
    %v11195 = vadd.f32 0.0, %v11194
    %v11196 = vpop.f32.mrb[0].mxu0
    %11197 = vmatprep.mubr.f32.mxu0 0.0
    %11198 = vmatmul.mubr.f32.gmra.mrb[0].mxu0 %v10989
    %v11199 = vpop.f32.mrb[0].mxu0
    %v11200 = vadd.f32 0.0, %v11199
    %v11201 = vpop.f32.mrb[0].mxu0
    %11202 = vmatprep.mubr.f32.mxu0 0.0
    %11203 = vmatmul.mubr.f32.gmra.mrb[0].mxu0 %v10990
    %v11204 = vpop.f32.mrb[0].mxu0
    %v11205 = vadd.f32 0.0, %v11204
    %v11206 = vpop.f32.mrb[0].mxu0
    %11207 = vmatprep.mubr.f32.mxu0 0.0
    %11208 = vmatmul.mubr.f32.gmra.mrb[0].mxu0 %v10991
    %v11209 = vpop.f32.mrb[0].mxu0
    %v11210 = vadd.f32 0.0, %v11209
    %v11211 = vpop.f32.mrb[0].mxu0
    %11212 = vmatprep.mubr.f32.mxu0 0.0
    %11213 = vmatmul.mubr.f32.gmra.mrb[0].mxu0 %v10992
    %v11214 = vpop.f32.mrb[0].mxu0
    %v11215 = vadd.f32 0.0, %v11214
    %v11216 = vpop.f32.mrb[0].mxu0
    %11217 = vmatprep.mubr.f32.mxu0 0.0
    %11218 = vmatmul.mubr.f32.gmra.mrb[0].mxu0 %v10993
    %v11219 = vpop.f32.mrb[0].mxu0
    %v11220 = vadd.f32 0.0, %v11219
    %v11221 = vpop.f32.mrb[0].mxu0
    %11222 = vmatprep.mubr.f32.mxu0 0.0
    %11223 = vmatmul.mubr.f32.gmra.mrb[0].mxu0 %v10994
    %v11224 = vpop.f32.mrb[0].mxu0
    %v11225 = vadd.f32 0.0, %v11224
    %v11226 = vpop.f32.mrb[0].mxu0
    %11227 = vmatprep.mubr.f32.mxu0 0.0
    %11228 = vmatmul.mubr.f32.gmra.mrb[0].mxu0 %v10995
    %v11229 = vpop.f32.mrb[0].mxu0
    %v11230 = vadd.f32 0.0, %v11229
    %v11231 = vpop.f32.mrb[0].mxu0
    %11232 = vmatprep.mubr.f32.mxu0 0.0
    %11233 = vmatmul.mubr.f32.gmra.mrb[0].mxu0 %v10996
    %v11234 = vpop.f32.mrb[0].mxu0
    %v11235 = vadd.f32 0.0, %v11234
    %v11236 = vpop.f32.mrb[0].mxu0
    %11237 = vmatprep.mubr.f32.mxu0 0.0
    %11238 = vmatmul.mubr.f32.gmra.mrb[0].mxu0 %v10997
    %v11239 = vpop.f32.mrb[0].mxu0
    %v11240 = vadd.f32 0.0, %v11239
    %v11241 = vpop.f32.mrb[0].mxu0
    %11242 = vmatprep.mubr.f32.mxu0 0.0
    %11243 = vmatmul.mubr.f32.gmra.mrb[0].mxu0 %v10998
    %v11244 = vpop.f32.mrb[0].mxu0
    %v11245 = vadd.f32 0.0, %v11244
    %v11246 = vpop.f32.mrb[0].mxu0
    %11247 = vmatprep.mubr.f32.mxu0 0.0
    %11248 = vmatmul.mubr.f32.gmra.mrb[0].mxu0 %v10999
    %v11249 = vpop.f32.mrb[0].mxu0
    %v11250 = vadd.f32 0.0, %v11249
    %v11251 = vpop.f32.mrb[0].mxu0
    %11252 = vmatprep.mubr.f32.mxu0 0.0
    %11253 = vmatmul.mubr.f32.gmra.mrb[0].mxu0 %v11000
    %v11254 = vpop.f32.mrb[0].mxu0
    %v11255 = vadd.f32 0.0, %v11254
    %v11256 = vpop.f32.mrb[0].mxu0
    %11257 = vmatprep.mubr.f32.mxu0 0.0
    %11258 = vmatmul.mubr.f32.gmra.mrb[0].mxu0 %v11001
    %v11259 = vpop.f32.mrb[0].mxu0
    %v11260 = vadd.f32 0.0, %v11259
    %v11261 = vpop.f32.mrb[0].mxu0
    %11262 = vmatprep.mubr.f32.mxu0 0.0
    %11263 = vmatmul.mubr.f32.gmra.mrb[0].mxu0 %v11002
    %v11264 = vpop.f32.mrb[0].mxu0
    %v11265 = vadd.f32 0.0, %v11264
    %v11266 = vpop.f32.mrb[0].mxu0
    %11267 = vmatprep.mubr.f32.mxu0 0.0
    %11268 = vmatmul.mubr.f32.gmra.mrb[0].mxu0 %v11003
    %v11269 = vpop.f32.mrb[0].mxu0
    %v11270 = vadd.f32 0.0, %v11269
    %v11271 = vpop.f32.mrb[0].mxu0
    %11272 = vmatprep.mubr.f32.mxu0 0.0
    %11273 = vmatmul.mubr.f32.gmra.mrb[0].mxu0 %v11004
    %v11274 = vpop.f32.mrb[0].mxu0
    %v11275 = vadd.f32 0.0, %v11274
    %v11276 = vpop.f32.mrb[0].mxu0
    %11277 = vmatprep.mubr.f32.mxu0 0.0
    %11278 = vmatmul.mubr.f32.gmra.mrb[0].mxu0 %v11005
    %v11279 = vpop.f32.mrb[0].mxu0
    %v11280 = vadd.f32 0.0, %v11279
    %v11281 = vpop.f32.mrb[0].mxu0
    %11282 = vmatprep.mubr.f32.mxu0 0.0
    %11283 = vmatmul.mubr.f32.gmra.mrb[0].mxu0 %v11006
    %v11284 = vpop.f32.mrb[0].mxu0
    %v11285 = vadd.f32 0.0, %v11284
    %v11286 = vpop.f32.mrb[0].mxu0
    %11287 = vmatprep.mubr.f32.mxu0 0.0
    %11288 = vmatmul.mubr.f32.gmra.mrb[0].mxu0 %v11007
    %v11289 = vpop.f32.mrb[0].mxu0
    %v11290 = vadd.f32 0.0, %v11289
    %v11291 = vpop.f32.mrb[0].mxu0
    %11292 = vmatprep.mubr.f32.mxu0 0.0
    %11293 = vmatmul.mubr.f32.gmra.mrb[0].mxu0 %v11008
    %v11294 = vpop.f32.mrb[0].mxu0
    %v11295 = vadd.f32 0.0, %v11294
    %v11296 = vpop.f32.mrb[0].mxu0
    %11297 = vmatprep.mubr.f32.mxu0 0.0
    %11298 = vmatmul.mubr.f32.gmra.mrb[0].mxu0 %v11009
    %v11299 = vpop.f32.mrb[0].mxu0
    %v11300 = vadd.f32 0.0, %v11299
    %v11301 = vpop.f32.mrb[0].mxu0
    %11302 = vmatprep.mubr.f32.mxu0 0.0
    %11303 = vmatmul.mubr.f32.gmra.mrb[0].mxu0 %v11010
    %v11304 = vpop.f32.mrb[0].mxu0
    %v11305 = vadd.f32 0.0, %v11304
    %v11306 = vpop.f32.mrb[0].mxu0
    %11307 = vmatprep.mubr.f32.mxu0 0.0
    %11308 = vmatmul.mubr.f32.gmra.mrb[0].mxu0 %v11011
    %v11309 = vpop.f32.mrb[0].mxu0
    %v11310 = vadd.f32 0.0, %v11309
    %v11311 = vpop.f32.mrb[0].mxu0
    %11312 = vmatprep.mubr.f32.mxu0 0.0
    %11313 = vmatmul.mubr.f32.gmra.mrb[0].mxu0 %v11012
    %v11314 = vpop.f32.mrb[0].mxu0
    %v11315 = vadd.f32 0.0, %v11314
    %v11316 = vpop.f32.mrb[0].mxu0
    %11317 = vmatprep.mubr.f32.mxu0 0.0
    %11318 = vmatmul.mubr.f32.gmra.mrb[0].mxu0 %v11013
    %v11319 = vpop.f32.mrb[0].mxu0
    %v11320 = vadd.f32 0.0, %v11319
    %v11321 = vpop.f32.mrb[0].mxu0
    %11322 = vmatprep.mubr.f32.mxu0 0.0
    %11323 = vmatmul.mubr.f32.gmra.mrb[0].mxu0 %v11014
    %v11324 = vpop.f32.mrb[0].mxu0
    %v11325 = vadd.f32 0.0, %v11324
    %v11326 = vpop.f32.mrb[0].mxu0
    %11327 = vmatprep.mubr.f32.mxu0 0.0
    %11328 = vmatmul.mubr.f32.gmra.mrb[0].mxu0 %v11015
    %v11329 = vpop.f32.mrb[0].mxu0
    %v11330 = vadd.f32 0.0, %v11329
    %v11331 = vpop.f32.mrb[0].mxu0
    %11332 = vmatprep.mubr.f32.mxu0 0.0
    %11333 = vmatmul.mubr.f32.gmra.mrb[0].mxu0 %v11016
    %v11334 = vpop.f32.mrb[0].mxu0
    %v11335 = vadd.f32 0.0, %v11334
    %v11336 = vpop.f32.mrb[0].mxu0
    %11337 = vmatprep.mubr.f32.mxu0 0.0
    %11338 = vmatmul.mubr.f32.gmra.mrb[0].mxu0 %v11017
    %v11339 = vpop.f32.mrb[0].mxu0
    %v11340 = vadd.f32 0.0, %v11339
    %v11341 = vpop.f32.mrb[0].mxu0
    %11342 = vmatprep.mubr.f32.mxu0 0.0
    %11343 = vmatmul.mubr.f32.gmra.mrb[0].mxu0 %v11018
    %v11344 = vpop.f32.mrb[0].mxu0
    %v11345 = vadd.f32 0.0, %v11344
    %v11346 = vpop.f32.mrb[0].mxu0
    %11347 = vmatprep.mubr.f32.mxu0 0.0
    %11348 = vmatmul.mubr.f32.gmra.mrb[0].mxu0 %v11019
    %v11349 = vpop.f32.mrb[0].mxu0
    %v11350 = vadd.f32 0.0, %v11349
    %v11351 = vpop.f32.mrb[0].mxu0
    %11352 = vmatprep.mubr.f32.mxu0 0.0
    %11353 = vmatmul.mubr.f32.gmra.mrb[0].mxu0 %v11020
    %v11354 = vpop.f32.mrb[0].mxu0
    %v11355 = vadd.f32 0.0, %v11354
    %v11356 = vpop.f32.mrb[0].mxu0
    %11357 = vmatprep.mubr.f32.mxu0 0.0
    %11358 = vmatmul.mubr.f32.gmra.mrb[0].mxu0 %v11021
    %v11359 = vpop.f32.mrb[0].mxu0
    %v11360 = vadd.f32 0.0, %v11359
    %v11361 = vpop.f32.mrb[0].mxu0
    %11362 = vmatprep.mubr.f32.mxu0 0.0
    %11363 = vmatmul.mubr.f32.gmra.mrb[0].mxu0 %v11022
    %v11364 = vpop.f32.mrb[0].mxu0
    %v11365 = vadd.f32 0.0, %v11364
    %v11366 = vpop.f32.mrb[0].mxu0
    %11367 = vmatprep.mubr.f32.mxu0 0.0
    %11368 = vmatmul.mubr.f32.gmra.mrb[0].mxu0 %v11023
    %v11369 = vpop.f32.mrb[0].mxu0
    %v11370 = vadd.f32 0.0, %v11369
    %v11371 = vpop.f32.mrb[0].mxu0
    %11372 = vmatprep.mubr.f32.mxu0 0.0
    %11373 = vmatmul.mubr.f32.gmra.mrb[0].mxu0 %v11024
    %v11374 = vpop.f32.mrb[0].mxu0
    %v11375 = vadd.f32 0.0, %v11374
    %v11376 = vpop.f32.mrb[0].mxu0
    %11377 = vmatprep.mubr.f32.mxu0 0.0
    %11378 = vmatmul.mubr.f32.gmra.mrb[0].mxu0 %v11025
    %v11379 = vpop.f32.mrb[0].mxu0
    %v11380 = vadd.f32 0.0, %v11379
    %v11381 = vpop.f32.mrb[0].mxu0
    %11382 = vmatprep.mubr.f32.mxu0 0.0
    %11383 = vmatmul.mubr.f32.gmra.mrb[0].mxu0 %v11026
    %v11384 = vpop.f32.mrb[0].mxu0
    %v11385 = vadd.f32 0.0, %v11384
    %v11386 = vpop.f32.mrb[0].mxu0
    %11387 = vmatprep.mubr.f32.mxu0 0.0
    %11388 = vmatmul.mubr.f32.gmra.mrb[0].mxu0 %v11027
    %v11389 = vpop.f32.mrb[0].mxu0
    %v11390 = vadd.f32 0.0, %v11389
    %v11391 = vpop.f32.mrb[0].mxu0
    %11392 = vmatprep.mubr.f32.mxu0 0.0
    %11393 = vmatmul.mubr.f32.gmra.mrb[0].mxu0 %v11028
    %v11394 = vpop.f32.mrb[0].mxu0
    %v11395 = vadd.f32 0.0, %v11394
    %v11396 = vpop.f32.mrb[0].mxu0
    %11397 = vmatprep.mubr.f32.mxu0 0.0
    %11398 = vmatmul.mubr.f32.gmra.mrb[0].mxu0 %v11029
    %v11399 = vpop.f32.mrb[0].mxu0
    %v11400 = vadd.f32 0.0, %v11399
    %v11401 = vpop.f32.mrb[0].mxu0
    %11402 = vmatprep.mubr.f32.mxu0 0.0
    %11403 = vmatmul.mubr.f32.gmra.mrb[0].mxu0 %v11030
    %v11404 = vpop.f32.mrb[0].mxu0
    %v11405 = vadd.f32 0.0, %v11404
    %v11406 = vpop.f32.mrb[0].mxu0
    %11407 = vmatprep.mubr.f32.mxu0 0.0
    %11408 = vmatmul.mubr.f32.gmra.mrb[0].mxu0 %v11031
    %v11409 = vpop.f32.mrb[0].mxu0
    %v11410 = vadd.f32 0.0, %v11409
    %v11411 = vpop.f32.mrb[0].mxu0
    %11412 = vmatprep.mubr.f32.mxu0 0.0
    %11413 = vmatmul.mubr.f32.gmra.mrb[0].mxu0 %v11032
    %v11414 = vpop.f32.mrb[0].mxu0
    %v11415 = vadd.f32 0.0, %v11414
    %v11416 = vpop.f32.mrb[0].mxu0
    %11417 = vmatprep.mubr.f32.mxu0 0.0
    %11418 = vmatmul.mubr.f32.gmra.mrb[0].mxu0 %v11033
    %v11419 = vpop.f32.mrb[0].mxu0
    %v11420 = vadd.f32 0.0, %v11419
    %v11421 = vpop.f32.mrb[0].mxu0
    %11422 = vmatprep.mubr.f32.mxu0 0.0
    %11423 = vmatmul.mubr.f32.gmra.mrb[0].mxu0 %v11034
    %v11424 = vpop.f32.mrb[0].mxu0
    %v11425 = vadd.f32 0.0, %v11424
    %v11426 = vpop.f32.mrb[0].mxu0
    %11427 = vmatprep.mubr.f32.mxu0 0.0
    %11428 = vmatmul.mubr.f32.gmra.mrb[0].mxu0 %v11035
    %v11429 = vpop.f32.mrb[0].mxu0
    %v11430 = vadd.f32 0.0, %v11429
    %v11431 = vpop.f32.mrb[0].mxu0
    %11432 = vmatprep.mubr.f32.mxu0 0.0
    %11433 = vmatmul.mubr.f32.gmra.mrb[0].mxu0 %v11036
    %v11434 = vpop.f32.mrb[0].mxu0
    %v11435 = vadd.f32 0.0, %v11434
    %v11436 = vpop.f32.mrb[0].mxu0
    %11437 = vmatprep.mubr.f32.mxu0 0.0
    %11438 = vmatmul.mubr.f32.gmra.mrb[0].mxu0 %v11037
    %v11439 = vpop.f32.mrb[0].mxu0
    %v11440 = vadd.f32 0.0, %v11439
    %v11441 = vpop.f32.mrb[0].mxu0
    %11442 = vmatprep.mubr.f32.mxu0 0.0
    %11443 = vmatmul.mubr.f32.gmra.mrb[0].mxu0 %v11038
    %v11444 = vpop.f32.mrb[0].mxu0
    %v11445 = vadd.f32 0.0, %v11444
    %v11446 = vpop.f32.mrb[0].mxu0
    %11447 = vmatprep.mubr.f32.mxu0 0.0
    %11448 = vmatmul.mubr.f32.gmra.mrb[0].mxu0 %v11039
    %v11449 = vpop.f32.mrb[0].mxu0
    %v11450 = vadd.f32 0.0, %v11449
    %v11451 = vpop.f32.mrb[0].mxu0
    %11452 = vmatprep.mubr.f32.mxu0 0.0
    %11453 = vmatmul.mubr.f32.gmra.mrb[0].mxu0 %v11040
    %v11454 = vpop.f32.mrb[0].mxu0
    %v11455 = vadd.f32 0.0, %v11454
    %v11456 = vpop.f32.mrb[0].mxu0
    %11457 = vmatprep.mubr.f32.mxu0 0.0
    %11458 = vmatmul.mubr.f32.gmra.mrb[0].mxu0 %v11041
    %v11459 = vpop.f32.mrb[0].mxu0
    %v11460 = vadd.f32 0.0, %v11459
    %v11461 = vpop.f32.mrb[0].mxu0
    %11462 = vmatprep.mubr.f32.mxu0 0.0
    %11463 = vmatmul.mubr.f32.gmra.mrb[0].mxu0 %v11042
    %v11464 = vpop.f32.mrb[0].mxu0
    %v11465 = vadd.f32 0.0, %v11464
    %v11466 = vpop.f32.mrb[0].mxu0
    %11467 = vmatprep.mubr.f32.mxu0 0.0
    %11468 = vmatmul.mubr.f32.gmra.mrb[0].mxu0 %v11043
    %v11469 = vpop.f32.mrb[0].mxu0
    %v11470 = vadd.f32 0.0, %v11469
    %v11471 = vpop.f32.mrb[0].mxu0
    %11472 = vmatprep.mubr.f32.mxu0 0.0
    %11473 = vmatmul.mubr.f32.gmra.mrb[0].mxu0 %v11044
    %v11474 = vpop.f32.mrb[0].mxu0
    %v11475 = vadd.f32 0.0, %v11474
    %v11476 = vpop.f32.mrb[0].mxu0
    %11477 = vmatprep.mubr.f32.mxu0 0.0
    %11478 = vmatmul.mubr.f32.gmra.mrb[0].mxu0 %v11045
    %v11479 = vpop.f32.mrb[0].mxu0
    %v11480 = vadd.f32 0.0, %v11479
    %v11481 = vpop.f32.mrb[0].mxu0
    %11482 = vmatprep.mubr.f32.mxu0 0.0
    %11483 = vmatmul.mubr.f32.gmra.mrb[0].mxu0 %v11046
    %v11484 = vpop.f32.mrb[0].mxu0
    %v11485 = vadd.f32 0.0, %v11484
    %v11486 = vpop.f32.mrb[0].mxu0
    %11487 = vmatprep.mubr.f32.mxu0 0.0
    %11488 = vmatmul.mubr.f32.gmra.mrb[0].mxu0 %v11047
    %v11489 = vpop.f32.mrb[0].mxu0
    %v11490 = vadd.f32 0.0, %v11489
    %v11491 = vpop.f32.mrb[0].mxu0
    %11492 = vmatprep.mubr.f32.mxu0 0.0
    %11493 = vmatmul.mubr.f32.gmra.mrb[0].mxu0 %v11048
    %v11494 = vpop.f32.mrb[0].mxu0
    %v11495 = vadd.f32 0.0, %v11494
    %v11496 = vpop.f32.mrb[0].mxu0
    %11497 = vmatprep.mubr.f32.mxu0 0.0
    %11498 = vmatmul.mubr.f32.gmra.mrb[0].mxu0 %v11049
    %v11499 = vpop.f32.mrb[0].mxu0
    %v11500 = vadd.f32 0.0, %v11499
    %v11501 = vpop.f32.mrb[0].mxu0
    %11502 = vmatprep.mubr.f32.mxu0 0.0
    %11503 = vmatmul.mubr.f32.gmra.mrb[0].mxu0 %v11050
    %v11504 = vpop.f32.mrb[0].mxu0
    %v11505 = vadd.f32 0.0, %v11504
    %v11506 = vpop.f32.mrb[0].mxu0
    %11507 = vmatprep.mubr.f32.mxu0 0.0
    %11508 = vmatmul.mubr.f32.gmra.mrb[0].mxu0 %v11051
    %v11509 = vpop.f32.mrb[0].mxu0
    %v11510 = vadd.f32 0.0, %v11509
    %v11511 = vpop.f32.mrb[0].mxu0
    %11512 = vmatprep.mubr.f32.mxu0 0.0
    %11513 = vmatmul.mubr.f32.gmra.mrb[0].mxu0 %v11052
    %v11514 = vpop.f32.mrb[0].mxu0
    %v11515 = vadd.f32 0.0, %v11514
    %v11516 = vpop.f32.mrb[0].mxu0
    %11517 = vmatprep.mubr.f32.mxu0 0.0
    %11518 = vmatmul.mubr.f32.gmra.mrb[0].mxu0 %v11053
    %v11519 = vpop.f32.mrb[0].mxu0
    %v11520 = vadd.f32 0.0, %v11519
    %v11521 = vpop.f32.mrb[0].mxu0
    %11522 = vmatprep.mubr.f32.mxu0 0.0
    %11523 = vmatmul.mubr.f32.gmra.mrb[0].mxu0 %v11054
    %v11524 = vpop.f32.mrb[0].mxu0
    %v11525 = vadd.f32 0.0, %v11524
    %v11526 = vpop.f32.mrb[0].mxu0
    %11527 = vmatprep.mubr.f32.mxu0 0.0
    %11528 = vmatmul.mubr.f32.gmra.mrb[0].mxu0 %v11055
    %v11529 = vpop.f32.mrb[0].mxu0
    %v11530 = vadd.f32 0.0, %v11529
    %v11531 = vpop.f32.mrb[0].mxu0
    %11532 = vmatprep.mubr.f32.mxu0 0.0
    %11533 = vmatmul.mubr.f32.gmra.mrb[0].mxu0 %v11056
    %v11534 = vpop.f32.mrb[0].mxu0
    %v11535 = vadd.f32 0.0, %v11534
    %v11536 = vpop.f32.mrb[0].mxu0
    %11537 = vmatprep.mubr.f32.mxu0 0.0
    %11538 = vmatmul.mubr.f32.gmra.mrb[0].mxu0 %v11057
    %v11539 = vpop.f32.mrb[0].mxu0
    %v11540 = vadd.f32 0.0, %v11539
    %v11541 = vpop.f32.mrb[0].mxu0
    %11542 = vmatprep.mubr.f32.mxu0 0.0
    %11543 = vmatmul.mubr.f32.gmra.mrb[0].mxu0 %v11058
    %v11544 = vpop.f32.mrb[0].mxu0
    %v11545 = vadd.f32 0.0, %v11544
    %v11546 = vpop.f32.mrb[0].mxu0
    %11547 = vmatprep.mubr.f32.mxu0 0.0
    %11548 = vmatmul.mubr.f32.gmra.mrb[0].mxu0 %v11059
    %v11549 = vpop.f32.mrb[0].mxu0
    %v11550 = vadd.f32 0.0, %v11549
    %v11551 = vpop.f32.mrb[0].mxu0
    %11552 = vmatprep.mubr.f32.mxu0 0.0
    %11553 = vmatmul.mubr.f32.gmra.mrb[0].mxu0 %v11060
    %v11554 = vpop.f32.mrb[0].mxu0
    %v11555 = vadd.f32 0.0, %v11554
    %v11556 = vpop.f32.mrb[0].mxu0
    %11557 = vmatprep.mubr.f32.mxu0 0.0
    %11558 = vmatmul.mubr.f32.gmra.mrb[0].mxu0 %v11061
    %v11559 = vpop.f32.mrb[0].mxu0
    %v11560 = vadd.f32 0.0, %v11559
    %v11561 = vpop.f32.mrb[0].mxu0
    %11562 = vmatprep.mubr.f32.mxu0 0.0
    %11563 = vmatmul.mubr.f32.gmra.mrb[0].mxu0 %v11062
    %v11564 = vpop.f32.mrb[0].mxu0
    %v11565 = vadd.f32 0.0, %v11564
    %v11566 = vpop.f32.mrb[0].mxu0
    %11567 = vmatprep.mubr.f32.mxu0 0.0
    %11568 = vmatmul.mubr.f32.gmra.mrb[0].mxu0 %v11063
    %v11569 = vpop.f32.mrb[0].mxu0
    %v11570 = vadd.f32 0.0, %v11569
    %v11571 = vpop.f32.mrb[0].mxu0
    %11572 = vmatprep.mubr.f32.mxu0 0.0
    %11573 = vmatmul.mubr.f32.gmra.mrb[0].mxu0 %v11064
    %v11574 = vpop.f32.mrb[0].mxu0
    %v11575 = vadd.f32 0.0, %v11574
    %v11576 = vpop.f32.mrb[0].mxu0
    %11577 = vmatprep.mubr.f32.mxu0 0.0
    %11578 = vmatmul.mubr.f32.gmra.mrb[0].mxu0 %v11065
    %v11579 = vpop.f32.mrb[0].mxu0
    %v11580 = vadd.f32 0.0, %v11579
    %v11581 = vpop.f32.mrb[0].mxu0
    %11582 = vmatprep.mubr.f32.mxu0 0.0
    %11583 = vmatmul.mubr.f32.gmra.mrb[0].mxu0 %v11066
    %v11584 = vpop.f32.mrb[0].mxu0
    %v11585 = vadd.f32 0.0, %v11584
    %v11586 = vpop.f32.mrb[0].mxu0
    %11587 = vmatprep.mubr.f32.mxu0 0.0
    %11588 = vmatmul.mubr.f32.gmra.mrb[0].mxu0 %v11067
    %v11589 = vpop.f32.mrb[0].mxu0
    %v11590 = vadd.f32 0.0, %v11589
    %v11591 = vpop.f32.mrb[0].mxu0
    %11592 = vmatprep.mubr.f32.mxu0 0.0
    %11593 = vmatmul.mubr.f32.gmra.mrb[0].mxu0 %v11068
    %v11594 = vpop.f32.mrb[0].mxu0
    %v11595 = vadd.f32 0.0, %v11594
    %v11596 = vpop.f32.mrb[0].mxu0
    %11597 = vmatprep.mubr.f32.mxu0 0.0
    %11598 = vmatmul.mubr.f32.gmra.mrb[0].mxu0 %v11069
    %v11599 = vpop.f32.mrb[0].mxu0
    %v11600 = vadd.f32 0.0, %v11599
    %v11601 = vpop.f32.mrb[0].mxu0
    %11602 = vmatprep.mubr.f32.mxu0 0.0
    %11603 = vmatmul.mubr.f32.gmra.mrb[0].mxu0 %v11070
    %v11604 = vpop.f32.mrb[0].mxu0
    %v11605 = vadd.f32 0.0, %v11604
    %v11606 = vpop.f32.mrb[0].mxu0
    %11607 = vmatprep.mubr.f32.mxu0 0.0
    %11608 = vmatmul.mubr.f32.gmra.mrb[0].mxu0 %v11071
    %v11609 = vpop.f32.mrb[0].mxu0
    %v11610 = vadd.f32 0.0, %v11609
    %v11611 = vpop.f32.mrb[0].mxu0
    %11612 = vmatprep.mubr.f32.mxu0 0.0
    %11613 = vmatmul.mubr.f32.gmra.mrb[0].mxu0 %v11072
    %v11614 = vpop.f32.mrb[0].mxu0
    %v11615 = vadd.f32 0.0, %v11614
    %v11616 = vpop.f32.mrb[0].mxu0
    %11617 = vmatprep.mubr.f32.mxu0 0.0
    %11618 = vmatmul.mubr.f32.gmra.mrb[0].mxu0 %v11073
    %v11619 = vpop.f32.mrb[0].mxu0
    %v11620 = vadd.f32 0.0, %v11619
    %v11621 = vpop.f32.mrb[0].mxu0
    %11622 = vmatprep.mubr.f32.mxu0 0.0
    %11623 = vmatmul.mubr.f32.gmra.mrb[0].mxu0 %v11074
    %v11624 = vpop.f32.mrb[0].mxu0
    %v11625 = vadd.f32 0.0, %v11624
    %v11626 = vpop.f32.mrb[0].mxu0
    %11627 = vmatprep.mubr.f32.mxu0 0.0
    %11628 = vmatmul.mubr.f32.gmra.mrb[0].mxu0 %v11075
    %v11629 = vpop.f32.mrb[0].mxu0
    %v11630 = vadd.f32 0.0, %v11629
    %v11631 = vpop.f32.mrb[0].mxu0
    %11632 = vmatprep.mubr.f32.mxu0 0.0
    %11633 = vmatmul.mubr.f32.gmra.mrb[0].mxu0 %v11076
    %v11634 = vpop.f32.mrb[0].mxu0
    %v11635 = vadd.f32 0.0, %v11634
    %v11636 = vpop.f32.mrb[0].mxu0
    %11637 = vmatprep.mubr.f32.mxu0 0.0
    %11638 = vmatmul.mubr.f32.gmra.mrb[0].mxu0 %v11077
    %v11639 = vpop.f32.mrb[0].mxu0
    %v11640 = vadd.f32 0.0, %v11639
    %v11641 = vpop.f32.mrb[0].mxu0
    %11642 = vdwg.mxu0
    %11647 = vrot.lane.b32.xlu0 %v11165, 6
    %v11648 = vpop.permute.xlu0 %11647
    %11649 = vrot.lane.b32.xlu0 %v11170, 6
    %v11650 = vpop.permute.xlu0 %11649
    %11651 = vrot.lane.b32.xlu0 %v11175, 6
    %v11652 = vpop.permute.xlu0 %11651
    %11653 = vrot.lane.b32.xlu0 %v11180, 6
    %v11654 = vpop.permute.xlu0 %11653
    %11663 = vrot.lane.b32.xlu0 %v11185, 12
    %v11664 = vpop.permute.xlu0 %11663
    %11665 = vrot.lane.b32.xlu0 %v11190, 12
    %v11666 = vpop.permute.xlu0 %11665
    %11667 = vrot.lane.b32.xlu0 %v11195, 12
    %v11668 = vpop.permute.xlu0 %11667
    %11669 = vrot.lane.b32.xlu0 %v11200, 12
    %v11670 = vpop.permute.xlu0 %11669
    %11679 = vrot.lane.b32.xlu0 %v11205, 18
    %v11680 = vpop.permute.xlu0 %11679
    %11681 = vrot.lane.b32.xlu0 %v11210, 18
    %v11682 = vpop.permute.xlu0 %11681
    %11683 = vrot.lane.b32.xlu0 %v11215, 18
    %v11684 = vpop.permute.xlu0 %11683
    %11685 = vrot.lane.b32.xlu0 %v11220, 18
    %v11686 = vpop.permute.xlu0 %11685
    %11695 = vrot.lane.b32.xlu0 %v11225, 24
    %v11696 = vpop.permute.xlu0 %11695
    %11697 = vrot.lane.b32.xlu0 %v11230, 24
    %v11698 = vpop.permute.xlu0 %11697
    %11699 = vrot.lane.b32.xlu0 %v11235, 24
    %v11700 = vpop.permute.xlu0 %11699
    %11701 = vrot.lane.b32.xlu0 %v11240, 24
    %v11702 = vpop.permute.xlu0 %11701
    %11711 = vrot.lane.b32.xlu0 %v11245, 30
    %v11712 = vpop.permute.xlu0 %11711
    %11713 = vrot.lane.b32.xlu0 %v11250, 30
    %v11714 = vpop.permute.xlu0 %11713
    %11715 = vrot.lane.b32.xlu0 %v11255, 30
    %v11716 = vpop.permute.xlu0 %11715
    %11717 = vrot.lane.b32.xlu0 %v11260, 30
    %v11718 = vpop.permute.xlu0 %11717
    %11727 = vrot.lane.b32.xlu0 %v11265, 36
    %v11728 = vpop.permute.xlu0 %11727
    %11729 = vrot.lane.b32.xlu0 %v11270, 36
    %v11730 = vpop.permute.xlu0 %11729
    %11731 = vrot.lane.b32.xlu0 %v11275, 36
    %v11732 = vpop.permute.xlu0 %11731
    %11733 = vrot.lane.b32.xlu0 %v11280, 36
    %v11734 = vpop.permute.xlu0 %11733
    %11743 = vrot.lane.b32.xlu0 %v11285, 42
    %v11744 = vpop.permute.xlu0 %11743
    %11745 = vrot.lane.b32.xlu0 %v11290, 42
    %v11746 = vpop.permute.xlu0 %11745
    %11747 = vrot.lane.b32.xlu0 %v11295, 42
    %v11748 = vpop.permute.xlu0 %11747
    %11749 = vrot.lane.b32.xlu0 %v11300, 42
    %v11750 = vpop.permute.xlu0 %11749
    %11759 = vrot.lane.b32.xlu0 %v11305, 48
    %v11760 = vpop.permute.xlu0 %11759
    %11761 = vrot.lane.b32.xlu0 %v11310, 48
    %v11762 = vpop.permute.xlu0 %11761
    %11763 = vrot.lane.b32.xlu0 %v11315, 48
    %v11764 = vpop.permute.xlu0 %11763
    %11765 = vrot.lane.b32.xlu0 %v11320, 48
    %v11766 = vpop.permute.xlu0 %11765
    %11775 = vrot.lane.b32.xlu0 %v11325, 54
    %v11776 = vpop.permute.xlu0 %11775
    %11777 = vrot.lane.b32.xlu0 %v11330, 54
    %v11778 = vpop.permute.xlu0 %11777
    %11779 = vrot.lane.b32.xlu0 %v11335, 54
    %v11780 = vpop.permute.xlu0 %11779
    %11781 = vrot.lane.b32.xlu0 %v11340, 54
    %v11782 = vpop.permute.xlu0 %11781
    %11791 = vrot.lane.b32.xlu0 %v11345, 60
    %v11792 = vpop.permute.xlu0 %11791
    %11793 = vrot.lane.b32.xlu0 %v11350, 60
    %v11794 = vpop.permute.xlu0 %11793
    %11795 = vrot.lane.b32.xlu0 %v11355, 60
    %v11796 = vpop.permute.xlu0 %11795
    %11797 = vrot.lane.b32.xlu0 %v11360, 60
    %v11798 = vpop.permute.xlu0 %11797
    %11807 = vrot.lane.b32.xlu0 %v11365, 66
    %v11808 = vpop.permute.xlu0 %11807
    %11809 = vrot.lane.b32.xlu0 %v11370, 66
    %v11810 = vpop.permute.xlu0 %11809
    %11811 = vrot.lane.b32.xlu0 %v11375, 66
    %v11812 = vpop.permute.xlu0 %11811
    %11813 = vrot.lane.b32.xlu0 %v11380, 66
    %v11814 = vpop.permute.xlu0 %11813
    %11823 = vrot.lane.b32.xlu0 %v11385, 72
    %v11824 = vpop.permute.xlu0 %11823
    %11825 = vrot.lane.b32.xlu0 %v11390, 72
    %v11826 = vpop.permute.xlu0 %11825
    %11827 = vrot.lane.b32.xlu0 %v11395, 72
    %v11828 = vpop.permute.xlu0 %11827
    %11829 = vrot.lane.b32.xlu0 %v11400, 72
    %v11830 = vpop.permute.xlu0 %11829
    %11839 = vrot.lane.b32.xlu0 %v11405, 78
    %v11840 = vpop.permute.xlu0 %11839
    %11841 = vrot.lane.b32.xlu0 %v11410, 78
    %v11842 = vpop.permute.xlu0 %11841
    %11843 = vrot.lane.b32.xlu0 %v11415, 78
    %v11844 = vpop.permute.xlu0 %11843
    %11845 = vrot.lane.b32.xlu0 %v11420, 78
    %v11846 = vpop.permute.xlu0 %11845
    %11855 = vrot.lane.b32.xlu0 %v11425, 84
    %v11856 = vpop.permute.xlu0 %11855
    %11857 = vrot.lane.b32.xlu0 %v11430, 84
    %v11858 = vpop.permute.xlu0 %11857
    %11859 = vrot.lane.b32.xlu0 %v11435, 84
    %v11860 = vpop.permute.xlu0 %11859
    %11861 = vrot.lane.b32.xlu0 %v11440, 84
    %v11862 = vpop.permute.xlu0 %11861
    %11871 = vrot.lane.b32.xlu0 %v11445, 90
    %v11872 = vpop.permute.xlu0 %11871
    %11873 = vrot.lane.b32.xlu0 %v11450, 90
    %v11874 = vpop.permute.xlu0 %11873
    %11875 = vrot.lane.b32.xlu0 %v11455, 90
    %v11876 = vpop.permute.xlu0 %11875
    %11877 = vrot.lane.b32.xlu0 %v11460, 90
    %v11878 = vpop.permute.xlu0 %11877
    %v11883 = vsel %vm5569, %v11145, %v11648
    %v11884 = vsel %vm5569, %v11150, %v11650
    %v11885 = vsel %vm5569, %v11155, %v11652
    %v11886 = vsel %vm5569, %v11160, %v11654
    %v11887 = vsel %vm5699, %v11883, %v11664
    %v11888 = vsel %vm5699, %v11884, %v11666
    %v11889 = vsel %vm5699, %v11885, %v11668
    %v11890 = vsel %vm5699, %v11886, %v11670
    %v11891 = vsel %vm5829, %v11887, %v11680
    %v11892 = vsel %vm5829, %v11888, %v11682
    %v11893 = vsel %vm5829, %v11889, %v11684
    %v11894 = vsel %vm5829, %v11890, %v11686
    %v11895 = vsel %vm5959, %v11891, %v11696
    %v11896 = vsel %vm5959, %v11892, %v11698
    %v11897 = vsel %vm5959, %v11893, %v11700
    %v11898 = vsel %vm5959, %v11894, %v11702
    %v11899 = vsel %vm6089, %v11895, %v11712
    %v11900 = vsel %vm6089, %v11896, %v11714
    %v11901 = vsel %vm6089, %v11897, %v11716
    %v11902 = vsel %vm6089, %v11898, %v11718
    %v11903 = vsel %vm6219, %v11899, %v11728
    %v11904 = vsel %vm6219, %v11900, %v11730
    %v11905 = vsel %vm6219, %v11901, %v11732
    %v11906 = vsel %vm6219, %v11902, %v11734
    %v11907 = vsel %vm6349, %v11903, %v11744
    %v11908 = vsel %vm6349, %v11904, %v11746
    %v11909 = vsel %vm6349, %v11905, %v11748
    %v11910 = vsel %vm6349, %v11906, %v11750
    %v11911 = vsel %vm9295, %v11907, %v11760
    %v11912 = vsel %vm9295, %v11908, %v11762
    %v11913 = vsel %vm9295, %v11909, %v11764
    %v11914 = vsel %vm9295, %v11910, %v11766
    %vm11915 = vcmask 441344
    %v11916 = vsel %vm11915, %v11911, %v11776
    %v11917 = vsel %vm11915, %v11912, %v11778
    %v11918 = vsel %vm11915, %v11913, %v11780
    %v11919 = vsel %vm11915, %v11914, %v11782
    %vm11920 = vcmask 490496
    %v11921 = vsel %vm11920, %v11916, %v11792
    %v11922 = vsel %vm11920, %v11917, %v11794
    %v11923 = vsel %vm11920, %v11918, %v11796
    %v11924 = vsel %vm11920, %v11919, %v11798
    %vm11925 = vcmask 539648
    %v11926 = vsel %vm11925, %v11921, %v11808
    %v11927 = vsel %vm11925, %v11922, %v11810
    %v11928 = vsel %vm11925, %v11923, %v11812
    %v11929 = vsel %vm11925, %v11924, %v11814
    %vm11930 = vcmask 588800
    %v11931 = vsel %vm11930, %v11926, %v11824
    %v11932 = vsel %vm11930, %v11927, %v11826
    %v11933 = vsel %vm11930, %v11928, %v11828
    %v11934 = vsel %vm11930, %v11929, %v11830
    %vm11935 = vcmask 637952
    %v11936 = vsel %vm11935, %v11931, %v11840
    %v11937 = vsel %vm11935, %v11932, %v11842
    %v11938 = vsel %vm11935, %v11933, %v11844
    %v11939 = vsel %vm11935, %v11934, %v11846
    %vm11940 = vcmask 687104
    %v11941 = vsel %vm11940, %v11936, %v11856
    %v11942 = vsel %vm11940, %v11937, %v11858
    %v11943 = vsel %vm11940, %v11938, %v11860
    %v11944 = vsel %vm11940, %v11939, %v11862
    %vm11945 = vcmask 736256
    %v11946 = vsel %vm11945, %v11941, %v11872
    %v11947 = vsel %vm11945, %v11942, %v11874
    %v11948 = vsel %vm11945, %v11943, %v11876
    %v11949 = vsel %vm11945, %v11944, %v11878
    %11954 = vrot.lane.b32.xlu0 %v11485, 6
    %v11955 = vpop.permute.xlu0 %11954
    %11956 = vrot.lane.b32.xlu0 %v11490, 6
    %v11957 = vpop.permute.xlu0 %11956
    %11958 = vrot.lane.b32.xlu0 %v11495, 6
    %v11959 = vpop.permute.xlu0 %11958
    %11960 = vrot.lane.b32.xlu0 %v11500, 6
    %v11961 = vpop.permute.xlu0 %11960
    %11970 = vrot.lane.b32.xlu0 %v11505, 12
    %v11971 = vpop.permute.xlu0 %11970
    %11972 = vrot.lane.b32.xlu0 %v11510, 12
    %v11973 = vpop.permute.xlu0 %11972
    %11974 = vrot.lane.b32.xlu0 %v11515, 12
    %v11975 = vpop.permute.xlu0 %11974
    %11976 = vrot.lane.b32.xlu0 %v11520, 12
    %v11977 = vpop.permute.xlu0 %11976
    %11986 = vrot.lane.b32.xlu0 %v11525, 18
    %v11987 = vpop.permute.xlu0 %11986
    %11988 = vrot.lane.b32.xlu0 %v11530, 18
    %v11989 = vpop.permute.xlu0 %11988
    %11990 = vrot.lane.b32.xlu0 %v11535, 18
    %v11991 = vpop.permute.xlu0 %11990
    %11992 = vrot.lane.b32.xlu0 %v11540, 18
    %v11993 = vpop.permute.xlu0 %11992
    %12002 = vrot.lane.b32.xlu0 %v11545, 24
    %v12003 = vpop.permute.xlu0 %12002
    %12004 = vrot.lane.b32.xlu0 %v11550, 24
    %v12005 = vpop.permute.xlu0 %12004
    %12006 = vrot.lane.b32.xlu0 %v11555, 24
    %v12007 = vpop.permute.xlu0 %12006
    %12008 = vrot.lane.b32.xlu0 %v11560, 24
    %v12009 = vpop.permute.xlu0 %12008
    %12018 = vrot.lane.b32.xlu0 %v11565, 30
    %v12019 = vpop.permute.xlu0 %12018
    %12020 = vrot.lane.b32.xlu0 %v11570, 30
    %v12021 = vpop.permute.xlu0 %12020
    %12022 = vrot.lane.b32.xlu0 %v11575, 30
    %v12023 = vpop.permute.xlu0 %12022
    %12024 = vrot.lane.b32.xlu0 %v11580, 30
    %v12025 = vpop.permute.xlu0 %12024
    %12034 = vrot.lane.b32.xlu0 %v11585, 36
    %v12035 = vpop.permute.xlu0 %12034
    %12036 = vrot.lane.b32.xlu0 %v11590, 36
    %v12037 = vpop.permute.xlu0 %12036
    %12038 = vrot.lane.b32.xlu0 %v11595, 36
    %v12039 = vpop.permute.xlu0 %12038
    %12040 = vrot.lane.b32.xlu0 %v11600, 36
    %v12041 = vpop.permute.xlu0 %12040
    %12050 = vrot.lane.b32.xlu0 %v11605, 42
    %v12051 = vpop.permute.xlu0 %12050
    %12052 = vrot.lane.b32.xlu0 %v11610, 42
    %v12053 = vpop.permute.xlu0 %12052
    %12054 = vrot.lane.b32.xlu0 %v11615, 42
    %v12055 = vpop.permute.xlu0 %12054
    %12056 = vrot.lane.b32.xlu0 %v11620, 42
    %v12057 = vpop.permute.xlu0 %12056
    %12066 = vrot.lane.b32.xlu0 %v11625, 48
    %v12067 = vpop.permute.xlu0 %12066
    %12068 = vrot.lane.b32.xlu0 %v11630, 48
    %v12069 = vpop.permute.xlu0 %12068
    %12070 = vrot.lane.b32.xlu0 %v11635, 48
    %v12071 = vpop.permute.xlu0 %12070
    %12072 = vrot.lane.b32.xlu0 %v11640, 48
    %v12073 = vpop.permute.xlu0 %12072
    %v12078 = vsel %vm5569, %v11465, %v11955
    %v12079 = vsel %vm5569, %v11470, %v11957
    %v12080 = vsel %vm5569, %v11475, %v11959
    %v12081 = vsel %vm5569, %v11480, %v11961
    %v12082 = vsel %vm5699, %v12078, %v11971
    %v12083 = vsel %vm5699, %v12079, %v11973
    %v12084 = vsel %vm5699, %v12080, %v11975
    %v12085 = vsel %vm5699, %v12081, %v11977
    %v12086 = vsel %vm5829, %v12082, %v11987
    %v12087 = vsel %vm5829, %v12083, %v11989
    %v12088 = vsel %vm5829, %v12084, %v11991
    %v12089 = vsel %vm5829, %v12085, %v11993
    %v12090 = vsel %vm5959, %v12086, %v12003
    %v12091 = vsel %vm5959, %v12087, %v12005
    %v12092 = vsel %vm5959, %v12088, %v12007
    %v12093 = vsel %vm5959, %v12089, %v12009
    %v12094 = vsel %vm6089, %v12090, %v12019
    %v12095 = vsel %vm6089, %v12091, %v12021
    %v12096 = vsel %vm6089, %v12092, %v12023
    %v12097 = vsel %vm6089, %v12093, %v12025
    %v12098 = vsel %vm6219, %v12094, %v12035
    %v12099 = vsel %vm6219, %v12095, %v12037
    %v12100 = vsel %vm6219, %v12096, %v12039
    %v12101 = vsel %vm6219, %v12097, %v12041
    %v12102 = vsel %vm6349, %v12098, %v12051
    %v12103 = vsel %vm6349, %v12099, %v12053
    %v12104 = vsel %vm6349, %v12100, %v12055
    %v12105 = vsel %vm6349, %v12101, %v12057
    %v12106 = vsel %vm9295, %v12102, %v12067
    %v12107 = vsel %vm9295, %v12103, %v12069
    %v12108 = vsel %vm9295, %v12104, %v12071
    %v12109 = vsel %vm9295, %v12105, %v12073
    %12114 = vrot.lane.b32.xlu0 %v12106, 96
    %v12115 = vpop.permute.xlu0 %12114
    %12116 = vrot.lane.b32.xlu0 %v12107, 96
    %v12117 = vpop.permute.xlu0 %12116
    %12118 = vrot.lane.b32.xlu0 %v12108, 96
    %v12119 = vpop.permute.xlu0 %12118
    %12120 = vrot.lane.b32.xlu0 %v12109, 96
    %v12121 = vpop.permute.xlu0 %12120
    %vm12126 = vcmask 785408
    %v12127 = vsel %vm12126, %v11946, %v12115
    %v12128 = vsel %vm12126, %v11947, %v12117
    %v12129 = vsel %vm12126, %v11948, %v12119
    %v12130 = vsel %vm12126, %v11949, %v12121
    %v12131 = vld [vmem:[%s6] sm:$0xff]
    %v12132 = vld [vmem:[%s6 + $0x8] sm:$0xff]
    %v12133 = vld [vmem:[%s6 + $0x10] sm:$0xff]
    %v12134 = vld [vmem:[%s6 + $0x18] sm:$0xff]
    %v12135 = vld [vmem:[%s6 + $0x20] sm:$0xff]
    %v12136 = vld [vmem:[%s6 + $0x28] sm:$0xff]
    %v12137 = vld [vmem:[%s6 + $0x30] sm:$0xff]
    %v12138 = vld [vmem:[%s6 + $0x38] sm:$0xff]
    %v12139 = vld [vmem:[%s6 + $0x40] sm:$0xff]
    %v12140 = vld [vmem:[%s6 + $0x48] sm:$0xff]
    %v12141 = vld [vmem:[%s6 + $0x50] sm:$0xff]
    %v12142 = vld [vmem:[%s6 + $0x58] sm:$0xff]
    %v12143 = vld [vmem:[%s6 + $0x60] sm:$0xff]
    %v12144 = vld [vmem:[%s6 + $0x68] sm:$0xff]
    %v12145 = vld [vmem:[%s6 + $0x70] sm:$0xff]
    %v12146 = vld [vmem:[%s6 + $0x78] sm:$0xff]
    %v12147 = vld [vmem:[%s6 + $0x80] sm:$0xff]
    %v12148 = vld [vmem:[%s6 + $0x88] sm:$0xff]
    %v12149 = vld [vmem:[%s6 + $0x90] sm:$0x3f]
    %vm12150 = vcmask 179200
    %v12151 = vsel %vm12150, %v12115, 0
    %v12153 = vsel %vm12150, %v12117, 0
    %v12155 = vsel %vm12150, %v12119, 0
    %v12157 = vsel %vm12150, %v12121, 0
    %vm12159 = vcmask 1045504
    %v12161 = vsel %vm12159, %v12149, 0
    %12163 = vmatprep.subr.mxu0 0.0
    %12164 = vmatpush1.msra.mxu0 %v12131
    %12165 = vmatprep.subr.mxu0 0.0
    %12166 = vmatpush1.msra.mxu0 %v12132
    %12167 = vmatprep.subr.mxu0 0.0
    %12168 = vmatpush1.msra.mxu0 %v12133
    %12169 = vmatprep.subr.mxu0 0.0
    %12170 = vmatpush1.msra.mxu0 %v12134
    %12171 = vmatprep.subr.mxu0 0.0
    %12172 = vmatpush1.msra.mxu0 %v12135
    %12173 = vmatprep.subr.mxu0 0.0
    %12174 = vmatpush1.msra.mxu0 %v12136
    %12175 = vmatprep.subr.mxu0 0.0
    %12176 = vmatpush1.msra.mxu0 %v12137
    %12177 = vmatprep.subr.mxu0 0.0
    %12178 = vmatpush1.msra.mxu0 %v12138
    %12179 = vmatprep.subr.mxu0 0.0
    %12180 = vmatpush1.msra.mxu0 %v12139
    %12181 = vmatprep.subr.mxu0 0.0
    %12182 = vmatpush1.msra.mxu0 %v12140
    %12183 = vmatprep.subr.mxu0 0.0
    %12184 = vmatpush1.msra.mxu0 %v12141
    %12185 = vmatprep.subr.mxu0 0.0
    %12186 = vmatpush1.msra.mxu0 %v12142
    %12187 = vmatprep.subr.mxu0 0.0
    %12188 = vmatpush1.msra.mxu0 %v12143
    %12189 = vmatprep.subr.mxu0 0.0
    %12190 = vmatpush1.msra.mxu0 %v12144
    %12191 = vmatprep.subr.mxu0 0.0
    %12192 = vmatpush1.msra.mxu0 %v12145
    %12193 = vmatprep.subr.mxu0 0.0
    %12194 = vmatpush1.msra.mxu0 %v12146
    %12195 = vmatprep.subr.mxu0 0.0
    %12196 = vmatpush1.msra.mxu0 %v12147
    %12197 = vmatprep.subr.mxu0 0.0
    %12198 = vmatpush1.msra.mxu0 %v12148
    %12199 = vmatprep.subr.mxu0 0.0
    %12200 = vmatpush1.msra.mxu0 %v12161
    %12201 = vmatprep.subr.mxu0 0.0
    %12202 = vmatpush1.msra.mxu0 0.0
    %12203 = vmatprep.subr.mxu0 0.0
    %12204 = vmatpush1.msra.mxu0 0.0
    %12205 = vmatprep.subr.mxu0 0.0
    %12206 = vmatpush1.msra.mxu0 0.0
    %12207 = vmatprep.subr.mxu0 0.0
    %12208 = vmatpush1.msra.mxu0 0.0
    %12209 = vmatprep.subr.mxu0 0.0
    %12210 = vmatpush1.msra.mxu0 0.0
    %12211 = vmatprep.subr.mxu0 0.0
    %12212 = vmatpush1.msra.mxu0 0.0
    %12213 = vmatprep.subr.mxu0 0.0
    %12214 = vmatpush1.msra.mxu0 0.0
    %12215 = vmatprep.subr.mxu0 0.0
    %12216 = vmatpush1.msra.mxu0 0.0
    %12217 = vmatprep.subr.mxu0 0.0
    %12218 = vmatpush1.msra.mxu0 0.0
    %12219 = vmatprep.subr.mxu0 0.0
    %12220 = vmatpush1.msra.mxu0 0.0
    %12221 = vmatprep.subr.mxu0 0.0
    %12222 = vmatpush1.msra.mxu0 0.0
    %12223 = vmatprep.subr.mxu0 0.0
    %12224 = vmatpush1.msra.mxu0 0.0
    %12225 = vmatprep.subr.mxu0 0.0
    %12226 = vmatpush1.msra.mxu0 0.0
    %12227 = vmatprep.mubr.f32.mxu0 %v12151
    %12228 = vmatmul.mubr.f32.gmra.mrb[0].mxu0 %v12127
    %v12229 = vpop.f32.mrb[0].mxu0
    %v12230 = vadd.f32 0.0, %v12229
    %v12231 = vpop.f32.mrb[0].mxu0
    %12232 = vmatprep.mubr.f32.mxu0 %v12153
    %12233 = vmatmul.mubr.f32.gmra.mrb[0].mxu0 %v12128
    %v12234 = vpop.f32.mrb[0].mxu0
    %v12235 = vadd.f32 0.0, %v12234
    %v12236 = vpop.f32.mrb[0].mxu0
    %12237 = vmatprep.mubr.f32.mxu0 %v12155
    %12238 = vmatmul.mubr.f32.gmra.mrb[0].mxu0 %v12129
    %v12239 = vpop.f32.mrb[0].mxu0
    %v12240 = vadd.f32 0.0, %v12239
    %v12241 = vpop.f32.mrb[0].mxu0
    %12242 = vmatprep.mubr.f32.mxu0 %v12157
    %12243 = vmatmul.mubr.f32.gmra.mrb[0].mxu0 %v12130
    %v12244 = vpop.f32.mrb[0].mxu0
    %v12245 = vadd.f32 0.0, %v12244
    %v12246 = vpop.f32.mrb[0].mxu0
    %12247 = vdwg.mxu0
    %vm12248 = vcmask 130048
    %v12249 = vsel %vm12248, %v12230, 0.0
    %v12250 = vsel %vm12248, %v12235, 0.0
    %v12251 = vadd.f32 %v12249, %v12250
    %v12252 = vsel %vm12248, %v12240, 0.0
    %v12253 = vadd.f32 %v12251, %v12252
    %v12254 = vsel %vm12248, %v12245, 0.0
    %v12255 = vadd.f32 %v12253, %v12254
    %v12256 = vrot.slane %v12255, 4
    %v12257 = vadd.f32 %v12255, %v12256
    %v12258 = vrot.slane %v12257, 2
    %v12259 = vadd.f32 %v12257, %v12258
    %v12260 = vrot.slane %v12259, 1
    %v12261 = vadd.f32 %v12259, %v12260
    %v12262 = vrcp.pop 32.0
    %v12263 = vmul.f32 %v12261, %v12262
    %v12264 = vmul.f32 %v12230, %v12230
    %v12265 = vmul.f32 %v12235, %v12235
    %v12266 = vmul.f32 %v12240, %v12240
    %v12267 = vmul.f32 %v12245, %v12245
    %v12268 = vsel %vm12248, %v12264, 0.0
    %v12269 = vsel %vm12248, %v12265, 0.0
    %v12270 = vadd.f32 %v12268, %v12269
    %v12271 = vsel %vm12248, %v12266, 0.0
    %v12272 = vadd.f32 %v12270, %v12271
    %v12273 = vsel %vm12248, %v12267, 0.0
    %v12274 = vadd.f32 %v12272, %v12273
    %v12275 = vrot.slane %v12274, 4
    %v12276 = vadd.f32 %v12274, %v12275
    %v12277 = vrot.slane %v12276, 2
    %v12278 = vadd.f32 %v12276, %v12277
    %v12279 = vrot.slane %v12278, 1
    %v12280 = vadd.f32 %v12278, %v12279
    %v12281 = vmul.f32 %v12280, %v12262
    %v12282 = vmul.f32 %v12263, %v12263
    %v12283 = vsub.f32 %v12281, %v12282
    %v12284 = vmax.f32 %v12283, 0.0
    %v12285 = vsub.f32 %v12230, %v12263
    %v12286 = vsub.f32 %v12235, %v12263
    %v12287 = vsub.f32 %v12240, %v12263
    %v12288 = vsub.f32 %v12245, %v12263
    %v12289 = vadd.f32 %v12284, 1e-05
    %v12290 = vrsqrt.pop %v12289
    %v12291 = vmul.f32 %v12285, %v12290
    %v12292 = vmul.f32 %v12286, %v12290
    %v12293 = vmul.f32 %v12287, %v12290
    %v12294 = vmul.f32 %v12288, %v12290
    %v12295 = vld [vmem:[%s7] sm:$0x1]
    %v12297 = vlaneseq
    %v12298 = vshrl.u32 %v12297, 7
    %v12299 = vsub.s32 0, %v12298
    %v12300 = vrot.slane %v12295, %v12299
    %v12302 = vmul.f32 %v12291, %v12300
    %v12303 = vmul.f32 %v12292, %v12300
    %v12304 = vmul.f32 %v12293, %v12300
    %v12305 = vmul.f32 %v12294, %v12300
    %v12306 = vld [vmem:[%s8] sm:$0x1]
    %v12308 = vlaneseq
    %v12309 = vshrl.u32 %v12308, 7
    %v12310 = vsub.s32 0, %v12309
    %v12311 = vrot.slane %v12306, %v12310
    %v12313 = vadd.f32 %v12302, %v12311
    %v12314 = vadd.f32 %v12303, %v12311
    %v12315 = vadd.f32 %v12304, %v12311
    %v12316 = vadd.f32 %v12305, %v12311
    %v12317 = vmax.f32 %v12313, 0.0
    %v12318 = vmax.f32 %v12314, 0.0
    %v12319 = vmax.f32 %v12315, 0.0
    %v12320 = vmax.f32 %v12316, 0.0
    %v12321 = vld [vmem:[%s9] sm:$0xff]
    %vm12322 = vcmask 261120
    %v12324 = vsel %vm12322, %v12321, 0
    %12326 = vmatprep.subr.mxu0 0.0
    %12327 = vmatpush1.msra.mxu0 %v12317
    %12328 = vmatprep.subr.mxu0 0.0
    %12329 = vmatpush1.msra.mxu0 %v12318
    %12330 = vmatprep.subr.mxu0 0.0
    %12331 = vmatpush1.msra.mxu0 %v12319
    %12332 = vmatprep.subr.mxu0 0.0
    %12333 = vmatpush1.msra.mxu0 %v12320
    %12334 = vmatprep.subr.mxu0 0.0
    %12335 = vmatpush1.msra.mxu0 0.0
    %12336 = vmatprep.subr.mxu0 0.0
    %12337 = vmatpush1.msra.mxu0 0.0
    %12338 = vmatprep.subr.mxu0 0.0
    %12339 = vmatpush1.msra.mxu0 0.0
    %12340 = vmatprep.subr.mxu0 0.0
    %12341 = vmatpush1.msra.mxu0 0.0
    %12342 = vmatprep.subr.mxu0 0.0
    %12343 = vmatpush1.msra.mxu0 0.0
    %12344 = vmatprep.subr.mxu0 0.0
    %12345 = vmatpush1.msra.mxu0 0.0
    %12346 = vmatprep.subr.mxu0 0.0
    %12347 = vmatpush1.msra.mxu0 0.0
    %12348 = vmatprep.subr.mxu0 0.0
    %12349 = vmatpush1.msra.mxu0 0.0
    %12350 = vmatprep.subr.mxu0 0.0
    %12351 = vmatpush1.msra.mxu0 0.0
    %12352 = vmatprep.subr.mxu0 0.0
    %12353 = vmatpush1.msra.mxu0 0.0
    %12354 = vmatprep.subr.mxu0 0.0
    %12355 = vmatpush1.msra.mxu0 0.0
    %12356 = vmatprep.subr.mxu0 0.0
    %12357 = vmatpush1.msra.mxu0 0.0
    %12358 = vmatprep.subr.mxu0 0.0
    %12359 = vmatpush1.msra.mxu0 0.0
    %12360 = vmatprep.subr.mxu0 0.0
    %12361 = vmatpush1.msra.mxu0 0.0
    %12362 = vmatprep.subr.mxu0 0.0
    %12363 = vmatpush1.msra.mxu0 0.0
    %12364 = vmatprep.subr.mxu0 0.0
    %12365 = vmatpush1.msra.mxu0 0.0
    %12366 = vmatprep.subr.mxu0 0.0
    %12367 = vmatpush1.msra.mxu0 0.0
    %12368 = vmatprep.subr.mxu0 0.0
    %12369 = vmatpush1.msra.mxu0 0.0
    %12370 = vmatprep.subr.mxu0 0.0
    %12371 = vmatpush1.msra.mxu0 0.0
    %12372 = vmatprep.subr.mxu0 0.0
    %12373 = vmatpush1.msra.mxu0 0.0
    %12374 = vmatprep.subr.mxu0 0.0
    %12375 = vmatpush1.msra.mxu0 0.0
    %12376 = vmatprep.subr.mxu0 0.0
    %12377 = vmatpush1.msra.mxu0 0.0
    %12378 = vmatprep.subr.mxu0 0.0
    %12379 = vmatpush1.msra.mxu0 0.0
    %12380 = vmatprep.subr.mxu0 0.0
    %12381 = vmatpush1.msra.mxu0 0.0
    %12382 = vmatprep.subr.mxu0 0.0
    %12383 = vmatpush1.msra.mxu0 0.0
    %12384 = vmatprep.subr.mxu0 0.0
    %12385 = vmatpush1.msra.mxu0 0.0
    %12386 = vmatprep.subr.mxu0 0.0
    %12387 = vmatpush1.msra.mxu0 0.0
    %12388 = vmatprep.subr.mxu0 0.0
    %12389 = vmatpush1.msra.mxu0 0.0
    %12390 = vmatprep.mubr.f32.mxu0 0.0
    %12391 = vmatmul.mubr.f32.gmra.mrb[0].mxu0 %v12324
    %v12392 = vpop.f32.mrb[0].mxu0
    %v12393 = vadd.f32 0.0, %v12392
    %v12394 = vpop.f32.mrb[0].mxu0
    %12395 = vdwg.mxu0
    %v12396 = vld [vmem:[%s10] sm:$0xff]
    %v12397 = vld [vmem:[%s10 + $0x8] sm:$0xff]
    %s12398 = scalar_lea.vmem %s10, 16
    %v12399 = vld [vmem:[%s12398] sm:$0xff]
    %v12400 = vld [vmem:[%s12398 + $0x8] sm:$0xff]
    %v12402 = vrot.slane %v12393, 2
    %v12403 = vsel %vm12248, %v12402, 0
    %12405 = vmatprep.subr.mxu0 0.0
    %12406 = vmatpush1.msra.mxu0 %v12399
    %12407 = vmatprep.subr.mxu0 0.0
    %12408 = vmatpush1.msra.mxu0 %v12400
    %12409 = vmatprep.subr.mxu0 0.0
    %12410 = vmatpush1.msra.mxu0 0.0
    %12411 = vmatprep.subr.mxu0 0.0
    %12412 = vmatpush1.msra.mxu0 0.0
    %12413 = vmatprep.subr.mxu0 0.0
    %12414 = vmatpush1.msra.mxu0 0.0
    %12415 = vmatprep.subr.mxu0 0.0
    %12416 = vmatpush1.msra.mxu0 0.0
    %12417 = vmatprep.subr.mxu0 0.0
    %12418 = vmatpush1.msra.mxu0 0.0
    %12419 = vmatprep.subr.mxu0 0.0
    %12420 = vmatpush1.msra.mxu0 0.0
    %12421 = vmatprep.subr.mxu0 0.0
    %12422 = vmatpush1.msra.mxu0 0.0
    %12423 = vmatprep.subr.mxu0 0.0
    %12424 = vmatpush1.msra.mxu0 0.0
    %12425 = vmatprep.subr.mxu0 0.0
    %12426 = vmatpush1.msra.mxu0 0.0
    %12427 = vmatprep.subr.mxu0 0.0
    %12428 = vmatpush1.msra.mxu0 0.0
    %12429 = vmatprep.subr.mxu0 0.0
    %12430 = vmatpush1.msra.mxu0 0.0
    %12431 = vmatprep.subr.mxu0 0.0
    %12432 = vmatpush1.msra.mxu0 0.0
    %12433 = vmatprep.subr.mxu0 0.0
    %12434 = vmatpush1.msra.mxu0 0.0
    %12435 = vmatprep.subr.mxu0 0.0
    %12436 = vmatpush1.msra.mxu0 0.0
    %12437 = vmatprep.subr.mxu0 0.0
    %12438 = vmatpush1.msra.mxu0 0.0
    %12439 = vmatprep.subr.mxu0 0.0
    %12440 = vmatpush1.msra.mxu0 0.0
    %12441 = vmatprep.subr.mxu0 0.0
    %12442 = vmatpush1.msra.mxu0 0.0
    %12443 = vmatprep.subr.mxu0 0.0
    %12444 = vmatpush1.msra.mxu0 0.0
    %12445 = vmatprep.subr.mxu0 0.0
    %12446 = vmatpush1.msra.mxu0 0.0
    %12447 = vmatprep.subr.mxu0 0.0
    %12448 = vmatpush1.msra.mxu0 0.0
    %12449 = vmatprep.subr.mxu0 0.0
    %12450 = vmatpush1.msra.mxu0 0.0
    %12451 = vmatprep.subr.mxu0 0.0
    %12452 = vmatpush1.msra.mxu0 0.0
    %12453 = vmatprep.subr.mxu0 0.0
    %12454 = vmatpush1.msra.mxu0 0.0
    %12455 = vmatprep.subr.mxu0 0.0
    %12456 = vmatpush1.msra.mxu0 0.0
    %12457 = vmatprep.subr.mxu0 0.0
    %12458 = vmatpush1.msra.mxu0 0.0
    %12459 = vmatprep.subr.mxu0 0.0
    %12460 = vmatpush1.msra.mxu0 0.0
    %12461 = vmatprep.subr.mxu0 0.0
    %12462 = vmatpush1.msra.mxu0 0.0
    %12463 = vmatprep.subr.mxu0 0.0
    %12464 = vmatpush1.msra.mxu0 0.0
    %12465 = vmatprep.subr.mxu0 0.0
    %12466 = vmatpush1.msra.mxu0 0.0
    %12467 = vmatprep.subr.mxu0 0.0
    %12468 = vmatpush1.msra.mxu0 0.0
    %12469 = vmatprep.mubr.f32.mxu0 0.0
    %12470 = vmatmul.mubr.f32.gmra.mrb[0].mxu0 %v12403
    %v12471 = vpop.f32.mrb[0].mxu0
    %v12472 = vadd.f32 0.0, %v12471
    %v12473 = vpop.f32.mrb[0].mxu0
    %12474 = vdwg.mxu0
    %v12475 = vsel %vm12248, %v12393, 0
    %12477 = vmatprep.subr.mxu0 0.0
    %12478 = vmatpush1.msra.mxu0 %v12396
    %12479 = vmatprep.subr.mxu0 0.0
    %12480 = vmatpush1.msra.mxu0 %v12397
    %12481 = vmatprep.subr.mxu0 0.0
    %12482 = vmatpush1.msra.mxu0 0.0
    %12483 = vmatprep.subr.mxu0 0.0
    %12484 = vmatpush1.msra.mxu0 0.0
    %12485 = vmatprep.subr.mxu0 0.0
    %12486 = vmatpush1.msra.mxu0 0.0
    %12487 = vmatprep.subr.mxu0 0.0
    %12488 = vmatpush1.msra.mxu0 0.0
    %12489 = vmatprep.subr.mxu0 0.0
    %12490 = vmatpush1.msra.mxu0 0.0
    %12491 = vmatprep.subr.mxu0 0.0
    %12492 = vmatpush1.msra.mxu0 0.0
    %12493 = vmatprep.subr.mxu0 0.0
    %12494 = vmatpush1.msra.mxu0 0.0
    %12495 = vmatprep.subr.mxu0 0.0
    %12496 = vmatpush1.msra.mxu0 0.0
    %12497 = vmatprep.subr.mxu0 0.0
    %12498 = vmatpush1.msra.mxu0 0.0
    %12499 = vmatprep.subr.mxu0 0.0
    %12500 = vmatpush1.msra.mxu0 0.0
    %12501 = vmatprep.subr.mxu0 0.0
    %12502 = vmatpush1.msra.mxu0 0.0
    %12503 = vmatprep.subr.mxu0 0.0
    %12504 = vmatpush1.msra.mxu0 0.0
    %12505 = vmatprep.subr.mxu0 0.0
    %12506 = vmatpush1.msra.mxu0 0.0
    %12507 = vmatprep.subr.mxu0 0.0
    %12508 = vmatpush1.msra.mxu0 0.0
    %12509 = vmatprep.subr.mxu0 0.0
    %12510 = vmatpush1.msra.mxu0 0.0
    %12511 = vmatprep.subr.mxu0 0.0
    %12512 = vmatpush1.msra.mxu0 0.0
    %12513 = vmatprep.subr.mxu0 0.0
    %12514 = vmatpush1.msra.mxu0 0.0
    %12515 = vmatprep.subr.mxu0 0.0
    %12516 = vmatpush1.msra.mxu0 0.0
    %12517 = vmatprep.subr.mxu0 0.0
    %12518 = vmatpush1.msra.mxu0 0.0
    %12519 = vmatprep.subr.mxu0 0.0
    %12520 = vmatpush1.msra.mxu0 0.0
    %12521 = vmatprep.subr.mxu0 0.0
    %12522 = vmatpush1.msra.mxu0 0.0
    %12523 = vmatprep.subr.mxu0 0.0
    %12524 = vmatpush1.msra.mxu0 0.0
    %12525 = vmatprep.subr.mxu0 0.0
    %12526 = vmatpush1.msra.mxu0 0.0
    %12527 = vmatprep.subr.mxu0 0.0
    %12528 = vmatpush1.msra.mxu0 0.0
    %12529 = vmatprep.subr.mxu0 0.0
    %12530 = vmatpush1.msra.mxu0 0.0
    %12531 = vmatprep.subr.mxu0 0.0
    %12532 = vmatpush1.msra.mxu0 0.0
    %12533 = vmatprep.subr.mxu0 0.0
    %12534 = vmatpush1.msra.mxu0 0.0
    %12535 = vmatprep.subr.mxu0 0.0
    %12536 = vmatpush1.msra.mxu0 0.0
    %12537 = vmatprep.subr.mxu0 0.0
    %12538 = vmatpush1.msra.mxu0 0.0
    %12539 = vmatprep.subr.mxu0 0.0
    %12540 = vmatpush1.msra.mxu0 0.0
    %12541 = vmatprep.mubr.f32.mxu0 0.0
    %12542 = vmatmul.mubr.f32.gmra.mrb[0].mxu0 %v12475
    %v12543 = vpop.f32.mrb[0].mxu0
    %v12544 = vadd.f32 %v12472, %v12543
    %v12545 = vpop.f32.mrb[0].mxu0
    %12546 = vdwg.mxu0
    %s12547 = scalar_lea.vmem %s10, 32
    %v12548 = vld [vmem:[%s12547] sm:$0xff]
    %v12549 = vld [vmem:[%s12547 + $0x8] sm:$0xff]
    %v12550 = vrot.slane %v12393, 4
    %v12551 = vsel %vm12248, %v12550, 0
    %12553 = vmatprep.subr.mxu0 0.0
    %12554 = vmatpush1.msra.mxu0 %v12548
    %12555 = vmatprep.subr.mxu0 0.0
    %12556 = vmatpush1.msra.mxu0 %v12549
    %12557 = vmatprep.subr.mxu0 0.0
    %12558 = vmatpush1.msra.mxu0 0.0
    %12559 = vmatprep.subr.mxu0 0.0
    %12560 = vmatpush1.msra.mxu0 0.0
    %12561 = vmatprep.subr.mxu0 0.0
    %12562 = vmatpush1.msra.mxu0 0.0
    %12563 = vmatprep.subr.mxu0 0.0
    %12564 = vmatpush1.msra.mxu0 0.0
    %12565 = vmatprep.subr.mxu0 0.0
    %12566 = vmatpush1.msra.mxu0 0.0
    %12567 = vmatprep.subr.mxu0 0.0
    %12568 = vmatpush1.msra.mxu0 0.0
    %12569 = vmatprep.subr.mxu0 0.0
    %12570 = vmatpush1.msra.mxu0 0.0
    %12571 = vmatprep.subr.mxu0 0.0
    %12572 = vmatpush1.msra.mxu0 0.0
    %12573 = vmatprep.subr.mxu0 0.0
    %12574 = vmatpush1.msra.mxu0 0.0
    %12575 = vmatprep.subr.mxu0 0.0
    %12576 = vmatpush1.msra.mxu0 0.0
    %12577 = vmatprep.subr.mxu0 0.0
    %12578 = vmatpush1.msra.mxu0 0.0
    %12579 = vmatprep.subr.mxu0 0.0
    %12580 = vmatpush1.msra.mxu0 0.0
    %12581 = vmatprep.subr.mxu0 0.0
    %12582 = vmatpush1.msra.mxu0 0.0
    %12583 = vmatprep.subr.mxu0 0.0
    %12584 = vmatpush1.msra.mxu0 0.0
    %12585 = vmatprep.subr.mxu0 0.0
    %12586 = vmatpush1.msra.mxu0 0.0
    %12587 = vmatprep.subr.mxu0 0.0
    %12588 = vmatpush1.msra.mxu0 0.0
    %12589 = vmatprep.subr.mxu0 0.0
    %12590 = vmatpush1.msra.mxu0 0.0
    %12591 = vmatprep.subr.mxu0 0.0
    %12592 = vmatpush1.msra.mxu0 0.0
    %12593 = vmatprep.subr.mxu0 0.0
    %12594 = vmatpush1.msra.mxu0 0.0
    %12595 = vmatprep.subr.mxu0 0.0
    %12596 = vmatpush1.msra.mxu0 0.0
    %12597 = vmatprep.subr.mxu0 0.0
    %12598 = vmatpush1.msra.mxu0 0.0
    %12599 = vmatprep.subr.mxu0 0.0
    %12600 = vmatpush1.msra.mxu0 0.0
    %12601 = vmatprep.subr.mxu0 0.0
    %12602 = vmatpush1.msra.mxu0 0.0
    %12603 = vmatprep.subr.mxu0 0.0
    %12604 = vmatpush1.msra.mxu0 0.0
    %12605 = vmatprep.subr.mxu0 0.0
    %12606 = vmatpush1.msra.mxu0 0.0
    %12607 = vmatprep.subr.mxu0 0.0
    %12608 = vmatpush1.msra.mxu0 0.0
    %12609 = vmatprep.subr.mxu0 0.0
    %12610 = vmatpush1.msra.mxu0 0.0
    %12611 = vmatprep.subr.mxu0 0.0
    %12612 = vmatpush1.msra.mxu0 0.0
    %12613 = vmatprep.subr.mxu0 0.0
    %12614 = vmatpush1.msra.mxu0 0.0
    %12615 = vmatprep.subr.mxu0 0.0
    %12616 = vmatpush1.msra.mxu0 0.0
    %12617 = vmatprep.mubr.f32.mxu0 0.0
    %12618 = vmatmul.mubr.f32.gmra.mrb[0].mxu0 %v12551
    %v12619 = vpop.f32.mrb[0].mxu0
    %v12620 = vadd.f32 0.0, %v12619
    %v12621 = vpop.f32.mrb[0].mxu0
    %12622 = vdwg.mxu0
    %v12623 = vadd.f32 %v12544, %v12620
    %s12624 = scalar_lea.vmem %s10, 48
    %v12625 = vld [vmem:[%s12624] sm:$0xff]
    %v12626 = vld [vmem:[%s12624 + $0x8] sm:$0xff]
    %v12627 = vrot.slane %v12393, 6
    %v12628 = vsel %vm12248, %v12627, 0
    %12630 = vmatprep.subr.mxu0 0.0
    %12631 = vmatpush1.msra.mxu0 %v12625
    %12632 = vmatprep.subr.mxu0 0.0
    %12633 = vmatpush1.msra.mxu0 %v12626
    %12634 = vmatprep.subr.mxu0 0.0
    %12635 = vmatpush1.msra.mxu0 0.0
    %12636 = vmatprep.subr.mxu0 0.0
    %12637 = vmatpush1.msra.mxu0 0.0
    %12638 = vmatprep.subr.mxu0 0.0
    %12639 = vmatpush1.msra.mxu0 0.0
    %12640 = vmatprep.subr.mxu0 0.0
    %12641 = vmatpush1.msra.mxu0 0.0
    %12642 = vmatprep.subr.mxu0 0.0
    %12643 = vmatpush1.msra.mxu0 0.0
    %12644 = vmatprep.subr.mxu0 0.0
    %12645 = vmatpush1.msra.mxu0 0.0
    %12646 = vmatprep.subr.mxu0 0.0
    %12647 = vmatpush1.msra.mxu0 0.0
    %12648 = vmatprep.subr.mxu0 0.0
    %12649 = vmatpush1.msra.mxu0 0.0
    %12650 = vmatprep.subr.mxu0 0.0
    %12651 = vmatpush1.msra.mxu0 0.0
    %12652 = vmatprep.subr.mxu0 0.0
    %12653 = vmatpush1.msra.mxu0 0.0
    %12654 = vmatprep.subr.mxu0 0.0
    %12655 = vmatpush1.msra.mxu0 0.0
    %12656 = vmatprep.subr.mxu0 0.0
    %12657 = vmatpush1.msra.mxu0 0.0
    %12658 = vmatprep.subr.mxu0 0.0
    %12659 = vmatpush1.msra.mxu0 0.0
    %12660 = vmatprep.subr.mxu0 0.0
    %12661 = vmatpush1.msra.mxu0 0.0
    %12662 = vmatprep.subr.mxu0 0.0
    %12663 = vmatpush1.msra.mxu0 0.0
    %12664 = vmatprep.subr.mxu0 0.0
    %12665 = vmatpush1.msra.mxu0 0.0
    %12666 = vmatprep.subr.mxu0 0.0
    %12667 = vmatpush1.msra.mxu0 0.0
    %12668 = vmatprep.subr.mxu0 0.0
    %12669 = vmatpush1.msra.mxu0 0.0
    %12670 = vmatprep.subr.mxu0 0.0
    %12671 = vmatpush1.msra.mxu0 0.0
    %12672 = vmatprep.subr.mxu0 0.0
    %12673 = vmatpush1.msra.mxu0 0.0
    %12674 = vmatprep.subr.mxu0 0.0
    %12675 = vmatpush1.msra.mxu0 0.0
    %12676 = vmatprep.subr.mxu0 0.0
    %12677 = vmatpush1.msra.mxu0 0.0
    %12678 = vmatprep.subr.mxu0 0.0
    %12679 = vmatpush1.msra.mxu0 0.0
    %12680 = vmatprep.subr.mxu0 0.0
    %12681 = vmatpush1.msra.mxu0 0.0
    %12682 = vmatprep.subr.mxu0 0.0
    %12683 = vmatpush1.msra.mxu0 0.0
    %12684 = vmatprep.subr.mxu0 0.0
    %12685 = vmatpush1.msra.mxu0 0.0
    %12686 = vmatprep.subr.mxu0 0.0
    %12687 = vmatpush1.msra.mxu0 0.0
    %12688 = vmatprep.subr.mxu0 0.0
    %12689 = vmatpush1.msra.mxu0 0.0
    %12690 = vmatprep.subr.mxu0 0.0
    %12691 = vmatpush1.msra.mxu0 0.0
    %12692 = vmatprep.subr.mxu0 0.0
    %12693 = vmatpush1.msra.mxu0 0.0
    %12694 = vmatprep.mubr.f32.mxu0 0.0
    %12695 = vmatmul.mubr.f32.gmra.mrb[0].mxu0 %v12628
    %v12696 = vpop.f32.mrb[0].mxu0
    %v12697 = vadd.f32 0.0, %v12696
    %v12698 = vpop.f32.mrb[0].mxu0
    %12699 = vdwg.mxu0
    %v12700 = vadd.f32 %v12623, %v12697
    %vm12701 = vcmask 975872
    %v12702 = vsel %vm12701, %v12700, 0.0
    %v12703 = vrot.slane %v12702, 4
    %v12704 = vadd.f32 %v12702, %v12703
    %v12705 = vrot.slane %v12704, 2
    %v12706 = vadd.f32 %v12704, %v12705
    %v12707 = vrot.slane %v12706, 1
    %v12708 = vadd.f32 %v12706, %v12707
    %v12709 = vrcp.pop 2.0
    %v12710 = vmul.f32 %v12708, %v12709
    %v12711 = vmul.f32 %v12700, %v12700
    %v12712 = vsel %vm12701, %v12711, 0.0
    %v12713 = vrot.slane %v12712, 4
    %v12714 = vadd.f32 %v12712, %v12713
    %v12715 = vrot.slane %v12714, 2
    %v12716 = vadd.f32 %v12714, %v12715
    %v12717 = vrot.slane %v12716, 1
    %v12718 = vadd.f32 %v12716, %v12717
    %v12719 = vmul.f32 %v12718, %v12709
    %v12720 = vmul.f32 %v12710, %v12710
    %v12721 = vsub.f32 %v12719, %v12720
    %v12722 = vmax.f32 %v12721, 0.0
    %v12723 = vsub.f32 %v12700, %v12710
    %v12724 = vadd.f32 %v12722, 1e-05
    %v12725 = vrsqrt.pop %v12724
    %v12726 = vmul.f32 %v12723, %v12725
    %v12727 = vld [vmem:[%s11] sm:$0x1]
    %v12729 = vlaneseq
    %v12730 = vshrl.u32 %v12729, 7
    %v12731 = vsub.s32 0, %v12730
    %v12732 = vrot.slane %v12727, %v12731
    %v12734 = vmul.f32 %v12726, %v12732
    %v12735 = vld [vmem:[%s12] sm:$0x1]
    %v12737 = vlaneseq
    %v12738 = vshrl.u32 %v12737, 7
    %v12739 = vsub.s32 0, %v12738
    %v12740 = vrot.slane %v12735, %v12739
    %v12742 = vadd.f32 %v12734, %v12740
    %v12743 = vmax.f32 %v12742, 0.0
    %v12744 = vld [vmem:[%s13] sm:$0xff]
    %v12745 = vld [vmem:[%s13 + $0x8] sm:$0xff]
    %v12746 = vld [vmem:[%s13 + $0x10] sm:$0xff]
    %v12747 = vld [vmem:[%s13 + $0x18] sm:$0xff]
    %v12748 = vld [vmem:[%s13 + $0x20] sm:$0xff]
    %v12749 = vld [vmem:[%s13 + $0x28] sm:$0xff]
    %v12750 = vld [vmem:[%s13 + $0x30] sm:$0xff]
    %v12751 = vld [vmem:[%s13 + $0x38] sm:$0xff]
    %v12752 = vld [vmem:[%s13 + $0x40] sm:$0xff]
    %v12753 = vld [vmem:[%s13 + $0x48] sm:$0xff]
    %v12754 = vld [vmem:[%s13 + $0x50] sm:$0xff]
    %v12755 = vld [vmem:[%s13 + $0x58] sm:$0xff]
    %v12756 = vld [vmem:[%s13 + $0x60] sm:$0xff]
    %v12757 = vld [vmem:[%s13 + $0x68] sm:$0xff]
    %v12758 = vld [vmem:[%s13 + $0x70] sm:$0xff]
    %vm12759 = vcmask 982016
    %v12761 = vsel %vm12759, %v12743, 0
    %12763 = vmatprep.subr.mxu0 0.0
    %12764 = vmatpush1.msra.mxu0 %v12744
    %12765 = vmatprep.subr.mxu0 0.0
    %12766 = vmatpush1.msra.mxu0 %v12745
    %12767 = vmatprep.subr.mxu0 0.0
    %12768 = vmatpush1.msra.mxu0 %v12746
    %12769 = vmatprep.subr.mxu0 0.0
    %12770 = vmatpush1.msra.mxu0 %v12747
    %12771 = vmatprep.subr.mxu0 0.0
    %12772 = vmatpush1.msra.mxu0 %v12748
    %12773 = vmatprep.subr.mxu0 0.0
    %12774 = vmatpush1.msra.mxu0 %v12749
    %12775 = vmatprep.subr.mxu0 0.0
    %12776 = vmatpush1.msra.mxu0 %v12750
    %12777 = vmatprep.subr.mxu0 0.0
    %12778 = vmatpush1.msra.mxu0 %v12751
    %12779 = vmatprep.subr.mxu0 0.0
    %12780 = vmatpush1.msra.mxu0 %v12752
    %12781 = vmatprep.subr.mxu0 0.0
    %12782 = vmatpush1.msra.mxu0 %v12753
    %12783 = vmatprep.subr.mxu0 0.0
    %12784 = vmatpush1.msra.mxu0 %v12754
    %12785 = vmatprep.subr.mxu0 0.0
    %12786 = vmatpush1.msra.mxu0 %v12755
    %12787 = vmatprep.subr.mxu0 0.0
    %12788 = vmatpush1.msra.mxu0 %v12756
    %12789 = vmatprep.subr.mxu0 0.0
    %12790 = vmatpush1.msra.mxu0 %v12757
    %12791 = vmatprep.subr.mxu0 0.0
    %12792 = vmatpush1.msra.mxu0 %v12758
    %12793 = vmatprep.subr.mxu0 0.0
    %12794 = vmatpush1.msra.mxu0 0.0
    %12795 = vmatprep.subr.mxu0 0.0
    %12796 = vmatpush1.msra.mxu0 0.0
    %12797 = vmatprep.subr.mxu0 0.0
    %12798 = vmatpush1.msra.mxu0 0.0
    %12799 = vmatprep.subr.mxu0 0.0
    %12800 = vmatpush1.msra.mxu0 0.0
    %12801 = vmatprep.subr.mxu0 0.0
    %12802 = vmatpush1.msra.mxu0 0.0
    %12803 = vmatprep.subr.mxu0 0.0
    %12804 = vmatpush1.msra.mxu0 0.0
    %12805 = vmatprep.subr.mxu0 0.0
    %12806 = vmatpush1.msra.mxu0 0.0
    %12807 = vmatprep.subr.mxu0 0.0
    %12808 = vmatpush1.msra.mxu0 0.0
    %12809 = vmatprep.subr.mxu0 0.0
    %12810 = vmatpush1.msra.mxu0 0.0
    %12811 = vmatprep.subr.mxu0 0.0
    %12812 = vmatpush1.msra.mxu0 0.0
    %12813 = vmatprep.subr.mxu0 0.0
    %12814 = vmatpush1.msra.mxu0 0.0
    %12815 = vmatprep.subr.mxu0 0.0
    %12816 = vmatpush1.msra.mxu0 0.0
    %12817 = vmatprep.subr.mxu0 0.0
    %12818 = vmatpush1.msra.mxu0 0.0
    %12819 = vmatprep.subr.mxu0 0.0
    %12820 = vmatpush1.msra.mxu0 0.0
    %12821 = vmatprep.subr.mxu0 0.0
    %12822 = vmatpush1.msra.mxu0 0.0
    %12823 = vmatprep.subr.mxu0 0.0
    %12824 = vmatpush1.msra.mxu0 0.0
    %12825 = vmatprep.subr.mxu0 0.0
    %12826 = vmatpush1.msra.mxu0 0.0
    %12827 = vmatprep.mubr.f32.mxu0 0.0
    %12828 = vmatmul.mubr.f32.gmra.mrb[0].mxu0 %v12761
    %v12829 = vpop.f32.mrb[0].mxu0
    %v12830 = vadd.f32 0.0, %v12829
    %v12831 = vpop.f32.mrb[0].mxu0
    %12832 = vdwg.mxu0
    %vm12833 = vcmask 680960
    %v12834 = vsel %vm12833, %v12830, 0.0
    %v12835 = vrot.slane %v12834, 4
    %v12836 = vadd.f32 %v12834, %v12835
    %v12837 = vrot.slane %v12836, 2
    %v12838 = vadd.f32 %v12836, %v12837
    %v12839 = vrot.slane %v12838, 1
    %v12840 = vadd.f32 %v12838, %v12839
    %v12841 = vmul.f32 %v12840, %v12709
    %v12842 = vmul.f32 %v12830, %v12830
    %v12843 = vsel %vm12833, %v12842, 0.0
    %v12844 = vrot.slane %v12843, 4
    %v12845 = vadd.f32 %v12843, %v12844
    %v12846 = vrot.slane %v12845, 2
    %v12847 = vadd.f32 %v12845, %v12846
    %v12848 = vrot.slane %v12847, 1
    %v12849 = vadd.f32 %v12847, %v12848
    %v12850 = vmul.f32 %v12849, %v12709
    %v12851 = vmul.f32 %v12841, %v12841
    %v12852 = vsub.f32 %v12850, %v12851
    %v12853 = vmax.f32 %v12852, 0.0
    %v12854 = vsub.f32 %v12830, %v12841
    %v12855 = vadd.f32 %v12853, 1e-05
    %v12856 = vrsqrt.pop %v12855
    %v12857 = vmul.f32 %v12854, %v12856
    %v12858 = vld [vmem:[%s14] sm:$0x1]
    %v12860 = vlaneseq
    %v12861 = vshrl.u32 %v12860, 7
    %v12862 = vsub.s32 0, %v12861
    %v12863 = vrot.slane %v12858, %v12862
    %v12865 = vmul.f32 %v12857, %v12863
    %v12866 = vld [vmem:[%s15] sm:$0x1]
    %v12868 = vlaneseq
    %v12869 = vshrl.u32 %v12868, 7
    %v12870 = vsub.s32 0, %v12869
    %v12871 = vrot.slane %v12866, %v12870
    %v12873 = vadd.f32 %v12865, %v12871
    %v12874 = vmax.f32 %v12873, 0.0
    %v12875 = vld [vmem:[%s16] sm:$0xff]
    %v12876 = vld [vmem:[%s16 + $0x8] sm:$0xff]
    %v12877 = vld [vmem:[%s16 + $0x10] sm:$0xff]
    %v12878 = vld [vmem:[%s16 + $0x18] sm:$0xff]
    %v12879 = vld [vmem:[%s16 + $0x20] sm:$0xff]
    %v12880 = vld [vmem:[%s16 + $0x28] sm:$0xff]
    %v12881 = vld [vmem:[%s16 + $0x30] sm:$0xff]
    %v12882 = vld [vmem:[%s16 + $0x38] sm:$0xff]
    %v12883 = vld [vmem:[%s16 + $0x40] sm:$0xff]
    %v12884 = vld [vmem:[%s16 + $0x48] sm:$0xff]
    %v12885 = vld [vmem:[%s16 + $0x50] sm:$0xf]
    %v12886 = vld [vmem:[%s17] sm:$0x1]
    %v12888 = vlaneseq
    %v12889 = vshrl.u32 %v12888, 7
    %v12890 = vsub.s32 0, %v12889
    %v12891 = vrot.slane %v12886, %v12890
    %v12894 = vsel %vm11940, %v12874, 0
    %vm12896 = vcmask 1043456
    %v12898 = vsel %vm12896, %v12885, 0
    %12900 = vmatprep.subr.mxu0 0.0
    %12901 = vmatpush1.msra.mxu0 %v12875
    %12902 = vmatprep.subr.mxu0 0.0
    %12903 = vmatpush1.msra.mxu0 %v12876
    %12904 = vmatprep.subr.mxu0 0.0
    %12905 = vmatpush1.msra.mxu0 %v12877
    %12906 = vmatprep.subr.mxu0 0.0
    %12907 = vmatpush1.msra.mxu0 %v12878
    %12908 = vmatprep.subr.mxu0 0.0
    %12909 = vmatpush1.msra.mxu0 %v12879
    %12910 = vmatprep.subr.mxu0 0.0
    %12911 = vmatpush1.msra.mxu0 %v12880
    %12912 = vmatprep.subr.mxu0 0.0
    %12913 = vmatpush1.msra.mxu0 %v12881
    %12914 = vmatprep.subr.mxu0 0.0
    %12915 = vmatpush1.msra.mxu0 %v12882
    %12916 = vmatprep.subr.mxu0 0.0
    %12917 = vmatpush1.msra.mxu0 %v12883
    %12918 = vmatprep.subr.mxu0 0.0
    %12919 = vmatpush1.msra.mxu0 %v12884
    %12920 = vmatprep.subr.mxu0 0.0
    %12921 = vmatpush1.msra.mxu0 %v12898
    %12922 = vmatprep.subr.mxu0 0.0
    %12923 = vmatpush1.msra.mxu0 0.0
    %12924 = vmatprep.subr.mxu0 0.0
    %12925 = vmatpush1.msra.mxu0 0.0
    %12926 = vmatprep.subr.mxu0 0.0
    %12927 = vmatpush1.msra.mxu0 0.0
    %12928 = vmatprep.subr.mxu0 0.0
    %12929 = vmatpush1.msra.mxu0 0.0
    %12930 = vmatprep.subr.mxu0 0.0
    %12931 = vmatpush1.msra.mxu0 0.0
    %12932 = vmatprep.subr.mxu0 0.0
    %12933 = vmatpush1.msra.mxu0 0.0
    %12934 = vmatprep.subr.mxu0 0.0
    %12935 = vmatpush1.msra.mxu0 0.0
    %12936 = vmatprep.subr.mxu0 0.0
    %12937 = vmatpush1.msra.mxu0 0.0
    %12938 = vmatprep.subr.mxu0 0.0
    %12939 = vmatpush1.msra.mxu0 0.0
    %12940 = vmatprep.subr.mxu0 0.0
    %12941 = vmatpush1.msra.mxu0 0.0
    %12942 = vmatprep.subr.mxu0 0.0
    %12943 = vmatpush1.msra.mxu0 0.0
    %12944 = vmatprep.subr.mxu0 0.0
    %12945 = vmatpush1.msra.mxu0 0.0
    %12946 = vmatprep.subr.mxu0 0.0
    %12947 = vmatpush1.msra.mxu0 0.0
    %12948 = vmatprep.subr.mxu0 0.0
    %12949 = vmatpush1.msra.mxu0 0.0
    %12950 = vmatprep.subr.mxu0 0.0
    %12951 = vmatpush1.msra.mxu0 0.0
    %12952 = vmatprep.subr.mxu0 0.0
    %12953 = vmatpush1.msra.mxu0 0.0
    %12954 = vmatprep.subr.mxu0 0.0
    %12955 = vmatpush1.msra.mxu0 0.0
    %12956 = vmatprep.subr.mxu0 0.0
    %12957 = vmatpush1.msra.mxu0 0.0
    %12958 = vmatprep.subr.mxu0 0.0
    %12959 = vmatpush1.msra.mxu0 0.0
    %12960 = vmatprep.subr.mxu0 0.0
    %12961 = vmatpush1.msra.mxu0 0.0
    %12962 = vmatprep.subr.mxu0 0.0
    %12963 = vmatpush1.msra.mxu0 0.0
    %12964 = vmatprep.mubr.f32.mxu0 0.0
    %12965 = vmatmul.mubr.f32.gmra.mrb[0].mxu0 %v12894
    %v12966 = vpop.f32.mrb[0].mxu0
    %v12967 = vadd.f32 %v12891, %v12966
    %v12968 = vpop.f32.mrb[0].mxu0
    %12969 = vdwg.mxu0
    %vm12970 = vcmask 74752
    %12971 = vst.msk [vmem:[#allocation2] sm:$0x3] %vm12970, %v12967
    // Predicated region
    $region74: #{bn_lenet_forward.1} parent=1 // pred_check
      _
    $region75: #{bn_lenet_forward.1} parent=1 // pred_check_branch
      %12973 = sbr.rel (0) target = $region77
    $region76: #{bn_lenet_forward.1} parent=1 // pred_region
      %s12975 = ssub.s32 32, 32
      %12976 = vsyncadd [#allocation3], %s12975
      %s12978 = sshll.u32 [#allocation2], 4
      %s12979 = int_to_ptr.vmem [resolvable:$true] %s12978
      %12981 = dma.vmem_to_hbm [thread:$0]  %s12979, 32, %s18, [#allocation3]
    $region77: #{bn_lenet_forward.1} parent=1 // pred_fallthru
      _
    // Predicated region
    $region78: #{bn_lenet_forward.1} parent=1 // pred_check
      _
    $region79: #{bn_lenet_forward.1} parent=1 // pred_check_branch
      %12983 = sbr.rel (0) target = $region81
    $region80: #{bn_lenet_forward.1} parent=1 // pred_region
      %12984 = dma.done [#allocation3], 32
    $region81: #{bn_lenet_forward.1} parent=1 // pred_fallthru
      _
    %12985 = vsyncpa [#allocation3], 1

</llo_original>
